<compile_context>
chip_gen: v7x
topology: tpu7x:2x2x1
jax: 0.10.0
libtpu: 0.0.40
codegen_flags: <defaults>
</compile_context>

<pallas_src>
import functools
import math

import numpy as np
import jax
import jax.numpy as jnp
from jax.experimental import pallas as pl
from jax.experimental.pallas import tpu as pltpu


def _round_up(x, m):
    return (x + m - 1) // m * m


def _pick_t_block(T, max_blk=16):
    """Largest divisor of T not exceeding max_blk (grid stays exact, no padding)."""
    for cand in range(min(max_blk, T), 0, -1):
        if T % cand == 0:
            return cand
    return 1


# ----------------------------------------------------------------------------
# Pallas kernel: T_BLK consecutive timesteps of
#   dense projection + dendritic leaky integration + branch sum
#   + rhythm-gated membrane update + spike generation
# ----------------------------------------------------------------------------
def _rhy_denri_seq_kernel(x_ref, w_ref, pB_ref, pO_ref, mask_ref,
                          d0_ref, mem0_ref, spike0_ref,
                          mem_out_ref, spike_out_ref,
                          d_fin_ref, mem_fin_ref, spike_fin_ref,
                          *, out_p, branch, t_blk):
    t = pl.program_id(1)          # time-block axis (inner, "arbitrary")

    # initialize carried state at the start of each batch-tile's time sweep;
    # the three *_fin output blocks are VMEM-resident across t and double as
    # the recurrent carries.
    @pl.when(t == 0)
    def _init():
        d_fin_ref[...] = d0_ref[...]
        mem_fin_ref[...] = mem0_ref[...]
        spike_fin_ref[...] = spike0_ref[...]

    # constants hoisted out of the unrolled time loop (JAX does not CSE these)
    bias = pB_ref[0:1, :]
    beta = pB_ref[1:2, :]
    one_m_beta = pB_ref[2:3, :]
    alpha = pO_ref[0:1, :]
    one_m_alpha = pO_ref[1:2, :]
    vth = pO_ref[2:3, :]

    d = d_fin_ref[...]            # (tile_b, branch*out_p) f32
    mem = mem_fin_ref[...]        # (tile_b, out_p)        f32
    spk = spike_fin_ref[...]      # (tile_b, out_p)        f32

    for s in range(t_blk):        # static unroll over the time block
        # dense(k_input) on the MXU: int8 spikes -> bf16, bf16 W -> f32 acc
        x_s = x_ref[s].astype(jnp.bfloat16)                 # (tile_b, dp_pad)
        dense_out = jnp.dot(x_s, w_ref[...],
                            preferred_element_type=jnp.float32) + bias

        # d = beta*d + (1-beta)*dense   (flat branch-major: col = j*out_p + o)
        d = beta * d + one_m_beta * dense_out

        # l_input = d.sum over branches: 128-lane-aligned contiguous slices
        l_input = d[:, 0:out_p]
        for j in range(1, branch):
            l_input = l_input + d[:, j * out_p:(j + 1) * out_p]

        # mem_update_pra_rhythm (rhythm-gated LIF update, R_m = 1)
        # TODO(synk): mem_update_pra_rhythm is not defined in the provided
        #             source; reproduced from the standard DH-SNN formulation.
        gate = mask_ref[s:s + 1, :] > 0.0                    # (1, out_p) bool
        mem_cand = mem * alpha + one_m_alpha * l_input - vth * spk
        mem = jnp.where(gate, mem_cand, mem)
        spk = jnp.where(jnp.logical_and(mem > vth, gate), 1.0, 0.0)

        # lane-dense bf16 trace stores (spike is {0,1}: bf16-exact)
        mem_out_ref[s] = mem.astype(jnp.bfloat16)
        spike_out_ref[s] = spk.astype(jnp.bfloat16)

    # write back the f32 carries (resident; final value persists across t)
    d_fin_ref[...] = d
    mem_fin_ref[...] = mem
    spike_fin_ref[...] = spk


def _build_runner(out_p, branch, dp_pad):
    bo = branch * out_p

    @jax.jit
    def run(x_seq, w_k, pB, pO, mask_seq, d0, mem0, spike0):
        T, b_pad, _ = x_seq.shape
        t_blk = _pick_t_block(T)
        n_t = T // t_blk
        if b_pad <= 128:
            tile_b = b_pad                # full batch in one tile
        elif b_pad % 256 == 0:
            tile_b = 256                  # fills the 256-wide MXU on v6e/v7x
        else:
            tile_b = 128
        n_b = b_pad // tile_b

        mask_blk = mask_seq.reshape(n_t, t_blk, out_p)

        kernel = functools.partial(_rhy_denri_seq_kernel,
                                   out_p=out_p, branch=branch, t_blk=t_blk)

        grid_spec = pltpu.PrefetchScalarGridSpec(
            num_scalar_prefetch=0,
            grid=(n_b, n_t),
            in_specs=[
                # streamed per time block (int8 spikes)
                pl.BlockSpec((t_blk, tile_b, dp_pad), lambda b, t: (t, b, 0)),
                # VMEM-resident across the whole sweep
                pl.BlockSpec((dp_pad, bo), lambda b, t: (0, 0)),        # W  bf16
                pl.BlockSpec((3, bo), lambda b, t: (0, 0)),             # bias/beta/1-beta
                pl.BlockSpec((3, out_p), lambda b, t: (0, 0)),          # alpha/1-alpha/vth
                # rhythm mask for this time block
                pl.BlockSpec((None, t_blk, out_p), lambda b, t: (t, 0, 0)),
                # initial state (one DMA per batch tile)
                pl.BlockSpec((tile_b, bo), lambda b, t: (b, 0)),        # d0
                pl.BlockSpec((tile_b, out_p), lambda b, t: (b, 0)),     # mem0
                pl.BlockSpec((tile_b, out_p), lambda b, t: (b, 0)),     # spike0
            ],
            out_specs=[
                pl.BlockSpec((t_blk, tile_b, out_p), lambda b, t: (t, b, 0)),  # mem trace (bf16)
                pl.BlockSpec((t_blk, tile_b, out_p), lambda b, t: (t, b, 0)),  # spike trace (bf16)
                pl.BlockSpec((tile_b, bo), lambda b, t: (b, 0)),               # d final  (f32)
                pl.BlockSpec((tile_b, out_p), lambda b, t: (b, 0)),            # mem final (f32)
                pl.BlockSpec((tile_b, out_p), lambda b, t: (b, 0)),            # spike final (f32)
            ],
        )
        out_shape = (
            jax.ShapeDtypeStruct((T, b_pad, out_p), jnp.bfloat16),
            jax.ShapeDtypeStruct((T, b_pad, out_p), jnp.bfloat16),
            jax.ShapeDtypeStruct((b_pad, bo), jnp.float32),
            jax.ShapeDtypeStruct((b_pad, out_p), jnp.float32),
            jax.ShapeDtypeStruct((b_pad, out_p), jnp.float32),
        )
        return pl.pallas_call(
            kernel,
            grid_spec=grid_spec,
            out_shape=out_shape,
            compiler_params=pltpu.CompilerParams(
                dimension_semantics=("parallel", "arbitrary"),
                vmem_limit_bytes=48 * 1024 * 1024),
        )(x_seq, w_k, pB, pO, mask_blk, d0, mem0, spike0)

    return run


# ----------------------------------------------------------------------------
# Module-equivalent wrapper (parameter construction = plain JAX / numpy glue)
# ----------------------------------------------------------------------------
class LearnRhySpikeDenseDenri:
    def __init__(self, input_dim, output_dim, *, low_m=0., high_m=4.,
                 low_n=0., high_n=4., vth=0.5, dt=1, branch=4,
                 cycle_min=3, cycle_max=10, duty_cycle_min=0.02,
                 duty_cycle_max=0.5, phase_max=0.5, mask_share=1, T=1000,
                 seed=0):
        self.input_dim = input_dim
        self.output_dim = output_dim
        self.branch = branch
        self.vth = float(vth)
        self.dt = dt
        self.mask_share = mask_share
        self.pad = (input_dim // branch * branch + branch - input_dim) % branch
        dp = input_dim + self.pad
        self.dp = dp
        self.dp_pad = _round_up(dp, 128)
        self.out_p = _round_up(output_dim, 128)
        out_p = self.out_p
        self.T_total = T

        key = jax.random.PRNGKey(seed)
        kw, kb, km, kn = jax.random.split(key, 4)

        # nn.Linear(dp, output_dim*branch) default init: U(-1/sqrt(dp), 1/sqrt(dp))
        bound = 1.0 / math.sqrt(dp)
        w = jax.random.uniform(kw, (output_dim * branch, dp), jnp.float32,
                               -bound, bound)
        b = jax.random.uniform(kb, (output_dim * branch,), jnp.float32,
                               -bound, bound)
        tau_m = jax.random.uniform(km, (output_dim,), jnp.float32, low_m, high_m)
        tau_n = jax.random.uniform(kn, (output_dim, branch), jnp.float32,
                                   low_n, high_n)

        # create_mask(): branch-wise disjoint connection mask (sparsity = 1/branch)
        rng = np.random.RandomState(seed)
        conn = np.zeros((output_dim * branch, dp), np.float32)
        for i in range(output_dim // mask_share):
            seq = rng.permutation(dp)
            for j in range(branch):
                lo, hi = j * dp // branch, (j + 1) * dp // branch
                for k in range(mask_share):
                    conn[(i * mask_share + k) * branch + j, seq[lo:hi]] = 1.0
        w = w * jnp.asarray(conn)                      # apply_mask()

        # ---- kernel-layout parameters (branch-major, lane-padded, bf16 W) ----
        # PyTorch dense column o*branch+j  ->  kernel column j*out_p+o
        w_bm = w.reshape(output_dim, branch, dp).transpose(1, 0, 2)   # (branch,O,dp)
        w_bm = jnp.pad(w_bm, ((0, 0), (0, out_p - output_dim),
                              (0, self.dp_pad - dp)))
        self.w_k = w_bm.reshape(branch * out_p, self.dp_pad).T.astype(jnp.bfloat16)

        b_bm = jnp.pad(b.reshape(output_dim, branch).T,
                       ((0, 0), (0, out_p - output_dim)))
        b_k = b_bm.reshape(branch * out_p)
        beta = jnp.pad(jax.nn.sigmoid(tau_n).T,
                       ((0, 0), (0, out_p - output_dim)))
        beta_k = beta.reshape(branch * out_p)
        self.pB = jnp.stack([b_k, beta_k, 1.0 - beta_k]).astype(jnp.float32)

        alpha = jnp.pad(jax.nn.sigmoid(tau_m), (0, out_p - output_dim))
        vth_row = jnp.full((out_p,), self.vth, jnp.float32)
        self.pO = jnp.stack([alpha, 1.0 - alpha, vth_row]).astype(jnp.float32)

        # TODO(synk): LearnableMask is not defined in the provided source; a
        # deterministic periodic rhythm mask is built with create_general_mask
        # and the __init__ rhythm hyper-parameters.
        masksteps = self._create_general_mask(output_dim, cycle_min, cycle_max,
                                              duty_cycle_min, duty_cycle_max,
                                              phase_max, T)            # (O, T)
        self._masksteps_np = masksteps
        mpad = np.zeros((T, out_p), np.float32)
        mpad[:, :output_dim] = masksteps.T
        self.mask_seq_all = jnp.asarray(mpad)                          # (T, out_p)

        # reference (PyTorch-layout) copies for numerical cross-check
        self._w_ref = np.asarray(w.astype(jnp.bfloat16).astype(jnp.float32))
        self._b_ref = np.asarray(b)
        self._tau_m_np = np.asarray(tau_m)
        self._tau_n_np = np.asarray(tau_n)

        self._run = _build_runner(out_p, branch, self.dp_pad)
        self.batch = self.b_pad = None
        self.mem_pad = self.spike_pad = self.d_pad = None
        self.mem0_np = self.spike0_np = None

    @staticmethod
    def _create_general_mask(dim, c_min, c_max, min_dc, max_dc,
                             phase_shift_max, T):
        mask = []
        dc_steps = np.linspace(min_dc, max_dc, dim)
        cycles = np.linspace(c_min, c_max, dim)
        phase_shifts = np.linspace(0, int(phase_shift_max * c_max), dim)
        for cycle, dc, ps in zip(cycles, dc_steps, phase_shifts):
            cycle = int(np.ceil(cycle))
            on_length = int(np.ceil(dc * cycle))
            off_length = cycle - on_length
            pattern = [1] * on_length + [0] * off_length
            ps = int(np.round(ps))
            pattern = pattern[-ps:] + pattern[:-ps]
            full_pattern = pattern * (T // cycle) + pattern[:T % cycle]
            mask.append(full_pattern)
        return np.asarray(mask, np.float32)

    def set_neuron_state(self, batch_size, seed=1):
        self.batch = batch_size
        # batch padding: multiple of 32 (int8 sublane tile) when small, else 128
        b_pad = (_round_up(batch_size, 32) if batch_size <= 128
                 else _round_up(batch_size, 128))
        self.b_pad = b_pad
        key = jax.random.PRNGKey(seed)
        k1, k2, k3 = jax.random.split(key, 3)
        mem = jax.random.uniform(k1, (batch_size, self.output_dim), jnp.float32)
        spike = jax.random.uniform(k2, (batch_size, self.output_dim), jnp.float32)
        self.mem0_np = np.asarray(mem)
        self.spike0_np = np.asarray(spike)
        zpad = jnp.zeros((b_pad, self.out_p), jnp.float32)
        self.mem_pad = zpad.at[:batch_size, :self.output_dim].set(mem)
        self.spike_pad = zpad.at[:batch_size, :self.output_dim].set(spike)
        # branch > 1 -> zeros; branch == 1 -> rand (matches PyTorch). Kernel
        # keeps d flat, branch-major.
        dz = jnp.zeros((b_pad, self.branch * self.out_p), jnp.float32)
        if self.branch == 1:
            d0 = jax.random.uniform(k3, (batch_size, self.output_dim), jnp.float32)
            dz = dz.at[:batch_size, :self.output_dim].set(d0)
        self.d_pad = dz

    def forward_sequence(self, input_spike_seq, t_start=0):
        """Run T consecutive timesteps in a single pallas_call.

        Returns bf16 mem/spike traces; the recurrent carry kept internally in
        f32 so chained calls do not drift.
        """
        T, batch, _ = input_spike_seq.shape
        assert batch == self.batch and t_start + T <= self.T_total
        # int8 spike stream, no f32 intermediate
        xp = jnp.pad(jnp.asarray(input_spike_seq).astype(jnp.int8),
                     ((0, 0), (0, self.b_pad - batch),
                      (0, self.dp_pad - self.input_dim)))
        mask_seq = self.mask_seq_all[t_start:t_start + T]

        mem_seq, spike_seq, d_fin, mem_fin, spike_fin = self._run(
            xp, self.w_k, self.pB, self.pO, mask_seq,
            self.d_pad, self.mem_pad, self.spike_pad)

        self.mem_pad = mem_fin        # f32 carries for the next call
        self.spike_pad = spike_fin
        self.d_pad = d_fin
        return (mem_seq[:, :batch, :self.output_dim],
                spike_seq[:, :batch, :self.output_dim])

    def forward(self, input_spike, time):
        """Module-equivalent single-step API (stateful)."""
        mem_seq, spike_seq = self.forward_sequence(input_spike[None],
                                                   t_start=time)
        return mem_seq[0], spike_seq[0]


# ----------------------------------------------------------------------------
# Pure-numpy reference in the original PyTorch layout (same bf16-rounded W)
# ----------------------------------------------------------------------------
def _np_sigmoid(x):
    return 1.0 / (1.0 + np.exp(-x))


def _reference_forward_seq(x_seq, w, b, tau_n, tau_m, masksteps,
                           mem, spike, d, vth, pad, t_start=0):
    T, B, _ = x_seq.shape
    O, branch = tau_n.shape
    beta = _np_sigmoid(tau_n)[None]          # (1, O, branch)
    alpha = _np_sigmoid(tau_m)[None]         # (1, O)
    mem = mem.astype(np.float32).copy()
    spike = spike.astype(np.float32).copy()
    d = d.astype(np.float32).copy()
    mems, spikes = [], []
    for t in range(T):
        k = np.concatenate([x_seq[t].astype(np.float32),
                            np.zeros((B, pad), np.float32)], axis=1)
        dense = k @ w.T + b                  # (B, O*branch)
        d = beta * d + (1.0 - beta) * dense.reshape(B, O, branch)
        l = d.sum(-1)
        gate = masksteps[:, t_start + t][None]
        mem_cand = mem * alpha + (1.0 - alpha) * l - vth * spike
        mem = gate * mem_cand + (1.0 - gate) * mem
        spike = (mem - vth > 0).astype(np.float32) * gate
        mems.append(mem.copy())
        spikes.append(spike.copy())
    return np.stack(mems), np.stack(spikes)


# ----------------------------------------------------------------------------
if __name__ == "__main__":
    input_dim, output_dim, branch, batch = 34, 32, 4, 2   # pad -> 2 (dp = 36)
    T_steps = 16
    layer = LearnRhySpikeDenseDenri(input_dim, output_dim, branch=branch,
                                    T=64, seed=0)
    layer.set_neuron_state(batch, seed=1)

    # deterministic binary input spike train, shape (T, batch, input_dim)
    key = jax.random.PRNGKey(0)
    x_seq = (jax.random.uniform(key, (T_steps, batch, input_dim)) > 0.5
             ).astype(jnp.float32)

    # capture the initial state before the kernel mutates it (for the reference)
    mem0 = layer.mem0_np.copy()
    spike0 = layer.spike0_np.copy()
    d0 = np.zeros((batch, output_dim, branch), np.float32)

    mem_seq, spike_seq = layer.forward_sequence(x_seq, t_start=0)
    jax.block_until_ready((mem_seq, spike_seq))
    assert mem_seq.shape == (T_steps, batch, output_dim)
    assert spike_seq.shape == (T_steps, batch, output_dim)

    ref_mem, ref_spk = _reference_forward_seq(
        np.asarray(x_seq), layer._w_ref, layer._b_ref, layer._tau_n_np,
        layer._tau_m_np, layer._masksteps_np, mem0, spike0, d0,
        layer.vth, layer.pad, t_start=0)

    mem_np = np.asarray(mem_seq.astype(jnp.float32))
    spk_np = np.asarray(spike_seq.astype(jnp.float32))
    # mem trace is stored in bf16 -> tolerance covers bf16 rounding (~2^-9 rel)
    np.testing.assert_allclose(mem_np, ref_mem, atol=5e-3, rtol=5e-3)
    np.testing.assert_allclose(spk_np, ref_spk, atol=1e-3, rtol=1e-3)

    # exercise the stateful single-step API (module-equivalent forward(x, t))
    mem, spike = layer.forward(x_seq[0], time=T_steps)
    jax.block_until_ready((mem, spike))
    assert mem.shape == (batch, output_dim) and spike.shape == (batch, output_dim)

    print("KERNEL_OK")
</pallas_src>

<mosaic_0001>
module attributes {stable_mosaic.version = 11 : i64} {
  func.func @_rhy_denri_seq_kernel(%arg0: i32, %arg1: i32, %arg2: memref<16x32x128xi8, #tpu.memory_space<vmem>>, %arg3: memref<128x512xbf16, #tpu.memory_space<vmem>>, %arg4: memref<3x512xf32, #tpu.memory_space<vmem>>, %arg5: memref<3x128xf32, #tpu.memory_space<vmem>>, %arg6: memref<1x16x128xf32, #tpu.memory_space<vmem>>, %arg7: memref<32x512xf32, #tpu.memory_space<vmem>>, %arg8: memref<32x128xf32, #tpu.memory_space<vmem>>, %arg9: memref<32x128xf32, #tpu.memory_space<vmem>>, %arg10: memref<16x32x128xbf16, #tpu.memory_space<vmem>>, %arg11: memref<16x32x128xbf16, #tpu.memory_space<vmem>>, %arg12: memref<32x512xf32, #tpu.memory_space<vmem>>, %arg13: memref<32x128xf32, #tpu.memory_space<vmem>>, %arg14: memref<32x128xf32, #tpu.memory_space<vmem>>) attributes {dimension_semantics = [#tpu.dimension_semantics<parallel>, #tpu.dimension_semantics<arbitrary>], iteration_bounds = array<i64: 1, 1>, scalar_prefetch = 0 : i64, scratch_operands = 0 : i64, tpu.core_type = #tpu.core_type<tc>, window_params = [{transform_indices = @transform_0, window_bounds = array<i64: 16, 32, 128>}, {pipeline_mode = #tpu.pipeline_mode<synchronous>, transform_indices = @transform_1, window_bounds = array<i64: 128, 512>}, {pipeline_mode = #tpu.pipeline_mode<synchronous>, transform_indices = @transform_2, window_bounds = array<i64: 3, 512>}, {pipeline_mode = #tpu.pipeline_mode<synchronous>, transform_indices = @transform_3, window_bounds = array<i64: 3, 128>}, {transform_indices = @transform_4, window_bounds = array<i64: 1, 16, 128>}, {transform_indices = @transform_5, window_bounds = array<i64: 32, 512>}, {transform_indices = @transform_6, window_bounds = array<i64: 32, 128>}, {transform_indices = @transform_7, window_bounds = array<i64: 32, 128>}, {transform_indices = @transform_8, window_bounds = array<i64: 16, 32, 128>}, {transform_indices = @transform_9, window_bounds = array<i64: 16, 32, 128>}, {transform_indices = @transform_10, window_bounds = array<i64: 32, 512>}, {transform_indices = @transform_11, window_bounds = array<i64: 32, 128>}, {transform_indices = @transform_12, window_bounds = array<i64: 32, 128>}]} {
    %c0_i32 = arith.constant 0 : i32
    %0 = arith.cmpi eq, %arg1, %c0_i32 : i32
    %1 = arith.extui %0 : i1 to i32
    %c0_i32_0 = arith.constant 0 : i32
    %2 = arith.cmpi ne, %1, %c0_i32_0 : i32
    scf.if %2 {
      %c0_296 = arith.constant 0 : index
      %c0_297 = arith.constant 0 : index
      %799 = vector.load %arg7[%c0_296, %c0_297] : memref<32x512xf32, #tpu.memory_space<vmem>>, vector<32x512xf32>
      %c0_298 = arith.constant 0 : index
      %c0_299 = arith.constant 0 : index
      %800 = vector.load %arg12[%c0_298, %c0_299] : memref<32x512xf32, #tpu.memory_space<vmem>>, vector<32x512xf32>
      tpu.vector_store %arg12[%c0_298, %c0_299], %799 {strides = array<i32>} : memref<32x512xf32, #tpu.memory_space<vmem>>, vector<32x512xf32>,
      %c0_300 = arith.constant 0 : index
      %c0_301 = arith.constant 0 : index
      %801 = vector.load %arg8[%c0_300, %c0_301] : memref<32x128xf32, #tpu.memory_space<vmem>>, vector<32x128xf32>
      %c0_302 = arith.constant 0 : index
      %c0_303 = arith.constant 0 : index
      %802 = vector.load %arg13[%c0_302, %c0_303] : memref<32x128xf32, #tpu.memory_space<vmem>>, vector<32x128xf32>
      tpu.vector_store %arg13[%c0_302, %c0_303], %801 {strides = array<i32>} : memref<32x128xf32, #tpu.memory_space<vmem>>, vector<32x128xf32>,
      %c0_304 = arith.constant 0 : index
      %c0_305 = arith.constant 0 : index
      %803 = vector.load %arg9[%c0_304, %c0_305] : memref<32x128xf32, #tpu.memory_space<vmem>>, vector<32x128xf32>
      %c0_306 = arith.constant 0 : index
      %c0_307 = arith.constant 0 : index
      %804 = vector.load %arg14[%c0_306, %c0_307] : memref<32x128xf32, #tpu.memory_space<vmem>>, vector<32x128xf32>
      tpu.vector_store %arg14[%c0_306, %c0_307], %803 {strides = array<i32>} : memref<32x128xf32, #tpu.memory_space<vmem>>, vector<32x128xf32>,
    } else {
    }
    %c0 = arith.constant 0 : index
    %c0_1 = arith.constant 0 : index
    %3 = vector.load %arg4[%c0, %c0_1] : memref<3x512xf32, #tpu.memory_space<vmem>>, vector<1x512xf32>
    %c1 = arith.constant 1 : index
    %c0_2 = arith.constant 0 : index
    %4 = vector.load %arg4[%c1, %c0_2] : memref<3x512xf32, #tpu.memory_space<vmem>>, vector<1x512xf32>
    %c2 = arith.constant 2 : index
    %c0_3 = arith.constant 0 : index
    %5 = vector.load %arg4[%c2, %c0_3] : memref<3x512xf32, #tpu.memory_space<vmem>>, vector<1x512xf32>
    %c0_4 = arith.constant 0 : index
    %c0_5 = arith.constant 0 : index
    %6 = vector.load %arg5[%c0_4, %c0_5] : memref<3x128xf32, #tpu.memory_space<vmem>>, vector<1x128xf32>
    %c1_6 = arith.constant 1 : index
    %c0_7 = arith.constant 0 : index
    %7 = vector.load %arg5[%c1_6, %c0_7] : memref<3x128xf32, #tpu.memory_space<vmem>>, vector<1x128xf32>
    %c2_8 = arith.constant 2 : index
    %c0_9 = arith.constant 0 : index
    %8 = vector.load %arg5[%c2_8, %c0_9] : memref<3x128xf32, #tpu.memory_space<vmem>>, vector<1x128xf32>
    %c0_10 = arith.constant 0 : index
    %c0_11 = arith.constant 0 : index
    %9 = vector.load %arg12[%c0_10, %c0_11] : memref<32x512xf32, #tpu.memory_space<vmem>>, vector<32x512xf32>
    %c0_12 = arith.constant 0 : index
    %c0_13 = arith.constant 0 : index
    %10 = vector.load %arg13[%c0_12, %c0_13] : memref<32x128xf32, #tpu.memory_space<vmem>>, vector<32x128xf32>
    %c0_14 = arith.constant 0 : index
    %c0_15 = arith.constant 0 : index
    %11 = vector.load %arg14[%c0_14, %c0_15] : memref<32x128xf32, #tpu.memory_space<vmem>>, vector<32x128xf32>
    %c0_16 = arith.constant 0 : index
    %c0_17 = arith.constant 0 : index
    %c0_18 = arith.constant 0 : index
    %12 = vector.load %arg2[%c0_16, %c0_17, %c0_18] : memref<16x32x128xi8, #tpu.memory_space<vmem>>, vector<1x32x128xi8>
    %13 = vector.shape_cast %12 : vector<1x32x128xi8> to vector<32x128xi8>
    %14 = arith.sitofp %13 : vector<32x128xi8> to vector<32x128xbf16>
    %c0_19 = arith.constant 0 : index
    %c0_20 = arith.constant 0 : index
    %15 = vector.load %arg3[%c0_19, %c0_20] : memref<128x512xbf16, #tpu.memory_space<vmem>>, vector<128x512xbf16>
    %cst = arith.constant dense<0.000000e+00> : vector<32x512xf32>
    %16 = tpu.matmul %14, %15, %cst {dimension_numbers = #tpu.dot_dimension_numbers<[1], [0], [0], [1], [0, 0, 1, 1], [], []>} : vector<32x128xbf16>, vector<128x512xbf16>, vector<32x512xf32> -> vector<32x512xf32>
    %17 = vector.broadcast %3 : vector<1x512xf32> to vector<32x512xf32>
    %18 = arith.addf %16, %17 : vector<32x512xf32>
    %19 = vector.broadcast %4 : vector<1x512xf32> to vector<32x512xf32>
    %20 = arith.mulf %19, %9 : vector<32x512xf32>
    %21 = vector.broadcast %5 : vector<1x512xf32> to vector<32x512xf32>
    %22 = arith.mulf %21, %18 : vector<32x512xf32>
    %23 = arith.addf %20, %22 : vector<32x512xf32>
    %24 = vector.extract_strided_slice %23 {offsets = [0, 0], sizes = [32, 128], strides = [1, 1]} : vector<32x512xf32> to vector<32x128xf32>
    %25 = vector.extract_strided_slice %23 {offsets = [0, 128], sizes = [32, 128], strides = [1, 1]} : vector<32x512xf32> to vector<32x128xf32>
    %26 = arith.addf %24, %25 : vector<32x128xf32>
    %27 = vector.extract_strided_slice %23 {offsets = [0, 256], sizes = [32, 128], strides = [1, 1]} : vector<32x512xf32> to vector<32x128xf32>
    %28 = arith.addf %26, %27 : vector<32x128xf32>
    %29 = vector.extract_strided_slice %23 {offsets = [0, 384], sizes = [32, 128], strides = [1, 1]} : vector<32x512xf32> to vector<32x128xf32>
    %30 = arith.addf %28, %29 : vector<32x128xf32>
    %c0_21 = arith.constant 0 : index
    %c0_22 = arith.constant 0 : index
    %c0_23 = arith.constant 0 : index
    %31 = vector.load %arg6[%c0_21, %c0_22, %c0_23] : memref<1x16x128xf32, #tpu.memory_space<vmem>>, vector<1x1x128xf32>
    %32 = vector.shape_cast %31 : vector<1x1x128xf32> to vector<1x128xf32>
    %cst_24 = arith.constant 0.000000e+00 : f32
    %33 = vector.broadcast %cst_24 : f32 to vector<1x128xf32>
    %34 = arith.cmpf ogt, %32, %33 : vector<1x128xf32>
    %35 = vector.broadcast %6 : vector<1x128xf32> to vector<32x128xf32>
    %36 = arith.mulf %10, %35 : vector<32x128xf32>
    %37 = vector.broadcast %7 : vector<1x128xf32> to vector<32x128xf32>
    %38 = arith.mulf %37, %30 : vector<32x128xf32>
    %39 = arith.addf %36, %38 : vector<32x128xf32>
    %40 = vector.broadcast %8 : vector<1x128xf32> to vector<32x128xf32>
    %41 = arith.mulf %40, %11 : vector<32x128xf32>
    %42 = arith.subf %39, %41 : vector<32x128xf32>
    %43 = vector.shape_cast %34 : vector<1x128xi1> to vector<1x128xi1>
    %44 = vector.broadcast %43 : vector<1x128xi1> to vector<32x128xi1>
    %45 = arith.select %44, %42, %10 : vector<32x128xi1>, vector<32x128xf32>
    %46 = vector.broadcast %8 : vector<1x128xf32> to vector<32x128xf32>
    %47 = arith.cmpf ogt, %45, %46 : vector<32x128xf32>
    %48 = vector.broadcast %34 : vector<1x128xi1> to vector<32x128xi1>
    %49 = arith.andi %47, %48 : vector<32x128xi1>
    %cst_25 = arith.constant 1.000000e+00 : f32
    %cst_26 = arith.constant 0.000000e+00 : f32
    %50 = vector.broadcast %cst_25 : f32 to vector<32x128xf32>
    %51 = vector.broadcast %cst_26 : f32 to vector<32x128xf32>
    %52 = arith.select %49, %50, %51 : vector<32x128xi1>, vector<32x128xf32>
    %53 = arith.truncf %45 : vector<32x128xf32> to vector<32x128xbf16>
    %c0_27 = arith.constant 0 : index
    %c0_28 = arith.constant 0 : index
    %c0_29 = arith.constant 0 : index
    %54 = vector.load %arg10[%c0_27, %c0_28, %c0_29] : memref<16x32x128xbf16, #tpu.memory_space<vmem>>, vector<1x32x128xbf16>
    %55 = vector.shape_cast %54 : vector<1x32x128xbf16> to vector<32x128xbf16>
    %56 = vector.shape_cast %53 : vector<32x128xbf16> to vector<1x32x128xbf16>
    tpu.vector_store %arg10[%c0_27, %c0_28, %c0_29], %56 {strides = array<i32>} : memref<16x32x128xbf16, #tpu.memory_space<vmem>>, vector<1x32x128xbf16>,
    %57 = arith.truncf %52 : vector<32x128xf32> to vector<32x128xbf16>
    %c0_30 = arith.constant 0 : index
    %c0_31 = arith.constant 0 : index
    %c0_32 = arith.constant 0 : index
    %58 = vector.load %arg11[%c0_30, %c0_31, %c0_32] : memref<16x32x128xbf16, #tpu.memory_space<vmem>>, vector<1x32x128xbf16>
    %59 = vector.shape_cast %58 : vector<1x32x128xbf16> to vector<32x128xbf16>
    %60 = vector.shape_cast %57 : vector<32x128xbf16> to vector<1x32x128xbf16>
    tpu.vector_store %arg11[%c0_30, %c0_31, %c0_32], %60 {strides = array<i32>} : memref<16x32x128xbf16, #tpu.memory_space<vmem>>, vector<1x32x128xbf16>,
    %c1_33 = arith.constant 1 : index
    %c0_34 = arith.constant 0 : index
    %c0_35 = arith.constant 0 : index
    %61 = vector.load %arg2[%c1_33, %c0_34, %c0_35] : memref<16x32x128xi8, #tpu.memory_space<vmem>>, vector<1x32x128xi8>
    %62 = vector.shape_cast %61 : vector<1x32x128xi8> to vector<32x128xi8>
    %63 = arith.sitofp %62 : vector<32x128xi8> to vector<32x128xbf16>
    %c0_36 = arith.constant 0 : index
    %c0_37 = arith.constant 0 : index
    %64 = vector.load %arg3[%c0_36, %c0_37] : memref<128x512xbf16, #tpu.memory_space<vmem>>, vector<128x512xbf16>
    %cst_38 = arith.constant dense<0.000000e+00> : vector<32x512xf32>
    %65 = tpu.matmul %63, %64, %cst_38 {dimension_numbers = #tpu.dot_dimension_numbers<[1], [0], [0], [1], [0, 0, 1, 1], [], []>} : vector<32x128xbf16>, vector<128x512xbf16>, vector<32x512xf32> -> vector<32x512xf32>
    %66 = vector.broadcast %3 : vector<1x512xf32> to vector<32x512xf32>
    %67 = arith.addf %65, %66 : vector<32x512xf32>
    %68 = vector.broadcast %4 : vector<1x512xf32> to vector<32x512xf32>
    %69 = arith.mulf %68, %23 : vector<32x512xf32>
    %70 = vector.broadcast %5 : vector<1x512xf32> to vector<32x512xf32>
    %71 = arith.mulf %70, %67 : vector<32x512xf32>
    %72 = arith.addf %69, %71 : vector<32x512xf32>
    %73 = vector.extract_strided_slice %72 {offsets = [0, 0], sizes = [32, 128], strides = [1, 1]} : vector<32x512xf32> to vector<32x128xf32>
    %74 = vector.extract_strided_slice %72 {offsets = [0, 128], sizes = [32, 128], strides = [1, 1]} : vector<32x512xf32> to vector<32x128xf32>
    %75 = arith.addf %73, %74 : vector<32x128xf32>
    %76 = vector.extract_strided_slice %72 {offsets = [0, 256], sizes = [32, 128], strides = [1, 1]} : vector<32x512xf32> to vector<32x128xf32>
    %77 = arith.addf %75, %76 : vector<32x128xf32>
    %78 = vector.extract_strided_slice %72 {offsets = [0, 384], sizes = [32, 128], strides = [1, 1]} : vector<32x512xf32> to vector<32x128xf32>
    %79 = arith.addf %77, %78 : vector<32x128xf32>
    %c0_39 = arith.constant 0 : index
    %c1_40 = arith.constant 1 : index
    %c0_41 = arith.constant 0 : index
    %80 = vector.load %arg6[%c0_39, %c1_40, %c0_41] : memref<1x16x128xf32, #tpu.memory_space<vmem>>, vector<1x1x128xf32>
    %81 = vector.shape_cast %80 : vector<1x1x128xf32> to vector<1x128xf32>
    %cst_42 = arith.constant 0.000000e+00 : f32
    %82 = vector.broadcast %cst_42 : f32 to vector<1x128xf32>
    %83 = arith.cmpf ogt, %81, %82 : vector<1x128xf32>
    %84 = vector.broadcast %6 : vector<1x128xf32> to vector<32x128xf32>
    %85 = arith.mulf %45, %84 : vector<32x128xf32>
    %86 = vector.broadcast %7 : vector<1x128xf32> to vector<32x128xf32>
    %87 = arith.mulf %86, %79 : vector<32x128xf32>
    %88 = arith.addf %85, %87 : vector<32x128xf32>
    %89 = vector.broadcast %8 : vector<1x128xf32> to vector<32x128xf32>
    %90 = arith.mulf %89, %52 : vector<32x128xf32>
    %91 = arith.subf %88, %90 : vector<32x128xf32>
    %92 = vector.shape_cast %83 : vector<1x128xi1> to vector<1x128xi1>
    %93 = vector.broadcast %92 : vector<1x128xi1> to vector<32x128xi1>
    %94 = arith.select %93, %91, %45 : vector<32x128xi1>, vector<32x128xf32>
    %95 = vector.broadcast %8 : vector<1x128xf32> to vector<32x128xf32>
    %96 = arith.cmpf ogt, %94, %95 : vector<32x128xf32>
    %97 = vector.broadcast %83 : vector<1x128xi1> to vector<32x128xi1>
    %98 = arith.andi %96, %97 : vector<32x128xi1>
    %cst_43 = arith.constant 1.000000e+00 : f32
    %cst_44 = arith.constant 0.000000e+00 : f32
    %99 = vector.broadcast %cst_43 : f32 to vector<32x128xf32>
    %100 = vector.broadcast %cst_44 : f32 to vector<32x128xf32>
    %101 = arith.select %98, %99, %100 : vector<32x128xi1>, vector<32x128xf32>
    %102 = arith.truncf %94 : vector<32x128xf32> to vector<32x128xbf16>
    %c1_45 = arith.constant 1 : index
    %c0_46 = arith.constant 0 : index
    %c0_47 = arith.constant 0 : index
    %103 = vector.load %arg10[%c1_45, %c0_46, %c0_47] : memref<16x32x128xbf16, #tpu.memory_space<vmem>>, vector<1x32x128xbf16>
    %104 = vector.shape_cast %103 : vector<1x32x128xbf16> to vector<32x128xbf16>
    %105 = vector.shape_cast %102 : vector<32x128xbf16> to vector<1x32x128xbf16>
    tpu.vector_store %arg10[%c1_45, %c0_46, %c0_47], %105 {strides = array<i32>} : memref<16x32x128xbf16, #tpu.memory_space<vmem>>, vector<1x32x128xbf16>,
    %106 = arith.truncf %101 : vector<32x128xf32> to vector<32x128xbf16>
    %c1_48 = arith.constant 1 : index
    %c0_49 = arith.constant 0 : index
    %c0_50 = arith.constant 0 : index
    %107 = vector.load %arg11[%c1_48, %c0_49, %c0_50] : memref<16x32x128xbf16, #tpu.memory_space<vmem>>, vector<1x32x128xbf16>
    %108 = vector.shape_cast %107 : vector<1x32x128xbf16> to vector<32x128xbf16>
    %109 = vector.shape_cast %106 : vector<32x128xbf16> to vector<1x32x128xbf16>
    tpu.vector_store %arg11[%c1_48, %c0_49, %c0_50], %109 {strides = array<i32>} : memref<16x32x128xbf16, #tpu.memory_space<vmem>>, vector<1x32x128xbf16>,
    %c2_51 = arith.constant 2 : index
    %c0_52 = arith.constant 0 : index
    %c0_53 = arith.constant 0 : index
    %110 = vector.load %arg2[%c2_51, %c0_52, %c0_53] : memref<16x32x128xi8, #tpu.memory_space<vmem>>, vector<1x32x128xi8>
    %111 = vector.shape_cast %110 : vector<1x32x128xi8> to vector<32x128xi8>
    %112 = arith.sitofp %111 : vector<32x128xi8> to vector<32x128xbf16>
    %c0_54 = arith.constant 0 : index
    %c0_55 = arith.constant 0 : index
    %113 = vector.load %arg3[%c0_54, %c0_55] : memref<128x512xbf16, #tpu.memory_space<vmem>>, vector<128x512xbf16>
    %cst_56 = arith.constant dense<0.000000e+00> : vector<32x512xf32>
    %114 = tpu.matmul %112, %113, %cst_56 {dimension_numbers = #tpu.dot_dimension_numbers<[1], [0], [0], [1], [0, 0, 1, 1], [], []>} : vector<32x128xbf16>, vector<128x512xbf16>, vector<32x512xf32> -> vector<32x512xf32>
    %115 = vector.broadcast %3 : vector<1x512xf32> to vector<32x512xf32>
    %116 = arith.addf %114, %115 : vector<32x512xf32>
    %117 = vector.broadcast %4 : vector<1x512xf32> to vector<32x512xf32>
    %118 = arith.mulf %117, %72 : vector<32x512xf32>
    %119 = vector.broadcast %5 : vector<1x512xf32> to vector<32x512xf32>
    %120 = arith.mulf %119, %116 : vector<32x512xf32>
    %121 = arith.addf %118, %120 : vector<32x512xf32>
    %122 = vector.extract_strided_slice %121 {offsets = [0, 0], sizes = [32, 128], strides = [1, 1]} : vector<32x512xf32> to vector<32x128xf32>
    %123 = vector.extract_strided_slice %121 {offsets = [0, 128], sizes = [32, 128], strides = [1, 1]} : vector<32x512xf32> to vector<32x128xf32>
    %124 = arith.addf %122, %123 : vector<32x128xf32>
    %125 = vector.extract_strided_slice %121 {offsets = [0, 256], sizes = [32, 128], strides = [1, 1]} : vector<32x512xf32> to vector<32x128xf32>
    %126 = arith.addf %124, %125 : vector<32x128xf32>
    %127 = vector.extract_strided_slice %121 {offsets = [0, 384], sizes = [32, 128], strides = [1, 1]} : vector<32x512xf32> to vector<32x128xf32>
    %128 = arith.addf %126, %127 : vector<32x128xf32>
    %c0_57 = arith.constant 0 : index
    %c2_58 = arith.constant 2 : index
    %c0_59 = arith.constant 0 : index
    %129 = vector.load %arg6[%c0_57, %c2_58, %c0_59] : memref<1x16x128xf32, #tpu.memory_space<vmem>>, vector<1x1x128xf32>
    %130 = vector.shape_cast %129 : vector<1x1x128xf32> to vector<1x128xf32>
    %cst_60 = arith.constant 0.000000e+00 : f32
    %131 = vector.broadcast %cst_60 : f32 to vector<1x128xf32>
    %132 = arith.cmpf ogt, %130, %131 : vector<1x128xf32>
    %133 = vector.broadcast %6 : vector<1x128xf32> to vector<32x128xf32>
    %134 = arith.mulf %94, %133 : vector<32x128xf32>
    %135 = vector.broadcast %7 : vector<1x128xf32> to vector<32x128xf32>
    %136 = arith.mulf %135, %128 : vector<32x128xf32>
    %137 = arith.addf %134, %136 : vector<32x128xf32>
    %138 = vector.broadcast %8 : vector<1x128xf32> to vector<32x128xf32>
    %139 = arith.mulf %138, %101 : vector<32x128xf32>
    %140 = arith.subf %137, %139 : vector<32x128xf32>
    %141 = vector.shape_cast %132 : vector<1x128xi1> to vector<1x128xi1>
    %142 = vector.broadcast %141 : vector<1x128xi1> to vector<32x128xi1>
    %143 = arith.select %142, %140, %94 : vector<32x128xi1>, vector<32x128xf32>
    %144 = vector.broadcast %8 : vector<1x128xf32> to vector<32x128xf32>
    %145 = arith.cmpf ogt, %143, %144 : vector<32x128xf32>
    %146 = vector.broadcast %132 : vector<1x128xi1> to vector<32x128xi1>
    %147 = arith.andi %145, %146 : vector<32x128xi1>
    %cst_61 = arith.constant 1.000000e+00 : f32
    %cst_62 = arith.constant 0.000000e+00 : f32
    %148 = vector.broadcast %cst_61 : f32 to vector<32x128xf32>
    %149 = vector.broadcast %cst_62 : f32 to vector<32x128xf32>
    %150 = arith.select %147, %148, %149 : vector<32x128xi1>, vector<32x128xf32>
    %151 = arith.truncf %143 : vector<32x128xf32> to vector<32x128xbf16>
    %c2_63 = arith.constant 2 : index
    %c0_64 = arith.constant 0 : index
    %c0_65 = arith.constant 0 : index
    %152 = vector.load %arg10[%c2_63, %c0_64, %c0_65] : memref<16x32x128xbf16, #tpu.memory_space<vmem>>, vector<1x32x128xbf16>
    %153 = vector.shape_cast %152 : vector<1x32x128xbf16> to vector<32x128xbf16>
    %154 = vector.shape_cast %151 : vector<32x128xbf16> to vector<1x32x128xbf16>
    tpu.vector_store %arg10[%c2_63, %c0_64, %c0_65], %154 {strides = array<i32>} : memref<16x32x128xbf16, #tpu.memory_space<vmem>>, vector<1x32x128xbf16>,
    %155 = arith.truncf %150 : vector<32x128xf32> to vector<32x128xbf16>
    %c2_66 = arith.constant 2 : index
    %c0_67 = arith.constant 0 : index
    %c0_68 = arith.constant 0 : index
    %156 = vector.load %arg11[%c2_66, %c0_67, %c0_68] : memref<16x32x128xbf16, #tpu.memory_space<vmem>>, vector<1x32x128xbf16>
    %157 = vector.shape_cast %156 : vector<1x32x128xbf16> to vector<32x128xbf16>
    %158 = vector.shape_cast %155 : vector<32x128xbf16> to vector<1x32x128xbf16>
    tpu.vector_store %arg11[%c2_66, %c0_67, %c0_68], %158 {strides = array<i32>} : memref<16x32x128xbf16, #tpu.memory_space<vmem>>, vector<1x32x128xbf16>,
    %c3 = arith.constant 3 : index
    %c0_69 = arith.constant 0 : index
    %c0_70 = arith.constant 0 : index
    %159 = vector.load %arg2[%c3, %c0_69, %c0_70] : memref<16x32x128xi8, #tpu.memory_space<vmem>>, vector<1x32x128xi8>
    %160 = vector.shape_cast %159 : vector<1x32x128xi8> to vector<32x128xi8>
    %161 = arith.sitofp %160 : vector<32x128xi8> to vector<32x128xbf16>
    %c0_71 = arith.constant 0 : index
    %c0_72 = arith.constant 0 : index
    %162 = vector.load %arg3[%c0_71, %c0_72] : memref<128x512xbf16, #tpu.memory_space<vmem>>, vector<128x512xbf16>
    %cst_73 = arith.constant dense<0.000000e+00> : vector<32x512xf32>
    %163 = tpu.matmul %161, %162, %cst_73 {dimension_numbers = #tpu.dot_dimension_numbers<[1], [0], [0], [1], [0, 0, 1, 1], [], []>} : vector<32x128xbf16>, vector<128x512xbf16>, vector<32x512xf32> -> vector<32x512xf32>
    %164 = vector.broadcast %3 : vector<1x512xf32> to vector<32x512xf32>
    %165 = arith.addf %163, %164 : vector<32x512xf32>
    %166 = vector.broadcast %4 : vector<1x512xf32> to vector<32x512xf32>
    %167 = arith.mulf %166, %121 : vector<32x512xf32>
    %168 = vector.broadcast %5 : vector<1x512xf32> to vector<32x512xf32>
    %169 = arith.mulf %168, %165 : vector<32x512xf32>
    %170 = arith.addf %167, %169 : vector<32x512xf32>
    %171 = vector.extract_strided_slice %170 {offsets = [0, 0], sizes = [32, 128], strides = [1, 1]} : vector<32x512xf32> to vector<32x128xf32>
    %172 = vector.extract_strided_slice %170 {offsets = [0, 128], sizes = [32, 128], strides = [1, 1]} : vector<32x512xf32> to vector<32x128xf32>
    %173 = arith.addf %171, %172 : vector<32x128xf32>
    %174 = vector.extract_strided_slice %170 {offsets = [0, 256], sizes = [32, 128], strides = [1, 1]} : vector<32x512xf32> to vector<32x128xf32>
    %175 = arith.addf %173, %174 : vector<32x128xf32>
    %176 = vector.extract_strided_slice %170 {offsets = [0, 384], sizes = [32, 128], strides = [1, 1]} : vector<32x512xf32> to vector<32x128xf32>
    %177 = arith.addf %175, %176 : vector<32x128xf32>
    %c0_74 = arith.constant 0 : index
    %c3_75 = arith.constant 3 : index
    %c0_76 = arith.constant 0 : index
    %178 = vector.load %arg6[%c0_74, %c3_75, %c0_76] : memref<1x16x128xf32, #tpu.memory_space<vmem>>, vector<1x1x128xf32>
    %179 = vector.shape_cast %178 : vector<1x1x128xf32> to vector<1x128xf32>
    %cst_77 = arith.constant 0.000000e+00 : f32
    %180 = vector.broadcast %cst_77 : f32 to vector<1x128xf32>
    %181 = arith.cmpf ogt, %179, %180 : vector<1x128xf32>
    %182 = vector.broadcast %6 : vector<1x128xf32> to vector<32x128xf32>
    %183 = arith.mulf %143, %182 : vector<32x128xf32>
    %184 = vector.broadcast %7 : vector<1x128xf32> to vector<32x128xf32>
    %185 = arith.mulf %184, %177 : vector<32x128xf32>
    %186 = arith.addf %183, %185 : vector<32x128xf32>
    %187 = vector.broadcast %8 : vector<1x128xf32> to vector<32x128xf32>
    %188 = arith.mulf %187, %150 : vector<32x128xf32>
    %189 = arith.subf %186, %188 : vector<32x128xf32>
    %190 = vector.shape_cast %181 : vector<1x128xi1> to vector<1x128xi1>
    %191 = vector.broadcast %190 : vector<1x128xi1> to vector<32x128xi1>
    %192 = arith.select %191, %189, %143 : vector<32x128xi1>, vector<32x128xf32>
    %193 = vector.broadcast %8 : vector<1x128xf32> to vector<32x128xf32>
    %194 = arith.cmpf ogt, %192, %193 : vector<32x128xf32>
    %195 = vector.broadcast %181 : vector<1x128xi1> to vector<32x128xi1>
    %196 = arith.andi %194, %195 : vector<32x128xi1>
    %cst_78 = arith.constant 1.000000e+00 : f32
    %cst_79 = arith.constant 0.000000e+00 : f32
    %197 = vector.broadcast %cst_78 : f32 to vector<32x128xf32>
    %198 = vector.broadcast %cst_79 : f32 to vector<32x128xf32>
    %199 = arith.select %196, %197, %198 : vector<32x128xi1>, vector<32x128xf32>
    %200 = arith.truncf %192 : vector<32x128xf32> to vector<32x128xbf16>
    %c3_80 = arith.constant 3 : index
    %c0_81 = arith.constant 0 : index
    %c0_82 = arith.constant 0 : index
    %201 = vector.load %arg10[%c3_80, %c0_81, %c0_82] : memref<16x32x128xbf16, #tpu.memory_space<vmem>>, vector<1x32x128xbf16>
    %202 = vector.shape_cast %201 : vector<1x32x128xbf16> to vector<32x128xbf16>
    %203 = vector.shape_cast %200 : vector<32x128xbf16> to vector<1x32x128xbf16>
    tpu.vector_store %arg10[%c3_80, %c0_81, %c0_82], %203 {strides = array<i32>} : memref<16x32x128xbf16, #tpu.memory_space<vmem>>, vector<1x32x128xbf16>,
    %204 = arith.truncf %199 : vector<32x128xf32> to vector<32x128xbf16>
    %c3_83 = arith.constant 3 : index
    %c0_84 = arith.constant 0 : index
    %c0_85 = arith.constant 0 : index
    %205 = vector.load %arg11[%c3_83, %c0_84, %c0_85] : memref<16x32x128xbf16, #tpu.memory_space<vmem>>, vector<1x32x128xbf16>
    %206 = vector.shape_cast %205 : vector<1x32x128xbf16> to vector<32x128xbf16>
    %207 = vector.shape_cast %204 : vector<32x128xbf16> to vector<1x32x128xbf16>
    tpu.vector_store %arg11[%c3_83, %c0_84, %c0_85], %207 {strides = array<i32>} : memref<16x32x128xbf16, #tpu.memory_space<vmem>>, vector<1x32x128xbf16>,
    %c4 = arith.constant 4 : index
    %c0_86 = arith.constant 0 : index
    %c0_87 = arith.constant 0 : index
    %208 = vector.load %arg2[%c4, %c0_86, %c0_87] : memref<16x32x128xi8, #tpu.memory_space<vmem>>, vector<1x32x128xi8>
    %209 = vector.shape_cast %208 : vector<1x32x128xi8> to vector<32x128xi8>
    %210 = arith.sitofp %209 : vector<32x128xi8> to vector<32x128xbf16>
    %c0_88 = arith.constant 0 : index
    %c0_89 = arith.constant 0 : index
    %211 = vector.load %arg3[%c0_88, %c0_89] : memref<128x512xbf16, #tpu.memory_space<vmem>>, vector<128x512xbf16>
    %cst_90 = arith.constant dense<0.000000e+00> : vector<32x512xf32>
    %212 = tpu.matmul %210, %211, %cst_90 {dimension_numbers = #tpu.dot_dimension_numbers<[1], [0], [0], [1], [0, 0, 1, 1], [], []>} : vector<32x128xbf16>, vector<128x512xbf16>, vector<32x512xf32> -> vector<32x512xf32>
    %213 = vector.broadcast %3 : vector<1x512xf32> to vector<32x512xf32>
    %214 = arith.addf %212, %213 : vector<32x512xf32>
    %215 = vector.broadcast %4 : vector<1x512xf32> to vector<32x512xf32>
    %216 = arith.mulf %215, %170 : vector<32x512xf32>
    %217 = vector.broadcast %5 : vector<1x512xf32> to vector<32x512xf32>
    %218 = arith.mulf %217, %214 : vector<32x512xf32>
    %219 = arith.addf %216, %218 : vector<32x512xf32>
    %220 = vector.extract_strided_slice %219 {offsets = [0, 0], sizes = [32, 128], strides = [1, 1]} : vector<32x512xf32> to vector<32x128xf32>
    %221 = vector.extract_strided_slice %219 {offsets = [0, 128], sizes = [32, 128], strides = [1, 1]} : vector<32x512xf32> to vector<32x128xf32>
    %222 = arith.addf %220, %221 : vector<32x128xf32>
    %223 = vector.extract_strided_slice %219 {offsets = [0, 256], sizes = [32, 128], strides = [1, 1]} : vector<32x512xf32> to vector<32x128xf32>
    %224 = arith.addf %222, %223 : vector<32x128xf32>
    %225 = vector.extract_strided_slice %219 {offsets = [0, 384], sizes = [32, 128], strides = [1, 1]} : vector<32x512xf32> to vector<32x128xf32>
    %226 = arith.addf %224, %225 : vector<32x128xf32>
    %c0_91 = arith.constant 0 : index
    %c4_92 = arith.constant 4 : index
    %c0_93 = arith.constant 0 : index
    %227 = vector.load %arg6[%c0_91, %c4_92, %c0_93] : memref<1x16x128xf32, #tpu.memory_space<vmem>>, vector<1x1x128xf32>
    %228 = vector.shape_cast %227 : vector<1x1x128xf32> to vector<1x128xf32>
    %cst_94 = arith.constant 0.000000e+00 : f32
    %229 = vector.broadcast %cst_94 : f32 to vector<1x128xf32>
    %230 = arith.cmpf ogt, %228, %229 : vector<1x128xf32>
    %231 = vector.broadcast %6 : vector<1x128xf32> to vector<32x128xf32>
    %232 = arith.mulf %192, %231 : vector<32x128xf32>
    %233 = vector.broadcast %7 : vector<1x128xf32> to vector<32x128xf32>
    %234 = arith.mulf %233, %226 : vector<32x128xf32>
    %235 = arith.addf %232, %234 : vector<32x128xf32>
    %236 = vector.broadcast %8 : vector<1x128xf32> to vector<32x128xf32>
    %237 = arith.mulf %236, %199 : vector<32x128xf32>
    %238 = arith.subf %235, %237 : vector<32x128xf32>
    %239 = vector.shape_cast %230 : vector<1x128xi1> to vector<1x128xi1>
    %240 = vector.broadcast %239 : vector<1x128xi1> to vector<32x128xi1>
    %241 = arith.select %240, %238, %192 : vector<32x128xi1>, vector<32x128xf32>
    %242 = vector.broadcast %8 : vector<1x128xf32> to vector<32x128xf32>
    %243 = arith.cmpf ogt, %241, %242 : vector<32x128xf32>
    %244 = vector.broadcast %230 : vector<1x128xi1> to vector<32x128xi1>
    %245 = arith.andi %243, %244 : vector<32x128xi1>
    %cst_95 = arith.constant 1.000000e+00 : f32
    %cst_96 = arith.constant 0.000000e+00 : f32
    %246 = vector.broadcast %cst_95 : f32 to vector<32x128xf32>
    %247 = vector.broadcast %cst_96 : f32 to vector<32x128xf32>
    %248 = arith.select %245, %246, %247 : vector<32x128xi1>, vector<32x128xf32>
    %249 = arith.truncf %241 : vector<32x128xf32> to vector<32x128xbf16>
    %c4_97 = arith.constant 4 : index
    %c0_98 = arith.constant 0 : index
    %c0_99 = arith.constant 0 : index
    %250 = vector.load %arg10[%c4_97, %c0_98, %c0_99] : memref<16x32x128xbf16, #tpu.memory_space<vmem>>, vector<1x32x128xbf16>
    %251 = vector.shape_cast %250 : vector<1x32x128xbf16> to vector<32x128xbf16>
    %252 = vector.shape_cast %249 : vector<32x128xbf16> to vector<1x32x128xbf16>
    tpu.vector_store %arg10[%c4_97, %c0_98, %c0_99], %252 {strides = array<i32>} : memref<16x32x128xbf16, #tpu.memory_space<vmem>>, vector<1x32x128xbf16>,
    %253 = arith.truncf %248 : vector<32x128xf32> to vector<32x128xbf16>
    %c4_100 = arith.constant 4 : index
    %c0_101 = arith.constant 0 : index
    %c0_102 = arith.constant 0 : index
    %254 = vector.load %arg11[%c4_100, %c0_101, %c0_102] : memref<16x32x128xbf16, #tpu.memory_space<vmem>>, vector<1x32x128xbf16>
    %255 = vector.shape_cast %254 : vector<1x32x128xbf16> to vector<32x128xbf16>
    %256 = vector.shape_cast %253 : vector<32x128xbf16> to vector<1x32x128xbf16>
    tpu.vector_store %arg11[%c4_100, %c0_101, %c0_102], %256 {strides = array<i32>} : memref<16x32x128xbf16, #tpu.memory_space<vmem>>, vector<1x32x128xbf16>,
    %c5 = arith.constant 5 : index
    %c0_103 = arith.constant 0 : index
    %c0_104 = arith.constant 0 : index
    %257 = vector.load %arg2[%c5, %c0_103, %c0_104] : memref<16x32x128xi8, #tpu.memory_space<vmem>>, vector<1x32x128xi8>
    %258 = vector.shape_cast %257 : vector<1x32x128xi8> to vector<32x128xi8>
    %259 = arith.sitofp %258 : vector<32x128xi8> to vector<32x128xbf16>
    %c0_105 = arith.constant 0 : index
    %c0_106 = arith.constant 0 : index
    %260 = vector.load %arg3[%c0_105, %c0_106] : memref<128x512xbf16, #tpu.memory_space<vmem>>, vector<128x512xbf16>
    %cst_107 = arith.constant dense<0.000000e+00> : vector<32x512xf32>
    %261 = tpu.matmul %259, %260, %cst_107 {dimension_numbers = #tpu.dot_dimension_numbers<[1], [0], [0], [1], [0, 0, 1, 1], [], []>} : vector<32x128xbf16>, vector<128x512xbf16>, vector<32x512xf32> -> vector<32x512xf32>
    %262 = vector.broadcast %3 : vector<1x512xf32> to vector<32x512xf32>
    %263 = arith.addf %261, %262 : vector<32x512xf32>
    %264 = vector.broadcast %4 : vector<1x512xf32> to vector<32x512xf32>
    %265 = arith.mulf %264, %219 : vector<32x512xf32>
    %266 = vector.broadcast %5 : vector<1x512xf32> to vector<32x512xf32>
    %267 = arith.mulf %266, %263 : vector<32x512xf32>
    %268 = arith.addf %265, %267 : vector<32x512xf32>
    %269 = vector.extract_strided_slice %268 {offsets = [0, 0], sizes = [32, 128], strides = [1, 1]} : vector<32x512xf32> to vector<32x128xf32>
    %270 = vector.extract_strided_slice %268 {offsets = [0, 128], sizes = [32, 128], strides = [1, 1]} : vector<32x512xf32> to vector<32x128xf32>
    %271 = arith.addf %269, %270 : vector<32x128xf32>
    %272 = vector.extract_strided_slice %268 {offsets = [0, 256], sizes = [32, 128], strides = [1, 1]} : vector<32x512xf32> to vector<32x128xf32>
    %273 = arith.addf %271, %272 : vector<32x128xf32>
    %274 = vector.extract_strided_slice %268 {offsets = [0, 384], sizes = [32, 128], strides = [1, 1]} : vector<32x512xf32> to vector<32x128xf32>
    %275 = arith.addf %273, %274 : vector<32x128xf32>
    %c0_108 = arith.constant 0 : index
    %c5_109 = arith.constant 5 : index
    %c0_110 = arith.constant 0 : index
    %276 = vector.load %arg6[%c0_108, %c5_109, %c0_110] : memref<1x16x128xf32, #tpu.memory_space<vmem>>, vector<1x1x128xf32>
    %277 = vector.shape_cast %276 : vector<1x1x128xf32> to vector<1x128xf32>
    %cst_111 = arith.constant 0.000000e+00 : f32
    %278 = vector.broadcast %cst_111 : f32 to vector<1x128xf32>
    %279 = arith.cmpf ogt, %277, %278 : vector<1x128xf32>
    %280 = vector.broadcast %6 : vector<1x128xf32> to vector<32x128xf32>
    %281 = arith.mulf %241, %280 : vector<32x128xf32>
    %282 = vector.broadcast %7 : vector<1x128xf32> to vector<32x128xf32>
    %283 = arith.mulf %282, %275 : vector<32x128xf32>
    %284 = arith.addf %281, %283 : vector<32x128xf32>
    %285 = vector.broadcast %8 : vector<1x128xf32> to vector<32x128xf32>
    %286 = arith.mulf %285, %248 : vector<32x128xf32>
    %287 = arith.subf %284, %286 : vector<32x128xf32>
    %288 = vector.shape_cast %279 : vector<1x128xi1> to vector<1x128xi1>
    %289 = vector.broadcast %288 : vector<1x128xi1> to vector<32x128xi1>
    %290 = arith.select %289, %287, %241 : vector<32x128xi1>, vector<32x128xf32>
    %291 = vector.broadcast %8 : vector<1x128xf32> to vector<32x128xf32>
    %292 = arith.cmpf ogt, %290, %291 : vector<32x128xf32>
    %293 = vector.broadcast %279 : vector<1x128xi1> to vector<32x128xi1>
    %294 = arith.andi %292, %293 : vector<32x128xi1>
    %cst_112 = arith.constant 1.000000e+00 : f32
    %cst_113 = arith.constant 0.000000e+00 : f32
    %295 = vector.broadcast %cst_112 : f32 to vector<32x128xf32>
    %296 = vector.broadcast %cst_113 : f32 to vector<32x128xf32>
    %297 = arith.select %294, %295, %296 : vector<32x128xi1>, vector<32x128xf32>
    %298 = arith.truncf %290 : vector<32x128xf32> to vector<32x128xbf16>
    %c5_114 = arith.constant 5 : index
    %c0_115 = arith.constant 0 : index
    %c0_116 = arith.constant 0 : index
    %299 = vector.load %arg10[%c5_114, %c0_115, %c0_116] : memref<16x32x128xbf16, #tpu.memory_space<vmem>>, vector<1x32x128xbf16>
    %300 = vector.shape_cast %299 : vector<1x32x128xbf16> to vector<32x128xbf16>
    %301 = vector.shape_cast %298 : vector<32x128xbf16> to vector<1x32x128xbf16>
    tpu.vector_store %arg10[%c5_114, %c0_115, %c0_116], %301 {strides = array<i32>} : memref<16x32x128xbf16, #tpu.memory_space<vmem>>, vector<1x32x128xbf16>,
    %302 = arith.truncf %297 : vector<32x128xf32> to vector<32x128xbf16>
    %c5_117 = arith.constant 5 : index
    %c0_118 = arith.constant 0 : index
    %c0_119 = arith.constant 0 : index
    %303 = vector.load %arg11[%c5_117, %c0_118, %c0_119] : memref<16x32x128xbf16, #tpu.memory_space<vmem>>, vector<1x32x128xbf16>
    %304 = vector.shape_cast %303 : vector<1x32x128xbf16> to vector<32x128xbf16>
    %305 = vector.shape_cast %302 : vector<32x128xbf16> to vector<1x32x128xbf16>
    tpu.vector_store %arg11[%c5_117, %c0_118, %c0_119], %305 {strides = array<i32>} : memref<16x32x128xbf16, #tpu.memory_space<vmem>>, vector<1x32x128xbf16>,
    %c6 = arith.constant 6 : index
    %c0_120 = arith.constant 0 : index
    %c0_121 = arith.constant 0 : index
    %306 = vector.load %arg2[%c6, %c0_120, %c0_121] : memref<16x32x128xi8, #tpu.memory_space<vmem>>, vector<1x32x128xi8>
    %307 = vector.shape_cast %306 : vector<1x32x128xi8> to vector<32x128xi8>
    %308 = arith.sitofp %307 : vector<32x128xi8> to vector<32x128xbf16>
    %c0_122 = arith.constant 0 : index
    %c0_123 = arith.constant 0 : index
    %309 = vector.load %arg3[%c0_122, %c0_123] : memref<128x512xbf16, #tpu.memory_space<vmem>>, vector<128x512xbf16>
    %cst_124 = arith.constant dense<0.000000e+00> : vector<32x512xf32>
    %310 = tpu.matmul %308, %309, %cst_124 {dimension_numbers = #tpu.dot_dimension_numbers<[1], [0], [0], [1], [0, 0, 1, 1], [], []>} : vector<32x128xbf16>, vector<128x512xbf16>, vector<32x512xf32> -> vector<32x512xf32>
    %311 = vector.broadcast %3 : vector<1x512xf32> to vector<32x512xf32>
    %312 = arith.addf %310, %311 : vector<32x512xf32>
    %313 = vector.broadcast %4 : vector<1x512xf32> to vector<32x512xf32>
    %314 = arith.mulf %313, %268 : vector<32x512xf32>
    %315 = vector.broadcast %5 : vector<1x512xf32> to vector<32x512xf32>
    %316 = arith.mulf %315, %312 : vector<32x512xf32>
    %317 = arith.addf %314, %316 : vector<32x512xf32>
    %318 = vector.extract_strided_slice %317 {offsets = [0, 0], sizes = [32, 128], strides = [1, 1]} : vector<32x512xf32> to vector<32x128xf32>
    %319 = vector.extract_strided_slice %317 {offsets = [0, 128], sizes = [32, 128], strides = [1, 1]} : vector<32x512xf32> to vector<32x128xf32>
    %320 = arith.addf %318, %319 : vector<32x128xf32>
    %321 = vector.extract_strided_slice %317 {offsets = [0, 256], sizes = [32, 128], strides = [1, 1]} : vector<32x512xf32> to vector<32x128xf32>
    %322 = arith.addf %320, %321 : vector<32x128xf32>
    %323 = vector.extract_strided_slice %317 {offsets = [0, 384], sizes = [32, 128], strides = [1, 1]} : vector<32x512xf32> to vector<32x128xf32>
    %324 = arith.addf %322, %323 : vector<32x128xf32>
    %c0_125 = arith.constant 0 : index
    %c6_126 = arith.constant 6 : index
    %c0_127 = arith.constant 0 : index
    %325 = vector.load %arg6[%c0_125, %c6_126, %c0_127] : memref<1x16x128xf32, #tpu.memory_space<vmem>>, vector<1x1x128xf32>
    %326 = vector.shape_cast %325 : vector<1x1x128xf32> to vector<1x128xf32>
    %cst_128 = arith.constant 0.000000e+00 : f32
    %327 = vector.broadcast %cst_128 : f32 to vector<1x128xf32>
    %328 = arith.cmpf ogt, %326, %327 : vector<1x128xf32>
    %329 = vector.broadcast %6 : vector<1x128xf32> to vector<32x128xf32>
    %330 = arith.mulf %290, %329 : vector<32x128xf32>
    %331 = vector.broadcast %7 : vector<1x128xf32> to vector<32x128xf32>
    %332 = arith.mulf %331, %324 : vector<32x128xf32>
    %333 = arith.addf %330, %332 : vector<32x128xf32>
    %334 = vector.broadcast %8 : vector<1x128xf32> to vector<32x128xf32>
    %335 = arith.mulf %334, %297 : vector<32x128xf32>
    %336 = arith.subf %333, %335 : vector<32x128xf32>
    %337 = vector.shape_cast %328 : vector<1x128xi1> to vector<1x128xi1>
    %338 = vector.broadcast %337 : vector<1x128xi1> to vector<32x128xi1>
    %339 = arith.select %338, %336, %290 : vector<32x128xi1>, vector<32x128xf32>
    %340 = vector.broadcast %8 : vector<1x128xf32> to vector<32x128xf32>
    %341 = arith.cmpf ogt, %339, %340 : vector<32x128xf32>
    %342 = vector.broadcast %328 : vector<1x128xi1> to vector<32x128xi1>
    %343 = arith.andi %341, %342 : vector<32x128xi1>
    %cst_129 = arith.constant 1.000000e+00 : f32
    %cst_130 = arith.constant 0.000000e+00 : f32
    %344 = vector.broadcast %cst_129 : f32 to vector<32x128xf32>
    %345 = vector.broadcast %cst_130 : f32 to vector<32x128xf32>
    %346 = arith.select %343, %344, %345 : vector<32x128xi1>, vector<32x128xf32>
    %347 = arith.truncf %339 : vector<32x128xf32> to vector<32x128xbf16>
    %c6_131 = arith.constant 6 : index
    %c0_132 = arith.constant 0 : index
    %c0_133 = arith.constant 0 : index
    %348 = vector.load %arg10[%c6_131, %c0_132, %c0_133] : memref<16x32x128xbf16, #tpu.memory_space<vmem>>, vector<1x32x128xbf16>
    %349 = vector.shape_cast %348 : vector<1x32x128xbf16> to vector<32x128xbf16>
    %350 = vector.shape_cast %347 : vector<32x128xbf16> to vector<1x32x128xbf16>
    tpu.vector_store %arg10[%c6_131, %c0_132, %c0_133], %350 {strides = array<i32>} : memref<16x32x128xbf16, #tpu.memory_space<vmem>>, vector<1x32x128xbf16>,
    %351 = arith.truncf %346 : vector<32x128xf32> to vector<32x128xbf16>
    %c6_134 = arith.constant 6 : index
    %c0_135 = arith.constant 0 : index
    %c0_136 = arith.constant 0 : index
    %352 = vector.load %arg11[%c6_134, %c0_135, %c0_136] : memref<16x32x128xbf16, #tpu.memory_space<vmem>>, vector<1x32x128xbf16>
    %353 = vector.shape_cast %352 : vector<1x32x128xbf16> to vector<32x128xbf16>
    %354 = vector.shape_cast %351 : vector<32x128xbf16> to vector<1x32x128xbf16>
    tpu.vector_store %arg11[%c6_134, %c0_135, %c0_136], %354 {strides = array<i32>} : memref<16x32x128xbf16, #tpu.memory_space<vmem>>, vector<1x32x128xbf16>,
    %c7 = arith.constant 7 : index
    %c0_137 = arith.constant 0 : index
    %c0_138 = arith.constant 0 : index
    %355 = vector.load %arg2[%c7, %c0_137, %c0_138] : memref<16x32x128xi8, #tpu.memory_space<vmem>>, vector<1x32x128xi8>
    %356 = vector.shape_cast %355 : vector<1x32x128xi8> to vector<32x128xi8>
    %357 = arith.sitofp %356 : vector<32x128xi8> to vector<32x128xbf16>
    %c0_139 = arith.constant 0 : index
    %c0_140 = arith.constant 0 : index
    %358 = vector.load %arg3[%c0_139, %c0_140] : memref<128x512xbf16, #tpu.memory_space<vmem>>, vector<128x512xbf16>
    %cst_141 = arith.constant dense<0.000000e+00> : vector<32x512xf32>
    %359 = tpu.matmul %357, %358, %cst_141 {dimension_numbers = #tpu.dot_dimension_numbers<[1], [0], [0], [1], [0, 0, 1, 1], [], []>} : vector<32x128xbf16>, vector<128x512xbf16>, vector<32x512xf32> -> vector<32x512xf32>
    %360 = vector.broadcast %3 : vector<1x512xf32> to vector<32x512xf32>
    %361 = arith.addf %359, %360 : vector<32x512xf32>
    %362 = vector.broadcast %4 : vector<1x512xf32> to vector<32x512xf32>
    %363 = arith.mulf %362, %317 : vector<32x512xf32>
    %364 = vector.broadcast %5 : vector<1x512xf32> to vector<32x512xf32>
    %365 = arith.mulf %364, %361 : vector<32x512xf32>
    %366 = arith.addf %363, %365 : vector<32x512xf32>
    %367 = vector.extract_strided_slice %366 {offsets = [0, 0], sizes = [32, 128], strides = [1, 1]} : vector<32x512xf32> to vector<32x128xf32>
    %368 = vector.extract_strided_slice %366 {offsets = [0, 128], sizes = [32, 128], strides = [1, 1]} : vector<32x512xf32> to vector<32x128xf32>
    %369 = arith.addf %367, %368 : vector<32x128xf32>
    %370 = vector.extract_strided_slice %366 {offsets = [0, 256], sizes = [32, 128], strides = [1, 1]} : vector<32x512xf32> to vector<32x128xf32>
    %371 = arith.addf %369, %370 : vector<32x128xf32>
    %372 = vector.extract_strided_slice %366 {offsets = [0, 384], sizes = [32, 128], strides = [1, 1]} : vector<32x512xf32> to vector<32x128xf32>
    %373 = arith.addf %371, %372 : vector<32x128xf32>
    %c0_142 = arith.constant 0 : index
    %c7_143 = arith.constant 7 : index
    %c0_144 = arith.constant 0 : index
    %374 = vector.load %arg6[%c0_142, %c7_143, %c0_144] : memref<1x16x128xf32, #tpu.memory_space<vmem>>, vector<1x1x128xf32>
    %375 = vector.shape_cast %374 : vector<1x1x128xf32> to vector<1x128xf32>
    %cst_145 = arith.constant 0.000000e+00 : f32
    %376 = vector.broadcast %cst_145 : f32 to vector<1x128xf32>
    %377 = arith.cmpf ogt, %375, %376 : vector<1x128xf32>
    %378 = vector.broadcast %6 : vector<1x128xf32> to vector<32x128xf32>
    %379 = arith.mulf %339, %378 : vector<32x128xf32>
    %380 = vector.broadcast %7 : vector<1x128xf32> to vector<32x128xf32>
    %381 = arith.mulf %380, %373 : vector<32x128xf32>
    %382 = arith.addf %379, %381 : vector<32x128xf32>
    %383 = vector.broadcast %8 : vector<1x128xf32> to vector<32x128xf32>
    %384 = arith.mulf %383, %346 : vector<32x128xf32>
    %385 = arith.subf %382, %384 : vector<32x128xf32>
    %386 = vector.shape_cast %377 : vector<1x128xi1> to vector<1x128xi1>
    %387 = vector.broadcast %386 : vector<1x128xi1> to vector<32x128xi1>
    %388 = arith.select %387, %385, %339 : vector<32x128xi1>, vector<32x128xf32>
    %389 = vector.broadcast %8 : vector<1x128xf32> to vector<32x128xf32>
    %390 = arith.cmpf ogt, %388, %389 : vector<32x128xf32>
    %391 = vector.broadcast %377 : vector<1x128xi1> to vector<32x128xi1>
    %392 = arith.andi %390, %391 : vector<32x128xi1>
    %cst_146 = arith.constant 1.000000e+00 : f32
    %cst_147 = arith.constant 0.000000e+00 : f32
    %393 = vector.broadcast %cst_146 : f32 to vector<32x128xf32>
    %394 = vector.broadcast %cst_147 : f32 to vector<32x128xf32>
    %395 = arith.select %392, %393, %394 : vector<32x128xi1>, vector<32x128xf32>
    %396 = arith.truncf %388 : vector<32x128xf32> to vector<32x128xbf16>
    %c7_148 = arith.constant 7 : index
    %c0_149 = arith.constant 0 : index
    %c0_150 = arith.constant 0 : index
    %397 = vector.load %arg10[%c7_148, %c0_149, %c0_150] : memref<16x32x128xbf16, #tpu.memory_space<vmem>>, vector<1x32x128xbf16>
    %398 = vector.shape_cast %397 : vector<1x32x128xbf16> to vector<32x128xbf16>
    %399 = vector.shape_cast %396 : vector<32x128xbf16> to vector<1x32x128xbf16>
    tpu.vector_store %arg10[%c7_148, %c0_149, %c0_150], %399 {strides = array<i32>} : memref<16x32x128xbf16, #tpu.memory_space<vmem>>, vector<1x32x128xbf16>,
    %400 = arith.truncf %395 : vector<32x128xf32> to vector<32x128xbf16>
    %c7_151 = arith.constant 7 : index
    %c0_152 = arith.constant 0 : index
    %c0_153 = arith.constant 0 : index
    %401 = vector.load %arg11[%c7_151, %c0_152, %c0_153] : memref<16x32x128xbf16, #tpu.memory_space<vmem>>, vector<1x32x128xbf16>
    %402 = vector.shape_cast %401 : vector<1x32x128xbf16> to vector<32x128xbf16>
    %403 = vector.shape_cast %400 : vector<32x128xbf16> to vector<1x32x128xbf16>
    tpu.vector_store %arg11[%c7_151, %c0_152, %c0_153], %403 {strides = array<i32>} : memref<16x32x128xbf16, #tpu.memory_space<vmem>>, vector<1x32x128xbf16>,
    %c8 = arith.constant 8 : index
    %c0_154 = arith.constant 0 : index
    %c0_155 = arith.constant 0 : index
    %404 = vector.load %arg2[%c8, %c0_154, %c0_155] : memref<16x32x128xi8, #tpu.memory_space<vmem>>, vector<1x32x128xi8>
    %405 = vector.shape_cast %404 : vector<1x32x128xi8> to vector<32x128xi8>
    %406 = arith.sitofp %405 : vector<32x128xi8> to vector<32x128xbf16>
    %c0_156 = arith.constant 0 : index
    %c0_157 = arith.constant 0 : index
    %407 = vector.load %arg3[%c0_156, %c0_157] : memref<128x512xbf16, #tpu.memory_space<vmem>>, vector<128x512xbf16>
    %cst_158 = arith.constant dense<0.000000e+00> : vector<32x512xf32>
    %408 = tpu.matmul %406, %407, %cst_158 {dimension_numbers = #tpu.dot_dimension_numbers<[1], [0], [0], [1], [0, 0, 1, 1], [], []>} : vector<32x128xbf16>, vector<128x512xbf16>, vector<32x512xf32> -> vector<32x512xf32>
    %409 = vector.broadcast %3 : vector<1x512xf32> to vector<32x512xf32>
    %410 = arith.addf %408, %409 : vector<32x512xf32>
    %411 = vector.broadcast %4 : vector<1x512xf32> to vector<32x512xf32>
    %412 = arith.mulf %411, %366 : vector<32x512xf32>
    %413 = vector.broadcast %5 : vector<1x512xf32> to vector<32x512xf32>
    %414 = arith.mulf %413, %410 : vector<32x512xf32>
    %415 = arith.addf %412, %414 : vector<32x512xf32>
    %416 = vector.extract_strided_slice %415 {offsets = [0, 0], sizes = [32, 128], strides = [1, 1]} : vector<32x512xf32> to vector<32x128xf32>
    %417 = vector.extract_strided_slice %415 {offsets = [0, 128], sizes = [32, 128], strides = [1, 1]} : vector<32x512xf32> to vector<32x128xf32>
    %418 = arith.addf %416, %417 : vector<32x128xf32>
    %419 = vector.extract_strided_slice %415 {offsets = [0, 256], sizes = [32, 128], strides = [1, 1]} : vector<32x512xf32> to vector<32x128xf32>
    %420 = arith.addf %418, %419 : vector<32x128xf32>
    %421 = vector.extract_strided_slice %415 {offsets = [0, 384], sizes = [32, 128], strides = [1, 1]} : vector<32x512xf32> to vector<32x128xf32>
    %422 = arith.addf %420, %421 : vector<32x128xf32>
    %c0_159 = arith.constant 0 : index
    %c8_160 = arith.constant 8 : index
    %c0_161 = arith.constant 0 : index
    %423 = vector.load %arg6[%c0_159, %c8_160, %c0_161] : memref<1x16x128xf32, #tpu.memory_space<vmem>>, vector<1x1x128xf32>
    %424 = vector.shape_cast %423 : vector<1x1x128xf32> to vector<1x128xf32>
    %cst_162 = arith.constant 0.000000e+00 : f32
    %425 = vector.broadcast %cst_162 : f32 to vector<1x128xf32>
    %426 = arith.cmpf ogt, %424, %425 : vector<1x128xf32>
    %427 = vector.broadcast %6 : vector<1x128xf32> to vector<32x128xf32>
    %428 = arith.mulf %388, %427 : vector<32x128xf32>
    %429 = vector.broadcast %7 : vector<1x128xf32> to vector<32x128xf32>
    %430 = arith.mulf %429, %422 : vector<32x128xf32>
    %431 = arith.addf %428, %430 : vector<32x128xf32>
    %432 = vector.broadcast %8 : vector<1x128xf32> to vector<32x128xf32>
    %433 = arith.mulf %432, %395 : vector<32x128xf32>
    %434 = arith.subf %431, %433 : vector<32x128xf32>
    %435 = vector.shape_cast %426 : vector<1x128xi1> to vector<1x128xi1>
    %436 = vector.broadcast %435 : vector<1x128xi1> to vector<32x128xi1>
    %437 = arith.select %436, %434, %388 : vector<32x128xi1>, vector<32x128xf32>
    %438 = vector.broadcast %8 : vector<1x128xf32> to vector<32x128xf32>
    %439 = arith.cmpf ogt, %437, %438 : vector<32x128xf32>
    %440 = vector.broadcast %426 : vector<1x128xi1> to vector<32x128xi1>
    %441 = arith.andi %439, %440 : vector<32x128xi1>
    %cst_163 = arith.constant 1.000000e+00 : f32
    %cst_164 = arith.constant 0.000000e+00 : f32
    %442 = vector.broadcast %cst_163 : f32 to vector<32x128xf32>
    %443 = vector.broadcast %cst_164 : f32 to vector<32x128xf32>
    %444 = arith.select %441, %442, %443 : vector<32x128xi1>, vector<32x128xf32>
    %445 = arith.truncf %437 : vector<32x128xf32> to vector<32x128xbf16>
    %c8_165 = arith.constant 8 : index
    %c0_166 = arith.constant 0 : index
    %c0_167 = arith.constant 0 : index
    %446 = vector.load %arg10[%c8_165, %c0_166, %c0_167] : memref<16x32x128xbf16, #tpu.memory_space<vmem>>, vector<1x32x128xbf16>
    %447 = vector.shape_cast %446 : vector<1x32x128xbf16> to vector<32x128xbf16>
    %448 = vector.shape_cast %445 : vector<32x128xbf16> to vector<1x32x128xbf16>
    tpu.vector_store %arg10[%c8_165, %c0_166, %c0_167], %448 {strides = array<i32>} : memref<16x32x128xbf16, #tpu.memory_space<vmem>>, vector<1x32x128xbf16>,
    %449 = arith.truncf %444 : vector<32x128xf32> to vector<32x128xbf16>
    %c8_168 = arith.constant 8 : index
    %c0_169 = arith.constant 0 : index
    %c0_170 = arith.constant 0 : index
    %450 = vector.load %arg11[%c8_168, %c0_169, %c0_170] : memref<16x32x128xbf16, #tpu.memory_space<vmem>>, vector<1x32x128xbf16>
    %451 = vector.shape_cast %450 : vector<1x32x128xbf16> to vector<32x128xbf16>
    %452 = vector.shape_cast %449 : vector<32x128xbf16> to vector<1x32x128xbf16>
    tpu.vector_store %arg11[%c8_168, %c0_169, %c0_170], %452 {strides = array<i32>} : memref<16x32x128xbf16, #tpu.memory_space<vmem>>, vector<1x32x128xbf16>,
    %c9 = arith.constant 9 : index
    %c0_171 = arith.constant 0 : index
    %c0_172 = arith.constant 0 : index
    %453 = vector.load %arg2[%c9, %c0_171, %c0_172] : memref<16x32x128xi8, #tpu.memory_space<vmem>>, vector<1x32x128xi8>
    %454 = vector.shape_cast %453 : vector<1x32x128xi8> to vector<32x128xi8>
    %455 = arith.sitofp %454 : vector<32x128xi8> to vector<32x128xbf16>
    %c0_173 = arith.constant 0 : index
    %c0_174 = arith.constant 0 : index
    %456 = vector.load %arg3[%c0_173, %c0_174] : memref<128x512xbf16, #tpu.memory_space<vmem>>, vector<128x512xbf16>
    %cst_175 = arith.constant dense<0.000000e+00> : vector<32x512xf32>
    %457 = tpu.matmul %455, %456, %cst_175 {dimension_numbers = #tpu.dot_dimension_numbers<[1], [0], [0], [1], [0, 0, 1, 1], [], []>} : vector<32x128xbf16>, vector<128x512xbf16>, vector<32x512xf32> -> vector<32x512xf32>
    %458 = vector.broadcast %3 : vector<1x512xf32> to vector<32x512xf32>
    %459 = arith.addf %457, %458 : vector<32x512xf32>
    %460 = vector.broadcast %4 : vector<1x512xf32> to vector<32x512xf32>
    %461 = arith.mulf %460, %415 : vector<32x512xf32>
    %462 = vector.broadcast %5 : vector<1x512xf32> to vector<32x512xf32>
    %463 = arith.mulf %462, %459 : vector<32x512xf32>
    %464 = arith.addf %461, %463 : vector<32x512xf32>
    %465 = vector.extract_strided_slice %464 {offsets = [0, 0], sizes = [32, 128], strides = [1, 1]} : vector<32x512xf32> to vector<32x128xf32>
    %466 = vector.extract_strided_slice %464 {offsets = [0, 128], sizes = [32, 128], strides = [1, 1]} : vector<32x512xf32> to vector<32x128xf32>
    %467 = arith.addf %465, %466 : vector<32x128xf32>
    %468 = vector.extract_strided_slice %464 {offsets = [0, 256], sizes = [32, 128], strides = [1, 1]} : vector<32x512xf32> to vector<32x128xf32>
    %469 = arith.addf %467, %468 : vector<32x128xf32>
    %470 = vector.extract_strided_slice %464 {offsets = [0, 384], sizes = [32, 128], strides = [1, 1]} : vector<32x512xf32> to vector<32x128xf32>
    %471 = arith.addf %469, %470 : vector<32x128xf32>
    %c0_176 = arith.constant 0 : index
    %c9_177 = arith.constant 9 : index
    %c0_178 = arith.constant 0 : index
    %472 = vector.load %arg6[%c0_176, %c9_177, %c0_178] : memref<1x16x128xf32, #tpu.memory_space<vmem>>, vector<1x1x128xf32>
    %473 = vector.shape_cast %472 : vector<1x1x128xf32> to vector<1x128xf32>
    %cst_179 = arith.constant 0.000000e+00 : f32
    %474 = vector.broadcast %cst_179 : f32 to vector<1x128xf32>
    %475 = arith.cmpf ogt, %473, %474 : vector<1x128xf32>
    %476 = vector.broadcast %6 : vector<1x128xf32> to vector<32x128xf32>
    %477 = arith.mulf %437, %476 : vector<32x128xf32>
    %478 = vector.broadcast %7 : vector<1x128xf32> to vector<32x128xf32>
    %479 = arith.mulf %478, %471 : vector<32x128xf32>
    %480 = arith.addf %477, %479 : vector<32x128xf32>
    %481 = vector.broadcast %8 : vector<1x128xf32> to vector<32x128xf32>
    %482 = arith.mulf %481, %444 : vector<32x128xf32>
    %483 = arith.subf %480, %482 : vector<32x128xf32>
    %484 = vector.shape_cast %475 : vector<1x128xi1> to vector<1x128xi1>
    %485 = vector.broadcast %484 : vector<1x128xi1> to vector<32x128xi1>
    %486 = arith.select %485, %483, %437 : vector<32x128xi1>, vector<32x128xf32>
    %487 = vector.broadcast %8 : vector<1x128xf32> to vector<32x128xf32>
    %488 = arith.cmpf ogt, %486, %487 : vector<32x128xf32>
    %489 = vector.broadcast %475 : vector<1x128xi1> to vector<32x128xi1>
    %490 = arith.andi %488, %489 : vector<32x128xi1>
    %cst_180 = arith.constant 1.000000e+00 : f32
    %cst_181 = arith.constant 0.000000e+00 : f32
    %491 = vector.broadcast %cst_180 : f32 to vector<32x128xf32>
    %492 = vector.broadcast %cst_181 : f32 to vector<32x128xf32>
    %493 = arith.select %490, %491, %492 : vector<32x128xi1>, vector<32x128xf32>
    %494 = arith.truncf %486 : vector<32x128xf32> to vector<32x128xbf16>
    %c9_182 = arith.constant 9 : index
    %c0_183 = arith.constant 0 : index
    %c0_184 = arith.constant 0 : index
    %495 = vector.load %arg10[%c9_182, %c0_183, %c0_184] : memref<16x32x128xbf16, #tpu.memory_space<vmem>>, vector<1x32x128xbf16>
    %496 = vector.shape_cast %495 : vector<1x32x128xbf16> to vector<32x128xbf16>
    %497 = vector.shape_cast %494 : vector<32x128xbf16> to vector<1x32x128xbf16>
    tpu.vector_store %arg10[%c9_182, %c0_183, %c0_184], %497 {strides = array<i32>} : memref<16x32x128xbf16, #tpu.memory_space<vmem>>, vector<1x32x128xbf16>,
    %498 = arith.truncf %493 : vector<32x128xf32> to vector<32x128xbf16>
    %c9_185 = arith.constant 9 : index
    %c0_186 = arith.constant 0 : index
    %c0_187 = arith.constant 0 : index
    %499 = vector.load %arg11[%c9_185, %c0_186, %c0_187] : memref<16x32x128xbf16, #tpu.memory_space<vmem>>, vector<1x32x128xbf16>
    %500 = vector.shape_cast %499 : vector<1x32x128xbf16> to vector<32x128xbf16>
    %501 = vector.shape_cast %498 : vector<32x128xbf16> to vector<1x32x128xbf16>
    tpu.vector_store %arg11[%c9_185, %c0_186, %c0_187], %501 {strides = array<i32>} : memref<16x32x128xbf16, #tpu.memory_space<vmem>>, vector<1x32x128xbf16>,
    %c10 = arith.constant 10 : index
    %c0_188 = arith.constant 0 : index
    %c0_189 = arith.constant 0 : index
    %502 = vector.load %arg2[%c10, %c0_188, %c0_189] : memref<16x32x128xi8, #tpu.memory_space<vmem>>, vector<1x32x128xi8>
    %503 = vector.shape_cast %502 : vector<1x32x128xi8> to vector<32x128xi8>
    %504 = arith.sitofp %503 : vector<32x128xi8> to vector<32x128xbf16>
    %c0_190 = arith.constant 0 : index
    %c0_191 = arith.constant 0 : index
    %505 = vector.load %arg3[%c0_190, %c0_191] : memref<128x512xbf16, #tpu.memory_space<vmem>>, vector<128x512xbf16>
    %cst_192 = arith.constant dense<0.000000e+00> : vector<32x512xf32>
    %506 = tpu.matmul %504, %505, %cst_192 {dimension_numbers = #tpu.dot_dimension_numbers<[1], [0], [0], [1], [0, 0, 1, 1], [], []>} : vector<32x128xbf16>, vector<128x512xbf16>, vector<32x512xf32> -> vector<32x512xf32>
    %507 = vector.broadcast %3 : vector<1x512xf32> to vector<32x512xf32>
    %508 = arith.addf %506, %507 : vector<32x512xf32>
    %509 = vector.broadcast %4 : vector<1x512xf32> to vector<32x512xf32>
    %510 = arith.mulf %509, %464 : vector<32x512xf32>
    %511 = vector.broadcast %5 : vector<1x512xf32> to vector<32x512xf32>
    %512 = arith.mulf %511, %508 : vector<32x512xf32>
    %513 = arith.addf %510, %512 : vector<32x512xf32>
    %514 = vector.extract_strided_slice %513 {offsets = [0, 0], sizes = [32, 128], strides = [1, 1]} : vector<32x512xf32> to vector<32x128xf32>
    %515 = vector.extract_strided_slice %513 {offsets = [0, 128], sizes = [32, 128], strides = [1, 1]} : vector<32x512xf32> to vector<32x128xf32>
    %516 = arith.addf %514, %515 : vector<32x128xf32>
    %517 = vector.extract_strided_slice %513 {offsets = [0, 256], sizes = [32, 128], strides = [1, 1]} : vector<32x512xf32> to vector<32x128xf32>
    %518 = arith.addf %516, %517 : vector<32x128xf32>
    %519 = vector.extract_strided_slice %513 {offsets = [0, 384], sizes = [32, 128], strides = [1, 1]} : vector<32x512xf32> to vector<32x128xf32>
    %520 = arith.addf %518, %519 : vector<32x128xf32>
    %c0_193 = arith.constant 0 : index
    %c10_194 = arith.constant 10 : index
    %c0_195 = arith.constant 0 : index
    %521 = vector.load %arg6[%c0_193, %c10_194, %c0_195] : memref<1x16x128xf32, #tpu.memory_space<vmem>>, vector<1x1x128xf32>
    %522 = vector.shape_cast %521 : vector<1x1x128xf32> to vector<1x128xf32>
    %cst_196 = arith.constant 0.000000e+00 : f32
    %523 = vector.broadcast %cst_196 : f32 to vector<1x128xf32>
    %524 = arith.cmpf ogt, %522, %523 : vector<1x128xf32>
    %525 = vector.broadcast %6 : vector<1x128xf32> to vector<32x128xf32>
    %526 = arith.mulf %486, %525 : vector<32x128xf32>
    %527 = vector.broadcast %7 : vector<1x128xf32> to vector<32x128xf32>
    %528 = arith.mulf %527, %520 : vector<32x128xf32>
    %529 = arith.addf %526, %528 : vector<32x128xf32>
    %530 = vector.broadcast %8 : vector<1x128xf32> to vector<32x128xf32>
    %531 = arith.mulf %530, %493 : vector<32x128xf32>
    %532 = arith.subf %529, %531 : vector<32x128xf32>
    %533 = vector.shape_cast %524 : vector<1x128xi1> to vector<1x128xi1>
    %534 = vector.broadcast %533 : vector<1x128xi1> to vector<32x128xi1>
    %535 = arith.select %534, %532, %486 : vector<32x128xi1>, vector<32x128xf32>
    %536 = vector.broadcast %8 : vector<1x128xf32> to vector<32x128xf32>
    %537 = arith.cmpf ogt, %535, %536 : vector<32x128xf32>
    %538 = vector.broadcast %524 : vector<1x128xi1> to vector<32x128xi1>
    %539 = arith.andi %537, %538 : vector<32x128xi1>
    %cst_197 = arith.constant 1.000000e+00 : f32
    %cst_198 = arith.constant 0.000000e+00 : f32
    %540 = vector.broadcast %cst_197 : f32 to vector<32x128xf32>
    %541 = vector.broadcast %cst_198 : f32 to vector<32x128xf32>
    %542 = arith.select %539, %540, %541 : vector<32x128xi1>, vector<32x128xf32>
    %543 = arith.truncf %535 : vector<32x128xf32> to vector<32x128xbf16>
    %c10_199 = arith.constant 10 : index
    %c0_200 = arith.constant 0 : index
    %c0_201 = arith.constant 0 : index
    %544 = vector.load %arg10[%c10_199, %c0_200, %c0_201] : memref<16x32x128xbf16, #tpu.memory_space<vmem>>, vector<1x32x128xbf16>
    %545 = vector.shape_cast %544 : vector<1x32x128xbf16> to vector<32x128xbf16>
    %546 = vector.shape_cast %543 : vector<32x128xbf16> to vector<1x32x128xbf16>
    tpu.vector_store %arg10[%c10_199, %c0_200, %c0_201], %546 {strides = array<i32>} : memref<16x32x128xbf16, #tpu.memory_space<vmem>>, vector<1x32x128xbf16>,
    %547 = arith.truncf %542 : vector<32x128xf32> to vector<32x128xbf16>
    %c10_202 = arith.constant 10 : index
    %c0_203 = arith.constant 0 : index
    %c0_204 = arith.constant 0 : index
    %548 = vector.load %arg11[%c10_202, %c0_203, %c0_204] : memref<16x32x128xbf16, #tpu.memory_space<vmem>>, vector<1x32x128xbf16>
    %549 = vector.shape_cast %548 : vector<1x32x128xbf16> to vector<32x128xbf16>
    %550 = vector.shape_cast %547 : vector<32x128xbf16> to vector<1x32x128xbf16>
    tpu.vector_store %arg11[%c10_202, %c0_203, %c0_204], %550 {strides = array<i32>} : memref<16x32x128xbf16, #tpu.memory_space<vmem>>, vector<1x32x128xbf16>,
    %c11 = arith.constant 11 : index
    %c0_205 = arith.constant 0 : index
    %c0_206 = arith.constant 0 : index
    %551 = vector.load %arg2[%c11, %c0_205, %c0_206] : memref<16x32x128xi8, #tpu.memory_space<vmem>>, vector<1x32x128xi8>
    %552 = vector.shape_cast %551 : vector<1x32x128xi8> to vector<32x128xi8>
    %553 = arith.sitofp %552 : vector<32x128xi8> to vector<32x128xbf16>
    %c0_207 = arith.constant 0 : index
    %c0_208 = arith.constant 0 : index
    %554 = vector.load %arg3[%c0_207, %c0_208] : memref<128x512xbf16, #tpu.memory_space<vmem>>, vector<128x512xbf16>
    %cst_209 = arith.constant dense<0.000000e+00> : vector<32x512xf32>
    %555 = tpu.matmul %553, %554, %cst_209 {dimension_numbers = #tpu.dot_dimension_numbers<[1], [0], [0], [1], [0, 0, 1, 1], [], []>} : vector<32x128xbf16>, vector<128x512xbf16>, vector<32x512xf32> -> vector<32x512xf32>
    %556 = vector.broadcast %3 : vector<1x512xf32> to vector<32x512xf32>
    %557 = arith.addf %555, %556 : vector<32x512xf32>
    %558 = vector.broadcast %4 : vector<1x512xf32> to vector<32x512xf32>
    %559 = arith.mulf %558, %513 : vector<32x512xf32>
    %560 = vector.broadcast %5 : vector<1x512xf32> to vector<32x512xf32>
    %561 = arith.mulf %560, %557 : vector<32x512xf32>
    %562 = arith.addf %559, %561 : vector<32x512xf32>
    %563 = vector.extract_strided_slice %562 {offsets = [0, 0], sizes = [32, 128], strides = [1, 1]} : vector<32x512xf32> to vector<32x128xf32>
    %564 = vector.extract_strided_slice %562 {offsets = [0, 128], sizes = [32, 128], strides = [1, 1]} : vector<32x512xf32> to vector<32x128xf32>
    %565 = arith.addf %563, %564 : vector<32x128xf32>
    %566 = vector.extract_strided_slice %562 {offsets = [0, 256], sizes = [32, 128], strides = [1, 1]} : vector<32x512xf32> to vector<32x128xf32>
    %567 = arith.addf %565, %566 : vector<32x128xf32>
    %568 = vector.extract_strided_slice %562 {offsets = [0, 384], sizes = [32, 128], strides = [1, 1]} : vector<32x512xf32> to vector<32x128xf32>
    %569 = arith.addf %567, %568 : vector<32x128xf32>
    %c0_210 = arith.constant 0 : index
    %c11_211 = arith.constant 11 : index
    %c0_212 = arith.constant 0 : index
    %570 = vector.load %arg6[%c0_210, %c11_211, %c0_212] : memref<1x16x128xf32, #tpu.memory_space<vmem>>, vector<1x1x128xf32>
    %571 = vector.shape_cast %570 : vector<1x1x128xf32> to vector<1x128xf32>
    %cst_213 = arith.constant 0.000000e+00 : f32
    %572 = vector.broadcast %cst_213 : f32 to vector<1x128xf32>
    %573 = arith.cmpf ogt, %571, %572 : vector<1x128xf32>
    %574 = vector.broadcast %6 : vector<1x128xf32> to vector<32x128xf32>
    %575 = arith.mulf %535, %574 : vector<32x128xf32>
    %576 = vector.broadcast %7 : vector<1x128xf32> to vector<32x128xf32>
    %577 = arith.mulf %576, %569 : vector<32x128xf32>
    %578 = arith.addf %575, %577 : vector<32x128xf32>
    %579 = vector.broadcast %8 : vector<1x128xf32> to vector<32x128xf32>
    %580 = arith.mulf %579, %542 : vector<32x128xf32>
    %581 = arith.subf %578, %580 : vector<32x128xf32>
    %582 = vector.shape_cast %573 : vector<1x128xi1> to vector<1x128xi1>
    %583 = vector.broadcast %582 : vector<1x128xi1> to vector<32x128xi1>
    %584 = arith.select %583, %581, %535 : vector<32x128xi1>, vector<32x128xf32>
    %585 = vector.broadcast %8 : vector<1x128xf32> to vector<32x128xf32>
    %586 = arith.cmpf ogt, %584, %585 : vector<32x128xf32>
    %587 = vector.broadcast %573 : vector<1x128xi1> to vector<32x128xi1>
    %588 = arith.andi %586, %587 : vector<32x128xi1>
    %cst_214 = arith.constant 1.000000e+00 : f32
    %cst_215 = arith.constant 0.000000e+00 : f32
    %589 = vector.broadcast %cst_214 : f32 to vector<32x128xf32>
    %590 = vector.broadcast %cst_215 : f32 to vector<32x128xf32>
    %591 = arith.select %588, %589, %590 : vector<32x128xi1>, vector<32x128xf32>
    %592 = arith.truncf %584 : vector<32x128xf32> to vector<32x128xbf16>
    %c11_216 = arith.constant 11 : index
    %c0_217 = arith.constant 0 : index
    %c0_218 = arith.constant 0 : index
    %593 = vector.load %arg10[%c11_216, %c0_217, %c0_218] : memref<16x32x128xbf16, #tpu.memory_space<vmem>>, vector<1x32x128xbf16>
    %594 = vector.shape_cast %593 : vector<1x32x128xbf16> to vector<32x128xbf16>
    %595 = vector.shape_cast %592 : vector<32x128xbf16> to vector<1x32x128xbf16>
    tpu.vector_store %arg10[%c11_216, %c0_217, %c0_218], %595 {strides = array<i32>} : memref<16x32x128xbf16, #tpu.memory_space<vmem>>, vector<1x32x128xbf16>,
    %596 = arith.truncf %591 : vector<32x128xf32> to vector<32x128xbf16>
    %c11_219 = arith.constant 11 : index
    %c0_220 = arith.constant 0 : index
    %c0_221 = arith.constant 0 : index
    %597 = vector.load %arg11[%c11_219, %c0_220, %c0_221] : memref<16x32x128xbf16, #tpu.memory_space<vmem>>, vector<1x32x128xbf16>
    %598 = vector.shape_cast %597 : vector<1x32x128xbf16> to vector<32x128xbf16>
    %599 = vector.shape_cast %596 : vector<32x128xbf16> to vector<1x32x128xbf16>
    tpu.vector_store %arg11[%c11_219, %c0_220, %c0_221], %599 {strides = array<i32>} : memref<16x32x128xbf16, #tpu.memory_space<vmem>>, vector<1x32x128xbf16>,
    %c12 = arith.constant 12 : index
    %c0_222 = arith.constant 0 : index
    %c0_223 = arith.constant 0 : index
    %600 = vector.load %arg2[%c12, %c0_222, %c0_223] : memref<16x32x128xi8, #tpu.memory_space<vmem>>, vector<1x32x128xi8>
    %601 = vector.shape_cast %600 : vector<1x32x128xi8> to vector<32x128xi8>
    %602 = arith.sitofp %601 : vector<32x128xi8> to vector<32x128xbf16>
    %c0_224 = arith.constant 0 : index
    %c0_225 = arith.constant 0 : index
    %603 = vector.load %arg3[%c0_224, %c0_225] : memref<128x512xbf16, #tpu.memory_space<vmem>>, vector<128x512xbf16>
    %cst_226 = arith.constant dense<0.000000e+00> : vector<32x512xf32>
    %604 = tpu.matmul %602, %603, %cst_226 {dimension_numbers = #tpu.dot_dimension_numbers<[1], [0], [0], [1], [0, 0, 1, 1], [], []>} : vector<32x128xbf16>, vector<128x512xbf16>, vector<32x512xf32> -> vector<32x512xf32>
    %605 = vector.broadcast %3 : vector<1x512xf32> to vector<32x512xf32>
    %606 = arith.addf %604, %605 : vector<32x512xf32>
    %607 = vector.broadcast %4 : vector<1x512xf32> to vector<32x512xf32>
    %608 = arith.mulf %607, %562 : vector<32x512xf32>
    %609 = vector.broadcast %5 : vector<1x512xf32> to vector<32x512xf32>
    %610 = arith.mulf %609, %606 : vector<32x512xf32>
    %611 = arith.addf %608, %610 : vector<32x512xf32>
    %612 = vector.extract_strided_slice %611 {offsets = [0, 0], sizes = [32, 128], strides = [1, 1]} : vector<32x512xf32> to vector<32x128xf32>
    %613 = vector.extract_strided_slice %611 {offsets = [0, 128], sizes = [32, 128], strides = [1, 1]} : vector<32x512xf32> to vector<32x128xf32>
    %614 = arith.addf %612, %613 : vector<32x128xf32>
    %615 = vector.extract_strided_slice %611 {offsets = [0, 256], sizes = [32, 128], strides = [1, 1]} : vector<32x512xf32> to vector<32x128xf32>
    %616 = arith.addf %614, %615 : vector<32x128xf32>
    %617 = vector.extract_strided_slice %611 {offsets = [0, 384], sizes = [32, 128], strides = [1, 1]} : vector<32x512xf32> to vector<32x128xf32>
    %618 = arith.addf %616, %617 : vector<32x128xf32>
    %c0_227 = arith.constant 0 : index
    %c12_228 = arith.constant 12 : index
    %c0_229 = arith.constant 0 : index
    %619 = vector.load %arg6[%c0_227, %c12_228, %c0_229] : memref<1x16x128xf32, #tpu.memory_space<vmem>>, vector<1x1x128xf32>
    %620 = vector.shape_cast %619 : vector<1x1x128xf32> to vector<1x128xf32>
    %cst_230 = arith.constant 0.000000e+00 : f32
    %621 = vector.broadcast %cst_230 : f32 to vector<1x128xf32>
    %622 = arith.cmpf ogt, %620, %621 : vector<1x128xf32>
    %623 = vector.broadcast %6 : vector<1x128xf32> to vector<32x128xf32>
    %624 = arith.mulf %584, %623 : vector<32x128xf32>
    %625 = vector.broadcast %7 : vector<1x128xf32> to vector<32x128xf32>
    %626 = arith.mulf %625, %618 : vector<32x128xf32>
    %627 = arith.addf %624, %626 : vector<32x128xf32>
    %628 = vector.broadcast %8 : vector<1x128xf32> to vector<32x128xf32>
    %629 = arith.mulf %628, %591 : vector<32x128xf32>
    %630 = arith.subf %627, %629 : vector<32x128xf32>
    %631 = vector.shape_cast %622 : vector<1x128xi1> to vector<1x128xi1>
    %632 = vector.broadcast %631 : vector<1x128xi1> to vector<32x128xi1>
    %633 = arith.select %632, %630, %584 : vector<32x128xi1>, vector<32x128xf32>
    %634 = vector.broadcast %8 : vector<1x128xf32> to vector<32x128xf32>
    %635 = arith.cmpf ogt, %633, %634 : vector<32x128xf32>
    %636 = vector.broadcast %622 : vector<1x128xi1> to vector<32x128xi1>
    %637 = arith.andi %635, %636 : vector<32x128xi1>
    %cst_231 = arith.constant 1.000000e+00 : f32
    %cst_232 = arith.constant 0.000000e+00 : f32
    %638 = vector.broadcast %cst_231 : f32 to vector<32x128xf32>
    %639 = vector.broadcast %cst_232 : f32 to vector<32x128xf32>
    %640 = arith.select %637, %638, %639 : vector<32x128xi1>, vector<32x128xf32>
    %641 = arith.truncf %633 : vector<32x128xf32> to vector<32x128xbf16>
    %c12_233 = arith.constant 12 : index
    %c0_234 = arith.constant 0 : index
    %c0_235 = arith.constant 0 : index
    %642 = vector.load %arg10[%c12_233, %c0_234, %c0_235] : memref<16x32x128xbf16, #tpu.memory_space<vmem>>, vector<1x32x128xbf16>
    %643 = vector.shape_cast %642 : vector<1x32x128xbf16> to vector<32x128xbf16>
    %644 = vector.shape_cast %641 : vector<32x128xbf16> to vector<1x32x128xbf16>
    tpu.vector_store %arg10[%c12_233, %c0_234, %c0_235], %644 {strides = array<i32>} : memref<16x32x128xbf16, #tpu.memory_space<vmem>>, vector<1x32x128xbf16>,
    %645 = arith.truncf %640 : vector<32x128xf32> to vector<32x128xbf16>
    %c12_236 = arith.constant 12 : index
    %c0_237 = arith.constant 0 : index
    %c0_238 = arith.constant 0 : index
    %646 = vector.load %arg11[%c12_236, %c0_237, %c0_238] : memref<16x32x128xbf16, #tpu.memory_space<vmem>>, vector<1x32x128xbf16>
    %647 = vector.shape_cast %646 : vector<1x32x128xbf16> to vector<32x128xbf16>
    %648 = vector.shape_cast %645 : vector<32x128xbf16> to vector<1x32x128xbf16>
    tpu.vector_store %arg11[%c12_236, %c0_237, %c0_238], %648 {strides = array<i32>} : memref<16x32x128xbf16, #tpu.memory_space<vmem>>, vector<1x32x128xbf16>,
    %c13 = arith.constant 13 : index
    %c0_239 = arith.constant 0 : index
    %c0_240 = arith.constant 0 : index
    %649 = vector.load %arg2[%c13, %c0_239, %c0_240] : memref<16x32x128xi8, #tpu.memory_space<vmem>>, vector<1x32x128xi8>
    %650 = vector.shape_cast %649 : vector<1x32x128xi8> to vector<32x128xi8>
    %651 = arith.sitofp %650 : vector<32x128xi8> to vector<32x128xbf16>
    %c0_241 = arith.constant 0 : index
    %c0_242 = arith.constant 0 : index
    %652 = vector.load %arg3[%c0_241, %c0_242] : memref<128x512xbf16, #tpu.memory_space<vmem>>, vector<128x512xbf16>
    %cst_243 = arith.constant dense<0.000000e+00> : vector<32x512xf32>
    %653 = tpu.matmul %651, %652, %cst_243 {dimension_numbers = #tpu.dot_dimension_numbers<[1], [0], [0], [1], [0, 0, 1, 1], [], []>} : vector<32x128xbf16>, vector<128x512xbf16>, vector<32x512xf32> -> vector<32x512xf32>
    %654 = vector.broadcast %3 : vector<1x512xf32> to vector<32x512xf32>
    %655 = arith.addf %653, %654 : vector<32x512xf32>
    %656 = vector.broadcast %4 : vector<1x512xf32> to vector<32x512xf32>
    %657 = arith.mulf %656, %611 : vector<32x512xf32>
    %658 = vector.broadcast %5 : vector<1x512xf32> to vector<32x512xf32>
    %659 = arith.mulf %658, %655 : vector<32x512xf32>
    %660 = arith.addf %657, %659 : vector<32x512xf32>
    %661 = vector.extract_strided_slice %660 {offsets = [0, 0], sizes = [32, 128], strides = [1, 1]} : vector<32x512xf32> to vector<32x128xf32>
    %662 = vector.extract_strided_slice %660 {offsets = [0, 128], sizes = [32, 128], strides = [1, 1]} : vector<32x512xf32> to vector<32x128xf32>
    %663 = arith.addf %661, %662 : vector<32x128xf32>
    %664 = vector.extract_strided_slice %660 {offsets = [0, 256], sizes = [32, 128], strides = [1, 1]} : vector<32x512xf32> to vector<32x128xf32>
    %665 = arith.addf %663, %664 : vector<32x128xf32>
    %666 = vector.extract_strided_slice %660 {offsets = [0, 384], sizes = [32, 128], strides = [1, 1]} : vector<32x512xf32> to vector<32x128xf32>
    %667 = arith.addf %665, %666 : vector<32x128xf32>
    %c0_244 = arith.constant 0 : index
    %c13_245 = arith.constant 13 : index
    %c0_246 = arith.constant 0 : index
    %668 = vector.load %arg6[%c0_244, %c13_245, %c0_246] : memref<1x16x128xf32, #tpu.memory_space<vmem>>, vector<1x1x128xf32>
    %669 = vector.shape_cast %668 : vector<1x1x128xf32> to vector<1x128xf32>
    %cst_247 = arith.constant 0.000000e+00 : f32
    %670 = vector.broadcast %cst_247 : f32 to vector<1x128xf32>
    %671 = arith.cmpf ogt, %669, %670 : vector<1x128xf32>
    %672 = vector.broadcast %6 : vector<1x128xf32> to vector<32x128xf32>
    %673 = arith.mulf %633, %672 : vector<32x128xf32>
    %674 = vector.broadcast %7 : vector<1x128xf32> to vector<32x128xf32>
    %675 = arith.mulf %674, %667 : vector<32x128xf32>
    %676 = arith.addf %673, %675 : vector<32x128xf32>
    %677 = vector.broadcast %8 : vector<1x128xf32> to vector<32x128xf32>
    %678 = arith.mulf %677, %640 : vector<32x128xf32>
    %679 = arith.subf %676, %678 : vector<32x128xf32>
    %680 = vector.shape_cast %671 : vector<1x128xi1> to vector<1x128xi1>
    %681 = vector.broadcast %680 : vector<1x128xi1> to vector<32x128xi1>
    %682 = arith.select %681, %679, %633 : vector<32x128xi1>, vector<32x128xf32>
    %683 = vector.broadcast %8 : vector<1x128xf32> to vector<32x128xf32>
    %684 = arith.cmpf ogt, %682, %683 : vector<32x128xf32>
    %685 = vector.broadcast %671 : vector<1x128xi1> to vector<32x128xi1>
    %686 = arith.andi %684, %685 : vector<32x128xi1>
    %cst_248 = arith.constant 1.000000e+00 : f32
    %cst_249 = arith.constant 0.000000e+00 : f32
    %687 = vector.broadcast %cst_248 : f32 to vector<32x128xf32>
    %688 = vector.broadcast %cst_249 : f32 to vector<32x128xf32>
    %689 = arith.select %686, %687, %688 : vector<32x128xi1>, vector<32x128xf32>
    %690 = arith.truncf %682 : vector<32x128xf32> to vector<32x128xbf16>
    %c13_250 = arith.constant 13 : index
    %c0_251 = arith.constant 0 : index
    %c0_252 = arith.constant 0 : index
    %691 = vector.load %arg10[%c13_250, %c0_251, %c0_252] : memref<16x32x128xbf16, #tpu.memory_space<vmem>>, vector<1x32x128xbf16>
    %692 = vector.shape_cast %691 : vector<1x32x128xbf16> to vector<32x128xbf16>
    %693 = vector.shape_cast %690 : vector<32x128xbf16> to vector<1x32x128xbf16>
    tpu.vector_store %arg10[%c13_250, %c0_251, %c0_252], %693 {strides = array<i32>} : memref<16x32x128xbf16, #tpu.memory_space<vmem>>, vector<1x32x128xbf16>,
    %694 = arith.truncf %689 : vector<32x128xf32> to vector<32x128xbf16>
    %c13_253 = arith.constant 13 : index
    %c0_254 = arith.constant 0 : index
    %c0_255 = arith.constant 0 : index
    %695 = vector.load %arg11[%c13_253, %c0_254, %c0_255] : memref<16x32x128xbf16, #tpu.memory_space<vmem>>, vector<1x32x128xbf16>
    %696 = vector.shape_cast %695 : vector<1x32x128xbf16> to vector<32x128xbf16>
    %697 = vector.shape_cast %694 : vector<32x128xbf16> to vector<1x32x128xbf16>
    tpu.vector_store %arg11[%c13_253, %c0_254, %c0_255], %697 {strides = array<i32>} : memref<16x32x128xbf16, #tpu.memory_space<vmem>>, vector<1x32x128xbf16>,
    %c14 = arith.constant 14 : index
    %c0_256 = arith.constant 0 : index
    %c0_257 = arith.constant 0 : index
    %698 = vector.load %arg2[%c14, %c0_256, %c0_257] : memref<16x32x128xi8, #tpu.memory_space<vmem>>, vector<1x32x128xi8>
    %699 = vector.shape_cast %698 : vector<1x32x128xi8> to vector<32x128xi8>
    %700 = arith.sitofp %699 : vector<32x128xi8> to vector<32x128xbf16>
    %c0_258 = arith.constant 0 : index
    %c0_259 = arith.constant 0 : index
    %701 = vector.load %arg3[%c0_258, %c0_259] : memref<128x512xbf16, #tpu.memory_space<vmem>>, vector<128x512xbf16>
    %cst_260 = arith.constant dense<0.000000e+00> : vector<32x512xf32>
    %702 = tpu.matmul %700, %701, %cst_260 {dimension_numbers = #tpu.dot_dimension_numbers<[1], [0], [0], [1], [0, 0, 1, 1], [], []>} : vector<32x128xbf16>, vector<128x512xbf16>, vector<32x512xf32> -> vector<32x512xf32>
    %703 = vector.broadcast %3 : vector<1x512xf32> to vector<32x512xf32>
    %704 = arith.addf %702, %703 : vector<32x512xf32>
    %705 = vector.broadcast %4 : vector<1x512xf32> to vector<32x512xf32>
    %706 = arith.mulf %705, %660 : vector<32x512xf32>
    %707 = vector.broadcast %5 : vector<1x512xf32> to vector<32x512xf32>
    %708 = arith.mulf %707, %704 : vector<32x512xf32>
    %709 = arith.addf %706, %708 : vector<32x512xf32>
    %710 = vector.extract_strided_slice %709 {offsets = [0, 0], sizes = [32, 128], strides = [1, 1]} : vector<32x512xf32> to vector<32x128xf32>
    %711 = vector.extract_strided_slice %709 {offsets = [0, 128], sizes = [32, 128], strides = [1, 1]} : vector<32x512xf32> to vector<32x128xf32>
    %712 = arith.addf %710, %711 : vector<32x128xf32>
    %713 = vector.extract_strided_slice %709 {offsets = [0, 256], sizes = [32, 128], strides = [1, 1]} : vector<32x512xf32> to vector<32x128xf32>
    %714 = arith.addf %712, %713 : vector<32x128xf32>
    %715 = vector.extract_strided_slice %709 {offsets = [0, 384], sizes = [32, 128], strides = [1, 1]} : vector<32x512xf32> to vector<32x128xf32>
    %716 = arith.addf %714, %715 : vector<32x128xf32>
    %c0_261 = arith.constant 0 : index
    %c14_262 = arith.constant 14 : index
    %c0_263 = arith.constant 0 : index
    %717 = vector.load %arg6[%c0_261, %c14_262, %c0_263] : memref<1x16x128xf32, #tpu.memory_space<vmem>>, vector<1x1x128xf32>
    %718 = vector.shape_cast %717 : vector<1x1x128xf32> to vector<1x128xf32>
    %cst_264 = arith.constant 0.000000e+00 : f32
    %719 = vector.broadcast %cst_264 : f32 to vector<1x128xf32>
    %720 = arith.cmpf ogt, %718, %719 : vector<1x128xf32>
    %721 = vector.broadcast %6 : vector<1x128xf32> to vector<32x128xf32>
    %722 = arith.mulf %682, %721 : vector<32x128xf32>
    %723 = vector.broadcast %7 : vector<1x128xf32> to vector<32x128xf32>
    %724 = arith.mulf %723, %716 : vector<32x128xf32>
    %725 = arith.addf %722, %724 : vector<32x128xf32>
    %726 = vector.broadcast %8 : vector<1x128xf32> to vector<32x128xf32>
    %727 = arith.mulf %726, %689 : vector<32x128xf32>
    %728 = arith.subf %725, %727 : vector<32x128xf32>
    %729 = vector.shape_cast %720 : vector<1x128xi1> to vector<1x128xi1>
    %730 = vector.broadcast %729 : vector<1x128xi1> to vector<32x128xi1>
    %731 = arith.select %730, %728, %682 : vector<32x128xi1>, vector<32x128xf32>
    %732 = vector.broadcast %8 : vector<1x128xf32> to vector<32x128xf32>
    %733 = arith.cmpf ogt, %731, %732 : vector<32x128xf32>
    %734 = vector.broadcast %720 : vector<1x128xi1> to vector<32x128xi1>
    %735 = arith.andi %733, %734 : vector<32x128xi1>
    %cst_265 = arith.constant 1.000000e+00 : f32
    %cst_266 = arith.constant 0.000000e+00 : f32
    %736 = vector.broadcast %cst_265 : f32 to vector<32x128xf32>
    %737 = vector.broadcast %cst_266 : f32 to vector<32x128xf32>
    %738 = arith.select %735, %736, %737 : vector<32x128xi1>, vector<32x128xf32>
    %739 = arith.truncf %731 : vector<32x128xf32> to vector<32x128xbf16>
    %c14_267 = arith.constant 14 : index
    %c0_268 = arith.constant 0 : index
    %c0_269 = arith.constant 0 : index
    %740 = vector.load %arg10[%c14_267, %c0_268, %c0_269] : memref<16x32x128xbf16, #tpu.memory_space<vmem>>, vector<1x32x128xbf16>
    %741 = vector.shape_cast %740 : vector<1x32x128xbf16> to vector<32x128xbf16>
    %742 = vector.shape_cast %739 : vector<32x128xbf16> to vector<1x32x128xbf16>
    tpu.vector_store %arg10[%c14_267, %c0_268, %c0_269], %742 {strides = array<i32>} : memref<16x32x128xbf16, #tpu.memory_space<vmem>>, vector<1x32x128xbf16>,
    %743 = arith.truncf %738 : vector<32x128xf32> to vector<32x128xbf16>
    %c14_270 = arith.constant 14 : index
    %c0_271 = arith.constant 0 : index
    %c0_272 = arith.constant 0 : index
    %744 = vector.load %arg11[%c14_270, %c0_271, %c0_272] : memref<16x32x128xbf16, #tpu.memory_space<vmem>>, vector<1x32x128xbf16>
    %745 = vector.shape_cast %744 : vector<1x32x128xbf16> to vector<32x128xbf16>
    %746 = vector.shape_cast %743 : vector<32x128xbf16> to vector<1x32x128xbf16>
    tpu.vector_store %arg11[%c14_270, %c0_271, %c0_272], %746 {strides = array<i32>} : memref<16x32x128xbf16, #tpu.memory_space<vmem>>, vector<1x32x128xbf16>,
    %c15 = arith.constant 15 : index
    %c0_273 = arith.constant 0 : index
    %c0_274 = arith.constant 0 : index
    %747 = vector.load %arg2[%c15, %c0_273, %c0_274] : memref<16x32x128xi8, #tpu.memory_space<vmem>>, vector<1x32x128xi8>
    %748 = vector.shape_cast %747 : vector<1x32x128xi8> to vector<32x128xi8>
    %749 = arith.sitofp %748 : vector<32x128xi8> to vector<32x128xbf16>
    %c0_275 = arith.constant 0 : index
    %c0_276 = arith.constant 0 : index
    %750 = vector.load %arg3[%c0_275, %c0_276] : memref<128x512xbf16, #tpu.memory_space<vmem>>, vector<128x512xbf16>
    %cst_277 = arith.constant dense<0.000000e+00> : vector<32x512xf32>
    %751 = tpu.matmul %749, %750, %cst_277 {dimension_numbers = #tpu.dot_dimension_numbers<[1], [0], [0], [1], [0, 0, 1, 1], [], []>} : vector<32x128xbf16>, vector<128x512xbf16>, vector<32x512xf32> -> vector<32x512xf32>
    %752 = vector.broadcast %3 : vector<1x512xf32> to vector<32x512xf32>
    %753 = arith.addf %751, %752 : vector<32x512xf32>
    %754 = vector.broadcast %4 : vector<1x512xf32> to vector<32x512xf32>
    %755 = arith.mulf %754, %709 : vector<32x512xf32>
    %756 = vector.broadcast %5 : vector<1x512xf32> to vector<32x512xf32>
    %757 = arith.mulf %756, %753 : vector<32x512xf32>
    %758 = arith.addf %755, %757 : vector<32x512xf32>
    %759 = vector.extract_strided_slice %758 {offsets = [0, 0], sizes = [32, 128], strides = [1, 1]} : vector<32x512xf32> to vector<32x128xf32>
    %760 = vector.extract_strided_slice %758 {offsets = [0, 128], sizes = [32, 128], strides = [1, 1]} : vector<32x512xf32> to vector<32x128xf32>
    %761 = arith.addf %759, %760 : vector<32x128xf32>
    %762 = vector.extract_strided_slice %758 {offsets = [0, 256], sizes = [32, 128], strides = [1, 1]} : vector<32x512xf32> to vector<32x128xf32>
    %763 = arith.addf %761, %762 : vector<32x128xf32>
    %764 = vector.extract_strided_slice %758 {offsets = [0, 384], sizes = [32, 128], strides = [1, 1]} : vector<32x512xf32> to vector<32x128xf32>
    %765 = arith.addf %763, %764 : vector<32x128xf32>
    %c0_278 = arith.constant 0 : index
    %c15_279 = arith.constant 15 : index
    %c0_280 = arith.constant 0 : index
    %766 = vector.load %arg6[%c0_278, %c15_279, %c0_280] : memref<1x16x128xf32, #tpu.memory_space<vmem>>, vector<1x1x128xf32>
    %767 = vector.shape_cast %766 : vector<1x1x128xf32> to vector<1x128xf32>
    %cst_281 = arith.constant 0.000000e+00 : f32
    %768 = vector.broadcast %cst_281 : f32 to vector<1x128xf32>
    %769 = arith.cmpf ogt, %767, %768 : vector<1x128xf32>
    %770 = vector.broadcast %6 : vector<1x128xf32> to vector<32x128xf32>
    %771 = arith.mulf %731, %770 : vector<32x128xf32>
    %772 = vector.broadcast %7 : vector<1x128xf32> to vector<32x128xf32>
    %773 = arith.mulf %772, %765 : vector<32x128xf32>
    %774 = arith.addf %771, %773 : vector<32x128xf32>
    %775 = vector.broadcast %8 : vector<1x128xf32> to vector<32x128xf32>
    %776 = arith.mulf %775, %738 : vector<32x128xf32>
    %777 = arith.subf %774, %776 : vector<32x128xf32>
    %778 = vector.shape_cast %769 : vector<1x128xi1> to vector<1x128xi1>
    %779 = vector.broadcast %778 : vector<1x128xi1> to vector<32x128xi1>
    %780 = arith.select %779, %777, %731 : vector<32x128xi1>, vector<32x128xf32>
    %781 = vector.broadcast %8 : vector<1x128xf32> to vector<32x128xf32>
    %782 = arith.cmpf ogt, %780, %781 : vector<32x128xf32>
    %783 = vector.broadcast %769 : vector<1x128xi1> to vector<32x128xi1>
    %784 = arith.andi %782, %783 : vector<32x128xi1>
    %cst_282 = arith.constant 1.000000e+00 : f32
    %cst_283 = arith.constant 0.000000e+00 : f32
    %785 = vector.broadcast %cst_282 : f32 to vector<32x128xf32>
    %786 = vector.broadcast %cst_283 : f32 to vector<32x128xf32>
    %787 = arith.select %784, %785, %786 : vector<32x128xi1>, vector<32x128xf32>
    %788 = arith.truncf %780 : vector<32x128xf32> to vector<32x128xbf16>
    %c15_284 = arith.constant 15 : index
    %c0_285 = arith.constant 0 : index
    %c0_286 = arith.constant 0 : index
    %789 = vector.load %arg10[%c15_284, %c0_285, %c0_286] : memref<16x32x128xbf16, #tpu.memory_space<vmem>>, vector<1x32x128xbf16>
    %790 = vector.shape_cast %789 : vector<1x32x128xbf16> to vector<32x128xbf16>
    %791 = vector.shape_cast %788 : vector<32x128xbf16> to vector<1x32x128xbf16>
    tpu.vector_store %arg10[%c15_284, %c0_285, %c0_286], %791 {strides = array<i32>} : memref<16x32x128xbf16, #tpu.memory_space<vmem>>, vector<1x32x128xbf16>,
    %792 = arith.truncf %787 : vector<32x128xf32> to vector<32x128xbf16>
    %c15_287 = arith.constant 15 : index
    %c0_288 = arith.constant 0 : index
    %c0_289 = arith.constant 0 : index
    %793 = vector.load %arg11[%c15_287, %c0_288, %c0_289] : memref<16x32x128xbf16, #tpu.memory_space<vmem>>, vector<1x32x128xbf16>
    %794 = vector.shape_cast %793 : vector<1x32x128xbf16> to vector<32x128xbf16>
    %795 = vector.shape_cast %792 : vector<32x128xbf16> to vector<1x32x128xbf16>
    tpu.vector_store %arg11[%c15_287, %c0_288, %c0_289], %795 {strides = array<i32>} : memref<16x32x128xbf16, #tpu.memory_space<vmem>>, vector<1x32x128xbf16>,
    %c0_290 = arith.constant 0 : index
    %c0_291 = arith.constant 0 : index
    %796 = vector.load %arg12[%c0_290, %c0_291] : memref<32x512xf32, #tpu.memory_space<vmem>>, vector<32x512xf32>
    tpu.vector_store %arg12[%c0_290, %c0_291], %758 {strides = array<i32>} : memref<32x512xf32, #tpu.memory_space<vmem>>, vector<32x512xf32>,
    %c0_292 = arith.constant 0 : index
    %c0_293 = arith.constant 0 : index
    %797 = vector.load %arg13[%c0_292, %c0_293] : memref<32x128xf32, #tpu.memory_space<vmem>>, vector<32x128xf32>
    tpu.vector_store %arg13[%c0_292, %c0_293], %780 {strides = array<i32>} : memref<32x128xf32, #tpu.memory_space<vmem>>, vector<32x128xf32>,
    %c0_294 = arith.constant 0 : index
    %c0_295 = arith.constant 0 : index
    %798 = vector.load %arg14[%c0_294, %c0_295] : memref<32x128xf32, #tpu.memory_space<vmem>>, vector<32x128xf32>
    tpu.vector_store %arg14[%c0_294, %c0_295], %787 {strides = array<i32>} : memref<32x128xf32, #tpu.memory_space<vmem>>, vector<32x128xf32>,
    return
  }
  func.func @transform_0(%arg0: i32, %arg1: i32) -> (i32, i32, i32) {
    %c0_i32 = arith.constant 0 : i32
    %c0_i32_0 = arith.constant 0 : i32
    return %arg1, %arg0, %c0_i32 : i32, i32, i32
  }
  func.func @transform_1(%arg0: i32, %arg1: i32) -> (i32, i32) {
    %c0_i32 = arith.constant 0 : i32
    %c0_i32_0 = arith.constant 0 : i32
    %c0_i32_1 = arith.constant 0 : i32
    return %c0_i32, %c0_i32_0 : i32, i32
  }
  func.func @transform_2(%arg0: i32, %arg1: i32) -> (i32, i32) {
    %c0_i32 = arith.constant 0 : i32
    %c0_i32_0 = arith.constant 0 : i32
    %c0_i32_1 = arith.constant 0 : i32
    return %c0_i32, %c0_i32_0 : i32, i32
  }
  func.func @transform_3(%arg0: i32, %arg1: i32) -> (i32, i32) {
    %c0_i32 = arith.constant 0 : i32
    %c0_i32_0 = arith.constant 0 : i32
    %c0_i32_1 = arith.constant 0 : i32
    return %c0_i32, %c0_i32_0 : i32, i32
  }
  func.func @transform_4(%arg0: i32, %arg1: i32) -> (i32, i32, i32) {
    %c0_i32 = arith.constant 0 : i32
    %c0_i32_0 = arith.constant 0 : i32
    %c0_i32_1 = arith.constant 0 : i32
    return %arg1, %c0_i32, %c0_i32_0 : i32, i32, i32
  }
  func.func @transform_5(%arg0: i32, %arg1: i32) -> (i32, i32) {
    %c0_i32 = arith.constant 0 : i32
    %c0_i32_0 = arith.constant 0 : i32
    return %arg0, %c0_i32 : i32, i32
  }
  func.func @transform_6(%arg0: i32, %arg1: i32) -> (i32, i32) {
    %c0_i32 = arith.constant 0 : i32
    %c0_i32_0 = arith.constant 0 : i32
    return %arg0, %c0_i32 : i32, i32
  }
  func.func @transform_7(%arg0: i32, %arg1: i32) -> (i32, i32) {
    %c0_i32 = arith.constant 0 : i32
    %c0_i32_0 = arith.constant 0 : i32
    return %arg0, %c0_i32 : i32, i32
  }
  func.func @transform_8(%arg0: i32, %arg1: i32) -> (i32, i32, i32) {
    %c0_i32 = arith.constant 0 : i32
    %c0_i32_0 = arith.constant 0 : i32
    return %arg1, %arg0, %c0_i32 : i32, i32, i32
  }
  func.func @transform_9(%arg0: i32, %arg1: i32) -> (i32, i32, i32) {
    %c0_i32 = arith.constant 0 : i32
    %c0_i32_0 = arith.constant 0 : i32
    return %arg1, %arg0, %c0_i32 : i32, i32, i32
  }
  func.func @transform_10(%arg0: i32, %arg1: i32) -> (i32, i32) {
    %c0_i32 = arith.constant 0 : i32
    %c0_i32_0 = arith.constant 0 : i32
    return %arg0, %c0_i32 : i32, i32
  }
  func.func @transform_11(%arg0: i32, %arg1: i32) -> (i32, i32) {
    %c0_i32 = arith.constant 0 : i32
    %c0_i32_0 = arith.constant 0 : i32
    return %arg0, %c0_i32 : i32, i32
  }
  func.func @transform_12(%arg0: i32, %arg1: i32) -> (i32, i32) {
    %c0_i32 = arith.constant 0 : i32
    %c0_i32_0 = arith.constant 0 : i32
    return %arg0, %c0_i32 : i32, i32
  }
}

</mosaic_0001>

<llo_original>
// kernel: run.1
$region0: #{run.1}
  #allocation0 [shape = 'u32[]', space=smem, size = 0x4, offset = 0x4, fixed_abs, tag = 'smem constant byte address 0x4 - core index']
  #allocation1 [shape = 'u32[144,128]{1,0:T(1,128)}', space=vmem, size = 0x12000, scoped, tag = 'internal scratch']
  %s0 = inlined_call_operand.hbm [shape: s8[16,32,128], index: 0, kind: input, shape index: {}]
  %s1 = inlined_call_operand.hbm [shape: bf16[128,512], index: 1, kind: input, shape index: {}]
  %s2 = inlined_call_operand.hbm [shape: f32[3,512], index: 2, kind: input, shape index: {}]
  %s3 = inlined_call_operand.hbm [shape: f32[3,128], index: 3, kind: input, shape index: {}]
  %s4 = inlined_call_operand.vmem [shape: f32[1,16,128], index: 4, kind: input, shape index: {}]
  %s5 = inlined_call_operand.hbm [shape: f32[32,512], index: 5, kind: input, shape index: {}]
  %s6 = inlined_call_operand.hbm [shape: f32[32,128], index: 6, kind: input, shape index: {}]
  %s7 = inlined_call_operand.hbm [shape: f32[32,128], index: 7, kind: input, shape index: {}]
  %s8 = inlined_call_operand.hbm [shape: bf16[16,32,128], index: 8, kind: output, shape index: {0}]
  %s9 = inlined_call_operand.hbm [shape: bf16[16,32,128], index: 9, kind: output, shape index: {1}]
  %s10 = inlined_call_operand.hbm [shape: f32[32,512], index: 10, kind: output, shape index: {2}]
  %s11 = inlined_call_operand.hbm [shape: f32[32,128], index: 11, kind: output, shape index: {3}]
  %s12 = inlined_call_operand.hbm [shape: f32[32,128], index: 12, kind: output, shape index: {4}]
  %13 = xla_tuple %s8, %s9, %s10, %s11, %s12
  %s14 = sld [smem:[#allocation0]]
  $region106: #{run.1} parent=0
    _
  %s16 = ssub.s32 1, %s14
  %s17 = scalar_select 0, %s16, %s14
  $region1: #{run.1} parent=0
    #allocation2 [shape = 'u8[65536]{0}', space=vmem, size = 0x10000, scoped, tag = 'input window, operand 0, single buffered']
    #allocation3 [shape = 's32[1]{0}', space=sflag, size = 0x4, scoped, tag = 'scoped memory for run.1']
    #allocation4 [shape = 's32[1]{0}', space=sflag, size = 0x4, scoped, tag = 'scoped memory for run.1']
    #allocation5 [shape = 'u8[131072]{0}', space=vmem, size = 0x20000, scoped, tag = 'input window, operand 1, single buffered']
    #allocation6 [shape = 's32[1]{0}', space=sflag, size = 0x4, scoped, tag = 'scoped memory for run.1']
    #allocation7 [shape = 'u8[8192]{0}', space=vmem, size = 0x2000, scoped, tag = 'input window, operand 2, single buffered']
    #allocation8 [shape = 'u8[2048]{0}', space=vmem, size = 0x800, scoped, tag = 'input window, operand 3, single buffered']
    #allocation9 [shape = 's32[1]{0}', space=sflag, size = 0x4, scoped, tag = 'scoped memory for run.1']
    #allocation10 [shape = 'u8[65536]{0}', space=vmem, size = 0x10000, scoped, tag = 'input window, operand 5, single buffered']
    #allocation11 [shape = 'u8[16384]{0}', space=vmem, size = 0x4000, scoped, tag = 'input window, operand 6, single buffered']
    #allocation12 [shape = 's32[1]{0}', space=sflag, size = 0x4, scoped, tag = 'scoped memory for run.1']
    #allocation13 [shape = 'u8[16384]{0}', space=vmem, size = 0x4000, scoped, tag = 'input window, operand 7, single buffered']
    #allocation14 [shape = 'u8[131072]{0}', space=vmem, size = 0x20000, scoped, tag = 'output window, operand 0, single buffered']
    #allocation15 [shape = 'u8[131072]{0}', space=vmem, size = 0x20000, scoped, tag = 'output window, operand 1, single buffered']
    #allocation16 [shape = 's32[1]{0}', space=sflag, size = 0x4, scoped, tag = 'scoped memory for run.1']
    #allocation17 [shape = 'u8[65536]{0}', space=vmem, size = 0x10000, scoped, tag = 'output window, operand 2, single buffered']
    #allocation18 [shape = 'u8[16384]{0}', space=vmem, size = 0x4000, scoped, tag = 'output window, operand 3, single buffered']
    #allocation19 [shape = 's32[1]{0}', space=sflag, size = 0x4, scoped, tag = 'scoped memory for run.1']
    #allocation20 [shape = 'u8[16384]{0}', space=vmem, size = 0x4000, scoped, tag = 'output window, operand 4, single buffered']
    %18 = vsyncpa [#allocation3], 0
    %19 = vsyncpa [#allocation6], 0
    %20 = vsyncpa [#allocation9], 0
    %21 = vsyncpa [#allocation12], 0
    %22 = vsyncpa [#allocation4], 0
    %23 = vsyncpa [#allocation16], 0
    %24 = vsyncpa [#allocation19], 0
    // Predicated region
    $region2: #{run.1} parent=1 // pred_check
      _
    $region3: #{run.1} parent=1 // pred_check_branch
      %26 = sbr.rel (0) target = $region5
    $region4: #{run.1} parent=1 // pred_region
      %s28 = ssub.s32 2048, 2048
      %29 = vsyncadd [#allocation3], %s28
      %s30 = sshll.u32 [#allocation2], 4
      %s31 = int_to_ptr.vmem [resolvable:$true] %s30
      %36 = dma.hbm_to_vmem [thread:$0]  %s0, 2048, %s31, [#allocation3], 128, 128, 8
    $region5: #{run.1} parent=1 // pred_fallthru
      _
    // Predicated region
    $region6: #{run.1} parent=1 // pred_check
      _
    $region7: #{run.1} parent=1 // pred_check_branch
      %38 = sbr.rel (0) target = $region9
    $region8: #{run.1} parent=1 // pred_region
      %s40 = ssub.s32 4096, 4096
      %41 = vsyncadd [#allocation6], %s40
      %s42 = sshll.u32 [#allocation5], 4
      %s43 = int_to_ptr.vmem [resolvable:$true] %s42
      %48 = dma.hbm_to_vmem [thread:$0]  %s1, 4096, %s43, [#allocation6], 256, 256, 16
    $region9: #{run.1} parent=1 // pred_fallthru
      _
    // Predicated region
    $region10: #{run.1} parent=1 // pred_check
      _
    $region11: #{run.1} parent=1 // pred_check_branch
      %50 = sbr.rel (0) target = $region13
    $region12: #{run.1} parent=1 // pred_region
      %s52 = ssub.s32 256, 256
      %53 = vsyncadd [#allocation6], %s52
      %s55 = sshll.u32 [#allocation7], 4
      %s56 = int_to_ptr.vmem [resolvable:$true] %s55
      %58 = dma.hbm_to_vmem [thread:$0]  %s2, 256, %s56, [#allocation6]
    $region13: #{run.1} parent=1 // pred_fallthru
      _
    // Predicated region
    $region14: #{run.1} parent=1 // pred_check
      _
    $region15: #{run.1} parent=1 // pred_check_branch
      %60 = sbr.rel (0) target = $region17
    $region16: #{run.1} parent=1 // pred_region
      %s62 = ssub.s32 64, 64
      %63 = vsyncadd [#allocation9], %s62
      %s65 = sshll.u32 [#allocation8], 4
      %s66 = int_to_ptr.vmem [resolvable:$true] %s65
      %68 = dma.hbm_to_vmem [thread:$0]  %s3, 64, %s66, [#allocation9]
    $region17: #{run.1} parent=1 // pred_fallthru
      _
    // Predicated region
    $region18: #{run.1} parent=1 // pred_check
      _
    $region19: #{run.1} parent=1 // pred_check_branch
      %70 = sbr.rel (0) target = $region21
    $region20: #{run.1} parent=1 // pred_region
      _
    $region21: #{run.1} parent=1 // pred_fallthru
      _
    // Predicated region
    $region22: #{run.1} parent=1 // pred_check
      _
    $region23: #{run.1} parent=1 // pred_check_branch
      %72 = sbr.rel (0) target = $region25
    $region24: #{run.1} parent=1 // pred_region
      %s74 = ssub.s32 2048, 2048
      %75 = vsyncadd [#allocation9], %s74
      %s76 = sshll.u32 [#allocation10], 4
      %s77 = int_to_ptr.vmem [resolvable:$true] %s76
      %82 = dma.hbm_to_vmem [thread:$0]  %s5, 2048, %s77, [#allocation9], 512, 512, 32
    $region25: #{run.1} parent=1 // pred_fallthru
      _
    // Predicated region
    $region26: #{run.1} parent=1 // pred_check
      _
    $region27: #{run.1} parent=1 // pred_check_branch
      %84 = sbr.rel (0) target = $region29
    $region28: #{run.1} parent=1 // pred_region
      %s86 = ssub.s32 512, 512
      %87 = vsyncadd [#allocation12], %s86
      %s88 = sshll.u32 [#allocation11], 4
      %s89 = int_to_ptr.vmem [resolvable:$true] %s88
      %94 = dma.hbm_to_vmem [thread:$0]  %s6, 512, %s89, [#allocation12], 128, 128, 8
    $region29: #{run.1} parent=1 // pred_fallthru
      _
    // Predicated region
    $region30: #{run.1} parent=1 // pred_check
      _
    $region31: #{run.1} parent=1 // pred_check_branch
      %96 = sbr.rel (0) target = $region33
    $region32: #{run.1} parent=1 // pred_region
      %s98 = ssub.s32 512, 512
      %99 = vsyncadd [#allocation12], %s98
      %s100 = sshll.u32 [#allocation13], 4
      %s101 = int_to_ptr.vmem [resolvable:$true] %s100
      %106 = dma.hbm_to_vmem [thread:$0]  %s7, 512, %s101, [#allocation12], 128, 128, 8
    $region33: #{run.1} parent=1 // pred_fallthru
      _
    // Predicated region
    $region34: #{run.1} parent=1 // pred_check
      _
    $region35: #{run.1} parent=1 // pred_check_branch
      %108 = sbr.rel (0) target = $region37
    $region36: #{run.1} parent=1 // pred_region
      %109 = dma.done [#allocation3], 2048
    $region37: #{run.1} parent=1 // pred_fallthru
      _
    // Predicated region
    $region38: #{run.1} parent=1 // pred_check
      _
    $region39: #{run.1} parent=1 // pred_check_branch
      %111 = sbr.rel (0) target = $region41
    $region40: #{run.1} parent=1 // pred_region
      %112 = dma.done [#allocation6], 4096
    $region41: #{run.1} parent=1 // pred_fallthru
      _
    // Predicated region
    $region42: #{run.1} parent=1 // pred_check
      _
    $region43: #{run.1} parent=1 // pred_check_branch
      %114 = sbr.rel (0) target = $region45
    $region44: #{run.1} parent=1 // pred_region
      %115 = dma.done [#allocation6], 256
    $region45: #{run.1} parent=1 // pred_fallthru
      _
    // Predicated region
    $region46: #{run.1} parent=1 // pred_check
      _
    $region47: #{run.1} parent=1 // pred_check_branch
      %117 = sbr.rel (0) target = $region49
    $region48: #{run.1} parent=1 // pred_region
      %118 = dma.done [#allocation9], 64
    $region49: #{run.1} parent=1 // pred_fallthru
      _
    // Predicated region
    $region50: #{run.1} parent=1 // pred_check
      _
    $region51: #{run.1} parent=1 // pred_check_branch
      %120 = sbr.rel (0) target = $region53
    $region52: #{run.1} parent=1 // pred_region
      %121 = dma.done [#allocation9], 2048
    $region53: #{run.1} parent=1 // pred_fallthru
      _
    // Predicated region
    $region54: #{run.1} parent=1 // pred_check
      _
    $region55: #{run.1} parent=1 // pred_check_branch
      %123 = sbr.rel (0) target = $region57
    $region56: #{run.1} parent=1 // pred_region
      %124 = dma.done [#allocation12], 512
    $region57: #{run.1} parent=1 // pred_fallthru
      _
    // Predicated region
    $region58: #{run.1} parent=1 // pred_check
      _
    $region59: #{run.1} parent=1 // pred_check_branch
      %126 = sbr.rel (0) target = $region61
    $region60: #{run.1} parent=1 // pred_region
      %127 = dma.done [#allocation12], 512
    $region61: #{run.1} parent=1 // pred_fallthru
      _
    %p129 = scmp.eq.s32.totalorder 0, 0
    // Predicated region
    $region62: #{run.1} parent=1 // pred_check
      %p130 = pneg %p129
    $region63: #{run.1} parent=1 // pred_check_branch
      %132 = sbr.rel (%p130) target = $region65
    $region64: #{run.1} parent=1 // pred_region
      %v133 = vld [vmem:[#allocation10] sm:$0xff]
      %v134 = vld [vmem:[#allocation10 + $0x8] sm:$0xff]
      %v135 = vld [vmem:[#allocation10 + $0x10] sm:$0xff]
      %v136 = vld [vmem:[#allocation10 + $0x18] sm:$0xff]
      %v137 = vld [vmem:[#allocation10 + $0x20] sm:$0xff]
      %v138 = vld [vmem:[#allocation10 + $0x28] sm:$0xff]
      %v139 = vld [vmem:[#allocation10 + $0x30] sm:$0xff]
      %v140 = vld [vmem:[#allocation10 + $0x38] sm:$0xff]
      %v141 = vld [vmem:[#allocation10 + $0x40] sm:$0xff]
      %v142 = vld [vmem:[#allocation10 + $0x48] sm:$0xff]
      %v143 = vld [vmem:[#allocation10 + $0x50] sm:$0xff]
      %v144 = vld [vmem:[#allocation10 + $0x58] sm:$0xff]
      %v145 = vld [vmem:[#allocation10 + $0x60] sm:$0xff]
      %v146 = vld [vmem:[#allocation10 + $0x68] sm:$0xff]
      %v147 = vld [vmem:[#allocation10 + $0x70] sm:$0xff]
      %v148 = vld [vmem:[#allocation10 + $0x78] sm:$0xff]
      %149 = vst [vmem:[#allocation17] sm:$0xff] %v133
      %150 = vst [vmem:[#allocation17 + $0x8] sm:$0xff] %v134
      %151 = vst [vmem:[#allocation17 + $0x10] sm:$0xff] %v135
      %152 = vst [vmem:[#allocation17 + $0x18] sm:$0xff] %v136
      %153 = vst [vmem:[#allocation17 + $0x20] sm:$0xff] %v137
      %154 = vst [vmem:[#allocation17 + $0x28] sm:$0xff] %v138
      %155 = vst [vmem:[#allocation17 + $0x30] sm:$0xff] %v139
      %156 = vst [vmem:[#allocation17 + $0x38] sm:$0xff] %v140
      %157 = vst [vmem:[#allocation17 + $0x40] sm:$0xff] %v141
      %158 = vst [vmem:[#allocation17 + $0x48] sm:$0xff] %v142
      %159 = vst [vmem:[#allocation17 + $0x50] sm:$0xff] %v143
      %160 = vst [vmem:[#allocation17 + $0x58] sm:$0xff] %v144
      %161 = vst [vmem:[#allocation17 + $0x60] sm:$0xff] %v145
      %162 = vst [vmem:[#allocation17 + $0x68] sm:$0xff] %v146
      %163 = vst [vmem:[#allocation17 + $0x70] sm:$0xff] %v147
      %164 = vst [vmem:[#allocation17 + $0x78] sm:$0xff] %v148
      %v165 = vld [vmem:[#allocation11] sm:$0xff]
      %v166 = vld [vmem:[#allocation11 + $0x8] sm:$0xff]
      %v167 = vld [vmem:[#allocation11 + $0x10] sm:$0xff]
      %v168 = vld [vmem:[#allocation11 + $0x18] sm:$0xff]
      %169 = vst [vmem:[#allocation18] sm:$0xff] %v165
      %170 = vst [vmem:[#allocation18 + $0x8] sm:$0xff] %v166
      %171 = vst [vmem:[#allocation18 + $0x10] sm:$0xff] %v167
      %172 = vst [vmem:[#allocation18 + $0x18] sm:$0xff] %v168
      %v173 = vld [vmem:[#allocation13] sm:$0xff]
      %v174 = vld [vmem:[#allocation13 + $0x8] sm:$0xff]
      %v175 = vld [vmem:[#allocation13 + $0x10] sm:$0xff]
      %v176 = vld [vmem:[#allocation13 + $0x18] sm:$0xff]
      %177 = vst [vmem:[#allocation20] sm:$0xff] %v173
      %178 = vst [vmem:[#allocation20 + $0x8] sm:$0xff] %v174
      %179 = vst [vmem:[#allocation20 + $0x10] sm:$0xff] %v175
      %180 = vst [vmem:[#allocation20 + $0x18] sm:$0xff] %v176
    $region65: #{run.1} parent=1 // pred_fallthru
      _
    %v181 = vld [vmem:[#allocation7] ss:$4 sm:$0xf]
    %s182 = scalar_lea.vmem [#allocation7], 1
    %v183 = vld [vmem:[%s182] ss:$4 sm:$0xf]
    %s184 = scalar_lea.vmem [#allocation7], 2
    %v185 = vld [vmem:[%s184] ss:$4 sm:$0xf]
    %v186 = vld [vmem:[#allocation8] sm:$0x1]
    %v187 = vld [vmem:[#allocation8 + $0x1] sm:$0x1]
    %v188 = vld [vmem:[#allocation8 + $0x2] sm:$0x1]
    %v189 = vld [vmem:[#allocation17] sm:$0xff]
    %v190 = vld [vmem:[#allocation17 + $0x8] sm:$0xff]
    %v191 = vld [vmem:[#allocation17 + $0x10] sm:$0xff]
    %v192 = vld [vmem:[#allocation17 + $0x18] sm:$0xff]
    %v193 = vld [vmem:[#allocation17 + $0x20] sm:$0xff]
    %v194 = vld [vmem:[#allocation17 + $0x28] sm:$0xff]
    %v195 = vld [vmem:[#allocation17 + $0x30] sm:$0xff]
    %v196 = vld [vmem:[#allocation17 + $0x38] sm:$0xff]
    %v197 = vld [vmem:[#allocation17 + $0x40] sm:$0xff]
    %v198 = vld [vmem:[#allocation17 + $0x48] sm:$0xff]
    %v199 = vld [vmem:[#allocation17 + $0x50] sm:$0xff]
    %v200 = vld [vmem:[#allocation17 + $0x58] sm:$0xff]
    %v201 = vld [vmem:[#allocation17 + $0x60] sm:$0xff]
    %v202 = vld [vmem:[#allocation17 + $0x68] sm:$0xff]
    %v203 = vld [vmem:[#allocation17 + $0x70] sm:$0xff]
    %v204 = vld [vmem:[#allocation17 + $0x78] sm:$0xff]
    %v205 = vld [vmem:[#allocation18] sm:$0xff]
    %v206 = vld [vmem:[#allocation18 + $0x8] sm:$0xff]
    %v207 = vld [vmem:[#allocation18 + $0x10] sm:$0xff]
    %v208 = vld [vmem:[#allocation18 + $0x18] sm:$0xff]
    %v209 = vld [vmem:[#allocation20] sm:$0xff]
    %v210 = vld [vmem:[#allocation20 + $0x8] sm:$0xff]
    %v211 = vld [vmem:[#allocation20 + $0x10] sm:$0xff]
    %v212 = vld [vmem:[#allocation20 + $0x18] sm:$0xff]
    %v213 = vld [vmem:[#allocation2] sm:$0xff]
    %v214 = vunpack.c.l.s8.bf16 %v213
    %v215 = vunpack.c.h.s8.bf16 %v213
    %v216 = vld [vmem:[#allocation5] sm:$0xff]
    %v217 = vld [vmem:[#allocation5 + $0x8] sm:$0xff]
    %v218 = vld [vmem:[#allocation5 + $0x10] sm:$0xff]
    %v219 = vld [vmem:[#allocation5 + $0x18] sm:$0xff]
    %v220 = vld [vmem:[#allocation5 + $0x20] sm:$0xff]
    %v221 = vld [vmem:[#allocation5 + $0x28] sm:$0xff]
    %v222 = vld [vmem:[#allocation5 + $0x30] sm:$0xff]
    %v223 = vld [vmem:[#allocation5 + $0x38] sm:$0xff]
    %v224 = vld [vmem:[#allocation5 + $0x40] sm:$0xff]
    %v225 = vld [vmem:[#allocation5 + $0x48] sm:$0xff]
    %v226 = vld [vmem:[#allocation5 + $0x50] sm:$0xff]
    %v227 = vld [vmem:[#allocation5 + $0x58] sm:$0xff]
    %v228 = vld [vmem:[#allocation5 + $0x60] sm:$0xff]
    %v229 = vld [vmem:[#allocation5 + $0x68] sm:$0xff]
    %v230 = vld [vmem:[#allocation5 + $0x70] sm:$0xff]
    %v231 = vld [vmem:[#allocation5 + $0x78] sm:$0xff]
    %v232 = vld [vmem:[#allocation5 + $0x80] sm:$0xff]
    %v233 = vld [vmem:[#allocation5 + $0x88] sm:$0xff]
    %v234 = vld [vmem:[#allocation5 + $0x90] sm:$0xff]
    %v235 = vld [vmem:[#allocation5 + $0x98] sm:$0xff]
    %v236 = vld [vmem:[#allocation5 + $0xa0] sm:$0xff]
    %v237 = vld [vmem:[#allocation5 + $0xa8] sm:$0xff]
    %v238 = vld [vmem:[#allocation5 + $0xb0] sm:$0xff]
    %v239 = vld [vmem:[#allocation5 + $0xb8] sm:$0xff]
    %v240 = vld [vmem:[#allocation5 + $0xc0] sm:$0xff]
    %v241 = vld [vmem:[#allocation5 + $0xc8] sm:$0xff]
    %v242 = vld [vmem:[#allocation5 + $0xd0] sm:$0xff]
    %v243 = vld [vmem:[#allocation5 + $0xd8] sm:$0xff]
    %v244 = vld [vmem:[#allocation5 + $0xe0] sm:$0xff]
    %v245 = vld [vmem:[#allocation5 + $0xe8] sm:$0xff]
    %v246 = vld [vmem:[#allocation5 + $0xf0] sm:$0xff]
    %v247 = vld [vmem:[#allocation5 + $0xf8] sm:$0xff]
    %v249 = vlaneseq
    %v250 = vshrl.u32 %v249, 7
    %v251 = vsub.s32 0, %v250
    %v252 = vrot.slane %v181, %v251
    %v253 = vlaneseq
    %v254 = vshrl.u32 %v253, 7
    %v255 = vsub.s32 1, %v254
    %v256 = vrot.slane %v181, %v255
    %v257 = vlaneseq
    %v258 = vshrl.u32 %v257, 7
    %v259 = vsub.s32 2, %v258
    %v260 = vrot.slane %v181, %v259
    %v261 = vlaneseq
    %v262 = vshrl.u32 %v261, 7
    %v263 = vsub.s32 3, %v262
    %v264 = vrot.slane %v181, %v263
    %v301 = vunpack.c.l.b16 %v216
    %v302 = vunpack.c.h.b16 %v216
    %v303 = vunpack.c.l.b16 %v217
    %v304 = vunpack.c.h.b16 %v217
    %v305 = vunpack.c.l.b16 %v218
    %v306 = vunpack.c.h.b16 %v218
    %v307 = vunpack.c.l.b16 %v219
    %v308 = vunpack.c.h.b16 %v219
    %v309 = vunpack.c.l.b16 %v220
    %v310 = vunpack.c.h.b16 %v220
    %v311 = vunpack.c.l.b16 %v221
    %v312 = vunpack.c.h.b16 %v221
    %v313 = vunpack.c.l.b16 %v222
    %v314 = vunpack.c.h.b16 %v222
    %v315 = vunpack.c.l.b16 %v223
    %v316 = vunpack.c.h.b16 %v223
    %v317 = vunpack.c.l.b16 %v224
    %v318 = vunpack.c.h.b16 %v224
    %v319 = vunpack.c.l.b16 %v225
    %v320 = vunpack.c.h.b16 %v225
    %v321 = vunpack.c.l.b16 %v226
    %v322 = vunpack.c.h.b16 %v226
    %v323 = vunpack.c.l.b16 %v227
    %v324 = vunpack.c.h.b16 %v227
    %v325 = vunpack.c.l.b16 %v228
    %v326 = vunpack.c.h.b16 %v228
    %v327 = vunpack.c.l.b16 %v229
    %v328 = vunpack.c.h.b16 %v229
    %v329 = vunpack.c.l.b16 %v230
    %v330 = vunpack.c.h.b16 %v230
    %v331 = vunpack.c.l.b16 %v231
    %v332 = vunpack.c.h.b16 %v231
    %v333 = vunpack.c.l.b16 %v232
    %v334 = vunpack.c.h.b16 %v232
    %v335 = vunpack.c.l.b16 %v233
    %v336 = vunpack.c.h.b16 %v233
    %v337 = vunpack.c.l.b16 %v234
    %v338 = vunpack.c.h.b16 %v234
    %v339 = vunpack.c.l.b16 %v235
    %v340 = vunpack.c.h.b16 %v235
    %v341 = vunpack.c.l.b16 %v236
    %v342 = vunpack.c.h.b16 %v236
    %v343 = vunpack.c.l.b16 %v237
    %v344 = vunpack.c.h.b16 %v237
    %v345 = vunpack.c.l.b16 %v238
    %v346 = vunpack.c.h.b16 %v238
    %v347 = vunpack.c.l.b16 %v239
    %v348 = vunpack.c.h.b16 %v239
    %v349 = vunpack.c.l.b16 %v240
    %v350 = vunpack.c.h.b16 %v240
    %v351 = vunpack.c.l.b16 %v241
    %v352 = vunpack.c.h.b16 %v241
    %v353 = vunpack.c.l.b16 %v242
    %v354 = vunpack.c.h.b16 %v242
    %v355 = vunpack.c.l.b16 %v243
    %v356 = vunpack.c.h.b16 %v243
    %v357 = vunpack.c.l.b16 %v244
    %v358 = vunpack.c.h.b16 %v244
    %v359 = vunpack.c.l.b16 %v245
    %v360 = vunpack.c.h.b16 %v245
    %v361 = vunpack.c.l.b16 %v246
    %v362 = vunpack.c.h.b16 %v246
    %v363 = vunpack.c.l.b16 %v247
    %v364 = vunpack.c.h.b16 %v247
    %v365 = vpack.c.b16 %v305, %v301
    %v366 = vpack.c.b16 %v306, %v302
    %v367 = vpack.c.b16 %v307, %v303
    %v368 = vpack.c.b16 %v308, %v304
    %v369 = vpack.c.b16 %v313, %v309
    %v370 = vpack.c.b16 %v314, %v310
    %v371 = vpack.c.b16 %v315, %v311
    %v372 = vpack.c.b16 %v316, %v312
    %v373 = vpack.c.b16 %v321, %v317
    %v374 = vpack.c.b16 %v322, %v318
    %v375 = vpack.c.b16 %v323, %v319
    %v376 = vpack.c.b16 %v324, %v320
    %v377 = vpack.c.b16 %v329, %v325
    %v378 = vpack.c.b16 %v330, %v326
    %v379 = vpack.c.b16 %v331, %v327
    %v380 = vpack.c.b16 %v332, %v328
    %v381 = vpack.c.b16 %v337, %v333
    %v382 = vpack.c.b16 %v338, %v334
    %v383 = vpack.c.b16 %v339, %v335
    %v384 = vpack.c.b16 %v340, %v336
    %v385 = vpack.c.b16 %v345, %v341
    %v386 = vpack.c.b16 %v346, %v342
    %v387 = vpack.c.b16 %v347, %v343
    %v388 = vpack.c.b16 %v348, %v344
    %v389 = vpack.c.b16 %v353, %v349
    %v390 = vpack.c.b16 %v354, %v350
    %v391 = vpack.c.b16 %v355, %v351
    %v392 = vpack.c.b16 %v356, %v352
    %v393 = vpack.c.b16 %v361, %v357
    %v394 = vpack.c.b16 %v362, %v358
    %v395 = vpack.c.b16 %v363, %v359
    %v396 = vpack.c.b16 %v364, %v360
    %429 = vmatprep.subr.bf16.mxu0 %v366
    %430 = vmatpush1.bf16.msra.mxu0 %v365
    %431 = vmatprep.subr.bf16.mxu0 %v370
    %432 = vmatpush1.bf16.msra.mxu0 %v369
    %433 = vmatprep.subr.bf16.mxu0 %v374
    %434 = vmatpush1.bf16.msra.mxu0 %v373
    %435 = vmatprep.subr.bf16.mxu0 %v378
    %436 = vmatpush1.bf16.msra.mxu0 %v377
    %437 = vmatprep.subr.bf16.mxu0 %v382
    %438 = vmatpush1.bf16.msra.mxu0 %v381
    %439 = vmatprep.subr.bf16.mxu0 %v386
    %440 = vmatpush1.bf16.msra.mxu0 %v385
    %441 = vmatprep.subr.bf16.mxu0 %v390
    %442 = vmatpush1.bf16.msra.mxu0 %v389
    %443 = vmatprep.subr.bf16.mxu0 %v394
    %444 = vmatpush1.bf16.msra.mxu0 %v393
    %445 = vmatprep.subr.bf16.mxu0 0
    %446 = vmatpush1.bf16.msra.mxu0 0
    %447 = vmatprep.subr.bf16.mxu0 0
    %448 = vmatpush1.bf16.msra.mxu0 0
    %449 = vmatprep.subr.bf16.mxu0 0
    %450 = vmatpush1.bf16.msra.mxu0 0
    %451 = vmatprep.subr.bf16.mxu0 0
    %452 = vmatpush1.bf16.msra.mxu0 0
    %453 = vmatprep.subr.bf16.mxu0 0
    %454 = vmatpush1.bf16.msra.mxu0 0
    %455 = vmatprep.subr.bf16.mxu0 0
    %456 = vmatpush1.bf16.msra.mxu0 0
    %457 = vmatprep.subr.bf16.mxu0 0
    %458 = vmatpush1.bf16.msra.mxu0 0
    %459 = vmatprep.subr.bf16.mxu0 0
    %460 = vmatpush1.bf16.msra.mxu0 0
    %461 = vmatprep.mubr.bf16.mxu0 0
    %462 = vmatmul.mubr.bf16.gmra.mrb[0].mxu0 %v214
    %v463 = vpop.f32.mrb[0].mxu0
    %v464 = vadd.f32 %v252, %v463
    %v465 = vpop.f32.mrb[0].mxu0
    %v466 = vadd.f32 %v256, %v465
    %v467 = vpop.f32.mrb[0].mxu0
    %v468 = vadd.f32 %v252, %v467
    %v469 = vpop.f32.mrb[0].mxu0
    %v470 = vadd.f32 %v256, %v469
    %471 = vmatprep.mubr.bf16.mxu0 0
    %472 = vmatmul.mubr.bf16.gmra.mrb[0].mxu0 %v215
    %v473 = vpop.f32.mrb[0].mxu0
    %v474 = vadd.f32 %v252, %v473
    %v475 = vpop.f32.mrb[0].mxu0
    %v476 = vadd.f32 %v256, %v475
    %v477 = vpop.f32.mrb[0].mxu0
    %v478 = vadd.f32 %v252, %v477
    %v479 = vpop.f32.mrb[0].mxu0
    %v480 = vadd.f32 %v256, %v479
    %481 = vdwg.mxu0
    %482 = vmatprep.subr.bf16.mxu0 %v368
    %483 = vmatpush1.bf16.msra.mxu0 %v367
    %484 = vmatprep.subr.bf16.mxu0 %v372
    %485 = vmatpush1.bf16.msra.mxu0 %v371
    %486 = vmatprep.subr.bf16.mxu0 %v376
    %487 = vmatpush1.bf16.msra.mxu0 %v375
    %488 = vmatprep.subr.bf16.mxu0 %v380
    %489 = vmatpush1.bf16.msra.mxu0 %v379
    %490 = vmatprep.subr.bf16.mxu0 %v384
    %491 = vmatpush1.bf16.msra.mxu0 %v383
    %492 = vmatprep.subr.bf16.mxu0 %v388
    %493 = vmatpush1.bf16.msra.mxu0 %v387
    %494 = vmatprep.subr.bf16.mxu0 %v392
    %495 = vmatpush1.bf16.msra.mxu0 %v391
    %496 = vmatprep.subr.bf16.mxu0 %v396
    %497 = vmatpush1.bf16.msra.mxu0 %v395
    %498 = vmatprep.subr.bf16.mxu0 0
    %499 = vmatpush1.bf16.msra.mxu0 0
    %500 = vmatprep.subr.bf16.mxu0 0
    %501 = vmatpush1.bf16.msra.mxu0 0
    %502 = vmatprep.subr.bf16.mxu0 0
    %503 = vmatpush1.bf16.msra.mxu0 0
    %504 = vmatprep.subr.bf16.mxu0 0
    %505 = vmatpush1.bf16.msra.mxu0 0
    %506 = vmatprep.subr.bf16.mxu0 0
    %507 = vmatpush1.bf16.msra.mxu0 0
    %508 = vmatprep.subr.bf16.mxu0 0
    %509 = vmatpush1.bf16.msra.mxu0 0
    %510 = vmatprep.subr.bf16.mxu0 0
    %511 = vmatpush1.bf16.msra.mxu0 0
    %512 = vmatprep.subr.bf16.mxu0 0
    %513 = vmatpush1.bf16.msra.mxu0 0
    %514 = vmatprep.mubr.bf16.mxu0 0
    %515 = vmatmul.mubr.bf16.gmra.mrb[0].mxu0 %v214
    %v516 = vpop.f32.mrb[0].mxu0
    %v517 = vadd.f32 %v260, %v516
    %v518 = vpop.f32.mrb[0].mxu0
    %v519 = vadd.f32 %v264, %v518
    %v520 = vpop.f32.mrb[0].mxu0
    %v521 = vadd.f32 %v260, %v520
    %v522 = vpop.f32.mrb[0].mxu0
    %v523 = vadd.f32 %v264, %v522
    %524 = vmatprep.mubr.bf16.mxu0 0
    %525 = vmatmul.mubr.bf16.gmra.mrb[0].mxu0 %v215
    %v526 = vpop.f32.mrb[0].mxu0
    %v527 = vadd.f32 %v260, %v526
    %v528 = vpop.f32.mrb[0].mxu0
    %v529 = vadd.f32 %v264, %v528
    %v530 = vpop.f32.mrb[0].mxu0
    %v531 = vadd.f32 %v260, %v530
    %v532 = vpop.f32.mrb[0].mxu0
    %v533 = vadd.f32 %v264, %v532
    %534 = vdwg.mxu0
    %v536 = vlaneseq
    %v537 = vshrl.u32 %v536, 7
    %v538 = vsub.s32 0, %v537
    %v539 = vrot.slane %v183, %v538
    %v540 = vlaneseq
    %v541 = vshrl.u32 %v540, 7
    %v542 = vsub.s32 1, %v541
    %v543 = vrot.slane %v183, %v542
    %v544 = vlaneseq
    %v545 = vshrl.u32 %v544, 7
    %v546 = vsub.s32 2, %v545
    %v547 = vrot.slane %v183, %v546
    %v548 = vlaneseq
    %v549 = vshrl.u32 %v548, 7
    %v550 = vsub.s32 3, %v549
    %v551 = vrot.slane %v183, %v550
    %v556 = vmul.f32 %v539, %v189
    %v557 = vmul.f32 %v543, %v190
    %v558 = vmul.f32 %v547, %v191
    %v559 = vmul.f32 %v551, %v192
    %v560 = vmul.f32 %v539, %v193
    %v561 = vmul.f32 %v543, %v194
    %v562 = vmul.f32 %v547, %v195
    %v563 = vmul.f32 %v551, %v196
    %v564 = vmul.f32 %v539, %v197
    %v565 = vmul.f32 %v543, %v198
    %v566 = vmul.f32 %v547, %v199
    %v567 = vmul.f32 %v551, %v200
    %v568 = vmul.f32 %v539, %v201
    %v569 = vmul.f32 %v543, %v202
    %v570 = vmul.f32 %v547, %v203
    %v571 = vmul.f32 %v551, %v204
    %v573 = vlaneseq
    %v574 = vshrl.u32 %v573, 7
    %v575 = vsub.s32 0, %v574
    %v576 = vrot.slane %v185, %v575
    %v577 = vlaneseq
    %v578 = vshrl.u32 %v577, 7
    %v579 = vsub.s32 1, %v578
    %v580 = vrot.slane %v185, %v579
    %v581 = vlaneseq
    %v582 = vshrl.u32 %v581, 7
    %v583 = vsub.s32 2, %v582
    %v584 = vrot.slane %v185, %v583
    %v585 = vlaneseq
    %v586 = vshrl.u32 %v585, 7
    %v587 = vsub.s32 3, %v586
    %v588 = vrot.slane %v185, %v587
    %v593 = vmul.f32 %v576, %v464
    %v594 = vmul.f32 %v580, %v466
    %v595 = vmul.f32 %v584, %v517
    %v596 = vmul.f32 %v588, %v519
    %v597 = vmul.f32 %v576, %v468
    %v598 = vmul.f32 %v580, %v470
    %v599 = vmul.f32 %v584, %v521
    %v600 = vmul.f32 %v588, %v523
    %v601 = vmul.f32 %v576, %v474
    %v602 = vmul.f32 %v580, %v476
    %v603 = vmul.f32 %v584, %v527
    %v604 = vmul.f32 %v588, %v529
    %v605 = vmul.f32 %v576, %v478
    %v606 = vmul.f32 %v580, %v480
    %v607 = vmul.f32 %v584, %v531
    %v608 = vmul.f32 %v588, %v533
    %v609 = vadd.f32 %v556, %v593
    %v610 = vadd.f32 %v557, %v594
    %v611 = vadd.f32 %v558, %v595
    %v612 = vadd.f32 %v559, %v596
    %v613 = vadd.f32 %v560, %v597
    %v614 = vadd.f32 %v561, %v598
    %v615 = vadd.f32 %v562, %v599
    %v616 = vadd.f32 %v563, %v600
    %v617 = vadd.f32 %v564, %v601
    %v618 = vadd.f32 %v565, %v602
    %v619 = vadd.f32 %v566, %v603
    %v620 = vadd.f32 %v567, %v604
    %v621 = vadd.f32 %v568, %v605
    %v622 = vadd.f32 %v569, %v606
    %v623 = vadd.f32 %v570, %v607
    %v624 = vadd.f32 %v571, %v608
    %v625 = vadd.f32 %v609, %v610
    %v626 = vadd.f32 %v613, %v614
    %v627 = vadd.f32 %v617, %v618
    %v628 = vadd.f32 %v621, %v622
    %v629 = vadd.f32 %v625, %v611
    %v630 = vadd.f32 %v626, %v615
    %v631 = vadd.f32 %v627, %v619
    %v632 = vadd.f32 %v628, %v623
    %v633 = vadd.f32 %v629, %v612
    %v634 = vadd.f32 %v630, %v616
    %v635 = vadd.f32 %v631, %v620
    %v636 = vadd.f32 %v632, %v624
    %v637 = vld [vmem:[%s4] sm:$0x1]
    %vm638 = vcmp.gt.f32.partialorder %v637, 0.0
    %v639 = vlaneseq
    %v640 = vshrl.u32 %v639, 7
    %v641 = vsub.s32 0, %v640
    %v642 = vrot.slane %v186, %v641
    %v643 = vmul.f32 %v205, %v642
    %v644 = vmul.f32 %v206, %v642
    %v645 = vmul.f32 %v207, %v642
    %v646 = vmul.f32 %v208, %v642
    %v647 = vlaneseq
    %v648 = vshrl.u32 %v647, 7
    %v649 = vsub.s32 0, %v648
    %v650 = vrot.slane %v187, %v649
    %v651 = vmul.f32 %v650, %v633
    %v652 = vmul.f32 %v650, %v634
    %v653 = vmul.f32 %v650, %v635
    %v654 = vmul.f32 %v650, %v636
    %v655 = vadd.f32 %v643, %v651
    %v656 = vadd.f32 %v644, %v652
    %v657 = vadd.f32 %v645, %v653
    %v658 = vadd.f32 %v646, %v654
    %v659 = vlaneseq
    %v660 = vshrl.u32 %v659, 7
    %v661 = vsub.s32 0, %v660
    %v662 = vrot.slane %v188, %v661
    %v663 = vmul.f32 %v662, %v209
    %v664 = vmul.f32 %v662, %v210
    %v665 = vmul.f32 %v662, %v211
    %v666 = vmul.f32 %v662, %v212
    %v667 = vsub.f32 %v655, %v663
    %v668 = vsub.f32 %v656, %v664
    %v669 = vsub.f32 %v657, %v665
    %v670 = vsub.f32 %v658, %v666
    %v671 = vsel %vm638, 1, 0
    %v672 = vlaneseq
    %v673 = vshrl.u32 %v672, 7
    %v674 = vsub.s32 0, %v673
    %v675 = vrot.slane %v671, %v674
    %vm676 = vcmp.eq.s32.totalorder %v675, 1
    %v677 = vsel %vm676, %v667, %v205
    %v678 = vsel %vm676, %v668, %v206
    %v679 = vsel %vm676, %v669, %v207
    %v680 = vsel %vm676, %v670, %v208
    %vm681 = vcmp.gt.f32.partialorder %v677, %v662
    %vm682 = vcmp.gt.f32.partialorder %v678, %v662
    %vm683 = vcmp.gt.f32.partialorder %v679, %v662
    %vm684 = vcmp.gt.f32.partialorder %v680, %v662
    %vm685 = vmand %vm681, %vm676
    %vm686 = vmand %vm682, %vm676
    %vm687 = vmand %vm683, %vm676
    %vm688 = vmand %vm684, %vm676
    %v689 = vsel %vm685, 1.0, 0.0
    %v690 = vsel %vm686, 1.0, 0.0
    %v691 = vsel %vm687, 1.0, 0.0
    %v692 = vsel %vm688, 1.0, 0.0
    %v693 = vpack.c.bf16 %v678, %v677
    %v694 = vpack.c.bf16 %v680, %v679
    %v697 = vunpack.c.l.b16 %v693
    %v698 = vunpack.c.h.b16 %v693
    %v699 = vunpack.c.l.b16 %v694
    %v700 = vunpack.c.h.b16 %v694
    %v701 = vpack.c.b16 %v697, %v697
    %v702 = vpack.c.b16 %v698, %v698
    %v703 = vpack.c.b16 %v699, %v699
    %v704 = vpack.c.b16 %v700, %v700
    %709 = vst [vmem:[#allocation14] sm:$0xf] %v701
    %710 = vst [vmem:[#allocation14 + $0x4] sm:$0xf] %v702
    %711 = vst [vmem:[#allocation14 + $0x8] sm:$0xf] %v703
    %712 = vst [vmem:[#allocation14 + $0xc] sm:$0xf] %v704
    %v713 = vpack.c.bf16 %v690, %v689
    %v714 = vpack.c.bf16 %v692, %v691
    %v717 = vunpack.c.l.b16 %v713
    %v718 = vunpack.c.h.b16 %v713
    %v719 = vunpack.c.l.b16 %v714
    %v720 = vunpack.c.h.b16 %v714
    %v721 = vpack.c.b16 %v717, %v717
    %v722 = vpack.c.b16 %v718, %v718
    %v723 = vpack.c.b16 %v719, %v719
    %v724 = vpack.c.b16 %v720, %v720
    %729 = vst [vmem:[#allocation15] sm:$0xf] %v721
    %730 = vst [vmem:[#allocation15 + $0x4] sm:$0xf] %v722
    %731 = vst [vmem:[#allocation15 + $0x8] sm:$0xf] %v723
    %732 = vst [vmem:[#allocation15 + $0xc] sm:$0xf] %v724
    %s733 = scalar_lea.vmem [#allocation2], 8
    %v734 = vld [vmem:[%s733] sm:$0xff]
    %v735 = vunpack.c.l.s8.bf16 %v734
    %v736 = vunpack.c.h.s8.bf16 %v734
    %v737 = vld [vmem:[#allocation5] sm:$0xff]
    %v738 = vld [vmem:[#allocation5 + $0x8] sm:$0xff]
    %v739 = vld [vmem:[#allocation5 + $0x10] sm:$0xff]
    %v740 = vld [vmem:[#allocation5 + $0x18] sm:$0xff]
    %v741 = vld [vmem:[#allocation5 + $0x20] sm:$0xff]
    %v742 = vld [vmem:[#allocation5 + $0x28] sm:$0xff]
    %v743 = vld [vmem:[#allocation5 + $0x30] sm:$0xff]
    %v744 = vld [vmem:[#allocation5 + $0x38] sm:$0xff]
    %v745 = vld [vmem:[#allocation5 + $0x40] sm:$0xff]
    %v746 = vld [vmem:[#allocation5 + $0x48] sm:$0xff]
    %v747 = vld [vmem:[#allocation5 + $0x50] sm:$0xff]
    %v748 = vld [vmem:[#allocation5 + $0x58] sm:$0xff]
    %v749 = vld [vmem:[#allocation5 + $0x60] sm:$0xff]
    %v750 = vld [vmem:[#allocation5 + $0x68] sm:$0xff]
    %v751 = vld [vmem:[#allocation5 + $0x70] sm:$0xff]
    %v752 = vld [vmem:[#allocation5 + $0x78] sm:$0xff]
    %v753 = vld [vmem:[#allocation5 + $0x80] sm:$0xff]
    %v754 = vld [vmem:[#allocation5 + $0x88] sm:$0xff]
    %v755 = vld [vmem:[#allocation5 + $0x90] sm:$0xff]
    %v756 = vld [vmem:[#allocation5 + $0x98] sm:$0xff]
    %v757 = vld [vmem:[#allocation5 + $0xa0] sm:$0xff]
    %v758 = vld [vmem:[#allocation5 + $0xa8] sm:$0xff]
    %v759 = vld [vmem:[#allocation5 + $0xb0] sm:$0xff]
    %v760 = vld [vmem:[#allocation5 + $0xb8] sm:$0xff]
    %v761 = vld [vmem:[#allocation5 + $0xc0] sm:$0xff]
    %v762 = vld [vmem:[#allocation5 + $0xc8] sm:$0xff]
    %v763 = vld [vmem:[#allocation5 + $0xd0] sm:$0xff]
    %v764 = vld [vmem:[#allocation5 + $0xd8] sm:$0xff]
    %v765 = vld [vmem:[#allocation5 + $0xe0] sm:$0xff]
    %v766 = vld [vmem:[#allocation5 + $0xe8] sm:$0xff]
    %v767 = vld [vmem:[#allocation5 + $0xf0] sm:$0xff]
    %v768 = vld [vmem:[#allocation5 + $0xf8] sm:$0xff]
    %v801 = vunpack.c.l.b16 %v737
    %v802 = vunpack.c.h.b16 %v737
    %v803 = vunpack.c.l.b16 %v738
    %v804 = vunpack.c.h.b16 %v738
    %v805 = vunpack.c.l.b16 %v739
    %v806 = vunpack.c.h.b16 %v739
    %v807 = vunpack.c.l.b16 %v740
    %v808 = vunpack.c.h.b16 %v740
    %v809 = vunpack.c.l.b16 %v741
    %v810 = vunpack.c.h.b16 %v741
    %v811 = vunpack.c.l.b16 %v742
    %v812 = vunpack.c.h.b16 %v742
    %v813 = vunpack.c.l.b16 %v743
    %v814 = vunpack.c.h.b16 %v743
    %v815 = vunpack.c.l.b16 %v744
    %v816 = vunpack.c.h.b16 %v744
    %v817 = vunpack.c.l.b16 %v745
    %v818 = vunpack.c.h.b16 %v745
    %v819 = vunpack.c.l.b16 %v746
    %v820 = vunpack.c.h.b16 %v746
    %v821 = vunpack.c.l.b16 %v747
    %v822 = vunpack.c.h.b16 %v747
    %v823 = vunpack.c.l.b16 %v748
    %v824 = vunpack.c.h.b16 %v748
    %v825 = vunpack.c.l.b16 %v749
    %v826 = vunpack.c.h.b16 %v749
    %v827 = vunpack.c.l.b16 %v750
    %v828 = vunpack.c.h.b16 %v750
    %v829 = vunpack.c.l.b16 %v751
    %v830 = vunpack.c.h.b16 %v751
    %v831 = vunpack.c.l.b16 %v752
    %v832 = vunpack.c.h.b16 %v752
    %v833 = vunpack.c.l.b16 %v753
    %v834 = vunpack.c.h.b16 %v753
    %v835 = vunpack.c.l.b16 %v754
    %v836 = vunpack.c.h.b16 %v754
    %v837 = vunpack.c.l.b16 %v755
    %v838 = vunpack.c.h.b16 %v755
    %v839 = vunpack.c.l.b16 %v756
    %v840 = vunpack.c.h.b16 %v756
    %v841 = vunpack.c.l.b16 %v757
    %v842 = vunpack.c.h.b16 %v757
    %v843 = vunpack.c.l.b16 %v758
    %v844 = vunpack.c.h.b16 %v758
    %v845 = vunpack.c.l.b16 %v759
    %v846 = vunpack.c.h.b16 %v759
    %v847 = vunpack.c.l.b16 %v760
    %v848 = vunpack.c.h.b16 %v760
    %v849 = vunpack.c.l.b16 %v761
    %v850 = vunpack.c.h.b16 %v761
    %v851 = vunpack.c.l.b16 %v762
    %v852 = vunpack.c.h.b16 %v762
    %v853 = vunpack.c.l.b16 %v763
    %v854 = vunpack.c.h.b16 %v763
    %v855 = vunpack.c.l.b16 %v764
    %v856 = vunpack.c.h.b16 %v764
    %v857 = vunpack.c.l.b16 %v765
    %v858 = vunpack.c.h.b16 %v765
    %v859 = vunpack.c.l.b16 %v766
    %v860 = vunpack.c.h.b16 %v766
    %v861 = vunpack.c.l.b16 %v767
    %v862 = vunpack.c.h.b16 %v767
    %v863 = vunpack.c.l.b16 %v768
    %v864 = vunpack.c.h.b16 %v768
    %v865 = vpack.c.b16 %v805, %v801
    %v866 = vpack.c.b16 %v806, %v802
    %v867 = vpack.c.b16 %v807, %v803
    %v868 = vpack.c.b16 %v808, %v804
    %v869 = vpack.c.b16 %v813, %v809
    %v870 = vpack.c.b16 %v814, %v810
    %v871 = vpack.c.b16 %v815, %v811
    %v872 = vpack.c.b16 %v816, %v812
    %v873 = vpack.c.b16 %v821, %v817
    %v874 = vpack.c.b16 %v822, %v818
    %v875 = vpack.c.b16 %v823, %v819
    %v876 = vpack.c.b16 %v824, %v820
    %v877 = vpack.c.b16 %v829, %v825
    %v878 = vpack.c.b16 %v830, %v826
    %v879 = vpack.c.b16 %v831, %v827
    %v880 = vpack.c.b16 %v832, %v828
    %v881 = vpack.c.b16 %v837, %v833
    %v882 = vpack.c.b16 %v838, %v834
    %v883 = vpack.c.b16 %v839, %v835
    %v884 = vpack.c.b16 %v840, %v836
    %v885 = vpack.c.b16 %v845, %v841
    %v886 = vpack.c.b16 %v846, %v842
    %v887 = vpack.c.b16 %v847, %v843
    %v888 = vpack.c.b16 %v848, %v844
    %v889 = vpack.c.b16 %v853, %v849
    %v890 = vpack.c.b16 %v854, %v850
    %v891 = vpack.c.b16 %v855, %v851
    %v892 = vpack.c.b16 %v856, %v852
    %v893 = vpack.c.b16 %v861, %v857
    %v894 = vpack.c.b16 %v862, %v858
    %v895 = vpack.c.b16 %v863, %v859
    %v896 = vpack.c.b16 %v864, %v860
    %929 = vmatprep.subr.bf16.mxu0 %v866
    %930 = vmatpush1.bf16.msra.mxu0 %v865
    %931 = vmatprep.subr.bf16.mxu0 %v870
    %932 = vmatpush1.bf16.msra.mxu0 %v869
    %933 = vmatprep.subr.bf16.mxu0 %v874
    %934 = vmatpush1.bf16.msra.mxu0 %v873
    %935 = vmatprep.subr.bf16.mxu0 %v878
    %936 = vmatpush1.bf16.msra.mxu0 %v877
    %937 = vmatprep.subr.bf16.mxu0 %v882
    %938 = vmatpush1.bf16.msra.mxu0 %v881
    %939 = vmatprep.subr.bf16.mxu0 %v886
    %940 = vmatpush1.bf16.msra.mxu0 %v885
    %941 = vmatprep.subr.bf16.mxu0 %v890
    %942 = vmatpush1.bf16.msra.mxu0 %v889
    %943 = vmatprep.subr.bf16.mxu0 %v894
    %944 = vmatpush1.bf16.msra.mxu0 %v893
    %945 = vmatprep.subr.bf16.mxu0 0
    %946 = vmatpush1.bf16.msra.mxu0 0
    %947 = vmatprep.subr.bf16.mxu0 0
    %948 = vmatpush1.bf16.msra.mxu0 0
    %949 = vmatprep.subr.bf16.mxu0 0
    %950 = vmatpush1.bf16.msra.mxu0 0
    %951 = vmatprep.subr.bf16.mxu0 0
    %952 = vmatpush1.bf16.msra.mxu0 0
    %953 = vmatprep.subr.bf16.mxu0 0
    %954 = vmatpush1.bf16.msra.mxu0 0
    %955 = vmatprep.subr.bf16.mxu0 0
    %956 = vmatpush1.bf16.msra.mxu0 0
    %957 = vmatprep.subr.bf16.mxu0 0
    %958 = vmatpush1.bf16.msra.mxu0 0
    %959 = vmatprep.subr.bf16.mxu0 0
    %960 = vmatpush1.bf16.msra.mxu0 0
    %961 = vmatprep.mubr.bf16.mxu0 0
    %962 = vmatmul.mubr.bf16.gmra.mrb[0].mxu0 %v735
    %v963 = vpop.f32.mrb[0].mxu0
    %v964 = vadd.f32 %v252, %v963
    %v965 = vpop.f32.mrb[0].mxu0
    %v966 = vadd.f32 %v256, %v965
    %v967 = vpop.f32.mrb[0].mxu0
    %v968 = vadd.f32 %v252, %v967
    %v969 = vpop.f32.mrb[0].mxu0
    %v970 = vadd.f32 %v256, %v969
    %971 = vmatprep.mubr.bf16.mxu0 0
    %972 = vmatmul.mubr.bf16.gmra.mrb[0].mxu0 %v736
    %v973 = vpop.f32.mrb[0].mxu0
    %v974 = vadd.f32 %v252, %v973
    %v975 = vpop.f32.mrb[0].mxu0
    %v976 = vadd.f32 %v256, %v975
    %v977 = vpop.f32.mrb[0].mxu0
    %v978 = vadd.f32 %v252, %v977
    %v979 = vpop.f32.mrb[0].mxu0
    %v980 = vadd.f32 %v256, %v979
    %981 = vdwg.mxu0
    %982 = vmatprep.subr.bf16.mxu0 %v868
    %983 = vmatpush1.bf16.msra.mxu0 %v867
    %984 = vmatprep.subr.bf16.mxu0 %v872
    %985 = vmatpush1.bf16.msra.mxu0 %v871
    %986 = vmatprep.subr.bf16.mxu0 %v876
    %987 = vmatpush1.bf16.msra.mxu0 %v875
    %988 = vmatprep.subr.bf16.mxu0 %v880
    %989 = vmatpush1.bf16.msra.mxu0 %v879
    %990 = vmatprep.subr.bf16.mxu0 %v884
    %991 = vmatpush1.bf16.msra.mxu0 %v883
    %992 = vmatprep.subr.bf16.mxu0 %v888
    %993 = vmatpush1.bf16.msra.mxu0 %v887
    %994 = vmatprep.subr.bf16.mxu0 %v892
    %995 = vmatpush1.bf16.msra.mxu0 %v891
    %996 = vmatprep.subr.bf16.mxu0 %v896
    %997 = vmatpush1.bf16.msra.mxu0 %v895
    %998 = vmatprep.subr.bf16.mxu0 0
    %999 = vmatpush1.bf16.msra.mxu0 0
    %1000 = vmatprep.subr.bf16.mxu0 0
    %1001 = vmatpush1.bf16.msra.mxu0 0
    %1002 = vmatprep.subr.bf16.mxu0 0
    %1003 = vmatpush1.bf16.msra.mxu0 0
    %1004 = vmatprep.subr.bf16.mxu0 0
    %1005 = vmatpush1.bf16.msra.mxu0 0
    %1006 = vmatprep.subr.bf16.mxu0 0
    %1007 = vmatpush1.bf16.msra.mxu0 0
    %1008 = vmatprep.subr.bf16.mxu0 0
    %1009 = vmatpush1.bf16.msra.mxu0 0
    %1010 = vmatprep.subr.bf16.mxu0 0
    %1011 = vmatpush1.bf16.msra.mxu0 0
    %1012 = vmatprep.subr.bf16.mxu0 0
    %1013 = vmatpush1.bf16.msra.mxu0 0
    %1014 = vmatprep.mubr.bf16.mxu0 0
    %1015 = vmatmul.mubr.bf16.gmra.mrb[0].mxu0 %v735
    %v1016 = vpop.f32.mrb[0].mxu0
    %v1017 = vadd.f32 %v260, %v1016
    %v1018 = vpop.f32.mrb[0].mxu0
    %v1019 = vadd.f32 %v264, %v1018
    %v1020 = vpop.f32.mrb[0].mxu0
    %v1021 = vadd.f32 %v260, %v1020
    %v1022 = vpop.f32.mrb[0].mxu0
    %v1023 = vadd.f32 %v264, %v1022
    %1024 = vmatprep.mubr.bf16.mxu0 0
    %1025 = vmatmul.mubr.bf16.gmra.mrb[0].mxu0 %v736
    %v1026 = vpop.f32.mrb[0].mxu0
    %v1027 = vadd.f32 %v260, %v1026
    %v1028 = vpop.f32.mrb[0].mxu0
    %v1029 = vadd.f32 %v264, %v1028
    %v1030 = vpop.f32.mrb[0].mxu0
    %v1031 = vadd.f32 %v260, %v1030
    %v1032 = vpop.f32.mrb[0].mxu0
    %v1033 = vadd.f32 %v264, %v1032
    %1034 = vdwg.mxu0
    %v1035 = vmul.f32 %v539, %v609
    %v1036 = vmul.f32 %v543, %v610
    %v1037 = vmul.f32 %v547, %v611
    %v1038 = vmul.f32 %v551, %v612
    %v1039 = vmul.f32 %v539, %v613
    %v1040 = vmul.f32 %v543, %v614
    %v1041 = vmul.f32 %v547, %v615
    %v1042 = vmul.f32 %v551, %v616
    %v1043 = vmul.f32 %v539, %v617
    %v1044 = vmul.f32 %v543, %v618
    %v1045 = vmul.f32 %v547, %v619
    %v1046 = vmul.f32 %v551, %v620
    %v1047 = vmul.f32 %v539, %v621
    %v1048 = vmul.f32 %v543, %v622
    %v1049 = vmul.f32 %v547, %v623
    %v1050 = vmul.f32 %v551, %v624
    %v1051 = vmul.f32 %v576, %v964
    %v1052 = vmul.f32 %v580, %v966
    %v1053 = vmul.f32 %v584, %v1017
    %v1054 = vmul.f32 %v588, %v1019
    %v1055 = vmul.f32 %v576, %v968
    %v1056 = vmul.f32 %v580, %v970
    %v1057 = vmul.f32 %v584, %v1021
    %v1058 = vmul.f32 %v588, %v1023
    %v1059 = vmul.f32 %v576, %v974
    %v1060 = vmul.f32 %v580, %v976
    %v1061 = vmul.f32 %v584, %v1027
    %v1062 = vmul.f32 %v588, %v1029
    %v1063 = vmul.f32 %v576, %v978
    %v1064 = vmul.f32 %v580, %v980
    %v1065 = vmul.f32 %v584, %v1031
    %v1066 = vmul.f32 %v588, %v1033
    %v1067 = vadd.f32 %v1035, %v1051
    %v1068 = vadd.f32 %v1036, %v1052
    %v1069 = vadd.f32 %v1037, %v1053
    %v1070 = vadd.f32 %v1038, %v1054
    %v1071 = vadd.f32 %v1039, %v1055
    %v1072 = vadd.f32 %v1040, %v1056
    %v1073 = vadd.f32 %v1041, %v1057
    %v1074 = vadd.f32 %v1042, %v1058
    %v1075 = vadd.f32 %v1043, %v1059
    %v1076 = vadd.f32 %v1044, %v1060
    %v1077 = vadd.f32 %v1045, %v1061
    %v1078 = vadd.f32 %v1046, %v1062
    %v1079 = vadd.f32 %v1047, %v1063
    %v1080 = vadd.f32 %v1048, %v1064
    %v1081 = vadd.f32 %v1049, %v1065
    %v1082 = vadd.f32 %v1050, %v1066
    %v1083 = vadd.f32 %v1067, %v1068
    %v1084 = vadd.f32 %v1071, %v1072
    %v1085 = vadd.f32 %v1075, %v1076
    %v1086 = vadd.f32 %v1079, %v1080
    %v1087 = vadd.f32 %v1083, %v1069
    %v1088 = vadd.f32 %v1084, %v1073
    %v1089 = vadd.f32 %v1085, %v1077
    %v1090 = vadd.f32 %v1086, %v1081
    %v1091 = vadd.f32 %v1087, %v1070
    %v1092 = vadd.f32 %v1088, %v1074
    %v1093 = vadd.f32 %v1089, %v1078
    %v1094 = vadd.f32 %v1090, %v1082
    %v1095 = vld [vmem:[%s4 + $0x1] sm:$0x1]
    %vm1096 = vcmp.gt.f32.partialorder %v1095, 0.0
    %v1097 = vmul.f32 %v677, %v642
    %v1098 = vmul.f32 %v678, %v642
    %v1099 = vmul.f32 %v679, %v642
    %v1100 = vmul.f32 %v680, %v642
    %v1101 = vmul.f32 %v650, %v1091
    %v1102 = vmul.f32 %v650, %v1092
    %v1103 = vmul.f32 %v650, %v1093
    %v1104 = vmul.f32 %v650, %v1094
    %v1105 = vadd.f32 %v1097, %v1101
    %v1106 = vadd.f32 %v1098, %v1102
    %v1107 = vadd.f32 %v1099, %v1103
    %v1108 = vadd.f32 %v1100, %v1104
    %v1109 = vmul.f32 %v662, %v689
    %v1110 = vmul.f32 %v662, %v690
    %v1111 = vmul.f32 %v662, %v691
    %v1112 = vmul.f32 %v662, %v692
    %v1113 = vsub.f32 %v1105, %v1109
    %v1114 = vsub.f32 %v1106, %v1110
    %v1115 = vsub.f32 %v1107, %v1111
    %v1116 = vsub.f32 %v1108, %v1112
    %v1117 = vsel %vm1096, 1, 0
    %v1118 = vlaneseq
    %v1119 = vshrl.u32 %v1118, 7
    %v1120 = vsub.s32 0, %v1119
    %v1121 = vrot.slane %v1117, %v1120
    %vm1122 = vcmp.eq.s32.totalorder %v1121, 1
    %v1123 = vsel %vm1122, %v1113, %v677
    %v1124 = vsel %vm1122, %v1114, %v678
    %v1125 = vsel %vm1122, %v1115, %v679
    %v1126 = vsel %vm1122, %v1116, %v680
    %vm1127 = vcmp.gt.f32.partialorder %v1123, %v662
    %vm1128 = vcmp.gt.f32.partialorder %v1124, %v662
    %vm1129 = vcmp.gt.f32.partialorder %v1125, %v662
    %vm1130 = vcmp.gt.f32.partialorder %v1126, %v662
    %vm1131 = vmand %vm1127, %vm1122
    %vm1132 = vmand %vm1128, %vm1122
    %vm1133 = vmand %vm1129, %vm1122
    %vm1134 = vmand %vm1130, %vm1122
    %v1135 = vsel %vm1131, 1.0, 0.0
    %v1136 = vsel %vm1132, 1.0, 0.0
    %v1137 = vsel %vm1133, 1.0, 0.0
    %v1138 = vsel %vm1134, 1.0, 0.0
    %v1139 = vpack.c.bf16 %v1124, %v1123
    %v1140 = vpack.c.bf16 %v1126, %v1125
    %v1143 = vunpack.c.l.b16 %v1139
    %v1144 = vunpack.c.h.b16 %v1139
    %v1145 = vunpack.c.l.b16 %v1140
    %v1146 = vunpack.c.h.b16 %v1140
    %v1147 = vpack.c.b16 %v1143, %v1143
    %v1148 = vpack.c.b16 %v1144, %v1144
    %v1149 = vpack.c.b16 %v1145, %v1145
    %v1150 = vpack.c.b16 %v1146, %v1146
    %s1155 = scalar_lea.vmem [#allocation14], 16
    %1156 = vst [vmem:[%s1155] sm:$0xf] %v1147
    %1157 = vst [vmem:[%s1155 + $0x4] sm:$0xf] %v1148
    %1158 = vst [vmem:[%s1155 + $0x8] sm:$0xf] %v1149
    %1159 = vst [vmem:[%s1155 + $0xc] sm:$0xf] %v1150
    %v1160 = vpack.c.bf16 %v1136, %v1135
    %v1161 = vpack.c.bf16 %v1138, %v1137
    %v1164 = vunpack.c.l.b16 %v1160
    %v1165 = vunpack.c.h.b16 %v1160
    %v1166 = vunpack.c.l.b16 %v1161
    %v1167 = vunpack.c.h.b16 %v1161
    %v1168 = vpack.c.b16 %v1164, %v1164
    %v1169 = vpack.c.b16 %v1165, %v1165
    %v1170 = vpack.c.b16 %v1166, %v1166
    %v1171 = vpack.c.b16 %v1167, %v1167
    %s1176 = scalar_lea.vmem [#allocation15], 16
    %1177 = vst [vmem:[%s1176] sm:$0xf] %v1168
    %1178 = vst [vmem:[%s1176 + $0x4] sm:$0xf] %v1169
    %1179 = vst [vmem:[%s1176 + $0x8] sm:$0xf] %v1170
    %1180 = vst [vmem:[%s1176 + $0xc] sm:$0xf] %v1171
    %s1181 = scalar_lea.vmem [#allocation2], 16
    %v1182 = vld [vmem:[%s1181] sm:$0xff]
    %v1183 = vunpack.c.l.s8.bf16 %v1182
    %v1184 = vunpack.c.h.s8.bf16 %v1182
    %v1185 = vld [vmem:[#allocation5] sm:$0xff]
    %v1186 = vld [vmem:[#allocation5 + $0x8] sm:$0xff]
    %v1187 = vld [vmem:[#allocation5 + $0x10] sm:$0xff]
    %v1188 = vld [vmem:[#allocation5 + $0x18] sm:$0xff]
    %v1189 = vld [vmem:[#allocation5 + $0x20] sm:$0xff]
    %v1190 = vld [vmem:[#allocation5 + $0x28] sm:$0xff]
    %v1191 = vld [vmem:[#allocation5 + $0x30] sm:$0xff]
    %v1192 = vld [vmem:[#allocation5 + $0x38] sm:$0xff]
    %v1193 = vld [vmem:[#allocation5 + $0x40] sm:$0xff]
    %v1194 = vld [vmem:[#allocation5 + $0x48] sm:$0xff]
    %v1195 = vld [vmem:[#allocation5 + $0x50] sm:$0xff]
    %v1196 = vld [vmem:[#allocation5 + $0x58] sm:$0xff]
    %v1197 = vld [vmem:[#allocation5 + $0x60] sm:$0xff]
    %v1198 = vld [vmem:[#allocation5 + $0x68] sm:$0xff]
    %v1199 = vld [vmem:[#allocation5 + $0x70] sm:$0xff]
    %v1200 = vld [vmem:[#allocation5 + $0x78] sm:$0xff]
    %v1201 = vld [vmem:[#allocation5 + $0x80] sm:$0xff]
    %v1202 = vld [vmem:[#allocation5 + $0x88] sm:$0xff]
    %v1203 = vld [vmem:[#allocation5 + $0x90] sm:$0xff]
    %v1204 = vld [vmem:[#allocation5 + $0x98] sm:$0xff]
    %v1205 = vld [vmem:[#allocation5 + $0xa0] sm:$0xff]
    %v1206 = vld [vmem:[#allocation5 + $0xa8] sm:$0xff]
    %v1207 = vld [vmem:[#allocation5 + $0xb0] sm:$0xff]
    %v1208 = vld [vmem:[#allocation5 + $0xb8] sm:$0xff]
    %v1209 = vld [vmem:[#allocation5 + $0xc0] sm:$0xff]
    %v1210 = vld [vmem:[#allocation5 + $0xc8] sm:$0xff]
    %v1211 = vld [vmem:[#allocation5 + $0xd0] sm:$0xff]
    %v1212 = vld [vmem:[#allocation5 + $0xd8] sm:$0xff]
    %v1213 = vld [vmem:[#allocation5 + $0xe0] sm:$0xff]
    %v1214 = vld [vmem:[#allocation5 + $0xe8] sm:$0xff]
    %v1215 = vld [vmem:[#allocation5 + $0xf0] sm:$0xff]
    %v1216 = vld [vmem:[#allocation5 + $0xf8] sm:$0xff]
    %v1249 = vunpack.c.l.b16 %v1185
    %v1250 = vunpack.c.h.b16 %v1185
    %v1251 = vunpack.c.l.b16 %v1186
    %v1252 = vunpack.c.h.b16 %v1186
    %v1253 = vunpack.c.l.b16 %v1187
    %v1254 = vunpack.c.h.b16 %v1187
    %v1255 = vunpack.c.l.b16 %v1188
    %v1256 = vunpack.c.h.b16 %v1188
    %v1257 = vunpack.c.l.b16 %v1189
    %v1258 = vunpack.c.h.b16 %v1189
    %v1259 = vunpack.c.l.b16 %v1190
    %v1260 = vunpack.c.h.b16 %v1190
    %v1261 = vunpack.c.l.b16 %v1191
    %v1262 = vunpack.c.h.b16 %v1191
    %v1263 = vunpack.c.l.b16 %v1192
    %v1264 = vunpack.c.h.b16 %v1192
    %v1265 = vunpack.c.l.b16 %v1193
    %v1266 = vunpack.c.h.b16 %v1193
    %v1267 = vunpack.c.l.b16 %v1194
    %v1268 = vunpack.c.h.b16 %v1194
    %v1269 = vunpack.c.l.b16 %v1195
    %v1270 = vunpack.c.h.b16 %v1195
    %v1271 = vunpack.c.l.b16 %v1196
    %v1272 = vunpack.c.h.b16 %v1196
    %v1273 = vunpack.c.l.b16 %v1197
    %v1274 = vunpack.c.h.b16 %v1197
    %v1275 = vunpack.c.l.b16 %v1198
    %v1276 = vunpack.c.h.b16 %v1198
    %v1277 = vunpack.c.l.b16 %v1199
    %v1278 = vunpack.c.h.b16 %v1199
    %v1279 = vunpack.c.l.b16 %v1200
    %v1280 = vunpack.c.h.b16 %v1200
    %v1281 = vunpack.c.l.b16 %v1201
    %v1282 = vunpack.c.h.b16 %v1201
    %v1283 = vunpack.c.l.b16 %v1202
    %v1284 = vunpack.c.h.b16 %v1202
    %v1285 = vunpack.c.l.b16 %v1203
    %v1286 = vunpack.c.h.b16 %v1203
    %v1287 = vunpack.c.l.b16 %v1204
    %v1288 = vunpack.c.h.b16 %v1204
    %v1289 = vunpack.c.l.b16 %v1205
    %v1290 = vunpack.c.h.b16 %v1205
    %v1291 = vunpack.c.l.b16 %v1206
    %v1292 = vunpack.c.h.b16 %v1206
    %v1293 = vunpack.c.l.b16 %v1207
    %v1294 = vunpack.c.h.b16 %v1207
    %v1295 = vunpack.c.l.b16 %v1208
    %v1296 = vunpack.c.h.b16 %v1208
    %v1297 = vunpack.c.l.b16 %v1209
    %v1298 = vunpack.c.h.b16 %v1209
    %v1299 = vunpack.c.l.b16 %v1210
    %v1300 = vunpack.c.h.b16 %v1210
    %v1301 = vunpack.c.l.b16 %v1211
    %v1302 = vunpack.c.h.b16 %v1211
    %v1303 = vunpack.c.l.b16 %v1212
    %v1304 = vunpack.c.h.b16 %v1212
    %v1305 = vunpack.c.l.b16 %v1213
    %v1306 = vunpack.c.h.b16 %v1213
    %v1307 = vunpack.c.l.b16 %v1214
    %v1308 = vunpack.c.h.b16 %v1214
    %v1309 = vunpack.c.l.b16 %v1215
    %v1310 = vunpack.c.h.b16 %v1215
    %v1311 = vunpack.c.l.b16 %v1216
    %v1312 = vunpack.c.h.b16 %v1216
    %v1313 = vpack.c.b16 %v1253, %v1249
    %v1314 = vpack.c.b16 %v1254, %v1250
    %v1315 = vpack.c.b16 %v1255, %v1251
    %v1316 = vpack.c.b16 %v1256, %v1252
    %v1317 = vpack.c.b16 %v1261, %v1257
    %v1318 = vpack.c.b16 %v1262, %v1258
    %v1319 = vpack.c.b16 %v1263, %v1259
    %v1320 = vpack.c.b16 %v1264, %v1260
    %v1321 = vpack.c.b16 %v1269, %v1265
    %v1322 = vpack.c.b16 %v1270, %v1266
    %v1323 = vpack.c.b16 %v1271, %v1267
    %v1324 = vpack.c.b16 %v1272, %v1268
    %v1325 = vpack.c.b16 %v1277, %v1273
    %v1326 = vpack.c.b16 %v1278, %v1274
    %v1327 = vpack.c.b16 %v1279, %v1275
    %v1328 = vpack.c.b16 %v1280, %v1276
    %v1329 = vpack.c.b16 %v1285, %v1281
    %v1330 = vpack.c.b16 %v1286, %v1282
    %v1331 = vpack.c.b16 %v1287, %v1283
    %v1332 = vpack.c.b16 %v1288, %v1284
    %v1333 = vpack.c.b16 %v1293, %v1289
    %v1334 = vpack.c.b16 %v1294, %v1290
    %v1335 = vpack.c.b16 %v1295, %v1291
    %v1336 = vpack.c.b16 %v1296, %v1292
    %v1337 = vpack.c.b16 %v1301, %v1297
    %v1338 = vpack.c.b16 %v1302, %v1298
    %v1339 = vpack.c.b16 %v1303, %v1299
    %v1340 = vpack.c.b16 %v1304, %v1300
    %v1341 = vpack.c.b16 %v1309, %v1305
    %v1342 = vpack.c.b16 %v1310, %v1306
    %v1343 = vpack.c.b16 %v1311, %v1307
    %v1344 = vpack.c.b16 %v1312, %v1308
    %1377 = vmatprep.subr.bf16.mxu0 %v1314
    %1378 = vmatpush1.bf16.msra.mxu0 %v1313
    %1379 = vmatprep.subr.bf16.mxu0 %v1318
    %1380 = vmatpush1.bf16.msra.mxu0 %v1317
    %1381 = vmatprep.subr.bf16.mxu0 %v1322
    %1382 = vmatpush1.bf16.msra.mxu0 %v1321
    %1383 = vmatprep.subr.bf16.mxu0 %v1326
    %1384 = vmatpush1.bf16.msra.mxu0 %v1325
    %1385 = vmatprep.subr.bf16.mxu0 %v1330
    %1386 = vmatpush1.bf16.msra.mxu0 %v1329
    %1387 = vmatprep.subr.bf16.mxu0 %v1334
    %1388 = vmatpush1.bf16.msra.mxu0 %v1333
    %1389 = vmatprep.subr.bf16.mxu0 %v1338
    %1390 = vmatpush1.bf16.msra.mxu0 %v1337
    %1391 = vmatprep.subr.bf16.mxu0 %v1342
    %1392 = vmatpush1.bf16.msra.mxu0 %v1341
    %1393 = vmatprep.subr.bf16.mxu0 0
    %1394 = vmatpush1.bf16.msra.mxu0 0
    %1395 = vmatprep.subr.bf16.mxu0 0
    %1396 = vmatpush1.bf16.msra.mxu0 0
    %1397 = vmatprep.subr.bf16.mxu0 0
    %1398 = vmatpush1.bf16.msra.mxu0 0
    %1399 = vmatprep.subr.bf16.mxu0 0
    %1400 = vmatpush1.bf16.msra.mxu0 0
    %1401 = vmatprep.subr.bf16.mxu0 0
    %1402 = vmatpush1.bf16.msra.mxu0 0
    %1403 = vmatprep.subr.bf16.mxu0 0
    %1404 = vmatpush1.bf16.msra.mxu0 0
    %1405 = vmatprep.subr.bf16.mxu0 0
    %1406 = vmatpush1.bf16.msra.mxu0 0
    %1407 = vmatprep.subr.bf16.mxu0 0
    %1408 = vmatpush1.bf16.msra.mxu0 0
    %1409 = vmatprep.mubr.bf16.mxu0 0
    %1410 = vmatmul.mubr.bf16.gmra.mrb[0].mxu0 %v1183
    %v1411 = vpop.f32.mrb[0].mxu0
    %v1412 = vadd.f32 %v252, %v1411
    %v1413 = vpop.f32.mrb[0].mxu0
    %v1414 = vadd.f32 %v256, %v1413
    %v1415 = vpop.f32.mrb[0].mxu0
    %v1416 = vadd.f32 %v252, %v1415
    %v1417 = vpop.f32.mrb[0].mxu0
    %v1418 = vadd.f32 %v256, %v1417
    %1419 = vmatprep.mubr.bf16.mxu0 0
    %1420 = vmatmul.mubr.bf16.gmra.mrb[0].mxu0 %v1184
    %v1421 = vpop.f32.mrb[0].mxu0
    %v1422 = vadd.f32 %v252, %v1421
    %v1423 = vpop.f32.mrb[0].mxu0
    %v1424 = vadd.f32 %v256, %v1423
    %v1425 = vpop.f32.mrb[0].mxu0
    %v1426 = vadd.f32 %v252, %v1425
    %v1427 = vpop.f32.mrb[0].mxu0
    %v1428 = vadd.f32 %v256, %v1427
    %1429 = vdwg.mxu0
    %1430 = vmatprep.subr.bf16.mxu0 %v1316
    %1431 = vmatpush1.bf16.msra.mxu0 %v1315
    %1432 = vmatprep.subr.bf16.mxu0 %v1320
    %1433 = vmatpush1.bf16.msra.mxu0 %v1319
    %1434 = vmatprep.subr.bf16.mxu0 %v1324
    %1435 = vmatpush1.bf16.msra.mxu0 %v1323
    %1436 = vmatprep.subr.bf16.mxu0 %v1328
    %1437 = vmatpush1.bf16.msra.mxu0 %v1327
    %1438 = vmatprep.subr.bf16.mxu0 %v1332
    %1439 = vmatpush1.bf16.msra.mxu0 %v1331
    %1440 = vmatprep.subr.bf16.mxu0 %v1336
    %1441 = vmatpush1.bf16.msra.mxu0 %v1335
    %1442 = vmatprep.subr.bf16.mxu0 %v1340
    %1443 = vmatpush1.bf16.msra.mxu0 %v1339
    %1444 = vmatprep.subr.bf16.mxu0 %v1344
    %1445 = vmatpush1.bf16.msra.mxu0 %v1343
    %1446 = vmatprep.subr.bf16.mxu0 0
    %1447 = vmatpush1.bf16.msra.mxu0 0
    %1448 = vmatprep.subr.bf16.mxu0 0
    %1449 = vmatpush1.bf16.msra.mxu0 0
    %1450 = vmatprep.subr.bf16.mxu0 0
    %1451 = vmatpush1.bf16.msra.mxu0 0
    %1452 = vmatprep.subr.bf16.mxu0 0
    %1453 = vmatpush1.bf16.msra.mxu0 0
    %1454 = vmatprep.subr.bf16.mxu0 0
    %1455 = vmatpush1.bf16.msra.mxu0 0
    %1456 = vmatprep.subr.bf16.mxu0 0
    %1457 = vmatpush1.bf16.msra.mxu0 0
    %1458 = vmatprep.subr.bf16.mxu0 0
    %1459 = vmatpush1.bf16.msra.mxu0 0
    %1460 = vmatprep.subr.bf16.mxu0 0
    %1461 = vmatpush1.bf16.msra.mxu0 0
    %1462 = vmatprep.mubr.bf16.mxu0 0
    %1463 = vmatmul.mubr.bf16.gmra.mrb[0].mxu0 %v1183
    %v1464 = vpop.f32.mrb[0].mxu0
    %v1465 = vadd.f32 %v260, %v1464
    %v1466 = vpop.f32.mrb[0].mxu0
    %v1467 = vadd.f32 %v264, %v1466
    %v1468 = vpop.f32.mrb[0].mxu0
    %v1469 = vadd.f32 %v260, %v1468
    %v1470 = vpop.f32.mrb[0].mxu0
    %v1471 = vadd.f32 %v264, %v1470
    %1472 = vmatprep.mubr.bf16.mxu0 0
    %1473 = vmatmul.mubr.bf16.gmra.mrb[0].mxu0 %v1184
    %v1474 = vpop.f32.mrb[0].mxu0
    %v1475 = vadd.f32 %v260, %v1474
    %v1476 = vpop.f32.mrb[0].mxu0
    %v1477 = vadd.f32 %v264, %v1476
    %v1478 = vpop.f32.mrb[0].mxu0
    %v1479 = vadd.f32 %v260, %v1478
    %v1480 = vpop.f32.mrb[0].mxu0
    %v1481 = vadd.f32 %v264, %v1480
    %1482 = vdwg.mxu0
    %v1483 = vmul.f32 %v539, %v1067
    %v1484 = vmul.f32 %v543, %v1068
    %v1485 = vmul.f32 %v547, %v1069
    %v1486 = vmul.f32 %v551, %v1070
    %v1487 = vmul.f32 %v539, %v1071
    %v1488 = vmul.f32 %v543, %v1072
    %v1489 = vmul.f32 %v547, %v1073
    %v1490 = vmul.f32 %v551, %v1074
    %v1491 = vmul.f32 %v539, %v1075
    %v1492 = vmul.f32 %v543, %v1076
    %v1493 = vmul.f32 %v547, %v1077
    %v1494 = vmul.f32 %v551, %v1078
    %v1495 = vmul.f32 %v539, %v1079
    %v1496 = vmul.f32 %v543, %v1080
    %v1497 = vmul.f32 %v547, %v1081
    %v1498 = vmul.f32 %v551, %v1082
    %v1499 = vmul.f32 %v576, %v1412
    %v1500 = vmul.f32 %v580, %v1414
    %v1501 = vmul.f32 %v584, %v1465
    %v1502 = vmul.f32 %v588, %v1467
    %v1503 = vmul.f32 %v576, %v1416
    %v1504 = vmul.f32 %v580, %v1418
    %v1505 = vmul.f32 %v584, %v1469
    %v1506 = vmul.f32 %v588, %v1471
    %v1507 = vmul.f32 %v576, %v1422
    %v1508 = vmul.f32 %v580, %v1424
    %v1509 = vmul.f32 %v584, %v1475
    %v1510 = vmul.f32 %v588, %v1477
    %v1511 = vmul.f32 %v576, %v1426
    %v1512 = vmul.f32 %v580, %v1428
    %v1513 = vmul.f32 %v584, %v1479
    %v1514 = vmul.f32 %v588, %v1481
    %v1515 = vadd.f32 %v1483, %v1499
    %v1516 = vadd.f32 %v1484, %v1500
    %v1517 = vadd.f32 %v1485, %v1501
    %v1518 = vadd.f32 %v1486, %v1502
    %v1519 = vadd.f32 %v1487, %v1503
    %v1520 = vadd.f32 %v1488, %v1504
    %v1521 = vadd.f32 %v1489, %v1505
    %v1522 = vadd.f32 %v1490, %v1506
    %v1523 = vadd.f32 %v1491, %v1507
    %v1524 = vadd.f32 %v1492, %v1508
    %v1525 = vadd.f32 %v1493, %v1509
    %v1526 = vadd.f32 %v1494, %v1510
    %v1527 = vadd.f32 %v1495, %v1511
    %v1528 = vadd.f32 %v1496, %v1512
    %v1529 = vadd.f32 %v1497, %v1513
    %v1530 = vadd.f32 %v1498, %v1514
    %v1531 = vadd.f32 %v1515, %v1516
    %v1532 = vadd.f32 %v1519, %v1520
    %v1533 = vadd.f32 %v1523, %v1524
    %v1534 = vadd.f32 %v1527, %v1528
    %v1535 = vadd.f32 %v1531, %v1517
    %v1536 = vadd.f32 %v1532, %v1521
    %v1537 = vadd.f32 %v1533, %v1525
    %v1538 = vadd.f32 %v1534, %v1529
    %v1539 = vadd.f32 %v1535, %v1518
    %v1540 = vadd.f32 %v1536, %v1522
    %v1541 = vadd.f32 %v1537, %v1526
    %v1542 = vadd.f32 %v1538, %v1530
    %v1543 = vld [vmem:[%s4 + $0x2] sm:$0x1]
    %vm1544 = vcmp.gt.f32.partialorder %v1543, 0.0
    %v1545 = vmul.f32 %v1123, %v642
    %v1546 = vmul.f32 %v1124, %v642
    %v1547 = vmul.f32 %v1125, %v642
    %v1548 = vmul.f32 %v1126, %v642
    %v1549 = vmul.f32 %v650, %v1539
    %v1550 = vmul.f32 %v650, %v1540
    %v1551 = vmul.f32 %v650, %v1541
    %v1552 = vmul.f32 %v650, %v1542
    %v1553 = vadd.f32 %v1545, %v1549
    %v1554 = vadd.f32 %v1546, %v1550
    %v1555 = vadd.f32 %v1547, %v1551
    %v1556 = vadd.f32 %v1548, %v1552
    %v1557 = vmul.f32 %v662, %v1135
    %v1558 = vmul.f32 %v662, %v1136
    %v1559 = vmul.f32 %v662, %v1137
    %v1560 = vmul.f32 %v662, %v1138
    %v1561 = vsub.f32 %v1553, %v1557
    %v1562 = vsub.f32 %v1554, %v1558
    %v1563 = vsub.f32 %v1555, %v1559
    %v1564 = vsub.f32 %v1556, %v1560
    %v1565 = vsel %vm1544, 1, 0
    %v1566 = vlaneseq
    %v1567 = vshrl.u32 %v1566, 7
    %v1568 = vsub.s32 0, %v1567
    %v1569 = vrot.slane %v1565, %v1568
    %vm1570 = vcmp.eq.s32.totalorder %v1569, 1
    %v1571 = vsel %vm1570, %v1561, %v1123
    %v1572 = vsel %vm1570, %v1562, %v1124
    %v1573 = vsel %vm1570, %v1563, %v1125
    %v1574 = vsel %vm1570, %v1564, %v1126
    %vm1575 = vcmp.gt.f32.partialorder %v1571, %v662
    %vm1576 = vcmp.gt.f32.partialorder %v1572, %v662
    %vm1577 = vcmp.gt.f32.partialorder %v1573, %v662
    %vm1578 = vcmp.gt.f32.partialorder %v1574, %v662
    %vm1579 = vmand %vm1575, %vm1570
    %vm1580 = vmand %vm1576, %vm1570
    %vm1581 = vmand %vm1577, %vm1570
    %vm1582 = vmand %vm1578, %vm1570
    %v1583 = vsel %vm1579, 1.0, 0.0
    %v1584 = vsel %vm1580, 1.0, 0.0
    %v1585 = vsel %vm1581, 1.0, 0.0
    %v1586 = vsel %vm1582, 1.0, 0.0
    %v1587 = vpack.c.bf16 %v1572, %v1571
    %v1588 = vpack.c.bf16 %v1574, %v1573
    %v1591 = vunpack.c.l.b16 %v1587
    %v1592 = vunpack.c.h.b16 %v1587
    %v1593 = vunpack.c.l.b16 %v1588
    %v1594 = vunpack.c.h.b16 %v1588
    %v1595 = vpack.c.b16 %v1591, %v1591
    %v1596 = vpack.c.b16 %v1592, %v1592
    %v1597 = vpack.c.b16 %v1593, %v1593
    %v1598 = vpack.c.b16 %v1594, %v1594
    %s1603 = scalar_lea.vmem [#allocation14], 32
    %1604 = vst [vmem:[%s1603] sm:$0xf] %v1595
    %1605 = vst [vmem:[%s1603 + $0x4] sm:$0xf] %v1596
    %1606 = vst [vmem:[%s1603 + $0x8] sm:$0xf] %v1597
    %1607 = vst [vmem:[%s1603 + $0xc] sm:$0xf] %v1598
    %v1608 = vpack.c.bf16 %v1584, %v1583
    %v1609 = vpack.c.bf16 %v1586, %v1585
    %v1612 = vunpack.c.l.b16 %v1608
    %v1613 = vunpack.c.h.b16 %v1608
    %v1614 = vunpack.c.l.b16 %v1609
    %v1615 = vunpack.c.h.b16 %v1609
    %v1616 = vpack.c.b16 %v1612, %v1612
    %v1617 = vpack.c.b16 %v1613, %v1613
    %v1618 = vpack.c.b16 %v1614, %v1614
    %v1619 = vpack.c.b16 %v1615, %v1615
    %s1624 = scalar_lea.vmem [#allocation15], 32
    %1625 = vst [vmem:[%s1624] sm:$0xf] %v1616
    %1626 = vst [vmem:[%s1624 + $0x4] sm:$0xf] %v1617
    %1627 = vst [vmem:[%s1624 + $0x8] sm:$0xf] %v1618
    %1628 = vst [vmem:[%s1624 + $0xc] sm:$0xf] %v1619
    %s1629 = scalar_lea.vmem [#allocation2], 24
    %v1630 = vld [vmem:[%s1629] sm:$0xff]
    %v1631 = vunpack.c.l.s8.bf16 %v1630
    %v1632 = vunpack.c.h.s8.bf16 %v1630
    %v1633 = vld [vmem:[#allocation5] sm:$0xff]
    %v1634 = vld [vmem:[#allocation5 + $0x8] sm:$0xff]
    %v1635 = vld [vmem:[#allocation5 + $0x10] sm:$0xff]
    %v1636 = vld [vmem:[#allocation5 + $0x18] sm:$0xff]
    %v1637 = vld [vmem:[#allocation5 + $0x20] sm:$0xff]
    %v1638 = vld [vmem:[#allocation5 + $0x28] sm:$0xff]
    %v1639 = vld [vmem:[#allocation5 + $0x30] sm:$0xff]
    %v1640 = vld [vmem:[#allocation5 + $0x38] sm:$0xff]
    %v1641 = vld [vmem:[#allocation5 + $0x40] sm:$0xff]
    %v1642 = vld [vmem:[#allocation5 + $0x48] sm:$0xff]
    %v1643 = vld [vmem:[#allocation5 + $0x50] sm:$0xff]
    %v1644 = vld [vmem:[#allocation5 + $0x58] sm:$0xff]
    %v1645 = vld [vmem:[#allocation5 + $0x60] sm:$0xff]
    %v1646 = vld [vmem:[#allocation5 + $0x68] sm:$0xff]
    %v1647 = vld [vmem:[#allocation5 + $0x70] sm:$0xff]
    %v1648 = vld [vmem:[#allocation5 + $0x78] sm:$0xff]
    %v1649 = vld [vmem:[#allocation5 + $0x80] sm:$0xff]
    %v1650 = vld [vmem:[#allocation5 + $0x88] sm:$0xff]
    %v1651 = vld [vmem:[#allocation5 + $0x90] sm:$0xff]
    %v1652 = vld [vmem:[#allocation5 + $0x98] sm:$0xff]
    %v1653 = vld [vmem:[#allocation5 + $0xa0] sm:$0xff]
    %v1654 = vld [vmem:[#allocation5 + $0xa8] sm:$0xff]
    %v1655 = vld [vmem:[#allocation5 + $0xb0] sm:$0xff]
    %v1656 = vld [vmem:[#allocation5 + $0xb8] sm:$0xff]
    %v1657 = vld [vmem:[#allocation5 + $0xc0] sm:$0xff]
    %v1658 = vld [vmem:[#allocation5 + $0xc8] sm:$0xff]
    %v1659 = vld [vmem:[#allocation5 + $0xd0] sm:$0xff]
    %v1660 = vld [vmem:[#allocation5 + $0xd8] sm:$0xff]
    %v1661 = vld [vmem:[#allocation5 + $0xe0] sm:$0xff]
    %v1662 = vld [vmem:[#allocation5 + $0xe8] sm:$0xff]
    %v1663 = vld [vmem:[#allocation5 + $0xf0] sm:$0xff]
    %v1664 = vld [vmem:[#allocation5 + $0xf8] sm:$0xff]
    %v1697 = vunpack.c.l.b16 %v1633
    %v1698 = vunpack.c.h.b16 %v1633
    %v1699 = vunpack.c.l.b16 %v1634
    %v1700 = vunpack.c.h.b16 %v1634
    %v1701 = vunpack.c.l.b16 %v1635
    %v1702 = vunpack.c.h.b16 %v1635
    %v1703 = vunpack.c.l.b16 %v1636
    %v1704 = vunpack.c.h.b16 %v1636
    %v1705 = vunpack.c.l.b16 %v1637
    %v1706 = vunpack.c.h.b16 %v1637
    %v1707 = vunpack.c.l.b16 %v1638
    %v1708 = vunpack.c.h.b16 %v1638
    %v1709 = vunpack.c.l.b16 %v1639
    %v1710 = vunpack.c.h.b16 %v1639
    %v1711 = vunpack.c.l.b16 %v1640
    %v1712 = vunpack.c.h.b16 %v1640
    %v1713 = vunpack.c.l.b16 %v1641
    %v1714 = vunpack.c.h.b16 %v1641
    %v1715 = vunpack.c.l.b16 %v1642
    %v1716 = vunpack.c.h.b16 %v1642
    %v1717 = vunpack.c.l.b16 %v1643
    %v1718 = vunpack.c.h.b16 %v1643
    %v1719 = vunpack.c.l.b16 %v1644
    %v1720 = vunpack.c.h.b16 %v1644
    %v1721 = vunpack.c.l.b16 %v1645
    %v1722 = vunpack.c.h.b16 %v1645
    %v1723 = vunpack.c.l.b16 %v1646
    %v1724 = vunpack.c.h.b16 %v1646
    %v1725 = vunpack.c.l.b16 %v1647
    %v1726 = vunpack.c.h.b16 %v1647
    %v1727 = vunpack.c.l.b16 %v1648
    %v1728 = vunpack.c.h.b16 %v1648
    %v1729 = vunpack.c.l.b16 %v1649
    %v1730 = vunpack.c.h.b16 %v1649
    %v1731 = vunpack.c.l.b16 %v1650
    %v1732 = vunpack.c.h.b16 %v1650
    %v1733 = vunpack.c.l.b16 %v1651
    %v1734 = vunpack.c.h.b16 %v1651
    %v1735 = vunpack.c.l.b16 %v1652
    %v1736 = vunpack.c.h.b16 %v1652
    %v1737 = vunpack.c.l.b16 %v1653
    %v1738 = vunpack.c.h.b16 %v1653
    %v1739 = vunpack.c.l.b16 %v1654
    %v1740 = vunpack.c.h.b16 %v1654
    %v1741 = vunpack.c.l.b16 %v1655
    %v1742 = vunpack.c.h.b16 %v1655
    %v1743 = vunpack.c.l.b16 %v1656
    %v1744 = vunpack.c.h.b16 %v1656
    %v1745 = vunpack.c.l.b16 %v1657
    %v1746 = vunpack.c.h.b16 %v1657
    %v1747 = vunpack.c.l.b16 %v1658
    %v1748 = vunpack.c.h.b16 %v1658
    %v1749 = vunpack.c.l.b16 %v1659
    %v1750 = vunpack.c.h.b16 %v1659
    %v1751 = vunpack.c.l.b16 %v1660
    %v1752 = vunpack.c.h.b16 %v1660
    %v1753 = vunpack.c.l.b16 %v1661
    %v1754 = vunpack.c.h.b16 %v1661
    %v1755 = vunpack.c.l.b16 %v1662
    %v1756 = vunpack.c.h.b16 %v1662
    %v1757 = vunpack.c.l.b16 %v1663
    %v1758 = vunpack.c.h.b16 %v1663
    %v1759 = vunpack.c.l.b16 %v1664
    %v1760 = vunpack.c.h.b16 %v1664
    %v1761 = vpack.c.b16 %v1701, %v1697
    %v1762 = vpack.c.b16 %v1702, %v1698
    %v1763 = vpack.c.b16 %v1703, %v1699
    %v1764 = vpack.c.b16 %v1704, %v1700
    %v1765 = vpack.c.b16 %v1709, %v1705
    %v1766 = vpack.c.b16 %v1710, %v1706
    %v1767 = vpack.c.b16 %v1711, %v1707
    %v1768 = vpack.c.b16 %v1712, %v1708
    %v1769 = vpack.c.b16 %v1717, %v1713
    %v1770 = vpack.c.b16 %v1718, %v1714
    %v1771 = vpack.c.b16 %v1719, %v1715
    %v1772 = vpack.c.b16 %v1720, %v1716
    %v1773 = vpack.c.b16 %v1725, %v1721
    %v1774 = vpack.c.b16 %v1726, %v1722
    %v1775 = vpack.c.b16 %v1727, %v1723
    %v1776 = vpack.c.b16 %v1728, %v1724
    %v1777 = vpack.c.b16 %v1733, %v1729
    %v1778 = vpack.c.b16 %v1734, %v1730
    %v1779 = vpack.c.b16 %v1735, %v1731
    %v1780 = vpack.c.b16 %v1736, %v1732
    %v1781 = vpack.c.b16 %v1741, %v1737
    %v1782 = vpack.c.b16 %v1742, %v1738
    %v1783 = vpack.c.b16 %v1743, %v1739
    %v1784 = vpack.c.b16 %v1744, %v1740
    %v1785 = vpack.c.b16 %v1749, %v1745
    %v1786 = vpack.c.b16 %v1750, %v1746
    %v1787 = vpack.c.b16 %v1751, %v1747
    %v1788 = vpack.c.b16 %v1752, %v1748
    %v1789 = vpack.c.b16 %v1757, %v1753
    %v1790 = vpack.c.b16 %v1758, %v1754
    %v1791 = vpack.c.b16 %v1759, %v1755
    %v1792 = vpack.c.b16 %v1760, %v1756
    %1825 = vmatprep.subr.bf16.mxu0 %v1762
    %1826 = vmatpush1.bf16.msra.mxu0 %v1761
    %1827 = vmatprep.subr.bf16.mxu0 %v1766
    %1828 = vmatpush1.bf16.msra.mxu0 %v1765
    %1829 = vmatprep.subr.bf16.mxu0 %v1770
    %1830 = vmatpush1.bf16.msra.mxu0 %v1769
    %1831 = vmatprep.subr.bf16.mxu0 %v1774
    %1832 = vmatpush1.bf16.msra.mxu0 %v1773
    %1833 = vmatprep.subr.bf16.mxu0 %v1778
    %1834 = vmatpush1.bf16.msra.mxu0 %v1777
    %1835 = vmatprep.subr.bf16.mxu0 %v1782
    %1836 = vmatpush1.bf16.msra.mxu0 %v1781
    %1837 = vmatprep.subr.bf16.mxu0 %v1786
    %1838 = vmatpush1.bf16.msra.mxu0 %v1785
    %1839 = vmatprep.subr.bf16.mxu0 %v1790
    %1840 = vmatpush1.bf16.msra.mxu0 %v1789
    %1841 = vmatprep.subr.bf16.mxu0 0
    %1842 = vmatpush1.bf16.msra.mxu0 0
    %1843 = vmatprep.subr.bf16.mxu0 0
    %1844 = vmatpush1.bf16.msra.mxu0 0
    %1845 = vmatprep.subr.bf16.mxu0 0
    %1846 = vmatpush1.bf16.msra.mxu0 0
    %1847 = vmatprep.subr.bf16.mxu0 0
    %1848 = vmatpush1.bf16.msra.mxu0 0
    %1849 = vmatprep.subr.bf16.mxu0 0
    %1850 = vmatpush1.bf16.msra.mxu0 0
    %1851 = vmatprep.subr.bf16.mxu0 0
    %1852 = vmatpush1.bf16.msra.mxu0 0
    %1853 = vmatprep.subr.bf16.mxu0 0
    %1854 = vmatpush1.bf16.msra.mxu0 0
    %1855 = vmatprep.subr.bf16.mxu0 0
    %1856 = vmatpush1.bf16.msra.mxu0 0
    %1857 = vmatprep.mubr.bf16.mxu0 0
    %1858 = vmatmul.mubr.bf16.gmra.mrb[0].mxu0 %v1631
    %v1859 = vpop.f32.mrb[0].mxu0
    %v1860 = vadd.f32 %v252, %v1859
    %v1861 = vpop.f32.mrb[0].mxu0
    %v1862 = vadd.f32 %v256, %v1861
    %v1863 = vpop.f32.mrb[0].mxu0
    %v1864 = vadd.f32 %v252, %v1863
    %v1865 = vpop.f32.mrb[0].mxu0
    %v1866 = vadd.f32 %v256, %v1865
    %1867 = vmatprep.mubr.bf16.mxu0 0
    %1868 = vmatmul.mubr.bf16.gmra.mrb[0].mxu0 %v1632
    %v1869 = vpop.f32.mrb[0].mxu0
    %v1870 = vadd.f32 %v252, %v1869
    %v1871 = vpop.f32.mrb[0].mxu0
    %v1872 = vadd.f32 %v256, %v1871
    %v1873 = vpop.f32.mrb[0].mxu0
    %v1874 = vadd.f32 %v252, %v1873
    %v1875 = vpop.f32.mrb[0].mxu0
    %v1876 = vadd.f32 %v256, %v1875
    %1877 = vdwg.mxu0
    %1878 = vmatprep.subr.bf16.mxu0 %v1764
    %1879 = vmatpush1.bf16.msra.mxu0 %v1763
    %1880 = vmatprep.subr.bf16.mxu0 %v1768
    %1881 = vmatpush1.bf16.msra.mxu0 %v1767
    %1882 = vmatprep.subr.bf16.mxu0 %v1772
    %1883 = vmatpush1.bf16.msra.mxu0 %v1771
    %1884 = vmatprep.subr.bf16.mxu0 %v1776
    %1885 = vmatpush1.bf16.msra.mxu0 %v1775
    %1886 = vmatprep.subr.bf16.mxu0 %v1780
    %1887 = vmatpush1.bf16.msra.mxu0 %v1779
    %1888 = vmatprep.subr.bf16.mxu0 %v1784
    %1889 = vmatpush1.bf16.msra.mxu0 %v1783
    %1890 = vmatprep.subr.bf16.mxu0 %v1788
    %1891 = vmatpush1.bf16.msra.mxu0 %v1787
    %1892 = vmatprep.subr.bf16.mxu0 %v1792
    %1893 = vmatpush1.bf16.msra.mxu0 %v1791
    %1894 = vmatprep.subr.bf16.mxu0 0
    %1895 = vmatpush1.bf16.msra.mxu0 0
    %1896 = vmatprep.subr.bf16.mxu0 0
    %1897 = vmatpush1.bf16.msra.mxu0 0
    %1898 = vmatprep.subr.bf16.mxu0 0
    %1899 = vmatpush1.bf16.msra.mxu0 0
    %1900 = vmatprep.subr.bf16.mxu0 0
    %1901 = vmatpush1.bf16.msra.mxu0 0
    %1902 = vmatprep.subr.bf16.mxu0 0
    %1903 = vmatpush1.bf16.msra.mxu0 0
    %1904 = vmatprep.subr.bf16.mxu0 0
    %1905 = vmatpush1.bf16.msra.mxu0 0
    %1906 = vmatprep.subr.bf16.mxu0 0
    %1907 = vmatpush1.bf16.msra.mxu0 0
    %1908 = vmatprep.subr.bf16.mxu0 0
    %1909 = vmatpush1.bf16.msra.mxu0 0
    %1910 = vmatprep.mubr.bf16.mxu0 0
    %1911 = vmatmul.mubr.bf16.gmra.mrb[0].mxu0 %v1631
    %v1912 = vpop.f32.mrb[0].mxu0
    %v1913 = vadd.f32 %v260, %v1912
    %v1914 = vpop.f32.mrb[0].mxu0
    %v1915 = vadd.f32 %v264, %v1914
    %v1916 = vpop.f32.mrb[0].mxu0
    %v1917 = vadd.f32 %v260, %v1916
    %v1918 = vpop.f32.mrb[0].mxu0
    %v1919 = vadd.f32 %v264, %v1918
    %1920 = vmatprep.mubr.bf16.mxu0 0
    %1921 = vmatmul.mubr.bf16.gmra.mrb[0].mxu0 %v1632
    %v1922 = vpop.f32.mrb[0].mxu0
    %v1923 = vadd.f32 %v260, %v1922
    %v1924 = vpop.f32.mrb[0].mxu0
    %v1925 = vadd.f32 %v264, %v1924
    %v1926 = vpop.f32.mrb[0].mxu0
    %v1927 = vadd.f32 %v260, %v1926
    %v1928 = vpop.f32.mrb[0].mxu0
    %v1929 = vadd.f32 %v264, %v1928
    %1930 = vdwg.mxu0
    %v1931 = vmul.f32 %v539, %v1515
    %v1932 = vmul.f32 %v543, %v1516
    %v1933 = vmul.f32 %v547, %v1517
    %v1934 = vmul.f32 %v551, %v1518
    %v1935 = vmul.f32 %v539, %v1519
    %v1936 = vmul.f32 %v543, %v1520
    %v1937 = vmul.f32 %v547, %v1521
    %v1938 = vmul.f32 %v551, %v1522
    %v1939 = vmul.f32 %v539, %v1523
    %v1940 = vmul.f32 %v543, %v1524
    %v1941 = vmul.f32 %v547, %v1525
    %v1942 = vmul.f32 %v551, %v1526
    %v1943 = vmul.f32 %v539, %v1527
    %v1944 = vmul.f32 %v543, %v1528
    %v1945 = vmul.f32 %v547, %v1529
    %v1946 = vmul.f32 %v551, %v1530
    %v1947 = vmul.f32 %v576, %v1860
    %v1948 = vmul.f32 %v580, %v1862
    %v1949 = vmul.f32 %v584, %v1913
    %v1950 = vmul.f32 %v588, %v1915
    %v1951 = vmul.f32 %v576, %v1864
    %v1952 = vmul.f32 %v580, %v1866
    %v1953 = vmul.f32 %v584, %v1917
    %v1954 = vmul.f32 %v588, %v1919
    %v1955 = vmul.f32 %v576, %v1870
    %v1956 = vmul.f32 %v580, %v1872
    %v1957 = vmul.f32 %v584, %v1923
    %v1958 = vmul.f32 %v588, %v1925
    %v1959 = vmul.f32 %v576, %v1874
    %v1960 = vmul.f32 %v580, %v1876
    %v1961 = vmul.f32 %v584, %v1927
    %v1962 = vmul.f32 %v588, %v1929
    %v1963 = vadd.f32 %v1931, %v1947
    %v1964 = vadd.f32 %v1932, %v1948
    %v1965 = vadd.f32 %v1933, %v1949
    %v1966 = vadd.f32 %v1934, %v1950
    %v1967 = vadd.f32 %v1935, %v1951
    %v1968 = vadd.f32 %v1936, %v1952
    %v1969 = vadd.f32 %v1937, %v1953
    %v1970 = vadd.f32 %v1938, %v1954
    %v1971 = vadd.f32 %v1939, %v1955
    %v1972 = vadd.f32 %v1940, %v1956
    %v1973 = vadd.f32 %v1941, %v1957
    %v1974 = vadd.f32 %v1942, %v1958
    %v1975 = vadd.f32 %v1943, %v1959
    %v1976 = vadd.f32 %v1944, %v1960
    %v1977 = vadd.f32 %v1945, %v1961
    %v1978 = vadd.f32 %v1946, %v1962
    %v1979 = vadd.f32 %v1963, %v1964
    %v1980 = vadd.f32 %v1967, %v1968
    %v1981 = vadd.f32 %v1971, %v1972
    %v1982 = vadd.f32 %v1975, %v1976
    %v1983 = vadd.f32 %v1979, %v1965
    %v1984 = vadd.f32 %v1980, %v1969
    %v1985 = vadd.f32 %v1981, %v1973
    %v1986 = vadd.f32 %v1982, %v1977
    %v1987 = vadd.f32 %v1983, %v1966
    %v1988 = vadd.f32 %v1984, %v1970
    %v1989 = vadd.f32 %v1985, %v1974
    %v1990 = vadd.f32 %v1986, %v1978
    %v1991 = vld [vmem:[%s4 + $0x3] sm:$0x1]
    %vm1992 = vcmp.gt.f32.partialorder %v1991, 0.0
    %v1993 = vmul.f32 %v1571, %v642
    %v1994 = vmul.f32 %v1572, %v642
    %v1995 = vmul.f32 %v1573, %v642
    %v1996 = vmul.f32 %v1574, %v642
    %v1997 = vmul.f32 %v650, %v1987
    %v1998 = vmul.f32 %v650, %v1988
    %v1999 = vmul.f32 %v650, %v1989
    %v2000 = vmul.f32 %v650, %v1990
    %v2001 = vadd.f32 %v1993, %v1997
    %v2002 = vadd.f32 %v1994, %v1998
    %v2003 = vadd.f32 %v1995, %v1999
    %v2004 = vadd.f32 %v1996, %v2000
    %v2005 = vmul.f32 %v662, %v1583
    %v2006 = vmul.f32 %v662, %v1584
    %v2007 = vmul.f32 %v662, %v1585
    %v2008 = vmul.f32 %v662, %v1586
    %v2009 = vsub.f32 %v2001, %v2005
    %v2010 = vsub.f32 %v2002, %v2006
    %v2011 = vsub.f32 %v2003, %v2007
    %v2012 = vsub.f32 %v2004, %v2008
    %v2013 = vsel %vm1992, 1, 0
    %v2014 = vlaneseq
    %v2015 = vshrl.u32 %v2014, 7
    %v2016 = vsub.s32 0, %v2015
    %v2017 = vrot.slane %v2013, %v2016
    %vm2018 = vcmp.eq.s32.totalorder %v2017, 1
    %v2019 = vsel %vm2018, %v2009, %v1571
    %v2020 = vsel %vm2018, %v2010, %v1572
    %v2021 = vsel %vm2018, %v2011, %v1573
    %v2022 = vsel %vm2018, %v2012, %v1574
    %vm2023 = vcmp.gt.f32.partialorder %v2019, %v662
    %vm2024 = vcmp.gt.f32.partialorder %v2020, %v662
    %vm2025 = vcmp.gt.f32.partialorder %v2021, %v662
    %vm2026 = vcmp.gt.f32.partialorder %v2022, %v662
    %vm2027 = vmand %vm2023, %vm2018
    %vm2028 = vmand %vm2024, %vm2018
    %vm2029 = vmand %vm2025, %vm2018
    %vm2030 = vmand %vm2026, %vm2018
    %v2031 = vsel %vm2027, 1.0, 0.0
    %v2032 = vsel %vm2028, 1.0, 0.0
    %v2033 = vsel %vm2029, 1.0, 0.0
    %v2034 = vsel %vm2030, 1.0, 0.0
    %v2035 = vpack.c.bf16 %v2020, %v2019
    %v2036 = vpack.c.bf16 %v2022, %v2021
    %v2039 = vunpack.c.l.b16 %v2035
    %v2040 = vunpack.c.h.b16 %v2035
    %v2041 = vunpack.c.l.b16 %v2036
    %v2042 = vunpack.c.h.b16 %v2036
    %v2043 = vpack.c.b16 %v2039, %v2039
    %v2044 = vpack.c.b16 %v2040, %v2040
    %v2045 = vpack.c.b16 %v2041, %v2041
    %v2046 = vpack.c.b16 %v2042, %v2042
    %s2051 = scalar_lea.vmem [#allocation14], 48
    %2052 = vst [vmem:[%s2051] sm:$0xf] %v2043
    %2053 = vst [vmem:[%s2051 + $0x4] sm:$0xf] %v2044
    %2054 = vst [vmem:[%s2051 + $0x8] sm:$0xf] %v2045
    %2055 = vst [vmem:[%s2051 + $0xc] sm:$0xf] %v2046
    %v2056 = vpack.c.bf16 %v2032, %v2031
    %v2057 = vpack.c.bf16 %v2034, %v2033
    %v2060 = vunpack.c.l.b16 %v2056
    %v2061 = vunpack.c.h.b16 %v2056
    %v2062 = vunpack.c.l.b16 %v2057
    %v2063 = vunpack.c.h.b16 %v2057
    %v2064 = vpack.c.b16 %v2060, %v2060
    %v2065 = vpack.c.b16 %v2061, %v2061
    %v2066 = vpack.c.b16 %v2062, %v2062
    %v2067 = vpack.c.b16 %v2063, %v2063
    %s2072 = scalar_lea.vmem [#allocation15], 48
    %2073 = vst [vmem:[%s2072] sm:$0xf] %v2064
    %2074 = vst [vmem:[%s2072 + $0x4] sm:$0xf] %v2065
    %2075 = vst [vmem:[%s2072 + $0x8] sm:$0xf] %v2066
    %2076 = vst [vmem:[%s2072 + $0xc] sm:$0xf] %v2067
    %s2077 = scalar_lea.vmem [#allocation2], 32
    %v2078 = vld [vmem:[%s2077] sm:$0xff]
    %v2079 = vunpack.c.l.s8.bf16 %v2078
    %v2080 = vunpack.c.h.s8.bf16 %v2078
    %v2081 = vld [vmem:[#allocation5] sm:$0xff]
    %v2082 = vld [vmem:[#allocation5 + $0x8] sm:$0xff]
    %v2083 = vld [vmem:[#allocation5 + $0x10] sm:$0xff]
    %v2084 = vld [vmem:[#allocation5 + $0x18] sm:$0xff]
    %v2085 = vld [vmem:[#allocation5 + $0x20] sm:$0xff]
    %v2086 = vld [vmem:[#allocation5 + $0x28] sm:$0xff]
    %v2087 = vld [vmem:[#allocation5 + $0x30] sm:$0xff]
    %v2088 = vld [vmem:[#allocation5 + $0x38] sm:$0xff]
    %v2089 = vld [vmem:[#allocation5 + $0x40] sm:$0xff]
    %v2090 = vld [vmem:[#allocation5 + $0x48] sm:$0xff]
    %v2091 = vld [vmem:[#allocation5 + $0x50] sm:$0xff]
    %v2092 = vld [vmem:[#allocation5 + $0x58] sm:$0xff]
    %v2093 = vld [vmem:[#allocation5 + $0x60] sm:$0xff]
    %v2094 = vld [vmem:[#allocation5 + $0x68] sm:$0xff]
    %v2095 = vld [vmem:[#allocation5 + $0x70] sm:$0xff]
    %v2096 = vld [vmem:[#allocation5 + $0x78] sm:$0xff]
    %v2097 = vld [vmem:[#allocation5 + $0x80] sm:$0xff]
    %v2098 = vld [vmem:[#allocation5 + $0x88] sm:$0xff]
    %v2099 = vld [vmem:[#allocation5 + $0x90] sm:$0xff]
    %v2100 = vld [vmem:[#allocation5 + $0x98] sm:$0xff]
    %v2101 = vld [vmem:[#allocation5 + $0xa0] sm:$0xff]
    %v2102 = vld [vmem:[#allocation5 + $0xa8] sm:$0xff]
    %v2103 = vld [vmem:[#allocation5 + $0xb0] sm:$0xff]
    %v2104 = vld [vmem:[#allocation5 + $0xb8] sm:$0xff]
    %v2105 = vld [vmem:[#allocation5 + $0xc0] sm:$0xff]
    %v2106 = vld [vmem:[#allocation5 + $0xc8] sm:$0xff]
    %v2107 = vld [vmem:[#allocation5 + $0xd0] sm:$0xff]
    %v2108 = vld [vmem:[#allocation5 + $0xd8] sm:$0xff]
    %v2109 = vld [vmem:[#allocation5 + $0xe0] sm:$0xff]
    %v2110 = vld [vmem:[#allocation5 + $0xe8] sm:$0xff]
    %v2111 = vld [vmem:[#allocation5 + $0xf0] sm:$0xff]
    %v2112 = vld [vmem:[#allocation5 + $0xf8] sm:$0xff]
    %v2145 = vunpack.c.l.b16 %v2081
    %v2146 = vunpack.c.h.b16 %v2081
    %v2147 = vunpack.c.l.b16 %v2082
    %v2148 = vunpack.c.h.b16 %v2082
    %v2149 = vunpack.c.l.b16 %v2083
    %v2150 = vunpack.c.h.b16 %v2083
    %v2151 = vunpack.c.l.b16 %v2084
    %v2152 = vunpack.c.h.b16 %v2084
    %v2153 = vunpack.c.l.b16 %v2085
    %v2154 = vunpack.c.h.b16 %v2085
    %v2155 = vunpack.c.l.b16 %v2086
    %v2156 = vunpack.c.h.b16 %v2086
    %v2157 = vunpack.c.l.b16 %v2087
    %v2158 = vunpack.c.h.b16 %v2087
    %v2159 = vunpack.c.l.b16 %v2088
    %v2160 = vunpack.c.h.b16 %v2088
    %v2161 = vunpack.c.l.b16 %v2089
    %v2162 = vunpack.c.h.b16 %v2089
    %v2163 = vunpack.c.l.b16 %v2090
    %v2164 = vunpack.c.h.b16 %v2090
    %v2165 = vunpack.c.l.b16 %v2091
    %v2166 = vunpack.c.h.b16 %v2091
    %v2167 = vunpack.c.l.b16 %v2092
    %v2168 = vunpack.c.h.b16 %v2092
    %v2169 = vunpack.c.l.b16 %v2093
    %v2170 = vunpack.c.h.b16 %v2093
    %v2171 = vunpack.c.l.b16 %v2094
    %v2172 = vunpack.c.h.b16 %v2094
    %v2173 = vunpack.c.l.b16 %v2095
    %v2174 = vunpack.c.h.b16 %v2095
    %v2175 = vunpack.c.l.b16 %v2096
    %v2176 = vunpack.c.h.b16 %v2096
    %v2177 = vunpack.c.l.b16 %v2097
    %v2178 = vunpack.c.h.b16 %v2097
    %v2179 = vunpack.c.l.b16 %v2098
    %v2180 = vunpack.c.h.b16 %v2098
    %v2181 = vunpack.c.l.b16 %v2099
    %v2182 = vunpack.c.h.b16 %v2099
    %v2183 = vunpack.c.l.b16 %v2100
    %v2184 = vunpack.c.h.b16 %v2100
    %v2185 = vunpack.c.l.b16 %v2101
    %v2186 = vunpack.c.h.b16 %v2101
    %v2187 = vunpack.c.l.b16 %v2102
    %v2188 = vunpack.c.h.b16 %v2102
    %v2189 = vunpack.c.l.b16 %v2103
    %v2190 = vunpack.c.h.b16 %v2103
    %v2191 = vunpack.c.l.b16 %v2104
    %v2192 = vunpack.c.h.b16 %v2104
    %v2193 = vunpack.c.l.b16 %v2105
    %v2194 = vunpack.c.h.b16 %v2105
    %v2195 = vunpack.c.l.b16 %v2106
    %v2196 = vunpack.c.h.b16 %v2106
    %v2197 = vunpack.c.l.b16 %v2107
    %v2198 = vunpack.c.h.b16 %v2107
    %v2199 = vunpack.c.l.b16 %v2108
    %v2200 = vunpack.c.h.b16 %v2108
    %v2201 = vunpack.c.l.b16 %v2109
    %v2202 = vunpack.c.h.b16 %v2109
    %v2203 = vunpack.c.l.b16 %v2110
    %v2204 = vunpack.c.h.b16 %v2110
    %v2205 = vunpack.c.l.b16 %v2111
    %v2206 = vunpack.c.h.b16 %v2111
    %v2207 = vunpack.c.l.b16 %v2112
    %v2208 = vunpack.c.h.b16 %v2112
    %v2209 = vpack.c.b16 %v2149, %v2145
    %v2210 = vpack.c.b16 %v2150, %v2146
    %v2211 = vpack.c.b16 %v2151, %v2147
    %v2212 = vpack.c.b16 %v2152, %v2148
    %v2213 = vpack.c.b16 %v2157, %v2153
    %v2214 = vpack.c.b16 %v2158, %v2154
    %v2215 = vpack.c.b16 %v2159, %v2155
    %v2216 = vpack.c.b16 %v2160, %v2156
    %v2217 = vpack.c.b16 %v2165, %v2161
    %v2218 = vpack.c.b16 %v2166, %v2162
    %v2219 = vpack.c.b16 %v2167, %v2163
    %v2220 = vpack.c.b16 %v2168, %v2164
    %v2221 = vpack.c.b16 %v2173, %v2169
    %v2222 = vpack.c.b16 %v2174, %v2170
    %v2223 = vpack.c.b16 %v2175, %v2171
    %v2224 = vpack.c.b16 %v2176, %v2172
    %v2225 = vpack.c.b16 %v2181, %v2177
    %v2226 = vpack.c.b16 %v2182, %v2178
    %v2227 = vpack.c.b16 %v2183, %v2179
    %v2228 = vpack.c.b16 %v2184, %v2180
    %v2229 = vpack.c.b16 %v2189, %v2185
    %v2230 = vpack.c.b16 %v2190, %v2186
    %v2231 = vpack.c.b16 %v2191, %v2187
    %v2232 = vpack.c.b16 %v2192, %v2188
    %v2233 = vpack.c.b16 %v2197, %v2193
    %v2234 = vpack.c.b16 %v2198, %v2194
    %v2235 = vpack.c.b16 %v2199, %v2195
    %v2236 = vpack.c.b16 %v2200, %v2196
    %v2237 = vpack.c.b16 %v2205, %v2201
    %v2238 = vpack.c.b16 %v2206, %v2202
    %v2239 = vpack.c.b16 %v2207, %v2203
    %v2240 = vpack.c.b16 %v2208, %v2204
    %2273 = vmatprep.subr.bf16.mxu0 %v2210
    %2274 = vmatpush1.bf16.msra.mxu0 %v2209
    %2275 = vmatprep.subr.bf16.mxu0 %v2214
    %2276 = vmatpush1.bf16.msra.mxu0 %v2213
    %2277 = vmatprep.subr.bf16.mxu0 %v2218
    %2278 = vmatpush1.bf16.msra.mxu0 %v2217
    %2279 = vmatprep.subr.bf16.mxu0 %v2222
    %2280 = vmatpush1.bf16.msra.mxu0 %v2221
    %2281 = vmatprep.subr.bf16.mxu0 %v2226
    %2282 = vmatpush1.bf16.msra.mxu0 %v2225
    %2283 = vmatprep.subr.bf16.mxu0 %v2230
    %2284 = vmatpush1.bf16.msra.mxu0 %v2229
    %2285 = vmatprep.subr.bf16.mxu0 %v2234
    %2286 = vmatpush1.bf16.msra.mxu0 %v2233
    %2287 = vmatprep.subr.bf16.mxu0 %v2238
    %2288 = vmatpush1.bf16.msra.mxu0 %v2237
    %2289 = vmatprep.subr.bf16.mxu0 0
    %2290 = vmatpush1.bf16.msra.mxu0 0
    %2291 = vmatprep.subr.bf16.mxu0 0
    %2292 = vmatpush1.bf16.msra.mxu0 0
    %2293 = vmatprep.subr.bf16.mxu0 0
    %2294 = vmatpush1.bf16.msra.mxu0 0
    %2295 = vmatprep.subr.bf16.mxu0 0
    %2296 = vmatpush1.bf16.msra.mxu0 0
    %2297 = vmatprep.subr.bf16.mxu0 0
    %2298 = vmatpush1.bf16.msra.mxu0 0
    %2299 = vmatprep.subr.bf16.mxu0 0
    %2300 = vmatpush1.bf16.msra.mxu0 0
    %2301 = vmatprep.subr.bf16.mxu0 0
    %2302 = vmatpush1.bf16.msra.mxu0 0
    %2303 = vmatprep.subr.bf16.mxu0 0
    %2304 = vmatpush1.bf16.msra.mxu0 0
    %2305 = vmatprep.mubr.bf16.mxu0 0
    %2306 = vmatmul.mubr.bf16.gmra.mrb[0].mxu0 %v2079
    %v2307 = vpop.f32.mrb[0].mxu0
    %v2308 = vadd.f32 %v252, %v2307
    %v2309 = vpop.f32.mrb[0].mxu0
    %v2310 = vadd.f32 %v256, %v2309
    %v2311 = vpop.f32.mrb[0].mxu0
    %v2312 = vadd.f32 %v252, %v2311
    %v2313 = vpop.f32.mrb[0].mxu0
    %v2314 = vadd.f32 %v256, %v2313
    %2315 = vmatprep.mubr.bf16.mxu0 0
    %2316 = vmatmul.mubr.bf16.gmra.mrb[0].mxu0 %v2080
    %v2317 = vpop.f32.mrb[0].mxu0
    %v2318 = vadd.f32 %v252, %v2317
    %v2319 = vpop.f32.mrb[0].mxu0
    %v2320 = vadd.f32 %v256, %v2319
    %v2321 = vpop.f32.mrb[0].mxu0
    %v2322 = vadd.f32 %v252, %v2321
    %v2323 = vpop.f32.mrb[0].mxu0
    %v2324 = vadd.f32 %v256, %v2323
    %2325 = vdwg.mxu0
    %2326 = vmatprep.subr.bf16.mxu0 %v2212
    %2327 = vmatpush1.bf16.msra.mxu0 %v2211
    %2328 = vmatprep.subr.bf16.mxu0 %v2216
    %2329 = vmatpush1.bf16.msra.mxu0 %v2215
    %2330 = vmatprep.subr.bf16.mxu0 %v2220
    %2331 = vmatpush1.bf16.msra.mxu0 %v2219
    %2332 = vmatprep.subr.bf16.mxu0 %v2224
    %2333 = vmatpush1.bf16.msra.mxu0 %v2223
    %2334 = vmatprep.subr.bf16.mxu0 %v2228
    %2335 = vmatpush1.bf16.msra.mxu0 %v2227
    %2336 = vmatprep.subr.bf16.mxu0 %v2232
    %2337 = vmatpush1.bf16.msra.mxu0 %v2231
    %2338 = vmatprep.subr.bf16.mxu0 %v2236
    %2339 = vmatpush1.bf16.msra.mxu0 %v2235
    %2340 = vmatprep.subr.bf16.mxu0 %v2240
    %2341 = vmatpush1.bf16.msra.mxu0 %v2239
    %2342 = vmatprep.subr.bf16.mxu0 0
    %2343 = vmatpush1.bf16.msra.mxu0 0
    %2344 = vmatprep.subr.bf16.mxu0 0
    %2345 = vmatpush1.bf16.msra.mxu0 0
    %2346 = vmatprep.subr.bf16.mxu0 0
    %2347 = vmatpush1.bf16.msra.mxu0 0
    %2348 = vmatprep.subr.bf16.mxu0 0
    %2349 = vmatpush1.bf16.msra.mxu0 0
    %2350 = vmatprep.subr.bf16.mxu0 0
    %2351 = vmatpush1.bf16.msra.mxu0 0
    %2352 = vmatprep.subr.bf16.mxu0 0
    %2353 = vmatpush1.bf16.msra.mxu0 0
    %2354 = vmatprep.subr.bf16.mxu0 0
    %2355 = vmatpush1.bf16.msra.mxu0 0
    %2356 = vmatprep.subr.bf16.mxu0 0
    %2357 = vmatpush1.bf16.msra.mxu0 0
    %2358 = vmatprep.mubr.bf16.mxu0 0
    %2359 = vmatmul.mubr.bf16.gmra.mrb[0].mxu0 %v2079
    %v2360 = vpop.f32.mrb[0].mxu0
    %v2361 = vadd.f32 %v260, %v2360
    %v2362 = vpop.f32.mrb[0].mxu0
    %v2363 = vadd.f32 %v264, %v2362
    %v2364 = vpop.f32.mrb[0].mxu0
    %v2365 = vadd.f32 %v260, %v2364
    %v2366 = vpop.f32.mrb[0].mxu0
    %v2367 = vadd.f32 %v264, %v2366
    %2368 = vmatprep.mubr.bf16.mxu0 0
    %2369 = vmatmul.mubr.bf16.gmra.mrb[0].mxu0 %v2080
    %v2370 = vpop.f32.mrb[0].mxu0
    %v2371 = vadd.f32 %v260, %v2370
    %v2372 = vpop.f32.mrb[0].mxu0
    %v2373 = vadd.f32 %v264, %v2372
    %v2374 = vpop.f32.mrb[0].mxu0
    %v2375 = vadd.f32 %v260, %v2374
    %v2376 = vpop.f32.mrb[0].mxu0
    %v2377 = vadd.f32 %v264, %v2376
    %2378 = vdwg.mxu0
    %v2379 = vmul.f32 %v539, %v1963
    %v2380 = vmul.f32 %v543, %v1964
    %v2381 = vmul.f32 %v547, %v1965
    %v2382 = vmul.f32 %v551, %v1966
    %v2383 = vmul.f32 %v539, %v1967
    %v2384 = vmul.f32 %v543, %v1968
    %v2385 = vmul.f32 %v547, %v1969
    %v2386 = vmul.f32 %v551, %v1970
    %v2387 = vmul.f32 %v539, %v1971
    %v2388 = vmul.f32 %v543, %v1972
    %v2389 = vmul.f32 %v547, %v1973
    %v2390 = vmul.f32 %v551, %v1974
    %v2391 = vmul.f32 %v539, %v1975
    %v2392 = vmul.f32 %v543, %v1976
    %v2393 = vmul.f32 %v547, %v1977
    %v2394 = vmul.f32 %v551, %v1978
    %v2395 = vmul.f32 %v576, %v2308
    %v2396 = vmul.f32 %v580, %v2310
    %v2397 = vmul.f32 %v584, %v2361
    %v2398 = vmul.f32 %v588, %v2363
    %v2399 = vmul.f32 %v576, %v2312
    %v2400 = vmul.f32 %v580, %v2314
    %v2401 = vmul.f32 %v584, %v2365
    %v2402 = vmul.f32 %v588, %v2367
    %v2403 = vmul.f32 %v576, %v2318
    %v2404 = vmul.f32 %v580, %v2320
    %v2405 = vmul.f32 %v584, %v2371
    %v2406 = vmul.f32 %v588, %v2373
    %v2407 = vmul.f32 %v576, %v2322
    %v2408 = vmul.f32 %v580, %v2324
    %v2409 = vmul.f32 %v584, %v2375
    %v2410 = vmul.f32 %v588, %v2377
    %v2411 = vadd.f32 %v2379, %v2395
    %v2412 = vadd.f32 %v2380, %v2396
    %v2413 = vadd.f32 %v2381, %v2397
    %v2414 = vadd.f32 %v2382, %v2398
    %v2415 = vadd.f32 %v2383, %v2399
    %v2416 = vadd.f32 %v2384, %v2400
    %v2417 = vadd.f32 %v2385, %v2401
    %v2418 = vadd.f32 %v2386, %v2402
    %v2419 = vadd.f32 %v2387, %v2403
    %v2420 = vadd.f32 %v2388, %v2404
    %v2421 = vadd.f32 %v2389, %v2405
    %v2422 = vadd.f32 %v2390, %v2406
    %v2423 = vadd.f32 %v2391, %v2407
    %v2424 = vadd.f32 %v2392, %v2408
    %v2425 = vadd.f32 %v2393, %v2409
    %v2426 = vadd.f32 %v2394, %v2410
    %v2427 = vadd.f32 %v2411, %v2412
    %v2428 = vadd.f32 %v2415, %v2416
    %v2429 = vadd.f32 %v2419, %v2420
    %v2430 = vadd.f32 %v2423, %v2424
    %v2431 = vadd.f32 %v2427, %v2413
    %v2432 = vadd.f32 %v2428, %v2417
    %v2433 = vadd.f32 %v2429, %v2421
    %v2434 = vadd.f32 %v2430, %v2425
    %v2435 = vadd.f32 %v2431, %v2414
    %v2436 = vadd.f32 %v2432, %v2418
    %v2437 = vadd.f32 %v2433, %v2422
    %v2438 = vadd.f32 %v2434, %v2426
    %v2439 = vld [vmem:[%s4 + $0x4] sm:$0x1]
    %vm2440 = vcmp.gt.f32.partialorder %v2439, 0.0
    %v2441 = vmul.f32 %v2019, %v642
    %v2442 = vmul.f32 %v2020, %v642
    %v2443 = vmul.f32 %v2021, %v642
    %v2444 = vmul.f32 %v2022, %v642
    %v2445 = vmul.f32 %v650, %v2435
    %v2446 = vmul.f32 %v650, %v2436
    %v2447 = vmul.f32 %v650, %v2437
    %v2448 = vmul.f32 %v650, %v2438
    %v2449 = vadd.f32 %v2441, %v2445
    %v2450 = vadd.f32 %v2442, %v2446
    %v2451 = vadd.f32 %v2443, %v2447
    %v2452 = vadd.f32 %v2444, %v2448
    %v2453 = vmul.f32 %v662, %v2031
    %v2454 = vmul.f32 %v662, %v2032
    %v2455 = vmul.f32 %v662, %v2033
    %v2456 = vmul.f32 %v662, %v2034
    %v2457 = vsub.f32 %v2449, %v2453
    %v2458 = vsub.f32 %v2450, %v2454
    %v2459 = vsub.f32 %v2451, %v2455
    %v2460 = vsub.f32 %v2452, %v2456
    %v2461 = vsel %vm2440, 1, 0
    %v2462 = vlaneseq
    %v2463 = vshrl.u32 %v2462, 7
    %v2464 = vsub.s32 0, %v2463
    %v2465 = vrot.slane %v2461, %v2464
    %vm2466 = vcmp.eq.s32.totalorder %v2465, 1
    %v2467 = vsel %vm2466, %v2457, %v2019
    %v2468 = vsel %vm2466, %v2458, %v2020
    %v2469 = vsel %vm2466, %v2459, %v2021
    %v2470 = vsel %vm2466, %v2460, %v2022
    %vm2471 = vcmp.gt.f32.partialorder %v2467, %v662
    %vm2472 = vcmp.gt.f32.partialorder %v2468, %v662
    %vm2473 = vcmp.gt.f32.partialorder %v2469, %v662
    %vm2474 = vcmp.gt.f32.partialorder %v2470, %v662
    %vm2475 = vmand %vm2471, %vm2466
    %vm2476 = vmand %vm2472, %vm2466
    %vm2477 = vmand %vm2473, %vm2466
    %vm2478 = vmand %vm2474, %vm2466
    %v2479 = vsel %vm2475, 1.0, 0.0
    %v2480 = vsel %vm2476, 1.0, 0.0
    %v2481 = vsel %vm2477, 1.0, 0.0
    %v2482 = vsel %vm2478, 1.0, 0.0
    %v2483 = vpack.c.bf16 %v2468, %v2467
    %v2484 = vpack.c.bf16 %v2470, %v2469
    %v2487 = vunpack.c.l.b16 %v2483
    %v2488 = vunpack.c.h.b16 %v2483
    %v2489 = vunpack.c.l.b16 %v2484
    %v2490 = vunpack.c.h.b16 %v2484
    %v2491 = vpack.c.b16 %v2487, %v2487
    %v2492 = vpack.c.b16 %v2488, %v2488
    %v2493 = vpack.c.b16 %v2489, %v2489
    %v2494 = vpack.c.b16 %v2490, %v2490
    %s2499 = scalar_lea.vmem [#allocation14], 64
    %2500 = vst [vmem:[%s2499] sm:$0xf] %v2491
    %2501 = vst [vmem:[%s2499 + $0x4] sm:$0xf] %v2492
    %2502 = vst [vmem:[%s2499 + $0x8] sm:$0xf] %v2493
    %2503 = vst [vmem:[%s2499 + $0xc] sm:$0xf] %v2494
    %v2504 = vpack.c.bf16 %v2480, %v2479
    %v2505 = vpack.c.bf16 %v2482, %v2481
    %v2508 = vunpack.c.l.b16 %v2504
    %v2509 = vunpack.c.h.b16 %v2504
    %v2510 = vunpack.c.l.b16 %v2505
    %v2511 = vunpack.c.h.b16 %v2505
    %v2512 = vpack.c.b16 %v2508, %v2508
    %v2513 = vpack.c.b16 %v2509, %v2509
    %v2514 = vpack.c.b16 %v2510, %v2510
    %v2515 = vpack.c.b16 %v2511, %v2511
    %s2520 = scalar_lea.vmem [#allocation15], 64
    %2521 = vst [vmem:[%s2520] sm:$0xf] %v2512
    %2522 = vst [vmem:[%s2520 + $0x4] sm:$0xf] %v2513
    %2523 = vst [vmem:[%s2520 + $0x8] sm:$0xf] %v2514
    %2524 = vst [vmem:[%s2520 + $0xc] sm:$0xf] %v2515
    %s2525 = scalar_lea.vmem [#allocation2], 40
    %v2526 = vld [vmem:[%s2525] sm:$0xff]
    %v2527 = vunpack.c.l.s8.bf16 %v2526
    %v2528 = vunpack.c.h.s8.bf16 %v2526
    %v2529 = vld [vmem:[#allocation5] sm:$0xff]
    %v2530 = vld [vmem:[#allocation5 + $0x8] sm:$0xff]
    %v2531 = vld [vmem:[#allocation5 + $0x10] sm:$0xff]
    %v2532 = vld [vmem:[#allocation5 + $0x18] sm:$0xff]
    %v2533 = vld [vmem:[#allocation5 + $0x20] sm:$0xff]
    %v2534 = vld [vmem:[#allocation5 + $0x28] sm:$0xff]
    %v2535 = vld [vmem:[#allocation5 + $0x30] sm:$0xff]
    %v2536 = vld [vmem:[#allocation5 + $0x38] sm:$0xff]
    %v2537 = vld [vmem:[#allocation5 + $0x40] sm:$0xff]
    %v2538 = vld [vmem:[#allocation5 + $0x48] sm:$0xff]
    %v2539 = vld [vmem:[#allocation5 + $0x50] sm:$0xff]
    %v2540 = vld [vmem:[#allocation5 + $0x58] sm:$0xff]
    %v2541 = vld [vmem:[#allocation5 + $0x60] sm:$0xff]
    %v2542 = vld [vmem:[#allocation5 + $0x68] sm:$0xff]
    %v2543 = vld [vmem:[#allocation5 + $0x70] sm:$0xff]
    %v2544 = vld [vmem:[#allocation5 + $0x78] sm:$0xff]
    %v2545 = vld [vmem:[#allocation5 + $0x80] sm:$0xff]
    %v2546 = vld [vmem:[#allocation5 + $0x88] sm:$0xff]
    %v2547 = vld [vmem:[#allocation5 + $0x90] sm:$0xff]
    %v2548 = vld [vmem:[#allocation5 + $0x98] sm:$0xff]
    %v2549 = vld [vmem:[#allocation5 + $0xa0] sm:$0xff]
    %v2550 = vld [vmem:[#allocation5 + $0xa8] sm:$0xff]
    %v2551 = vld [vmem:[#allocation5 + $0xb0] sm:$0xff]
    %v2552 = vld [vmem:[#allocation5 + $0xb8] sm:$0xff]
    %v2553 = vld [vmem:[#allocation5 + $0xc0] sm:$0xff]
    %v2554 = vld [vmem:[#allocation5 + $0xc8] sm:$0xff]
    %v2555 = vld [vmem:[#allocation5 + $0xd0] sm:$0xff]
    %v2556 = vld [vmem:[#allocation5 + $0xd8] sm:$0xff]
    %v2557 = vld [vmem:[#allocation5 + $0xe0] sm:$0xff]
    %v2558 = vld [vmem:[#allocation5 + $0xe8] sm:$0xff]
    %v2559 = vld [vmem:[#allocation5 + $0xf0] sm:$0xff]
    %v2560 = vld [vmem:[#allocation5 + $0xf8] sm:$0xff]
    %v2593 = vunpack.c.l.b16 %v2529
    %v2594 = vunpack.c.h.b16 %v2529
    %v2595 = vunpack.c.l.b16 %v2530
    %v2596 = vunpack.c.h.b16 %v2530
    %v2597 = vunpack.c.l.b16 %v2531
    %v2598 = vunpack.c.h.b16 %v2531
    %v2599 = vunpack.c.l.b16 %v2532
    %v2600 = vunpack.c.h.b16 %v2532
    %v2601 = vunpack.c.l.b16 %v2533
    %v2602 = vunpack.c.h.b16 %v2533
    %v2603 = vunpack.c.l.b16 %v2534
    %v2604 = vunpack.c.h.b16 %v2534
    %v2605 = vunpack.c.l.b16 %v2535
    %v2606 = vunpack.c.h.b16 %v2535
    %v2607 = vunpack.c.l.b16 %v2536
    %v2608 = vunpack.c.h.b16 %v2536
    %v2609 = vunpack.c.l.b16 %v2537
    %v2610 = vunpack.c.h.b16 %v2537
    %v2611 = vunpack.c.l.b16 %v2538
    %v2612 = vunpack.c.h.b16 %v2538
    %v2613 = vunpack.c.l.b16 %v2539
    %v2614 = vunpack.c.h.b16 %v2539
    %v2615 = vunpack.c.l.b16 %v2540
    %v2616 = vunpack.c.h.b16 %v2540
    %v2617 = vunpack.c.l.b16 %v2541
    %v2618 = vunpack.c.h.b16 %v2541
    %v2619 = vunpack.c.l.b16 %v2542
    %v2620 = vunpack.c.h.b16 %v2542
    %v2621 = vunpack.c.l.b16 %v2543
    %v2622 = vunpack.c.h.b16 %v2543
    %v2623 = vunpack.c.l.b16 %v2544
    %v2624 = vunpack.c.h.b16 %v2544
    %v2625 = vunpack.c.l.b16 %v2545
    %v2626 = vunpack.c.h.b16 %v2545
    %v2627 = vunpack.c.l.b16 %v2546
    %v2628 = vunpack.c.h.b16 %v2546
    %v2629 = vunpack.c.l.b16 %v2547
    %v2630 = vunpack.c.h.b16 %v2547
    %v2631 = vunpack.c.l.b16 %v2548
    %v2632 = vunpack.c.h.b16 %v2548
    %v2633 = vunpack.c.l.b16 %v2549
    %v2634 = vunpack.c.h.b16 %v2549
    %v2635 = vunpack.c.l.b16 %v2550
    %v2636 = vunpack.c.h.b16 %v2550
    %v2637 = vunpack.c.l.b16 %v2551
    %v2638 = vunpack.c.h.b16 %v2551
    %v2639 = vunpack.c.l.b16 %v2552
    %v2640 = vunpack.c.h.b16 %v2552
    %v2641 = vunpack.c.l.b16 %v2553
    %v2642 = vunpack.c.h.b16 %v2553
    %v2643 = vunpack.c.l.b16 %v2554
    %v2644 = vunpack.c.h.b16 %v2554
    %v2645 = vunpack.c.l.b16 %v2555
    %v2646 = vunpack.c.h.b16 %v2555
    %v2647 = vunpack.c.l.b16 %v2556
    %v2648 = vunpack.c.h.b16 %v2556
    %v2649 = vunpack.c.l.b16 %v2557
    %v2650 = vunpack.c.h.b16 %v2557
    %v2651 = vunpack.c.l.b16 %v2558
    %v2652 = vunpack.c.h.b16 %v2558
    %v2653 = vunpack.c.l.b16 %v2559
    %v2654 = vunpack.c.h.b16 %v2559
    %v2655 = vunpack.c.l.b16 %v2560
    %v2656 = vunpack.c.h.b16 %v2560
    %v2657 = vpack.c.b16 %v2597, %v2593
    %v2658 = vpack.c.b16 %v2598, %v2594
    %v2659 = vpack.c.b16 %v2599, %v2595
    %v2660 = vpack.c.b16 %v2600, %v2596
    %v2661 = vpack.c.b16 %v2605, %v2601
    %v2662 = vpack.c.b16 %v2606, %v2602
    %v2663 = vpack.c.b16 %v2607, %v2603
    %v2664 = vpack.c.b16 %v2608, %v2604
    %v2665 = vpack.c.b16 %v2613, %v2609
    %v2666 = vpack.c.b16 %v2614, %v2610
    %v2667 = vpack.c.b16 %v2615, %v2611
    %v2668 = vpack.c.b16 %v2616, %v2612
    %v2669 = vpack.c.b16 %v2621, %v2617
    %v2670 = vpack.c.b16 %v2622, %v2618
    %v2671 = vpack.c.b16 %v2623, %v2619
    %v2672 = vpack.c.b16 %v2624, %v2620
    %v2673 = vpack.c.b16 %v2629, %v2625
    %v2674 = vpack.c.b16 %v2630, %v2626
    %v2675 = vpack.c.b16 %v2631, %v2627
    %v2676 = vpack.c.b16 %v2632, %v2628
    %v2677 = vpack.c.b16 %v2637, %v2633
    %v2678 = vpack.c.b16 %v2638, %v2634
    %v2679 = vpack.c.b16 %v2639, %v2635
    %v2680 = vpack.c.b16 %v2640, %v2636
    %v2681 = vpack.c.b16 %v2645, %v2641
    %v2682 = vpack.c.b16 %v2646, %v2642
    %v2683 = vpack.c.b16 %v2647, %v2643
    %v2684 = vpack.c.b16 %v2648, %v2644
    %v2685 = vpack.c.b16 %v2653, %v2649
    %v2686 = vpack.c.b16 %v2654, %v2650
    %v2687 = vpack.c.b16 %v2655, %v2651
    %v2688 = vpack.c.b16 %v2656, %v2652
    %2721 = vmatprep.subr.bf16.mxu0 %v2658
    %2722 = vmatpush1.bf16.msra.mxu0 %v2657
    %2723 = vmatprep.subr.bf16.mxu0 %v2662
    %2724 = vmatpush1.bf16.msra.mxu0 %v2661
    %2725 = vmatprep.subr.bf16.mxu0 %v2666
    %2726 = vmatpush1.bf16.msra.mxu0 %v2665
    %2727 = vmatprep.subr.bf16.mxu0 %v2670
    %2728 = vmatpush1.bf16.msra.mxu0 %v2669
    %2729 = vmatprep.subr.bf16.mxu0 %v2674
    %2730 = vmatpush1.bf16.msra.mxu0 %v2673
    %2731 = vmatprep.subr.bf16.mxu0 %v2678
    %2732 = vmatpush1.bf16.msra.mxu0 %v2677
    %2733 = vmatprep.subr.bf16.mxu0 %v2682
    %2734 = vmatpush1.bf16.msra.mxu0 %v2681
    %2735 = vmatprep.subr.bf16.mxu0 %v2686
    %2736 = vmatpush1.bf16.msra.mxu0 %v2685
    %2737 = vmatprep.subr.bf16.mxu0 0
    %2738 = vmatpush1.bf16.msra.mxu0 0
    %2739 = vmatprep.subr.bf16.mxu0 0
    %2740 = vmatpush1.bf16.msra.mxu0 0
    %2741 = vmatprep.subr.bf16.mxu0 0
    %2742 = vmatpush1.bf16.msra.mxu0 0
    %2743 = vmatprep.subr.bf16.mxu0 0
    %2744 = vmatpush1.bf16.msra.mxu0 0
    %2745 = vmatprep.subr.bf16.mxu0 0
    %2746 = vmatpush1.bf16.msra.mxu0 0
    %2747 = vmatprep.subr.bf16.mxu0 0
    %2748 = vmatpush1.bf16.msra.mxu0 0
    %2749 = vmatprep.subr.bf16.mxu0 0
    %2750 = vmatpush1.bf16.msra.mxu0 0
    %2751 = vmatprep.subr.bf16.mxu0 0
    %2752 = vmatpush1.bf16.msra.mxu0 0
    %2753 = vmatprep.mubr.bf16.mxu0 0
    %2754 = vmatmul.mubr.bf16.gmra.mrb[0].mxu0 %v2527
    %v2755 = vpop.f32.mrb[0].mxu0
    %v2756 = vadd.f32 %v252, %v2755
    %v2757 = vpop.f32.mrb[0].mxu0
    %v2758 = vadd.f32 %v256, %v2757
    %v2759 = vpop.f32.mrb[0].mxu0
    %v2760 = vadd.f32 %v252, %v2759
    %v2761 = vpop.f32.mrb[0].mxu0
    %v2762 = vadd.f32 %v256, %v2761
    %2763 = vmatprep.mubr.bf16.mxu0 0
    %2764 = vmatmul.mubr.bf16.gmra.mrb[0].mxu0 %v2528
    %v2765 = vpop.f32.mrb[0].mxu0
    %v2766 = vadd.f32 %v252, %v2765
    %v2767 = vpop.f32.mrb[0].mxu0
    %v2768 = vadd.f32 %v256, %v2767
    %v2769 = vpop.f32.mrb[0].mxu0
    %v2770 = vadd.f32 %v252, %v2769
    %v2771 = vpop.f32.mrb[0].mxu0
    %v2772 = vadd.f32 %v256, %v2771
    %2773 = vdwg.mxu0
    %2774 = vmatprep.subr.bf16.mxu0 %v2660
    %2775 = vmatpush1.bf16.msra.mxu0 %v2659
    %2776 = vmatprep.subr.bf16.mxu0 %v2664
    %2777 = vmatpush1.bf16.msra.mxu0 %v2663
    %2778 = vmatprep.subr.bf16.mxu0 %v2668
    %2779 = vmatpush1.bf16.msra.mxu0 %v2667
    %2780 = vmatprep.subr.bf16.mxu0 %v2672
    %2781 = vmatpush1.bf16.msra.mxu0 %v2671
    %2782 = vmatprep.subr.bf16.mxu0 %v2676
    %2783 = vmatpush1.bf16.msra.mxu0 %v2675
    %2784 = vmatprep.subr.bf16.mxu0 %v2680
    %2785 = vmatpush1.bf16.msra.mxu0 %v2679
    %2786 = vmatprep.subr.bf16.mxu0 %v2684
    %2787 = vmatpush1.bf16.msra.mxu0 %v2683
    %2788 = vmatprep.subr.bf16.mxu0 %v2688
    %2789 = vmatpush1.bf16.msra.mxu0 %v2687
    %2790 = vmatprep.subr.bf16.mxu0 0
    %2791 = vmatpush1.bf16.msra.mxu0 0
    %2792 = vmatprep.subr.bf16.mxu0 0
    %2793 = vmatpush1.bf16.msra.mxu0 0
    %2794 = vmatprep.subr.bf16.mxu0 0
    %2795 = vmatpush1.bf16.msra.mxu0 0
    %2796 = vmatprep.subr.bf16.mxu0 0
    %2797 = vmatpush1.bf16.msra.mxu0 0
    %2798 = vmatprep.subr.bf16.mxu0 0
    %2799 = vmatpush1.bf16.msra.mxu0 0
    %2800 = vmatprep.subr.bf16.mxu0 0
    %2801 = vmatpush1.bf16.msra.mxu0 0
    %2802 = vmatprep.subr.bf16.mxu0 0
    %2803 = vmatpush1.bf16.msra.mxu0 0
    %2804 = vmatprep.subr.bf16.mxu0 0
    %2805 = vmatpush1.bf16.msra.mxu0 0
    %2806 = vmatprep.mubr.bf16.mxu0 0
    %2807 = vmatmul.mubr.bf16.gmra.mrb[0].mxu0 %v2527
    %v2808 = vpop.f32.mrb[0].mxu0
    %v2809 = vadd.f32 %v260, %v2808
    %v2810 = vpop.f32.mrb[0].mxu0
    %v2811 = vadd.f32 %v264, %v2810
    %v2812 = vpop.f32.mrb[0].mxu0
    %v2813 = vadd.f32 %v260, %v2812
    %v2814 = vpop.f32.mrb[0].mxu0
    %v2815 = vadd.f32 %v264, %v2814
    %2816 = vmatprep.mubr.bf16.mxu0 0
    %2817 = vmatmul.mubr.bf16.gmra.mrb[0].mxu0 %v2528
    %v2818 = vpop.f32.mrb[0].mxu0
    %v2819 = vadd.f32 %v260, %v2818
    %v2820 = vpop.f32.mrb[0].mxu0
    %v2821 = vadd.f32 %v264, %v2820
    %v2822 = vpop.f32.mrb[0].mxu0
    %v2823 = vadd.f32 %v260, %v2822
    %v2824 = vpop.f32.mrb[0].mxu0
    %v2825 = vadd.f32 %v264, %v2824
    %2826 = vdwg.mxu0
    %v2827 = vmul.f32 %v539, %v2411
    %v2828 = vmul.f32 %v543, %v2412
    %v2829 = vmul.f32 %v547, %v2413
    %v2830 = vmul.f32 %v551, %v2414
    %v2831 = vmul.f32 %v539, %v2415
    %v2832 = vmul.f32 %v543, %v2416
    %v2833 = vmul.f32 %v547, %v2417
    %v2834 = vmul.f32 %v551, %v2418
    %v2835 = vmul.f32 %v539, %v2419
    %v2836 = vmul.f32 %v543, %v2420
    %v2837 = vmul.f32 %v547, %v2421
    %v2838 = vmul.f32 %v551, %v2422
    %v2839 = vmul.f32 %v539, %v2423
    %v2840 = vmul.f32 %v543, %v2424
    %v2841 = vmul.f32 %v547, %v2425
    %v2842 = vmul.f32 %v551, %v2426
    %v2843 = vmul.f32 %v576, %v2756
    %v2844 = vmul.f32 %v580, %v2758
    %v2845 = vmul.f32 %v584, %v2809
    %v2846 = vmul.f32 %v588, %v2811
    %v2847 = vmul.f32 %v576, %v2760
    %v2848 = vmul.f32 %v580, %v2762
    %v2849 = vmul.f32 %v584, %v2813
    %v2850 = vmul.f32 %v588, %v2815
    %v2851 = vmul.f32 %v576, %v2766
    %v2852 = vmul.f32 %v580, %v2768
    %v2853 = vmul.f32 %v584, %v2819
    %v2854 = vmul.f32 %v588, %v2821
    %v2855 = vmul.f32 %v576, %v2770
    %v2856 = vmul.f32 %v580, %v2772
    %v2857 = vmul.f32 %v584, %v2823
    %v2858 = vmul.f32 %v588, %v2825
    %v2859 = vadd.f32 %v2827, %v2843
    %v2860 = vadd.f32 %v2828, %v2844
    %v2861 = vadd.f32 %v2829, %v2845
    %v2862 = vadd.f32 %v2830, %v2846
    %v2863 = vadd.f32 %v2831, %v2847
    %v2864 = vadd.f32 %v2832, %v2848
    %v2865 = vadd.f32 %v2833, %v2849
    %v2866 = vadd.f32 %v2834, %v2850
    %v2867 = vadd.f32 %v2835, %v2851
    %v2868 = vadd.f32 %v2836, %v2852
    %v2869 = vadd.f32 %v2837, %v2853
    %v2870 = vadd.f32 %v2838, %v2854
    %v2871 = vadd.f32 %v2839, %v2855
    %v2872 = vadd.f32 %v2840, %v2856
    %v2873 = vadd.f32 %v2841, %v2857
    %v2874 = vadd.f32 %v2842, %v2858
    %v2875 = vadd.f32 %v2859, %v2860
    %v2876 = vadd.f32 %v2863, %v2864
    %v2877 = vadd.f32 %v2867, %v2868
    %v2878 = vadd.f32 %v2871, %v2872
    %v2879 = vadd.f32 %v2875, %v2861
    %v2880 = vadd.f32 %v2876, %v2865
    %v2881 = vadd.f32 %v2877, %v2869
    %v2882 = vadd.f32 %v2878, %v2873
    %v2883 = vadd.f32 %v2879, %v2862
    %v2884 = vadd.f32 %v2880, %v2866
    %v2885 = vadd.f32 %v2881, %v2870
    %v2886 = vadd.f32 %v2882, %v2874
    %v2887 = vld [vmem:[%s4 + $0x5] sm:$0x1]
    %vm2888 = vcmp.gt.f32.partialorder %v2887, 0.0
    %v2889 = vmul.f32 %v2467, %v642
    %v2890 = vmul.f32 %v2468, %v642
    %v2891 = vmul.f32 %v2469, %v642
    %v2892 = vmul.f32 %v2470, %v642
    %v2893 = vmul.f32 %v650, %v2883
    %v2894 = vmul.f32 %v650, %v2884
    %v2895 = vmul.f32 %v650, %v2885
    %v2896 = vmul.f32 %v650, %v2886
    %v2897 = vadd.f32 %v2889, %v2893
    %v2898 = vadd.f32 %v2890, %v2894
    %v2899 = vadd.f32 %v2891, %v2895
    %v2900 = vadd.f32 %v2892, %v2896
    %v2901 = vmul.f32 %v662, %v2479
    %v2902 = vmul.f32 %v662, %v2480
    %v2903 = vmul.f32 %v662, %v2481
    %v2904 = vmul.f32 %v662, %v2482
    %v2905 = vsub.f32 %v2897, %v2901
    %v2906 = vsub.f32 %v2898, %v2902
    %v2907 = vsub.f32 %v2899, %v2903
    %v2908 = vsub.f32 %v2900, %v2904
    %v2909 = vsel %vm2888, 1, 0
    %v2910 = vlaneseq
    %v2911 = vshrl.u32 %v2910, 7
    %v2912 = vsub.s32 0, %v2911
    %v2913 = vrot.slane %v2909, %v2912
    %vm2914 = vcmp.eq.s32.totalorder %v2913, 1
    %v2915 = vsel %vm2914, %v2905, %v2467
    %v2916 = vsel %vm2914, %v2906, %v2468
    %v2917 = vsel %vm2914, %v2907, %v2469
    %v2918 = vsel %vm2914, %v2908, %v2470
    %vm2919 = vcmp.gt.f32.partialorder %v2915, %v662
    %vm2920 = vcmp.gt.f32.partialorder %v2916, %v662
    %vm2921 = vcmp.gt.f32.partialorder %v2917, %v662
    %vm2922 = vcmp.gt.f32.partialorder %v2918, %v662
    %vm2923 = vmand %vm2919, %vm2914
    %vm2924 = vmand %vm2920, %vm2914
    %vm2925 = vmand %vm2921, %vm2914
    %vm2926 = vmand %vm2922, %vm2914
    %v2927 = vsel %vm2923, 1.0, 0.0
    %v2928 = vsel %vm2924, 1.0, 0.0
    %v2929 = vsel %vm2925, 1.0, 0.0
    %v2930 = vsel %vm2926, 1.0, 0.0
    %v2931 = vpack.c.bf16 %v2916, %v2915
    %v2932 = vpack.c.bf16 %v2918, %v2917
    %v2935 = vunpack.c.l.b16 %v2931
    %v2936 = vunpack.c.h.b16 %v2931
    %v2937 = vunpack.c.l.b16 %v2932
    %v2938 = vunpack.c.h.b16 %v2932
    %v2939 = vpack.c.b16 %v2935, %v2935
    %v2940 = vpack.c.b16 %v2936, %v2936
    %v2941 = vpack.c.b16 %v2937, %v2937
    %v2942 = vpack.c.b16 %v2938, %v2938
    %s2947 = scalar_lea.vmem [#allocation14], 80
    %2948 = vst [vmem:[%s2947] sm:$0xf] %v2939
    %2949 = vst [vmem:[%s2947 + $0x4] sm:$0xf] %v2940
    %2950 = vst [vmem:[%s2947 + $0x8] sm:$0xf] %v2941
    %2951 = vst [vmem:[%s2947 + $0xc] sm:$0xf] %v2942
    %v2952 = vpack.c.bf16 %v2928, %v2927
    %v2953 = vpack.c.bf16 %v2930, %v2929
    %v2956 = vunpack.c.l.b16 %v2952
    %v2957 = vunpack.c.h.b16 %v2952
    %v2958 = vunpack.c.l.b16 %v2953
    %v2959 = vunpack.c.h.b16 %v2953
    %v2960 = vpack.c.b16 %v2956, %v2956
    %v2961 = vpack.c.b16 %v2957, %v2957
    %v2962 = vpack.c.b16 %v2958, %v2958
    %v2963 = vpack.c.b16 %v2959, %v2959
    %s2968 = scalar_lea.vmem [#allocation15], 80
    %2969 = vst [vmem:[%s2968] sm:$0xf] %v2960
    %2970 = vst [vmem:[%s2968 + $0x4] sm:$0xf] %v2961
    %2971 = vst [vmem:[%s2968 + $0x8] sm:$0xf] %v2962
    %2972 = vst [vmem:[%s2968 + $0xc] sm:$0xf] %v2963
    %s2973 = scalar_lea.vmem [#allocation2], 48
    %v2974 = vld [vmem:[%s2973] sm:$0xff]
    %v2975 = vunpack.c.l.s8.bf16 %v2974
    %v2976 = vunpack.c.h.s8.bf16 %v2974
    %v2977 = vld [vmem:[#allocation5] sm:$0xff]
    %v2978 = vld [vmem:[#allocation5 + $0x8] sm:$0xff]
    %v2979 = vld [vmem:[#allocation5 + $0x10] sm:$0xff]
    %v2980 = vld [vmem:[#allocation5 + $0x18] sm:$0xff]
    %v2981 = vld [vmem:[#allocation5 + $0x20] sm:$0xff]
    %v2982 = vld [vmem:[#allocation5 + $0x28] sm:$0xff]
    %v2983 = vld [vmem:[#allocation5 + $0x30] sm:$0xff]
    %v2984 = vld [vmem:[#allocation5 + $0x38] sm:$0xff]
    %v2985 = vld [vmem:[#allocation5 + $0x40] sm:$0xff]
    %v2986 = vld [vmem:[#allocation5 + $0x48] sm:$0xff]
    %v2987 = vld [vmem:[#allocation5 + $0x50] sm:$0xff]
    %v2988 = vld [vmem:[#allocation5 + $0x58] sm:$0xff]
    %v2989 = vld [vmem:[#allocation5 + $0x60] sm:$0xff]
    %v2990 = vld [vmem:[#allocation5 + $0x68] sm:$0xff]
    %v2991 = vld [vmem:[#allocation5 + $0x70] sm:$0xff]
    %v2992 = vld [vmem:[#allocation5 + $0x78] sm:$0xff]
    %v2993 = vld [vmem:[#allocation5 + $0x80] sm:$0xff]
    %v2994 = vld [vmem:[#allocation5 + $0x88] sm:$0xff]
    %v2995 = vld [vmem:[#allocation5 + $0x90] sm:$0xff]
    %v2996 = vld [vmem:[#allocation5 + $0x98] sm:$0xff]
    %v2997 = vld [vmem:[#allocation5 + $0xa0] sm:$0xff]
    %v2998 = vld [vmem:[#allocation5 + $0xa8] sm:$0xff]
    %v2999 = vld [vmem:[#allocation5 + $0xb0] sm:$0xff]
    %v3000 = vld [vmem:[#allocation5 + $0xb8] sm:$0xff]
    %v3001 = vld [vmem:[#allocation5 + $0xc0] sm:$0xff]
    %v3002 = vld [vmem:[#allocation5 + $0xc8] sm:$0xff]
    %v3003 = vld [vmem:[#allocation5 + $0xd0] sm:$0xff]
    %v3004 = vld [vmem:[#allocation5 + $0xd8] sm:$0xff]
    %v3005 = vld [vmem:[#allocation5 + $0xe0] sm:$0xff]
    %v3006 = vld [vmem:[#allocation5 + $0xe8] sm:$0xff]
    %v3007 = vld [vmem:[#allocation5 + $0xf0] sm:$0xff]
    %v3008 = vld [vmem:[#allocation5 + $0xf8] sm:$0xff]
    %v3041 = vunpack.c.l.b16 %v2977
    %v3042 = vunpack.c.h.b16 %v2977
    %v3043 = vunpack.c.l.b16 %v2978
    %v3044 = vunpack.c.h.b16 %v2978
    %v3045 = vunpack.c.l.b16 %v2979
    %v3046 = vunpack.c.h.b16 %v2979
    %v3047 = vunpack.c.l.b16 %v2980
    %v3048 = vunpack.c.h.b16 %v2980
    %v3049 = vunpack.c.l.b16 %v2981
    %v3050 = vunpack.c.h.b16 %v2981
    %v3051 = vunpack.c.l.b16 %v2982
    %v3052 = vunpack.c.h.b16 %v2982
    %v3053 = vunpack.c.l.b16 %v2983
    %v3054 = vunpack.c.h.b16 %v2983
    %v3055 = vunpack.c.l.b16 %v2984
    %v3056 = vunpack.c.h.b16 %v2984
    %v3057 = vunpack.c.l.b16 %v2985
    %v3058 = vunpack.c.h.b16 %v2985
    %v3059 = vunpack.c.l.b16 %v2986
    %v3060 = vunpack.c.h.b16 %v2986
    %v3061 = vunpack.c.l.b16 %v2987
    %v3062 = vunpack.c.h.b16 %v2987
    %v3063 = vunpack.c.l.b16 %v2988
    %v3064 = vunpack.c.h.b16 %v2988
    %v3065 = vunpack.c.l.b16 %v2989
    %v3066 = vunpack.c.h.b16 %v2989
    %v3067 = vunpack.c.l.b16 %v2990
    %v3068 = vunpack.c.h.b16 %v2990
    %v3069 = vunpack.c.l.b16 %v2991
    %v3070 = vunpack.c.h.b16 %v2991
    %v3071 = vunpack.c.l.b16 %v2992
    %v3072 = vunpack.c.h.b16 %v2992
    %v3073 = vunpack.c.l.b16 %v2993
    %v3074 = vunpack.c.h.b16 %v2993
    %v3075 = vunpack.c.l.b16 %v2994
    %v3076 = vunpack.c.h.b16 %v2994
    %v3077 = vunpack.c.l.b16 %v2995
    %v3078 = vunpack.c.h.b16 %v2995
    %v3079 = vunpack.c.l.b16 %v2996
    %v3080 = vunpack.c.h.b16 %v2996
    %v3081 = vunpack.c.l.b16 %v2997
    %v3082 = vunpack.c.h.b16 %v2997
    %v3083 = vunpack.c.l.b16 %v2998
    %v3084 = vunpack.c.h.b16 %v2998
    %v3085 = vunpack.c.l.b16 %v2999
    %v3086 = vunpack.c.h.b16 %v2999
    %v3087 = vunpack.c.l.b16 %v3000
    %v3088 = vunpack.c.h.b16 %v3000
    %v3089 = vunpack.c.l.b16 %v3001
    %v3090 = vunpack.c.h.b16 %v3001
    %v3091 = vunpack.c.l.b16 %v3002
    %v3092 = vunpack.c.h.b16 %v3002
    %v3093 = vunpack.c.l.b16 %v3003
    %v3094 = vunpack.c.h.b16 %v3003
    %v3095 = vunpack.c.l.b16 %v3004
    %v3096 = vunpack.c.h.b16 %v3004
    %v3097 = vunpack.c.l.b16 %v3005
    %v3098 = vunpack.c.h.b16 %v3005
    %v3099 = vunpack.c.l.b16 %v3006
    %v3100 = vunpack.c.h.b16 %v3006
    %v3101 = vunpack.c.l.b16 %v3007
    %v3102 = vunpack.c.h.b16 %v3007
    %v3103 = vunpack.c.l.b16 %v3008
    %v3104 = vunpack.c.h.b16 %v3008
    %v3105 = vpack.c.b16 %v3045, %v3041
    %v3106 = vpack.c.b16 %v3046, %v3042
    %v3107 = vpack.c.b16 %v3047, %v3043
    %v3108 = vpack.c.b16 %v3048, %v3044
    %v3109 = vpack.c.b16 %v3053, %v3049
    %v3110 = vpack.c.b16 %v3054, %v3050
    %v3111 = vpack.c.b16 %v3055, %v3051
    %v3112 = vpack.c.b16 %v3056, %v3052
    %v3113 = vpack.c.b16 %v3061, %v3057
    %v3114 = vpack.c.b16 %v3062, %v3058
    %v3115 = vpack.c.b16 %v3063, %v3059
    %v3116 = vpack.c.b16 %v3064, %v3060
    %v3117 = vpack.c.b16 %v3069, %v3065
    %v3118 = vpack.c.b16 %v3070, %v3066
    %v3119 = vpack.c.b16 %v3071, %v3067
    %v3120 = vpack.c.b16 %v3072, %v3068
    %v3121 = vpack.c.b16 %v3077, %v3073
    %v3122 = vpack.c.b16 %v3078, %v3074
    %v3123 = vpack.c.b16 %v3079, %v3075
    %v3124 = vpack.c.b16 %v3080, %v3076
    %v3125 = vpack.c.b16 %v3085, %v3081
    %v3126 = vpack.c.b16 %v3086, %v3082
    %v3127 = vpack.c.b16 %v3087, %v3083
    %v3128 = vpack.c.b16 %v3088, %v3084
    %v3129 = vpack.c.b16 %v3093, %v3089
    %v3130 = vpack.c.b16 %v3094, %v3090
    %v3131 = vpack.c.b16 %v3095, %v3091
    %v3132 = vpack.c.b16 %v3096, %v3092
    %v3133 = vpack.c.b16 %v3101, %v3097
    %v3134 = vpack.c.b16 %v3102, %v3098
    %v3135 = vpack.c.b16 %v3103, %v3099
    %v3136 = vpack.c.b16 %v3104, %v3100
    %3169 = vmatprep.subr.bf16.mxu0 %v3106
    %3170 = vmatpush1.bf16.msra.mxu0 %v3105
    %3171 = vmatprep.subr.bf16.mxu0 %v3110
    %3172 = vmatpush1.bf16.msra.mxu0 %v3109
    %3173 = vmatprep.subr.bf16.mxu0 %v3114
    %3174 = vmatpush1.bf16.msra.mxu0 %v3113
    %3175 = vmatprep.subr.bf16.mxu0 %v3118
    %3176 = vmatpush1.bf16.msra.mxu0 %v3117
    %3177 = vmatprep.subr.bf16.mxu0 %v3122
    %3178 = vmatpush1.bf16.msra.mxu0 %v3121
    %3179 = vmatprep.subr.bf16.mxu0 %v3126
    %3180 = vmatpush1.bf16.msra.mxu0 %v3125
    %3181 = vmatprep.subr.bf16.mxu0 %v3130
    %3182 = vmatpush1.bf16.msra.mxu0 %v3129
    %3183 = vmatprep.subr.bf16.mxu0 %v3134
    %3184 = vmatpush1.bf16.msra.mxu0 %v3133
    %3185 = vmatprep.subr.bf16.mxu0 0
    %3186 = vmatpush1.bf16.msra.mxu0 0
    %3187 = vmatprep.subr.bf16.mxu0 0
    %3188 = vmatpush1.bf16.msra.mxu0 0
    %3189 = vmatprep.subr.bf16.mxu0 0
    %3190 = vmatpush1.bf16.msra.mxu0 0
    %3191 = vmatprep.subr.bf16.mxu0 0
    %3192 = vmatpush1.bf16.msra.mxu0 0
    %3193 = vmatprep.subr.bf16.mxu0 0
    %3194 = vmatpush1.bf16.msra.mxu0 0
    %3195 = vmatprep.subr.bf16.mxu0 0
    %3196 = vmatpush1.bf16.msra.mxu0 0
    %3197 = vmatprep.subr.bf16.mxu0 0
    %3198 = vmatpush1.bf16.msra.mxu0 0
    %3199 = vmatprep.subr.bf16.mxu0 0
    %3200 = vmatpush1.bf16.msra.mxu0 0
    %3201 = vmatprep.mubr.bf16.mxu0 0
    %3202 = vmatmul.mubr.bf16.gmra.mrb[0].mxu0 %v2975
    %v3203 = vpop.f32.mrb[0].mxu0
    %v3204 = vadd.f32 %v252, %v3203
    %v3205 = vpop.f32.mrb[0].mxu0
    %v3206 = vadd.f32 %v256, %v3205
    %v3207 = vpop.f32.mrb[0].mxu0
    %v3208 = vadd.f32 %v252, %v3207
    %v3209 = vpop.f32.mrb[0].mxu0
    %v3210 = vadd.f32 %v256, %v3209
    %3211 = vmatprep.mubr.bf16.mxu0 0
    %3212 = vmatmul.mubr.bf16.gmra.mrb[0].mxu0 %v2976
    %v3213 = vpop.f32.mrb[0].mxu0
    %v3214 = vadd.f32 %v252, %v3213
    %v3215 = vpop.f32.mrb[0].mxu0
    %v3216 = vadd.f32 %v256, %v3215
    %v3217 = vpop.f32.mrb[0].mxu0
    %v3218 = vadd.f32 %v252, %v3217
    %v3219 = vpop.f32.mrb[0].mxu0
    %v3220 = vadd.f32 %v256, %v3219
    %3221 = vdwg.mxu0
    %3222 = vmatprep.subr.bf16.mxu0 %v3108
    %3223 = vmatpush1.bf16.msra.mxu0 %v3107
    %3224 = vmatprep.subr.bf16.mxu0 %v3112
    %3225 = vmatpush1.bf16.msra.mxu0 %v3111
    %3226 = vmatprep.subr.bf16.mxu0 %v3116
    %3227 = vmatpush1.bf16.msra.mxu0 %v3115
    %3228 = vmatprep.subr.bf16.mxu0 %v3120
    %3229 = vmatpush1.bf16.msra.mxu0 %v3119
    %3230 = vmatprep.subr.bf16.mxu0 %v3124
    %3231 = vmatpush1.bf16.msra.mxu0 %v3123
    %3232 = vmatprep.subr.bf16.mxu0 %v3128
    %3233 = vmatpush1.bf16.msra.mxu0 %v3127
    %3234 = vmatprep.subr.bf16.mxu0 %v3132
    %3235 = vmatpush1.bf16.msra.mxu0 %v3131
    %3236 = vmatprep.subr.bf16.mxu0 %v3136
    %3237 = vmatpush1.bf16.msra.mxu0 %v3135
    %3238 = vmatprep.subr.bf16.mxu0 0
    %3239 = vmatpush1.bf16.msra.mxu0 0
    %3240 = vmatprep.subr.bf16.mxu0 0
    %3241 = vmatpush1.bf16.msra.mxu0 0
    %3242 = vmatprep.subr.bf16.mxu0 0
    %3243 = vmatpush1.bf16.msra.mxu0 0
    %3244 = vmatprep.subr.bf16.mxu0 0
    %3245 = vmatpush1.bf16.msra.mxu0 0
    %3246 = vmatprep.subr.bf16.mxu0 0
    %3247 = vmatpush1.bf16.msra.mxu0 0
    %3248 = vmatprep.subr.bf16.mxu0 0
    %3249 = vmatpush1.bf16.msra.mxu0 0
    %3250 = vmatprep.subr.bf16.mxu0 0
    %3251 = vmatpush1.bf16.msra.mxu0 0
    %3252 = vmatprep.subr.bf16.mxu0 0
    %3253 = vmatpush1.bf16.msra.mxu0 0
    %3254 = vmatprep.mubr.bf16.mxu0 0
    %3255 = vmatmul.mubr.bf16.gmra.mrb[0].mxu0 %v2975
    %v3256 = vpop.f32.mrb[0].mxu0
    %v3257 = vadd.f32 %v260, %v3256
    %v3258 = vpop.f32.mrb[0].mxu0
    %v3259 = vadd.f32 %v264, %v3258
    %v3260 = vpop.f32.mrb[0].mxu0
    %v3261 = vadd.f32 %v260, %v3260
    %v3262 = vpop.f32.mrb[0].mxu0
    %v3263 = vadd.f32 %v264, %v3262
    %3264 = vmatprep.mubr.bf16.mxu0 0
    %3265 = vmatmul.mubr.bf16.gmra.mrb[0].mxu0 %v2976
    %v3266 = vpop.f32.mrb[0].mxu0
    %v3267 = vadd.f32 %v260, %v3266
    %v3268 = vpop.f32.mrb[0].mxu0
    %v3269 = vadd.f32 %v264, %v3268
    %v3270 = vpop.f32.mrb[0].mxu0
    %v3271 = vadd.f32 %v260, %v3270
    %v3272 = vpop.f32.mrb[0].mxu0
    %v3273 = vadd.f32 %v264, %v3272
    %3274 = vdwg.mxu0
    %v3275 = vmul.f32 %v539, %v2859
    %v3276 = vmul.f32 %v543, %v2860
    %v3277 = vmul.f32 %v547, %v2861
    %v3278 = vmul.f32 %v551, %v2862
    %v3279 = vmul.f32 %v539, %v2863
    %v3280 = vmul.f32 %v543, %v2864
    %v3281 = vmul.f32 %v547, %v2865
    %v3282 = vmul.f32 %v551, %v2866
    %v3283 = vmul.f32 %v539, %v2867
    %v3284 = vmul.f32 %v543, %v2868
    %v3285 = vmul.f32 %v547, %v2869
    %v3286 = vmul.f32 %v551, %v2870
    %v3287 = vmul.f32 %v539, %v2871
    %v3288 = vmul.f32 %v543, %v2872
    %v3289 = vmul.f32 %v547, %v2873
    %v3290 = vmul.f32 %v551, %v2874
    %v3291 = vmul.f32 %v576, %v3204
    %v3292 = vmul.f32 %v580, %v3206
    %v3293 = vmul.f32 %v584, %v3257
    %v3294 = vmul.f32 %v588, %v3259
    %v3295 = vmul.f32 %v576, %v3208
    %v3296 = vmul.f32 %v580, %v3210
    %v3297 = vmul.f32 %v584, %v3261
    %v3298 = vmul.f32 %v588, %v3263
    %v3299 = vmul.f32 %v576, %v3214
    %v3300 = vmul.f32 %v580, %v3216
    %v3301 = vmul.f32 %v584, %v3267
    %v3302 = vmul.f32 %v588, %v3269
    %v3303 = vmul.f32 %v576, %v3218
    %v3304 = vmul.f32 %v580, %v3220
    %v3305 = vmul.f32 %v584, %v3271
    %v3306 = vmul.f32 %v588, %v3273
    %v3307 = vadd.f32 %v3275, %v3291
    %v3308 = vadd.f32 %v3276, %v3292
    %v3309 = vadd.f32 %v3277, %v3293
    %v3310 = vadd.f32 %v3278, %v3294
    %v3311 = vadd.f32 %v3279, %v3295
    %v3312 = vadd.f32 %v3280, %v3296
    %v3313 = vadd.f32 %v3281, %v3297
    %v3314 = vadd.f32 %v3282, %v3298
    %v3315 = vadd.f32 %v3283, %v3299
    %v3316 = vadd.f32 %v3284, %v3300
    %v3317 = vadd.f32 %v3285, %v3301
    %v3318 = vadd.f32 %v3286, %v3302
    %v3319 = vadd.f32 %v3287, %v3303
    %v3320 = vadd.f32 %v3288, %v3304
    %v3321 = vadd.f32 %v3289, %v3305
    %v3322 = vadd.f32 %v3290, %v3306
    %v3323 = vadd.f32 %v3307, %v3308
    %v3324 = vadd.f32 %v3311, %v3312
    %v3325 = vadd.f32 %v3315, %v3316
    %v3326 = vadd.f32 %v3319, %v3320
    %v3327 = vadd.f32 %v3323, %v3309
    %v3328 = vadd.f32 %v3324, %v3313
    %v3329 = vadd.f32 %v3325, %v3317
    %v3330 = vadd.f32 %v3326, %v3321
    %v3331 = vadd.f32 %v3327, %v3310
    %v3332 = vadd.f32 %v3328, %v3314
    %v3333 = vadd.f32 %v3329, %v3318
    %v3334 = vadd.f32 %v3330, %v3322
    %v3335 = vld [vmem:[%s4 + $0x6] sm:$0x1]
    %vm3336 = vcmp.gt.f32.partialorder %v3335, 0.0
    %v3337 = vmul.f32 %v2915, %v642
    %v3338 = vmul.f32 %v2916, %v642
    %v3339 = vmul.f32 %v2917, %v642
    %v3340 = vmul.f32 %v2918, %v642
    %v3341 = vmul.f32 %v650, %v3331
    %v3342 = vmul.f32 %v650, %v3332
    %v3343 = vmul.f32 %v650, %v3333
    %v3344 = vmul.f32 %v650, %v3334
    %v3345 = vadd.f32 %v3337, %v3341
    %v3346 = vadd.f32 %v3338, %v3342
    %v3347 = vadd.f32 %v3339, %v3343
    %v3348 = vadd.f32 %v3340, %v3344
    %v3349 = vmul.f32 %v662, %v2927
    %v3350 = vmul.f32 %v662, %v2928
    %v3351 = vmul.f32 %v662, %v2929
    %v3352 = vmul.f32 %v662, %v2930
    %v3353 = vsub.f32 %v3345, %v3349
    %v3354 = vsub.f32 %v3346, %v3350
    %v3355 = vsub.f32 %v3347, %v3351
    %v3356 = vsub.f32 %v3348, %v3352
    %v3357 = vsel %vm3336, 1, 0
    %v3358 = vlaneseq
    %v3359 = vshrl.u32 %v3358, 7
    %v3360 = vsub.s32 0, %v3359
    %v3361 = vrot.slane %v3357, %v3360
    %vm3362 = vcmp.eq.s32.totalorder %v3361, 1
    %v3363 = vsel %vm3362, %v3353, %v2915
    %v3364 = vsel %vm3362, %v3354, %v2916
    %v3365 = vsel %vm3362, %v3355, %v2917
    %v3366 = vsel %vm3362, %v3356, %v2918
    %vm3367 = vcmp.gt.f32.partialorder %v3363, %v662
    %vm3368 = vcmp.gt.f32.partialorder %v3364, %v662
    %vm3369 = vcmp.gt.f32.partialorder %v3365, %v662
    %vm3370 = vcmp.gt.f32.partialorder %v3366, %v662
    %vm3371 = vmand %vm3367, %vm3362
    %vm3372 = vmand %vm3368, %vm3362
    %vm3373 = vmand %vm3369, %vm3362
    %vm3374 = vmand %vm3370, %vm3362
    %v3375 = vsel %vm3371, 1.0, 0.0
    %v3376 = vsel %vm3372, 1.0, 0.0
    %v3377 = vsel %vm3373, 1.0, 0.0
    %v3378 = vsel %vm3374, 1.0, 0.0
    %v3379 = vpack.c.bf16 %v3364, %v3363
    %v3380 = vpack.c.bf16 %v3366, %v3365
    %v3383 = vunpack.c.l.b16 %v3379
    %v3384 = vunpack.c.h.b16 %v3379
    %v3385 = vunpack.c.l.b16 %v3380
    %v3386 = vunpack.c.h.b16 %v3380
    %v3387 = vpack.c.b16 %v3383, %v3383
    %v3388 = vpack.c.b16 %v3384, %v3384
    %v3389 = vpack.c.b16 %v3385, %v3385
    %v3390 = vpack.c.b16 %v3386, %v3386
    %s3395 = scalar_lea.vmem [#allocation14], 96
    %3396 = vst [vmem:[%s3395] sm:$0xf] %v3387
    %3397 = vst [vmem:[%s3395 + $0x4] sm:$0xf] %v3388
    %3398 = vst [vmem:[%s3395 + $0x8] sm:$0xf] %v3389
    %3399 = vst [vmem:[%s3395 + $0xc] sm:$0xf] %v3390
    %v3400 = vpack.c.bf16 %v3376, %v3375
    %v3401 = vpack.c.bf16 %v3378, %v3377
    %v3404 = vunpack.c.l.b16 %v3400
    %v3405 = vunpack.c.h.b16 %v3400
    %v3406 = vunpack.c.l.b16 %v3401
    %v3407 = vunpack.c.h.b16 %v3401
    %v3408 = vpack.c.b16 %v3404, %v3404
    %v3409 = vpack.c.b16 %v3405, %v3405
    %v3410 = vpack.c.b16 %v3406, %v3406
    %v3411 = vpack.c.b16 %v3407, %v3407
    %s3416 = scalar_lea.vmem [#allocation15], 96
    %3417 = vst [vmem:[%s3416] sm:$0xf] %v3408
    %3418 = vst [vmem:[%s3416 + $0x4] sm:$0xf] %v3409
    %3419 = vst [vmem:[%s3416 + $0x8] sm:$0xf] %v3410
    %3420 = vst [vmem:[%s3416 + $0xc] sm:$0xf] %v3411
    %s3421 = scalar_lea.vmem [#allocation2], 56
    %v3422 = vld [vmem:[%s3421] sm:$0xff]
    %v3423 = vunpack.c.l.s8.bf16 %v3422
    %v3424 = vunpack.c.h.s8.bf16 %v3422
    %v3425 = vld [vmem:[#allocation5] sm:$0xff]
    %v3426 = vld [vmem:[#allocation5 + $0x8] sm:$0xff]
    %v3427 = vld [vmem:[#allocation5 + $0x10] sm:$0xff]
    %v3428 = vld [vmem:[#allocation5 + $0x18] sm:$0xff]
    %v3429 = vld [vmem:[#allocation5 + $0x20] sm:$0xff]
    %v3430 = vld [vmem:[#allocation5 + $0x28] sm:$0xff]
    %v3431 = vld [vmem:[#allocation5 + $0x30] sm:$0xff]
    %v3432 = vld [vmem:[#allocation5 + $0x38] sm:$0xff]
    %v3433 = vld [vmem:[#allocation5 + $0x40] sm:$0xff]
    %v3434 = vld [vmem:[#allocation5 + $0x48] sm:$0xff]
    %v3435 = vld [vmem:[#allocation5 + $0x50] sm:$0xff]
    %v3436 = vld [vmem:[#allocation5 + $0x58] sm:$0xff]
    %v3437 = vld [vmem:[#allocation5 + $0x60] sm:$0xff]
    %v3438 = vld [vmem:[#allocation5 + $0x68] sm:$0xff]
    %v3439 = vld [vmem:[#allocation5 + $0x70] sm:$0xff]
    %v3440 = vld [vmem:[#allocation5 + $0x78] sm:$0xff]
    %v3441 = vld [vmem:[#allocation5 + $0x80] sm:$0xff]
    %v3442 = vld [vmem:[#allocation5 + $0x88] sm:$0xff]
    %v3443 = vld [vmem:[#allocation5 + $0x90] sm:$0xff]
    %v3444 = vld [vmem:[#allocation5 + $0x98] sm:$0xff]
    %v3445 = vld [vmem:[#allocation5 + $0xa0] sm:$0xff]
    %v3446 = vld [vmem:[#allocation5 + $0xa8] sm:$0xff]
    %v3447 = vld [vmem:[#allocation5 + $0xb0] sm:$0xff]
    %v3448 = vld [vmem:[#allocation5 + $0xb8] sm:$0xff]
    %v3449 = vld [vmem:[#allocation5 + $0xc0] sm:$0xff]
    %v3450 = vld [vmem:[#allocation5 + $0xc8] sm:$0xff]
    %v3451 = vld [vmem:[#allocation5 + $0xd0] sm:$0xff]
    %v3452 = vld [vmem:[#allocation5 + $0xd8] sm:$0xff]
    %v3453 = vld [vmem:[#allocation5 + $0xe0] sm:$0xff]
    %v3454 = vld [vmem:[#allocation5 + $0xe8] sm:$0xff]
    %v3455 = vld [vmem:[#allocation5 + $0xf0] sm:$0xff]
    %v3456 = vld [vmem:[#allocation5 + $0xf8] sm:$0xff]
    %v3489 = vunpack.c.l.b16 %v3425
    %v3490 = vunpack.c.h.b16 %v3425
    %v3491 = vunpack.c.l.b16 %v3426
    %v3492 = vunpack.c.h.b16 %v3426
    %v3493 = vunpack.c.l.b16 %v3427
    %v3494 = vunpack.c.h.b16 %v3427
    %v3495 = vunpack.c.l.b16 %v3428
    %v3496 = vunpack.c.h.b16 %v3428
    %v3497 = vunpack.c.l.b16 %v3429
    %v3498 = vunpack.c.h.b16 %v3429
    %v3499 = vunpack.c.l.b16 %v3430
    %v3500 = vunpack.c.h.b16 %v3430
    %v3501 = vunpack.c.l.b16 %v3431
    %v3502 = vunpack.c.h.b16 %v3431
    %v3503 = vunpack.c.l.b16 %v3432
    %v3504 = vunpack.c.h.b16 %v3432
    %v3505 = vunpack.c.l.b16 %v3433
    %v3506 = vunpack.c.h.b16 %v3433
    %v3507 = vunpack.c.l.b16 %v3434
    %v3508 = vunpack.c.h.b16 %v3434
    %v3509 = vunpack.c.l.b16 %v3435
    %v3510 = vunpack.c.h.b16 %v3435
    %v3511 = vunpack.c.l.b16 %v3436
    %v3512 = vunpack.c.h.b16 %v3436
    %v3513 = vunpack.c.l.b16 %v3437
    %v3514 = vunpack.c.h.b16 %v3437
    %v3515 = vunpack.c.l.b16 %v3438
    %v3516 = vunpack.c.h.b16 %v3438
    %v3517 = vunpack.c.l.b16 %v3439
    %v3518 = vunpack.c.h.b16 %v3439
    %v3519 = vunpack.c.l.b16 %v3440
    %v3520 = vunpack.c.h.b16 %v3440
    %v3521 = vunpack.c.l.b16 %v3441
    %v3522 = vunpack.c.h.b16 %v3441
    %v3523 = vunpack.c.l.b16 %v3442
    %v3524 = vunpack.c.h.b16 %v3442
    %v3525 = vunpack.c.l.b16 %v3443
    %v3526 = vunpack.c.h.b16 %v3443
    %v3527 = vunpack.c.l.b16 %v3444
    %v3528 = vunpack.c.h.b16 %v3444
    %v3529 = vunpack.c.l.b16 %v3445
    %v3530 = vunpack.c.h.b16 %v3445
    %v3531 = vunpack.c.l.b16 %v3446
    %v3532 = vunpack.c.h.b16 %v3446
    %v3533 = vunpack.c.l.b16 %v3447
    %v3534 = vunpack.c.h.b16 %v3447
    %v3535 = vunpack.c.l.b16 %v3448
    %v3536 = vunpack.c.h.b16 %v3448
    %v3537 = vunpack.c.l.b16 %v3449
    %v3538 = vunpack.c.h.b16 %v3449
    %v3539 = vunpack.c.l.b16 %v3450
    %v3540 = vunpack.c.h.b16 %v3450
    %v3541 = vunpack.c.l.b16 %v3451
    %v3542 = vunpack.c.h.b16 %v3451
    %v3543 = vunpack.c.l.b16 %v3452
    %v3544 = vunpack.c.h.b16 %v3452
    %v3545 = vunpack.c.l.b16 %v3453
    %v3546 = vunpack.c.h.b16 %v3453
    %v3547 = vunpack.c.l.b16 %v3454
    %v3548 = vunpack.c.h.b16 %v3454
    %v3549 = vunpack.c.l.b16 %v3455
    %v3550 = vunpack.c.h.b16 %v3455
    %v3551 = vunpack.c.l.b16 %v3456
    %v3552 = vunpack.c.h.b16 %v3456
    %v3553 = vpack.c.b16 %v3493, %v3489
    %v3554 = vpack.c.b16 %v3494, %v3490
    %v3555 = vpack.c.b16 %v3495, %v3491
    %v3556 = vpack.c.b16 %v3496, %v3492
    %v3557 = vpack.c.b16 %v3501, %v3497
    %v3558 = vpack.c.b16 %v3502, %v3498
    %v3559 = vpack.c.b16 %v3503, %v3499
    %v3560 = vpack.c.b16 %v3504, %v3500
    %v3561 = vpack.c.b16 %v3509, %v3505
    %v3562 = vpack.c.b16 %v3510, %v3506
    %v3563 = vpack.c.b16 %v3511, %v3507
    %v3564 = vpack.c.b16 %v3512, %v3508
    %v3565 = vpack.c.b16 %v3517, %v3513
    %v3566 = vpack.c.b16 %v3518, %v3514
    %v3567 = vpack.c.b16 %v3519, %v3515
    %v3568 = vpack.c.b16 %v3520, %v3516
    %v3569 = vpack.c.b16 %v3525, %v3521
    %v3570 = vpack.c.b16 %v3526, %v3522
    %v3571 = vpack.c.b16 %v3527, %v3523
    %v3572 = vpack.c.b16 %v3528, %v3524
    %v3573 = vpack.c.b16 %v3533, %v3529
    %v3574 = vpack.c.b16 %v3534, %v3530
    %v3575 = vpack.c.b16 %v3535, %v3531
    %v3576 = vpack.c.b16 %v3536, %v3532
    %v3577 = vpack.c.b16 %v3541, %v3537
    %v3578 = vpack.c.b16 %v3542, %v3538
    %v3579 = vpack.c.b16 %v3543, %v3539
    %v3580 = vpack.c.b16 %v3544, %v3540
    %v3581 = vpack.c.b16 %v3549, %v3545
    %v3582 = vpack.c.b16 %v3550, %v3546
    %v3583 = vpack.c.b16 %v3551, %v3547
    %v3584 = vpack.c.b16 %v3552, %v3548
    %3617 = vmatprep.subr.bf16.mxu0 %v3554
    %3618 = vmatpush1.bf16.msra.mxu0 %v3553
    %3619 = vmatprep.subr.bf16.mxu0 %v3558
    %3620 = vmatpush1.bf16.msra.mxu0 %v3557
    %3621 = vmatprep.subr.bf16.mxu0 %v3562
    %3622 = vmatpush1.bf16.msra.mxu0 %v3561
    %3623 = vmatprep.subr.bf16.mxu0 %v3566
    %3624 = vmatpush1.bf16.msra.mxu0 %v3565
    %3625 = vmatprep.subr.bf16.mxu0 %v3570
    %3626 = vmatpush1.bf16.msra.mxu0 %v3569
    %3627 = vmatprep.subr.bf16.mxu0 %v3574
    %3628 = vmatpush1.bf16.msra.mxu0 %v3573
    %3629 = vmatprep.subr.bf16.mxu0 %v3578
    %3630 = vmatpush1.bf16.msra.mxu0 %v3577
    %3631 = vmatprep.subr.bf16.mxu0 %v3582
    %3632 = vmatpush1.bf16.msra.mxu0 %v3581
    %3633 = vmatprep.subr.bf16.mxu0 0
    %3634 = vmatpush1.bf16.msra.mxu0 0
    %3635 = vmatprep.subr.bf16.mxu0 0
    %3636 = vmatpush1.bf16.msra.mxu0 0
    %3637 = vmatprep.subr.bf16.mxu0 0
    %3638 = vmatpush1.bf16.msra.mxu0 0
    %3639 = vmatprep.subr.bf16.mxu0 0
    %3640 = vmatpush1.bf16.msra.mxu0 0
    %3641 = vmatprep.subr.bf16.mxu0 0
    %3642 = vmatpush1.bf16.msra.mxu0 0
    %3643 = vmatprep.subr.bf16.mxu0 0
    %3644 = vmatpush1.bf16.msra.mxu0 0
    %3645 = vmatprep.subr.bf16.mxu0 0
    %3646 = vmatpush1.bf16.msra.mxu0 0
    %3647 = vmatprep.subr.bf16.mxu0 0
    %3648 = vmatpush1.bf16.msra.mxu0 0
    %3649 = vmatprep.mubr.bf16.mxu0 0
    %3650 = vmatmul.mubr.bf16.gmra.mrb[0].mxu0 %v3423
    %v3651 = vpop.f32.mrb[0].mxu0
    %v3652 = vadd.f32 %v252, %v3651
    %v3653 = vpop.f32.mrb[0].mxu0
    %v3654 = vadd.f32 %v256, %v3653
    %v3655 = vpop.f32.mrb[0].mxu0
    %v3656 = vadd.f32 %v252, %v3655
    %v3657 = vpop.f32.mrb[0].mxu0
    %v3658 = vadd.f32 %v256, %v3657
    %3659 = vmatprep.mubr.bf16.mxu0 0
    %3660 = vmatmul.mubr.bf16.gmra.mrb[0].mxu0 %v3424
    %v3661 = vpop.f32.mrb[0].mxu0
    %v3662 = vadd.f32 %v252, %v3661
    %v3663 = vpop.f32.mrb[0].mxu0
    %v3664 = vadd.f32 %v256, %v3663
    %v3665 = vpop.f32.mrb[0].mxu0
    %v3666 = vadd.f32 %v252, %v3665
    %v3667 = vpop.f32.mrb[0].mxu0
    %v3668 = vadd.f32 %v256, %v3667
    %3669 = vdwg.mxu0
    %3670 = vmatprep.subr.bf16.mxu0 %v3556
    %3671 = vmatpush1.bf16.msra.mxu0 %v3555
    %3672 = vmatprep.subr.bf16.mxu0 %v3560
    %3673 = vmatpush1.bf16.msra.mxu0 %v3559
    %3674 = vmatprep.subr.bf16.mxu0 %v3564
    %3675 = vmatpush1.bf16.msra.mxu0 %v3563
    %3676 = vmatprep.subr.bf16.mxu0 %v3568
    %3677 = vmatpush1.bf16.msra.mxu0 %v3567
    %3678 = vmatprep.subr.bf16.mxu0 %v3572
    %3679 = vmatpush1.bf16.msra.mxu0 %v3571
    %3680 = vmatprep.subr.bf16.mxu0 %v3576
    %3681 = vmatpush1.bf16.msra.mxu0 %v3575
    %3682 = vmatprep.subr.bf16.mxu0 %v3580
    %3683 = vmatpush1.bf16.msra.mxu0 %v3579
    %3684 = vmatprep.subr.bf16.mxu0 %v3584
    %3685 = vmatpush1.bf16.msra.mxu0 %v3583
    %3686 = vmatprep.subr.bf16.mxu0 0
    %3687 = vmatpush1.bf16.msra.mxu0 0
    %3688 = vmatprep.subr.bf16.mxu0 0
    %3689 = vmatpush1.bf16.msra.mxu0 0
    %3690 = vmatprep.subr.bf16.mxu0 0
    %3691 = vmatpush1.bf16.msra.mxu0 0
    %3692 = vmatprep.subr.bf16.mxu0 0
    %3693 = vmatpush1.bf16.msra.mxu0 0
    %3694 = vmatprep.subr.bf16.mxu0 0
    %3695 = vmatpush1.bf16.msra.mxu0 0
    %3696 = vmatprep.subr.bf16.mxu0 0
    %3697 = vmatpush1.bf16.msra.mxu0 0
    %3698 = vmatprep.subr.bf16.mxu0 0
    %3699 = vmatpush1.bf16.msra.mxu0 0
    %3700 = vmatprep.subr.bf16.mxu0 0
    %3701 = vmatpush1.bf16.msra.mxu0 0
    %3702 = vmatprep.mubr.bf16.mxu0 0
    %3703 = vmatmul.mubr.bf16.gmra.mrb[0].mxu0 %v3423
    %v3704 = vpop.f32.mrb[0].mxu0
    %v3705 = vadd.f32 %v260, %v3704
    %v3706 = vpop.f32.mrb[0].mxu0
    %v3707 = vadd.f32 %v264, %v3706
    %v3708 = vpop.f32.mrb[0].mxu0
    %v3709 = vadd.f32 %v260, %v3708
    %v3710 = vpop.f32.mrb[0].mxu0
    %v3711 = vadd.f32 %v264, %v3710
    %3712 = vmatprep.mubr.bf16.mxu0 0
    %3713 = vmatmul.mubr.bf16.gmra.mrb[0].mxu0 %v3424
    %v3714 = vpop.f32.mrb[0].mxu0
    %v3715 = vadd.f32 %v260, %v3714
    %v3716 = vpop.f32.mrb[0].mxu0
    %v3717 = vadd.f32 %v264, %v3716
    %v3718 = vpop.f32.mrb[0].mxu0
    %v3719 = vadd.f32 %v260, %v3718
    %v3720 = vpop.f32.mrb[0].mxu0
    %v3721 = vadd.f32 %v264, %v3720
    %3722 = vdwg.mxu0
    %v3723 = vmul.f32 %v539, %v3307
    %v3724 = vmul.f32 %v543, %v3308
    %v3725 = vmul.f32 %v547, %v3309
    %v3726 = vmul.f32 %v551, %v3310
    %v3727 = vmul.f32 %v539, %v3311
    %v3728 = vmul.f32 %v543, %v3312
    %v3729 = vmul.f32 %v547, %v3313
    %v3730 = vmul.f32 %v551, %v3314
    %v3731 = vmul.f32 %v539, %v3315
    %v3732 = vmul.f32 %v543, %v3316
    %v3733 = vmul.f32 %v547, %v3317
    %v3734 = vmul.f32 %v551, %v3318
    %v3735 = vmul.f32 %v539, %v3319
    %v3736 = vmul.f32 %v543, %v3320
    %v3737 = vmul.f32 %v547, %v3321
    %v3738 = vmul.f32 %v551, %v3322
    %v3739 = vmul.f32 %v576, %v3652
    %v3740 = vmul.f32 %v580, %v3654
    %v3741 = vmul.f32 %v584, %v3705
    %v3742 = vmul.f32 %v588, %v3707
    %v3743 = vmul.f32 %v576, %v3656
    %v3744 = vmul.f32 %v580, %v3658
    %v3745 = vmul.f32 %v584, %v3709
    %v3746 = vmul.f32 %v588, %v3711
    %v3747 = vmul.f32 %v576, %v3662
    %v3748 = vmul.f32 %v580, %v3664
    %v3749 = vmul.f32 %v584, %v3715
    %v3750 = vmul.f32 %v588, %v3717
    %v3751 = vmul.f32 %v576, %v3666
    %v3752 = vmul.f32 %v580, %v3668
    %v3753 = vmul.f32 %v584, %v3719
    %v3754 = vmul.f32 %v588, %v3721
    %v3755 = vadd.f32 %v3723, %v3739
    %v3756 = vadd.f32 %v3724, %v3740
    %v3757 = vadd.f32 %v3725, %v3741
    %v3758 = vadd.f32 %v3726, %v3742
    %v3759 = vadd.f32 %v3727, %v3743
    %v3760 = vadd.f32 %v3728, %v3744
    %v3761 = vadd.f32 %v3729, %v3745
    %v3762 = vadd.f32 %v3730, %v3746
    %v3763 = vadd.f32 %v3731, %v3747
    %v3764 = vadd.f32 %v3732, %v3748
    %v3765 = vadd.f32 %v3733, %v3749
    %v3766 = vadd.f32 %v3734, %v3750
    %v3767 = vadd.f32 %v3735, %v3751
    %v3768 = vadd.f32 %v3736, %v3752
    %v3769 = vadd.f32 %v3737, %v3753
    %v3770 = vadd.f32 %v3738, %v3754
    %v3771 = vadd.f32 %v3755, %v3756
    %v3772 = vadd.f32 %v3759, %v3760
    %v3773 = vadd.f32 %v3763, %v3764
    %v3774 = vadd.f32 %v3767, %v3768
    %v3775 = vadd.f32 %v3771, %v3757
    %v3776 = vadd.f32 %v3772, %v3761
    %v3777 = vadd.f32 %v3773, %v3765
    %v3778 = vadd.f32 %v3774, %v3769
    %v3779 = vadd.f32 %v3775, %v3758
    %v3780 = vadd.f32 %v3776, %v3762
    %v3781 = vadd.f32 %v3777, %v3766
    %v3782 = vadd.f32 %v3778, %v3770
    %v3783 = vld [vmem:[%s4 + $0x7] sm:$0x1]
    %vm3784 = vcmp.gt.f32.partialorder %v3783, 0.0
    %v3785 = vmul.f32 %v3363, %v642
    %v3786 = vmul.f32 %v3364, %v642
    %v3787 = vmul.f32 %v3365, %v642
    %v3788 = vmul.f32 %v3366, %v642
    %v3789 = vmul.f32 %v650, %v3779
    %v3790 = vmul.f32 %v650, %v3780
    %v3791 = vmul.f32 %v650, %v3781
    %v3792 = vmul.f32 %v650, %v3782
    %v3793 = vadd.f32 %v3785, %v3789
    %v3794 = vadd.f32 %v3786, %v3790
    %v3795 = vadd.f32 %v3787, %v3791
    %v3796 = vadd.f32 %v3788, %v3792
    %v3797 = vmul.f32 %v662, %v3375
    %v3798 = vmul.f32 %v662, %v3376
    %v3799 = vmul.f32 %v662, %v3377
    %v3800 = vmul.f32 %v662, %v3378
    %v3801 = vsub.f32 %v3793, %v3797
    %v3802 = vsub.f32 %v3794, %v3798
    %v3803 = vsub.f32 %v3795, %v3799
    %v3804 = vsub.f32 %v3796, %v3800
    %v3805 = vsel %vm3784, 1, 0
    %v3806 = vlaneseq
    %v3807 = vshrl.u32 %v3806, 7
    %v3808 = vsub.s32 0, %v3807
    %v3809 = vrot.slane %v3805, %v3808
    %vm3810 = vcmp.eq.s32.totalorder %v3809, 1
    %v3811 = vsel %vm3810, %v3801, %v3363
    %v3812 = vsel %vm3810, %v3802, %v3364
    %v3813 = vsel %vm3810, %v3803, %v3365
    %v3814 = vsel %vm3810, %v3804, %v3366
    %vm3815 = vcmp.gt.f32.partialorder %v3811, %v662
    %vm3816 = vcmp.gt.f32.partialorder %v3812, %v662
    %vm3817 = vcmp.gt.f32.partialorder %v3813, %v662
    %vm3818 = vcmp.gt.f32.partialorder %v3814, %v662
    %vm3819 = vmand %vm3815, %vm3810
    %vm3820 = vmand %vm3816, %vm3810
    %vm3821 = vmand %vm3817, %vm3810
    %vm3822 = vmand %vm3818, %vm3810
    %v3823 = vsel %vm3819, 1.0, 0.0
    %v3824 = vsel %vm3820, 1.0, 0.0
    %v3825 = vsel %vm3821, 1.0, 0.0
    %v3826 = vsel %vm3822, 1.0, 0.0
    %v3827 = vpack.c.bf16 %v3812, %v3811
    %v3828 = vpack.c.bf16 %v3814, %v3813
    %v3831 = vunpack.c.l.b16 %v3827
    %v3832 = vunpack.c.h.b16 %v3827
    %v3833 = vunpack.c.l.b16 %v3828
    %v3834 = vunpack.c.h.b16 %v3828
    %v3835 = vpack.c.b16 %v3831, %v3831
    %v3836 = vpack.c.b16 %v3832, %v3832
    %v3837 = vpack.c.b16 %v3833, %v3833
    %v3838 = vpack.c.b16 %v3834, %v3834
    %s3843 = scalar_lea.vmem [#allocation14], 112
    %3844 = vst [vmem:[%s3843] sm:$0xf] %v3835
    %3845 = vst [vmem:[%s3843 + $0x4] sm:$0xf] %v3836
    %3846 = vst [vmem:[%s3843 + $0x8] sm:$0xf] %v3837
    %3847 = vst [vmem:[%s3843 + $0xc] sm:$0xf] %v3838
    %v3848 = vpack.c.bf16 %v3824, %v3823
    %v3849 = vpack.c.bf16 %v3826, %v3825
    %v3852 = vunpack.c.l.b16 %v3848
    %v3853 = vunpack.c.h.b16 %v3848
    %v3854 = vunpack.c.l.b16 %v3849
    %v3855 = vunpack.c.h.b16 %v3849
    %v3856 = vpack.c.b16 %v3852, %v3852
    %v3857 = vpack.c.b16 %v3853, %v3853
    %v3858 = vpack.c.b16 %v3854, %v3854
    %v3859 = vpack.c.b16 %v3855, %v3855
    %s3864 = scalar_lea.vmem [#allocation15], 112
    %3865 = vst [vmem:[%s3864] sm:$0xf] %v3856
    %3866 = vst [vmem:[%s3864 + $0x4] sm:$0xf] %v3857
    %3867 = vst [vmem:[%s3864 + $0x8] sm:$0xf] %v3858
    %3868 = vst [vmem:[%s3864 + $0xc] sm:$0xf] %v3859
    %s3869 = scalar_lea.vmem [#allocation2], 64
    %v3870 = vld [vmem:[%s3869] sm:$0xff]
    %v3871 = vunpack.c.l.s8.bf16 %v3870
    %v3872 = vunpack.c.h.s8.bf16 %v3870
    %v3873 = vld [vmem:[#allocation5] sm:$0xff]
    %v3874 = vld [vmem:[#allocation5 + $0x8] sm:$0xff]
    %v3875 = vld [vmem:[#allocation5 + $0x10] sm:$0xff]
    %v3876 = vld [vmem:[#allocation5 + $0x18] sm:$0xff]
    %v3877 = vld [vmem:[#allocation5 + $0x20] sm:$0xff]
    %v3878 = vld [vmem:[#allocation5 + $0x28] sm:$0xff]
    %v3879 = vld [vmem:[#allocation5 + $0x30] sm:$0xff]
    %v3880 = vld [vmem:[#allocation5 + $0x38] sm:$0xff]
    %v3881 = vld [vmem:[#allocation5 + $0x40] sm:$0xff]
    %v3882 = vld [vmem:[#allocation5 + $0x48] sm:$0xff]
    %v3883 = vld [vmem:[#allocation5 + $0x50] sm:$0xff]
    %v3884 = vld [vmem:[#allocation5 + $0x58] sm:$0xff]
    %v3885 = vld [vmem:[#allocation5 + $0x60] sm:$0xff]
    %v3886 = vld [vmem:[#allocation5 + $0x68] sm:$0xff]
    %v3887 = vld [vmem:[#allocation5 + $0x70] sm:$0xff]
    %v3888 = vld [vmem:[#allocation5 + $0x78] sm:$0xff]
    %v3889 = vld [vmem:[#allocation5 + $0x80] sm:$0xff]
    %v3890 = vld [vmem:[#allocation5 + $0x88] sm:$0xff]
    %v3891 = vld [vmem:[#allocation5 + $0x90] sm:$0xff]
    %v3892 = vld [vmem:[#allocation5 + $0x98] sm:$0xff]
    %v3893 = vld [vmem:[#allocation5 + $0xa0] sm:$0xff]
    %v3894 = vld [vmem:[#allocation5 + $0xa8] sm:$0xff]
    %v3895 = vld [vmem:[#allocation5 + $0xb0] sm:$0xff]
    %v3896 = vld [vmem:[#allocation5 + $0xb8] sm:$0xff]
    %v3897 = vld [vmem:[#allocation5 + $0xc0] sm:$0xff]
    %v3898 = vld [vmem:[#allocation5 + $0xc8] sm:$0xff]
    %v3899 = vld [vmem:[#allocation5 + $0xd0] sm:$0xff]
    %v3900 = vld [vmem:[#allocation5 + $0xd8] sm:$0xff]
    %v3901 = vld [vmem:[#allocation5 + $0xe0] sm:$0xff]
    %v3902 = vld [vmem:[#allocation5 + $0xe8] sm:$0xff]
    %v3903 = vld [vmem:[#allocation5 + $0xf0] sm:$0xff]
    %v3904 = vld [vmem:[#allocation5 + $0xf8] sm:$0xff]
    %v3937 = vunpack.c.l.b16 %v3873
    %v3938 = vunpack.c.h.b16 %v3873
    %v3939 = vunpack.c.l.b16 %v3874
    %v3940 = vunpack.c.h.b16 %v3874
    %v3941 = vunpack.c.l.b16 %v3875
    %v3942 = vunpack.c.h.b16 %v3875
    %v3943 = vunpack.c.l.b16 %v3876
    %v3944 = vunpack.c.h.b16 %v3876
    %v3945 = vunpack.c.l.b16 %v3877
    %v3946 = vunpack.c.h.b16 %v3877
    %v3947 = vunpack.c.l.b16 %v3878
    %v3948 = vunpack.c.h.b16 %v3878
    %v3949 = vunpack.c.l.b16 %v3879
    %v3950 = vunpack.c.h.b16 %v3879
    %v3951 = vunpack.c.l.b16 %v3880
    %v3952 = vunpack.c.h.b16 %v3880
    %v3953 = vunpack.c.l.b16 %v3881
    %v3954 = vunpack.c.h.b16 %v3881
    %v3955 = vunpack.c.l.b16 %v3882
    %v3956 = vunpack.c.h.b16 %v3882
    %v3957 = vunpack.c.l.b16 %v3883
    %v3958 = vunpack.c.h.b16 %v3883
    %v3959 = vunpack.c.l.b16 %v3884
    %v3960 = vunpack.c.h.b16 %v3884
    %v3961 = vunpack.c.l.b16 %v3885
    %v3962 = vunpack.c.h.b16 %v3885
    %v3963 = vunpack.c.l.b16 %v3886
    %v3964 = vunpack.c.h.b16 %v3886
    %v3965 = vunpack.c.l.b16 %v3887
    %v3966 = vunpack.c.h.b16 %v3887
    %v3967 = vunpack.c.l.b16 %v3888
    %v3968 = vunpack.c.h.b16 %v3888
    %v3969 = vunpack.c.l.b16 %v3889
    %v3970 = vunpack.c.h.b16 %v3889
    %v3971 = vunpack.c.l.b16 %v3890
    %v3972 = vunpack.c.h.b16 %v3890
    %v3973 = vunpack.c.l.b16 %v3891
    %v3974 = vunpack.c.h.b16 %v3891
    %v3975 = vunpack.c.l.b16 %v3892
    %v3976 = vunpack.c.h.b16 %v3892
    %v3977 = vunpack.c.l.b16 %v3893
    %v3978 = vunpack.c.h.b16 %v3893
    %v3979 = vunpack.c.l.b16 %v3894
    %v3980 = vunpack.c.h.b16 %v3894
    %v3981 = vunpack.c.l.b16 %v3895
    %v3982 = vunpack.c.h.b16 %v3895
    %v3983 = vunpack.c.l.b16 %v3896
    %v3984 = vunpack.c.h.b16 %v3896
    %v3985 = vunpack.c.l.b16 %v3897
    %v3986 = vunpack.c.h.b16 %v3897
    %v3987 = vunpack.c.l.b16 %v3898
    %v3988 = vunpack.c.h.b16 %v3898
    %v3989 = vunpack.c.l.b16 %v3899
    %v3990 = vunpack.c.h.b16 %v3899
    %v3991 = vunpack.c.l.b16 %v3900
    %v3992 = vunpack.c.h.b16 %v3900
    %v3993 = vunpack.c.l.b16 %v3901
    %v3994 = vunpack.c.h.b16 %v3901
    %v3995 = vunpack.c.l.b16 %v3902
    %v3996 = vunpack.c.h.b16 %v3902
    %v3997 = vunpack.c.l.b16 %v3903
    %v3998 = vunpack.c.h.b16 %v3903
    %v3999 = vunpack.c.l.b16 %v3904
    %v4000 = vunpack.c.h.b16 %v3904
    %v4001 = vpack.c.b16 %v3941, %v3937
    %v4002 = vpack.c.b16 %v3942, %v3938
    %v4003 = vpack.c.b16 %v3943, %v3939
    %v4004 = vpack.c.b16 %v3944, %v3940
    %v4005 = vpack.c.b16 %v3949, %v3945
    %v4006 = vpack.c.b16 %v3950, %v3946
    %v4007 = vpack.c.b16 %v3951, %v3947
    %v4008 = vpack.c.b16 %v3952, %v3948
    %v4009 = vpack.c.b16 %v3957, %v3953
    %v4010 = vpack.c.b16 %v3958, %v3954
    %v4011 = vpack.c.b16 %v3959, %v3955
    %v4012 = vpack.c.b16 %v3960, %v3956
    %v4013 = vpack.c.b16 %v3965, %v3961
    %v4014 = vpack.c.b16 %v3966, %v3962
    %v4015 = vpack.c.b16 %v3967, %v3963
    %v4016 = vpack.c.b16 %v3968, %v3964
    %v4017 = vpack.c.b16 %v3973, %v3969
    %v4018 = vpack.c.b16 %v3974, %v3970
    %v4019 = vpack.c.b16 %v3975, %v3971
    %v4020 = vpack.c.b16 %v3976, %v3972
    %v4021 = vpack.c.b16 %v3981, %v3977
    %v4022 = vpack.c.b16 %v3982, %v3978
    %v4023 = vpack.c.b16 %v3983, %v3979
    %v4024 = vpack.c.b16 %v3984, %v3980
    %v4025 = vpack.c.b16 %v3989, %v3985
    %v4026 = vpack.c.b16 %v3990, %v3986
    %v4027 = vpack.c.b16 %v3991, %v3987
    %v4028 = vpack.c.b16 %v3992, %v3988
    %v4029 = vpack.c.b16 %v3997, %v3993
    %v4030 = vpack.c.b16 %v3998, %v3994
    %v4031 = vpack.c.b16 %v3999, %v3995
    %v4032 = vpack.c.b16 %v4000, %v3996
    %4065 = vmatprep.subr.bf16.mxu0 %v4002
    %4066 = vmatpush1.bf16.msra.mxu0 %v4001
    %4067 = vmatprep.subr.bf16.mxu0 %v4006
    %4068 = vmatpush1.bf16.msra.mxu0 %v4005
    %4069 = vmatprep.subr.bf16.mxu0 %v4010
    %4070 = vmatpush1.bf16.msra.mxu0 %v4009
    %4071 = vmatprep.subr.bf16.mxu0 %v4014
    %4072 = vmatpush1.bf16.msra.mxu0 %v4013
    %4073 = vmatprep.subr.bf16.mxu0 %v4018
    %4074 = vmatpush1.bf16.msra.mxu0 %v4017
    %4075 = vmatprep.subr.bf16.mxu0 %v4022
    %4076 = vmatpush1.bf16.msra.mxu0 %v4021
    %4077 = vmatprep.subr.bf16.mxu0 %v4026
    %4078 = vmatpush1.bf16.msra.mxu0 %v4025
    %4079 = vmatprep.subr.bf16.mxu0 %v4030
    %4080 = vmatpush1.bf16.msra.mxu0 %v4029
    %4081 = vmatprep.subr.bf16.mxu0 0
    %4082 = vmatpush1.bf16.msra.mxu0 0
    %4083 = vmatprep.subr.bf16.mxu0 0
    %4084 = vmatpush1.bf16.msra.mxu0 0
    %4085 = vmatprep.subr.bf16.mxu0 0
    %4086 = vmatpush1.bf16.msra.mxu0 0
    %4087 = vmatprep.subr.bf16.mxu0 0
    %4088 = vmatpush1.bf16.msra.mxu0 0
    %4089 = vmatprep.subr.bf16.mxu0 0
    %4090 = vmatpush1.bf16.msra.mxu0 0
    %4091 = vmatprep.subr.bf16.mxu0 0
    %4092 = vmatpush1.bf16.msra.mxu0 0
    %4093 = vmatprep.subr.bf16.mxu0 0
    %4094 = vmatpush1.bf16.msra.mxu0 0
    %4095 = vmatprep.subr.bf16.mxu0 0
    %4096 = vmatpush1.bf16.msra.mxu0 0
    %4097 = vmatprep.mubr.bf16.mxu0 0
    %4098 = vmatmul.mubr.bf16.gmra.mrb[0].mxu0 %v3871
    %v4099 = vpop.f32.mrb[0].mxu0
    %v4100 = vadd.f32 %v252, %v4099
    %v4101 = vpop.f32.mrb[0].mxu0
    %v4102 = vadd.f32 %v256, %v4101
    %v4103 = vpop.f32.mrb[0].mxu0
    %v4104 = vadd.f32 %v252, %v4103
    %v4105 = vpop.f32.mrb[0].mxu0
    %v4106 = vadd.f32 %v256, %v4105
    %4107 = vmatprep.mubr.bf16.mxu0 0
    %4108 = vmatmul.mubr.bf16.gmra.mrb[0].mxu0 %v3872
    %v4109 = vpop.f32.mrb[0].mxu0
    %v4110 = vadd.f32 %v252, %v4109
    %v4111 = vpop.f32.mrb[0].mxu0
    %v4112 = vadd.f32 %v256, %v4111
    %v4113 = vpop.f32.mrb[0].mxu0
    %v4114 = vadd.f32 %v252, %v4113
    %v4115 = vpop.f32.mrb[0].mxu0
    %v4116 = vadd.f32 %v256, %v4115
    %4117 = vdwg.mxu0
    %4118 = vmatprep.subr.bf16.mxu0 %v4004
    %4119 = vmatpush1.bf16.msra.mxu0 %v4003
    %4120 = vmatprep.subr.bf16.mxu0 %v4008
    %4121 = vmatpush1.bf16.msra.mxu0 %v4007
    %4122 = vmatprep.subr.bf16.mxu0 %v4012
    %4123 = vmatpush1.bf16.msra.mxu0 %v4011
    %4124 = vmatprep.subr.bf16.mxu0 %v4016
    %4125 = vmatpush1.bf16.msra.mxu0 %v4015
    %4126 = vmatprep.subr.bf16.mxu0 %v4020
    %4127 = vmatpush1.bf16.msra.mxu0 %v4019
    %4128 = vmatprep.subr.bf16.mxu0 %v4024
    %4129 = vmatpush1.bf16.msra.mxu0 %v4023
    %4130 = vmatprep.subr.bf16.mxu0 %v4028
    %4131 = vmatpush1.bf16.msra.mxu0 %v4027
    %4132 = vmatprep.subr.bf16.mxu0 %v4032
    %4133 = vmatpush1.bf16.msra.mxu0 %v4031
    %4134 = vmatprep.subr.bf16.mxu0 0
    %4135 = vmatpush1.bf16.msra.mxu0 0
    %4136 = vmatprep.subr.bf16.mxu0 0
    %4137 = vmatpush1.bf16.msra.mxu0 0
    %4138 = vmatprep.subr.bf16.mxu0 0
    %4139 = vmatpush1.bf16.msra.mxu0 0
    %4140 = vmatprep.subr.bf16.mxu0 0
    %4141 = vmatpush1.bf16.msra.mxu0 0
    %4142 = vmatprep.subr.bf16.mxu0 0
    %4143 = vmatpush1.bf16.msra.mxu0 0
    %4144 = vmatprep.subr.bf16.mxu0 0
    %4145 = vmatpush1.bf16.msra.mxu0 0
    %4146 = vmatprep.subr.bf16.mxu0 0
    %4147 = vmatpush1.bf16.msra.mxu0 0
    %4148 = vmatprep.subr.bf16.mxu0 0
    %4149 = vmatpush1.bf16.msra.mxu0 0
    %4150 = vmatprep.mubr.bf16.mxu0 0
    %4151 = vmatmul.mubr.bf16.gmra.mrb[0].mxu0 %v3871
    %v4152 = vpop.f32.mrb[0].mxu0
    %v4153 = vadd.f32 %v260, %v4152
    %v4154 = vpop.f32.mrb[0].mxu0
    %v4155 = vadd.f32 %v264, %v4154
    %v4156 = vpop.f32.mrb[0].mxu0
    %v4157 = vadd.f32 %v260, %v4156
    %v4158 = vpop.f32.mrb[0].mxu0
    %v4159 = vadd.f32 %v264, %v4158
    %4160 = vmatprep.mubr.bf16.mxu0 0
    %4161 = vmatmul.mubr.bf16.gmra.mrb[0].mxu0 %v3872
    %v4162 = vpop.f32.mrb[0].mxu0
    %v4163 = vadd.f32 %v260, %v4162
    %v4164 = vpop.f32.mrb[0].mxu0
    %v4165 = vadd.f32 %v264, %v4164
    %v4166 = vpop.f32.mrb[0].mxu0
    %v4167 = vadd.f32 %v260, %v4166
    %v4168 = vpop.f32.mrb[0].mxu0
    %v4169 = vadd.f32 %v264, %v4168
    %4170 = vdwg.mxu0
    %v4171 = vmul.f32 %v539, %v3755
    %v4172 = vmul.f32 %v543, %v3756
    %v4173 = vmul.f32 %v547, %v3757
    %v4174 = vmul.f32 %v551, %v3758
    %v4175 = vmul.f32 %v539, %v3759
    %v4176 = vmul.f32 %v543, %v3760
    %v4177 = vmul.f32 %v547, %v3761
    %v4178 = vmul.f32 %v551, %v3762
    %v4179 = vmul.f32 %v539, %v3763
    %v4180 = vmul.f32 %v543, %v3764
    %v4181 = vmul.f32 %v547, %v3765
    %v4182 = vmul.f32 %v551, %v3766
    %v4183 = vmul.f32 %v539, %v3767
    %v4184 = vmul.f32 %v543, %v3768
    %v4185 = vmul.f32 %v547, %v3769
    %v4186 = vmul.f32 %v551, %v3770
    %v4187 = vmul.f32 %v576, %v4100
    %v4188 = vmul.f32 %v580, %v4102
    %v4189 = vmul.f32 %v584, %v4153
    %v4190 = vmul.f32 %v588, %v4155
    %v4191 = vmul.f32 %v576, %v4104
    %v4192 = vmul.f32 %v580, %v4106
    %v4193 = vmul.f32 %v584, %v4157
    %v4194 = vmul.f32 %v588, %v4159
    %v4195 = vmul.f32 %v576, %v4110
    %v4196 = vmul.f32 %v580, %v4112
    %v4197 = vmul.f32 %v584, %v4163
    %v4198 = vmul.f32 %v588, %v4165
    %v4199 = vmul.f32 %v576, %v4114
    %v4200 = vmul.f32 %v580, %v4116
    %v4201 = vmul.f32 %v584, %v4167
    %v4202 = vmul.f32 %v588, %v4169
    %v4203 = vadd.f32 %v4171, %v4187
    %v4204 = vadd.f32 %v4172, %v4188
    %v4205 = vadd.f32 %v4173, %v4189
    %v4206 = vadd.f32 %v4174, %v4190
    %v4207 = vadd.f32 %v4175, %v4191
    %v4208 = vadd.f32 %v4176, %v4192
    %v4209 = vadd.f32 %v4177, %v4193
    %v4210 = vadd.f32 %v4178, %v4194
    %v4211 = vadd.f32 %v4179, %v4195
    %v4212 = vadd.f32 %v4180, %v4196
    %v4213 = vadd.f32 %v4181, %v4197
    %v4214 = vadd.f32 %v4182, %v4198
    %v4215 = vadd.f32 %v4183, %v4199
    %v4216 = vadd.f32 %v4184, %v4200
    %v4217 = vadd.f32 %v4185, %v4201
    %v4218 = vadd.f32 %v4186, %v4202
    %v4219 = vadd.f32 %v4203, %v4204
    %v4220 = vadd.f32 %v4207, %v4208
    %v4221 = vadd.f32 %v4211, %v4212
    %v4222 = vadd.f32 %v4215, %v4216
    %v4223 = vadd.f32 %v4219, %v4205
    %v4224 = vadd.f32 %v4220, %v4209
    %v4225 = vadd.f32 %v4221, %v4213
    %v4226 = vadd.f32 %v4222, %v4217
    %v4227 = vadd.f32 %v4223, %v4206
    %v4228 = vadd.f32 %v4224, %v4210
    %v4229 = vadd.f32 %v4225, %v4214
    %v4230 = vadd.f32 %v4226, %v4218
    %v4231 = vld [vmem:[%s4 + $0x8] sm:$0x1]
    %vm4232 = vcmp.gt.f32.partialorder %v4231, 0.0
    %v4233 = vmul.f32 %v3811, %v642
    %v4234 = vmul.f32 %v3812, %v642
    %v4235 = vmul.f32 %v3813, %v642
    %v4236 = vmul.f32 %v3814, %v642
    %v4237 = vmul.f32 %v650, %v4227
    %v4238 = vmul.f32 %v650, %v4228
    %v4239 = vmul.f32 %v650, %v4229
    %v4240 = vmul.f32 %v650, %v4230
    %v4241 = vadd.f32 %v4233, %v4237
    %v4242 = vadd.f32 %v4234, %v4238
    %v4243 = vadd.f32 %v4235, %v4239
    %v4244 = vadd.f32 %v4236, %v4240
    %v4245 = vmul.f32 %v662, %v3823
    %v4246 = vmul.f32 %v662, %v3824
    %v4247 = vmul.f32 %v662, %v3825
    %v4248 = vmul.f32 %v662, %v3826
    %v4249 = vsub.f32 %v4241, %v4245
    %v4250 = vsub.f32 %v4242, %v4246
    %v4251 = vsub.f32 %v4243, %v4247
    %v4252 = vsub.f32 %v4244, %v4248
    %v4253 = vsel %vm4232, 1, 0
    %v4254 = vlaneseq
    %v4255 = vshrl.u32 %v4254, 7
    %v4256 = vsub.s32 0, %v4255
    %v4257 = vrot.slane %v4253, %v4256
    %vm4258 = vcmp.eq.s32.totalorder %v4257, 1
    %v4259 = vsel %vm4258, %v4249, %v3811
    %v4260 = vsel %vm4258, %v4250, %v3812
    %v4261 = vsel %vm4258, %v4251, %v3813
    %v4262 = vsel %vm4258, %v4252, %v3814
    %vm4263 = vcmp.gt.f32.partialorder %v4259, %v662
    %vm4264 = vcmp.gt.f32.partialorder %v4260, %v662
    %vm4265 = vcmp.gt.f32.partialorder %v4261, %v662
    %vm4266 = vcmp.gt.f32.partialorder %v4262, %v662
    %vm4267 = vmand %vm4263, %vm4258
    %vm4268 = vmand %vm4264, %vm4258
    %vm4269 = vmand %vm4265, %vm4258
    %vm4270 = vmand %vm4266, %vm4258
    %v4271 = vsel %vm4267, 1.0, 0.0
    %v4272 = vsel %vm4268, 1.0, 0.0
    %v4273 = vsel %vm4269, 1.0, 0.0
    %v4274 = vsel %vm4270, 1.0, 0.0
    %v4275 = vpack.c.bf16 %v4260, %v4259
    %v4276 = vpack.c.bf16 %v4262, %v4261
    %v4279 = vunpack.c.l.b16 %v4275
    %v4280 = vunpack.c.h.b16 %v4275
    %v4281 = vunpack.c.l.b16 %v4276
    %v4282 = vunpack.c.h.b16 %v4276
    %v4283 = vpack.c.b16 %v4279, %v4279
    %v4284 = vpack.c.b16 %v4280, %v4280
    %v4285 = vpack.c.b16 %v4281, %v4281
    %v4286 = vpack.c.b16 %v4282, %v4282
    %s4291 = scalar_lea.vmem [#allocation14], 128
    %4292 = vst [vmem:[%s4291] sm:$0xf] %v4283
    %4293 = vst [vmem:[%s4291 + $0x4] sm:$0xf] %v4284
    %4294 = vst [vmem:[%s4291 + $0x8] sm:$0xf] %v4285
    %4295 = vst [vmem:[%s4291 + $0xc] sm:$0xf] %v4286
    %v4296 = vpack.c.bf16 %v4272, %v4271
    %v4297 = vpack.c.bf16 %v4274, %v4273
    %v4300 = vunpack.c.l.b16 %v4296
    %v4301 = vunpack.c.h.b16 %v4296
    %v4302 = vunpack.c.l.b16 %v4297
    %v4303 = vunpack.c.h.b16 %v4297
    %v4304 = vpack.c.b16 %v4300, %v4300
    %v4305 = vpack.c.b16 %v4301, %v4301
    %v4306 = vpack.c.b16 %v4302, %v4302
    %v4307 = vpack.c.b16 %v4303, %v4303
    %s4312 = scalar_lea.vmem [#allocation15], 128
    %4313 = vst [vmem:[%s4312] sm:$0xf] %v4304
    %4314 = vst [vmem:[%s4312 + $0x4] sm:$0xf] %v4305
    %4315 = vst [vmem:[%s4312 + $0x8] sm:$0xf] %v4306
    %4316 = vst [vmem:[%s4312 + $0xc] sm:$0xf] %v4307
    %s4317 = scalar_lea.vmem [#allocation2], 72
    %v4318 = vld [vmem:[%s4317] sm:$0xff]
    %v4319 = vunpack.c.l.s8.bf16 %v4318
    %v4320 = vunpack.c.h.s8.bf16 %v4318
    %v4321 = vld [vmem:[#allocation5] sm:$0xff]
    %v4322 = vld [vmem:[#allocation5 + $0x8] sm:$0xff]
    %v4323 = vld [vmem:[#allocation5 + $0x10] sm:$0xff]
    %v4324 = vld [vmem:[#allocation5 + $0x18] sm:$0xff]
    %v4325 = vld [vmem:[#allocation5 + $0x20] sm:$0xff]
    %v4326 = vld [vmem:[#allocation5 + $0x28] sm:$0xff]
    %v4327 = vld [vmem:[#allocation5 + $0x30] sm:$0xff]
    %v4328 = vld [vmem:[#allocation5 + $0x38] sm:$0xff]
    %v4329 = vld [vmem:[#allocation5 + $0x40] sm:$0xff]
    %v4330 = vld [vmem:[#allocation5 + $0x48] sm:$0xff]
    %v4331 = vld [vmem:[#allocation5 + $0x50] sm:$0xff]
    %v4332 = vld [vmem:[#allocation5 + $0x58] sm:$0xff]
    %v4333 = vld [vmem:[#allocation5 + $0x60] sm:$0xff]
    %v4334 = vld [vmem:[#allocation5 + $0x68] sm:$0xff]
    %v4335 = vld [vmem:[#allocation5 + $0x70] sm:$0xff]
    %v4336 = vld [vmem:[#allocation5 + $0x78] sm:$0xff]
    %v4337 = vld [vmem:[#allocation5 + $0x80] sm:$0xff]
    %v4338 = vld [vmem:[#allocation5 + $0x88] sm:$0xff]
    %v4339 = vld [vmem:[#allocation5 + $0x90] sm:$0xff]
    %v4340 = vld [vmem:[#allocation5 + $0x98] sm:$0xff]
    %v4341 = vld [vmem:[#allocation5 + $0xa0] sm:$0xff]
    %v4342 = vld [vmem:[#allocation5 + $0xa8] sm:$0xff]
    %v4343 = vld [vmem:[#allocation5 + $0xb0] sm:$0xff]
    %v4344 = vld [vmem:[#allocation5 + $0xb8] sm:$0xff]
    %v4345 = vld [vmem:[#allocation5 + $0xc0] sm:$0xff]
    %v4346 = vld [vmem:[#allocation5 + $0xc8] sm:$0xff]
    %v4347 = vld [vmem:[#allocation5 + $0xd0] sm:$0xff]
    %v4348 = vld [vmem:[#allocation5 + $0xd8] sm:$0xff]
    %v4349 = vld [vmem:[#allocation5 + $0xe0] sm:$0xff]
    %v4350 = vld [vmem:[#allocation5 + $0xe8] sm:$0xff]
    %v4351 = vld [vmem:[#allocation5 + $0xf0] sm:$0xff]
    %v4352 = vld [vmem:[#allocation5 + $0xf8] sm:$0xff]
    %v4385 = vunpack.c.l.b16 %v4321
    %v4386 = vunpack.c.h.b16 %v4321
    %v4387 = vunpack.c.l.b16 %v4322
    %v4388 = vunpack.c.h.b16 %v4322
    %v4389 = vunpack.c.l.b16 %v4323
    %v4390 = vunpack.c.h.b16 %v4323
    %v4391 = vunpack.c.l.b16 %v4324
    %v4392 = vunpack.c.h.b16 %v4324
    %v4393 = vunpack.c.l.b16 %v4325
    %v4394 = vunpack.c.h.b16 %v4325
    %v4395 = vunpack.c.l.b16 %v4326
    %v4396 = vunpack.c.h.b16 %v4326
    %v4397 = vunpack.c.l.b16 %v4327
    %v4398 = vunpack.c.h.b16 %v4327
    %v4399 = vunpack.c.l.b16 %v4328
    %v4400 = vunpack.c.h.b16 %v4328
    %v4401 = vunpack.c.l.b16 %v4329
    %v4402 = vunpack.c.h.b16 %v4329
    %v4403 = vunpack.c.l.b16 %v4330
    %v4404 = vunpack.c.h.b16 %v4330
    %v4405 = vunpack.c.l.b16 %v4331
    %v4406 = vunpack.c.h.b16 %v4331
    %v4407 = vunpack.c.l.b16 %v4332
    %v4408 = vunpack.c.h.b16 %v4332
    %v4409 = vunpack.c.l.b16 %v4333
    %v4410 = vunpack.c.h.b16 %v4333
    %v4411 = vunpack.c.l.b16 %v4334
    %v4412 = vunpack.c.h.b16 %v4334
    %v4413 = vunpack.c.l.b16 %v4335
    %v4414 = vunpack.c.h.b16 %v4335
    %v4415 = vunpack.c.l.b16 %v4336
    %v4416 = vunpack.c.h.b16 %v4336
    %v4417 = vunpack.c.l.b16 %v4337
    %v4418 = vunpack.c.h.b16 %v4337
    %v4419 = vunpack.c.l.b16 %v4338
    %v4420 = vunpack.c.h.b16 %v4338
    %v4421 = vunpack.c.l.b16 %v4339
    %v4422 = vunpack.c.h.b16 %v4339
    %v4423 = vunpack.c.l.b16 %v4340
    %v4424 = vunpack.c.h.b16 %v4340
    %v4425 = vunpack.c.l.b16 %v4341
    %v4426 = vunpack.c.h.b16 %v4341
    %v4427 = vunpack.c.l.b16 %v4342
    %v4428 = vunpack.c.h.b16 %v4342
    %v4429 = vunpack.c.l.b16 %v4343
    %v4430 = vunpack.c.h.b16 %v4343
    %v4431 = vunpack.c.l.b16 %v4344
    %v4432 = vunpack.c.h.b16 %v4344
    %v4433 = vunpack.c.l.b16 %v4345
    %v4434 = vunpack.c.h.b16 %v4345
    %v4435 = vunpack.c.l.b16 %v4346
    %v4436 = vunpack.c.h.b16 %v4346
    %v4437 = vunpack.c.l.b16 %v4347
    %v4438 = vunpack.c.h.b16 %v4347
    %v4439 = vunpack.c.l.b16 %v4348
    %v4440 = vunpack.c.h.b16 %v4348
    %v4441 = vunpack.c.l.b16 %v4349
    %v4442 = vunpack.c.h.b16 %v4349
    %v4443 = vunpack.c.l.b16 %v4350
    %v4444 = vunpack.c.h.b16 %v4350
    %v4445 = vunpack.c.l.b16 %v4351
    %v4446 = vunpack.c.h.b16 %v4351
    %v4447 = vunpack.c.l.b16 %v4352
    %v4448 = vunpack.c.h.b16 %v4352
    %v4449 = vpack.c.b16 %v4389, %v4385
    %v4450 = vpack.c.b16 %v4390, %v4386
    %v4451 = vpack.c.b16 %v4391, %v4387
    %v4452 = vpack.c.b16 %v4392, %v4388
    %v4453 = vpack.c.b16 %v4397, %v4393
    %v4454 = vpack.c.b16 %v4398, %v4394
    %v4455 = vpack.c.b16 %v4399, %v4395
    %v4456 = vpack.c.b16 %v4400, %v4396
    %v4457 = vpack.c.b16 %v4405, %v4401
    %v4458 = vpack.c.b16 %v4406, %v4402
    %v4459 = vpack.c.b16 %v4407, %v4403
    %v4460 = vpack.c.b16 %v4408, %v4404
    %v4461 = vpack.c.b16 %v4413, %v4409
    %v4462 = vpack.c.b16 %v4414, %v4410
    %v4463 = vpack.c.b16 %v4415, %v4411
    %v4464 = vpack.c.b16 %v4416, %v4412
    %v4465 = vpack.c.b16 %v4421, %v4417
    %v4466 = vpack.c.b16 %v4422, %v4418
    %v4467 = vpack.c.b16 %v4423, %v4419
    %v4468 = vpack.c.b16 %v4424, %v4420
    %v4469 = vpack.c.b16 %v4429, %v4425
    %v4470 = vpack.c.b16 %v4430, %v4426
    %v4471 = vpack.c.b16 %v4431, %v4427
    %v4472 = vpack.c.b16 %v4432, %v4428
    %v4473 = vpack.c.b16 %v4437, %v4433
    %v4474 = vpack.c.b16 %v4438, %v4434
    %v4475 = vpack.c.b16 %v4439, %v4435
    %v4476 = vpack.c.b16 %v4440, %v4436
    %v4477 = vpack.c.b16 %v4445, %v4441
    %v4478 = vpack.c.b16 %v4446, %v4442
    %v4479 = vpack.c.b16 %v4447, %v4443
    %v4480 = vpack.c.b16 %v4448, %v4444
    %4513 = vmatprep.subr.bf16.mxu0 %v4450
    %4514 = vmatpush1.bf16.msra.mxu0 %v4449
    %4515 = vmatprep.subr.bf16.mxu0 %v4454
    %4516 = vmatpush1.bf16.msra.mxu0 %v4453
    %4517 = vmatprep.subr.bf16.mxu0 %v4458
    %4518 = vmatpush1.bf16.msra.mxu0 %v4457
    %4519 = vmatprep.subr.bf16.mxu0 %v4462
    %4520 = vmatpush1.bf16.msra.mxu0 %v4461
    %4521 = vmatprep.subr.bf16.mxu0 %v4466
    %4522 = vmatpush1.bf16.msra.mxu0 %v4465
    %4523 = vmatprep.subr.bf16.mxu0 %v4470
    %4524 = vmatpush1.bf16.msra.mxu0 %v4469
    %4525 = vmatprep.subr.bf16.mxu0 %v4474
    %4526 = vmatpush1.bf16.msra.mxu0 %v4473
    %4527 = vmatprep.subr.bf16.mxu0 %v4478
    %4528 = vmatpush1.bf16.msra.mxu0 %v4477
    %4529 = vmatprep.subr.bf16.mxu0 0
    %4530 = vmatpush1.bf16.msra.mxu0 0
    %4531 = vmatprep.subr.bf16.mxu0 0
    %4532 = vmatpush1.bf16.msra.mxu0 0
    %4533 = vmatprep.subr.bf16.mxu0 0
    %4534 = vmatpush1.bf16.msra.mxu0 0
    %4535 = vmatprep.subr.bf16.mxu0 0
    %4536 = vmatpush1.bf16.msra.mxu0 0
    %4537 = vmatprep.subr.bf16.mxu0 0
    %4538 = vmatpush1.bf16.msra.mxu0 0
    %4539 = vmatprep.subr.bf16.mxu0 0
    %4540 = vmatpush1.bf16.msra.mxu0 0
    %4541 = vmatprep.subr.bf16.mxu0 0
    %4542 = vmatpush1.bf16.msra.mxu0 0
    %4543 = vmatprep.subr.bf16.mxu0 0
    %4544 = vmatpush1.bf16.msra.mxu0 0
    %4545 = vmatprep.mubr.bf16.mxu0 0
    %4546 = vmatmul.mubr.bf16.gmra.mrb[0].mxu0 %v4319
    %v4547 = vpop.f32.mrb[0].mxu0
    %v4548 = vadd.f32 %v252, %v4547
    %v4549 = vpop.f32.mrb[0].mxu0
    %v4550 = vadd.f32 %v256, %v4549
    %v4551 = vpop.f32.mrb[0].mxu0
    %v4552 = vadd.f32 %v252, %v4551
    %v4553 = vpop.f32.mrb[0].mxu0
    %v4554 = vadd.f32 %v256, %v4553
    %4555 = vmatprep.mubr.bf16.mxu0 0
    %4556 = vmatmul.mubr.bf16.gmra.mrb[0].mxu0 %v4320
    %v4557 = vpop.f32.mrb[0].mxu0
    %v4558 = vadd.f32 %v252, %v4557
    %v4559 = vpop.f32.mrb[0].mxu0
    %v4560 = vadd.f32 %v256, %v4559
    %v4561 = vpop.f32.mrb[0].mxu0
    %v4562 = vadd.f32 %v252, %v4561
    %v4563 = vpop.f32.mrb[0].mxu0
    %v4564 = vadd.f32 %v256, %v4563
    %4565 = vdwg.mxu0
    %4566 = vmatprep.subr.bf16.mxu0 %v4452
    %4567 = vmatpush1.bf16.msra.mxu0 %v4451
    %4568 = vmatprep.subr.bf16.mxu0 %v4456
    %4569 = vmatpush1.bf16.msra.mxu0 %v4455
    %4570 = vmatprep.subr.bf16.mxu0 %v4460
    %4571 = vmatpush1.bf16.msra.mxu0 %v4459
    %4572 = vmatprep.subr.bf16.mxu0 %v4464
    %4573 = vmatpush1.bf16.msra.mxu0 %v4463
    %4574 = vmatprep.subr.bf16.mxu0 %v4468
    %4575 = vmatpush1.bf16.msra.mxu0 %v4467
    %4576 = vmatprep.subr.bf16.mxu0 %v4472
    %4577 = vmatpush1.bf16.msra.mxu0 %v4471
    %4578 = vmatprep.subr.bf16.mxu0 %v4476
    %4579 = vmatpush1.bf16.msra.mxu0 %v4475
    %4580 = vmatprep.subr.bf16.mxu0 %v4480
    %4581 = vmatpush1.bf16.msra.mxu0 %v4479
    %4582 = vmatprep.subr.bf16.mxu0 0
    %4583 = vmatpush1.bf16.msra.mxu0 0
    %4584 = vmatprep.subr.bf16.mxu0 0
    %4585 = vmatpush1.bf16.msra.mxu0 0
    %4586 = vmatprep.subr.bf16.mxu0 0
    %4587 = vmatpush1.bf16.msra.mxu0 0
    %4588 = vmatprep.subr.bf16.mxu0 0
    %4589 = vmatpush1.bf16.msra.mxu0 0
    %4590 = vmatprep.subr.bf16.mxu0 0
    %4591 = vmatpush1.bf16.msra.mxu0 0
    %4592 = vmatprep.subr.bf16.mxu0 0
    %4593 = vmatpush1.bf16.msra.mxu0 0
    %4594 = vmatprep.subr.bf16.mxu0 0
    %4595 = vmatpush1.bf16.msra.mxu0 0
    %4596 = vmatprep.subr.bf16.mxu0 0
    %4597 = vmatpush1.bf16.msra.mxu0 0
    %4598 = vmatprep.mubr.bf16.mxu0 0
    %4599 = vmatmul.mubr.bf16.gmra.mrb[0].mxu0 %v4319
    %v4600 = vpop.f32.mrb[0].mxu0
    %v4601 = vadd.f32 %v260, %v4600
    %v4602 = vpop.f32.mrb[0].mxu0
    %v4603 = vadd.f32 %v264, %v4602
    %v4604 = vpop.f32.mrb[0].mxu0
    %v4605 = vadd.f32 %v260, %v4604
    %v4606 = vpop.f32.mrb[0].mxu0
    %v4607 = vadd.f32 %v264, %v4606
    %4608 = vmatprep.mubr.bf16.mxu0 0
    %4609 = vmatmul.mubr.bf16.gmra.mrb[0].mxu0 %v4320
    %v4610 = vpop.f32.mrb[0].mxu0
    %v4611 = vadd.f32 %v260, %v4610
    %v4612 = vpop.f32.mrb[0].mxu0
    %v4613 = vadd.f32 %v264, %v4612
    %v4614 = vpop.f32.mrb[0].mxu0
    %v4615 = vadd.f32 %v260, %v4614
    %v4616 = vpop.f32.mrb[0].mxu0
    %v4617 = vadd.f32 %v264, %v4616
    %4618 = vdwg.mxu0
    %v4619 = vmul.f32 %v539, %v4203
    %v4620 = vmul.f32 %v543, %v4204
    %v4621 = vmul.f32 %v547, %v4205
    %v4622 = vmul.f32 %v551, %v4206
    %v4623 = vmul.f32 %v539, %v4207
    %v4624 = vmul.f32 %v543, %v4208
    %v4625 = vmul.f32 %v547, %v4209
    %v4626 = vmul.f32 %v551, %v4210
    %v4627 = vmul.f32 %v539, %v4211
    %v4628 = vmul.f32 %v543, %v4212
    %v4629 = vmul.f32 %v547, %v4213
    %v4630 = vmul.f32 %v551, %v4214
    %v4631 = vmul.f32 %v539, %v4215
    %v4632 = vmul.f32 %v543, %v4216
    %v4633 = vmul.f32 %v547, %v4217
    %v4634 = vmul.f32 %v551, %v4218
    %v4635 = vmul.f32 %v576, %v4548
    %v4636 = vmul.f32 %v580, %v4550
    %v4637 = vmul.f32 %v584, %v4601
    %v4638 = vmul.f32 %v588, %v4603
    %v4639 = vmul.f32 %v576, %v4552
    %v4640 = vmul.f32 %v580, %v4554
    %v4641 = vmul.f32 %v584, %v4605
    %v4642 = vmul.f32 %v588, %v4607
    %v4643 = vmul.f32 %v576, %v4558
    %v4644 = vmul.f32 %v580, %v4560
    %v4645 = vmul.f32 %v584, %v4611
    %v4646 = vmul.f32 %v588, %v4613
    %v4647 = vmul.f32 %v576, %v4562
    %v4648 = vmul.f32 %v580, %v4564
    %v4649 = vmul.f32 %v584, %v4615
    %v4650 = vmul.f32 %v588, %v4617
    %v4651 = vadd.f32 %v4619, %v4635
    %v4652 = vadd.f32 %v4620, %v4636
    %v4653 = vadd.f32 %v4621, %v4637
    %v4654 = vadd.f32 %v4622, %v4638
    %v4655 = vadd.f32 %v4623, %v4639
    %v4656 = vadd.f32 %v4624, %v4640
    %v4657 = vadd.f32 %v4625, %v4641
    %v4658 = vadd.f32 %v4626, %v4642
    %v4659 = vadd.f32 %v4627, %v4643
    %v4660 = vadd.f32 %v4628, %v4644
    %v4661 = vadd.f32 %v4629, %v4645
    %v4662 = vadd.f32 %v4630, %v4646
    %v4663 = vadd.f32 %v4631, %v4647
    %v4664 = vadd.f32 %v4632, %v4648
    %v4665 = vadd.f32 %v4633, %v4649
    %v4666 = vadd.f32 %v4634, %v4650
    %v4667 = vadd.f32 %v4651, %v4652
    %v4668 = vadd.f32 %v4655, %v4656
    %v4669 = vadd.f32 %v4659, %v4660
    %v4670 = vadd.f32 %v4663, %v4664
    %v4671 = vadd.f32 %v4667, %v4653
    %v4672 = vadd.f32 %v4668, %v4657
    %v4673 = vadd.f32 %v4669, %v4661
    %v4674 = vadd.f32 %v4670, %v4665
    %v4675 = vadd.f32 %v4671, %v4654
    %v4676 = vadd.f32 %v4672, %v4658
    %v4677 = vadd.f32 %v4673, %v4662
    %v4678 = vadd.f32 %v4674, %v4666
    %v4679 = vld [vmem:[%s4 + $0x9] sm:$0x1]
    %vm4680 = vcmp.gt.f32.partialorder %v4679, 0.0
    %v4681 = vmul.f32 %v4259, %v642
    %v4682 = vmul.f32 %v4260, %v642
    %v4683 = vmul.f32 %v4261, %v642
    %v4684 = vmul.f32 %v4262, %v642
    %v4685 = vmul.f32 %v650, %v4675
    %v4686 = vmul.f32 %v650, %v4676
    %v4687 = vmul.f32 %v650, %v4677
    %v4688 = vmul.f32 %v650, %v4678
    %v4689 = vadd.f32 %v4681, %v4685
    %v4690 = vadd.f32 %v4682, %v4686
    %v4691 = vadd.f32 %v4683, %v4687
    %v4692 = vadd.f32 %v4684, %v4688
    %v4693 = vmul.f32 %v662, %v4271
    %v4694 = vmul.f32 %v662, %v4272
    %v4695 = vmul.f32 %v662, %v4273
    %v4696 = vmul.f32 %v662, %v4274
    %v4697 = vsub.f32 %v4689, %v4693
    %v4698 = vsub.f32 %v4690, %v4694
    %v4699 = vsub.f32 %v4691, %v4695
    %v4700 = vsub.f32 %v4692, %v4696
    %v4701 = vsel %vm4680, 1, 0
    %v4702 = vlaneseq
    %v4703 = vshrl.u32 %v4702, 7
    %v4704 = vsub.s32 0, %v4703
    %v4705 = vrot.slane %v4701, %v4704
    %vm4706 = vcmp.eq.s32.totalorder %v4705, 1
    %v4707 = vsel %vm4706, %v4697, %v4259
    %v4708 = vsel %vm4706, %v4698, %v4260
    %v4709 = vsel %vm4706, %v4699, %v4261
    %v4710 = vsel %vm4706, %v4700, %v4262
    %vm4711 = vcmp.gt.f32.partialorder %v4707, %v662
    %vm4712 = vcmp.gt.f32.partialorder %v4708, %v662
    %vm4713 = vcmp.gt.f32.partialorder %v4709, %v662
    %vm4714 = vcmp.gt.f32.partialorder %v4710, %v662
    %vm4715 = vmand %vm4711, %vm4706
    %vm4716 = vmand %vm4712, %vm4706
    %vm4717 = vmand %vm4713, %vm4706
    %vm4718 = vmand %vm4714, %vm4706
    %v4719 = vsel %vm4715, 1.0, 0.0
    %v4720 = vsel %vm4716, 1.0, 0.0
    %v4721 = vsel %vm4717, 1.0, 0.0
    %v4722 = vsel %vm4718, 1.0, 0.0
    %v4723 = vpack.c.bf16 %v4708, %v4707
    %v4724 = vpack.c.bf16 %v4710, %v4709
    %v4727 = vunpack.c.l.b16 %v4723
    %v4728 = vunpack.c.h.b16 %v4723
    %v4729 = vunpack.c.l.b16 %v4724
    %v4730 = vunpack.c.h.b16 %v4724
    %v4731 = vpack.c.b16 %v4727, %v4727
    %v4732 = vpack.c.b16 %v4728, %v4728
    %v4733 = vpack.c.b16 %v4729, %v4729
    %v4734 = vpack.c.b16 %v4730, %v4730
    %s4739 = scalar_lea.vmem [#allocation14], 144
    %4740 = vst [vmem:[%s4739] sm:$0xf] %v4731
    %4741 = vst [vmem:[%s4739 + $0x4] sm:$0xf] %v4732
    %4742 = vst [vmem:[%s4739 + $0x8] sm:$0xf] %v4733
    %4743 = vst [vmem:[%s4739 + $0xc] sm:$0xf] %v4734
    %v4744 = vpack.c.bf16 %v4720, %v4719
    %v4745 = vpack.c.bf16 %v4722, %v4721
    %v4748 = vunpack.c.l.b16 %v4744
    %v4749 = vunpack.c.h.b16 %v4744
    %v4750 = vunpack.c.l.b16 %v4745
    %v4751 = vunpack.c.h.b16 %v4745
    %v4752 = vpack.c.b16 %v4748, %v4748
    %v4753 = vpack.c.b16 %v4749, %v4749
    %v4754 = vpack.c.b16 %v4750, %v4750
    %v4755 = vpack.c.b16 %v4751, %v4751
    %s4760 = scalar_lea.vmem [#allocation15], 144
    %4761 = vst [vmem:[%s4760] sm:$0xf] %v4752
    %4762 = vst [vmem:[%s4760 + $0x4] sm:$0xf] %v4753
    %4763 = vst [vmem:[%s4760 + $0x8] sm:$0xf] %v4754
    %4764 = vst [vmem:[%s4760 + $0xc] sm:$0xf] %v4755
    %s4765 = scalar_lea.vmem [#allocation2], 80
    %v4766 = vld [vmem:[%s4765] sm:$0xff]
    %v4767 = vunpack.c.l.s8.bf16 %v4766
    %v4768 = vunpack.c.h.s8.bf16 %v4766
    %v4769 = vld [vmem:[#allocation5] sm:$0xff]
    %v4770 = vld [vmem:[#allocation5 + $0x8] sm:$0xff]
    %v4771 = vld [vmem:[#allocation5 + $0x10] sm:$0xff]
    %v4772 = vld [vmem:[#allocation5 + $0x18] sm:$0xff]
    %v4773 = vld [vmem:[#allocation5 + $0x20] sm:$0xff]
    %v4774 = vld [vmem:[#allocation5 + $0x28] sm:$0xff]
    %v4775 = vld [vmem:[#allocation5 + $0x30] sm:$0xff]
    %v4776 = vld [vmem:[#allocation5 + $0x38] sm:$0xff]
    %v4777 = vld [vmem:[#allocation5 + $0x40] sm:$0xff]
    %v4778 = vld [vmem:[#allocation5 + $0x48] sm:$0xff]
    %v4779 = vld [vmem:[#allocation5 + $0x50] sm:$0xff]
    %v4780 = vld [vmem:[#allocation5 + $0x58] sm:$0xff]
    %v4781 = vld [vmem:[#allocation5 + $0x60] sm:$0xff]
    %v4782 = vld [vmem:[#allocation5 + $0x68] sm:$0xff]
    %v4783 = vld [vmem:[#allocation5 + $0x70] sm:$0xff]
    %v4784 = vld [vmem:[#allocation5 + $0x78] sm:$0xff]
    %v4785 = vld [vmem:[#allocation5 + $0x80] sm:$0xff]
    %v4786 = vld [vmem:[#allocation5 + $0x88] sm:$0xff]
    %v4787 = vld [vmem:[#allocation5 + $0x90] sm:$0xff]
    %v4788 = vld [vmem:[#allocation5 + $0x98] sm:$0xff]
    %v4789 = vld [vmem:[#allocation5 + $0xa0] sm:$0xff]
    %v4790 = vld [vmem:[#allocation5 + $0xa8] sm:$0xff]
    %v4791 = vld [vmem:[#allocation5 + $0xb0] sm:$0xff]
    %v4792 = vld [vmem:[#allocation5 + $0xb8] sm:$0xff]
    %v4793 = vld [vmem:[#allocation5 + $0xc0] sm:$0xff]
    %v4794 = vld [vmem:[#allocation5 + $0xc8] sm:$0xff]
    %v4795 = vld [vmem:[#allocation5 + $0xd0] sm:$0xff]
    %v4796 = vld [vmem:[#allocation5 + $0xd8] sm:$0xff]
    %v4797 = vld [vmem:[#allocation5 + $0xe0] sm:$0xff]
    %v4798 = vld [vmem:[#allocation5 + $0xe8] sm:$0xff]
    %v4799 = vld [vmem:[#allocation5 + $0xf0] sm:$0xff]
    %v4800 = vld [vmem:[#allocation5 + $0xf8] sm:$0xff]
    %v4833 = vunpack.c.l.b16 %v4769
    %v4834 = vunpack.c.h.b16 %v4769
    %v4835 = vunpack.c.l.b16 %v4770
    %v4836 = vunpack.c.h.b16 %v4770
    %v4837 = vunpack.c.l.b16 %v4771
    %v4838 = vunpack.c.h.b16 %v4771
    %v4839 = vunpack.c.l.b16 %v4772
    %v4840 = vunpack.c.h.b16 %v4772
    %v4841 = vunpack.c.l.b16 %v4773
    %v4842 = vunpack.c.h.b16 %v4773
    %v4843 = vunpack.c.l.b16 %v4774
    %v4844 = vunpack.c.h.b16 %v4774
    %v4845 = vunpack.c.l.b16 %v4775
    %v4846 = vunpack.c.h.b16 %v4775
    %v4847 = vunpack.c.l.b16 %v4776
    %v4848 = vunpack.c.h.b16 %v4776
    %v4849 = vunpack.c.l.b16 %v4777
    %v4850 = vunpack.c.h.b16 %v4777
    %v4851 = vunpack.c.l.b16 %v4778
    %v4852 = vunpack.c.h.b16 %v4778
    %v4853 = vunpack.c.l.b16 %v4779
    %v4854 = vunpack.c.h.b16 %v4779
    %v4855 = vunpack.c.l.b16 %v4780
    %v4856 = vunpack.c.h.b16 %v4780
    %v4857 = vunpack.c.l.b16 %v4781
    %v4858 = vunpack.c.h.b16 %v4781
    %v4859 = vunpack.c.l.b16 %v4782
    %v4860 = vunpack.c.h.b16 %v4782
    %v4861 = vunpack.c.l.b16 %v4783
    %v4862 = vunpack.c.h.b16 %v4783
    %v4863 = vunpack.c.l.b16 %v4784
    %v4864 = vunpack.c.h.b16 %v4784
    %v4865 = vunpack.c.l.b16 %v4785
    %v4866 = vunpack.c.h.b16 %v4785
    %v4867 = vunpack.c.l.b16 %v4786
    %v4868 = vunpack.c.h.b16 %v4786
    %v4869 = vunpack.c.l.b16 %v4787
    %v4870 = vunpack.c.h.b16 %v4787
    %v4871 = vunpack.c.l.b16 %v4788
    %v4872 = vunpack.c.h.b16 %v4788
    %v4873 = vunpack.c.l.b16 %v4789
    %v4874 = vunpack.c.h.b16 %v4789
    %v4875 = vunpack.c.l.b16 %v4790
    %v4876 = vunpack.c.h.b16 %v4790
    %v4877 = vunpack.c.l.b16 %v4791
    %v4878 = vunpack.c.h.b16 %v4791
    %v4879 = vunpack.c.l.b16 %v4792
    %v4880 = vunpack.c.h.b16 %v4792
    %v4881 = vunpack.c.l.b16 %v4793
    %v4882 = vunpack.c.h.b16 %v4793
    %v4883 = vunpack.c.l.b16 %v4794
    %v4884 = vunpack.c.h.b16 %v4794
    %v4885 = vunpack.c.l.b16 %v4795
    %v4886 = vunpack.c.h.b16 %v4795
    %v4887 = vunpack.c.l.b16 %v4796
    %v4888 = vunpack.c.h.b16 %v4796
    %v4889 = vunpack.c.l.b16 %v4797
    %v4890 = vunpack.c.h.b16 %v4797
    %v4891 = vunpack.c.l.b16 %v4798
    %v4892 = vunpack.c.h.b16 %v4798
    %v4893 = vunpack.c.l.b16 %v4799
    %v4894 = vunpack.c.h.b16 %v4799
    %v4895 = vunpack.c.l.b16 %v4800
    %v4896 = vunpack.c.h.b16 %v4800
    %v4897 = vpack.c.b16 %v4837, %v4833
    %v4898 = vpack.c.b16 %v4838, %v4834
    %v4899 = vpack.c.b16 %v4839, %v4835
    %v4900 = vpack.c.b16 %v4840, %v4836
    %v4901 = vpack.c.b16 %v4845, %v4841
    %v4902 = vpack.c.b16 %v4846, %v4842
    %v4903 = vpack.c.b16 %v4847, %v4843
    %v4904 = vpack.c.b16 %v4848, %v4844
    %v4905 = vpack.c.b16 %v4853, %v4849
    %v4906 = vpack.c.b16 %v4854, %v4850
    %v4907 = vpack.c.b16 %v4855, %v4851
    %v4908 = vpack.c.b16 %v4856, %v4852
    %v4909 = vpack.c.b16 %v4861, %v4857
    %v4910 = vpack.c.b16 %v4862, %v4858
    %v4911 = vpack.c.b16 %v4863, %v4859
    %v4912 = vpack.c.b16 %v4864, %v4860
    %v4913 = vpack.c.b16 %v4869, %v4865
    %v4914 = vpack.c.b16 %v4870, %v4866
    %v4915 = vpack.c.b16 %v4871, %v4867
    %v4916 = vpack.c.b16 %v4872, %v4868
    %v4917 = vpack.c.b16 %v4877, %v4873
    %v4918 = vpack.c.b16 %v4878, %v4874
    %v4919 = vpack.c.b16 %v4879, %v4875
    %v4920 = vpack.c.b16 %v4880, %v4876
    %v4921 = vpack.c.b16 %v4885, %v4881
    %v4922 = vpack.c.b16 %v4886, %v4882
    %v4923 = vpack.c.b16 %v4887, %v4883
    %v4924 = vpack.c.b16 %v4888, %v4884
    %v4925 = vpack.c.b16 %v4893, %v4889
    %v4926 = vpack.c.b16 %v4894, %v4890
    %v4927 = vpack.c.b16 %v4895, %v4891
    %v4928 = vpack.c.b16 %v4896, %v4892
    %4961 = vmatprep.subr.bf16.mxu0 %v4898
    %4962 = vmatpush1.bf16.msra.mxu0 %v4897
    %4963 = vmatprep.subr.bf16.mxu0 %v4902
    %4964 = vmatpush1.bf16.msra.mxu0 %v4901
    %4965 = vmatprep.subr.bf16.mxu0 %v4906
    %4966 = vmatpush1.bf16.msra.mxu0 %v4905
    %4967 = vmatprep.subr.bf16.mxu0 %v4910
    %4968 = vmatpush1.bf16.msra.mxu0 %v4909
    %4969 = vmatprep.subr.bf16.mxu0 %v4914
    %4970 = vmatpush1.bf16.msra.mxu0 %v4913
    %4971 = vmatprep.subr.bf16.mxu0 %v4918
    %4972 = vmatpush1.bf16.msra.mxu0 %v4917
    %4973 = vmatprep.subr.bf16.mxu0 %v4922
    %4974 = vmatpush1.bf16.msra.mxu0 %v4921
    %4975 = vmatprep.subr.bf16.mxu0 %v4926
    %4976 = vmatpush1.bf16.msra.mxu0 %v4925
    %4977 = vmatprep.subr.bf16.mxu0 0
    %4978 = vmatpush1.bf16.msra.mxu0 0
    %4979 = vmatprep.subr.bf16.mxu0 0
    %4980 = vmatpush1.bf16.msra.mxu0 0
    %4981 = vmatprep.subr.bf16.mxu0 0
    %4982 = vmatpush1.bf16.msra.mxu0 0
    %4983 = vmatprep.subr.bf16.mxu0 0
    %4984 = vmatpush1.bf16.msra.mxu0 0
    %4985 = vmatprep.subr.bf16.mxu0 0
    %4986 = vmatpush1.bf16.msra.mxu0 0
    %4987 = vmatprep.subr.bf16.mxu0 0
    %4988 = vmatpush1.bf16.msra.mxu0 0
    %4989 = vmatprep.subr.bf16.mxu0 0
    %4990 = vmatpush1.bf16.msra.mxu0 0
    %4991 = vmatprep.subr.bf16.mxu0 0
    %4992 = vmatpush1.bf16.msra.mxu0 0
    %4993 = vmatprep.mubr.bf16.mxu0 0
    %4994 = vmatmul.mubr.bf16.gmra.mrb[0].mxu0 %v4767
    %v4995 = vpop.f32.mrb[0].mxu0
    %v4996 = vadd.f32 %v252, %v4995
    %v4997 = vpop.f32.mrb[0].mxu0
    %v4998 = vadd.f32 %v256, %v4997
    %v4999 = vpop.f32.mrb[0].mxu0
    %v5000 = vadd.f32 %v252, %v4999
    %v5001 = vpop.f32.mrb[0].mxu0
    %v5002 = vadd.f32 %v256, %v5001
    %5003 = vmatprep.mubr.bf16.mxu0 0
    %5004 = vmatmul.mubr.bf16.gmra.mrb[0].mxu0 %v4768
    %v5005 = vpop.f32.mrb[0].mxu0
    %v5006 = vadd.f32 %v252, %v5005
    %v5007 = vpop.f32.mrb[0].mxu0
    %v5008 = vadd.f32 %v256, %v5007
    %v5009 = vpop.f32.mrb[0].mxu0
    %v5010 = vadd.f32 %v252, %v5009
    %v5011 = vpop.f32.mrb[0].mxu0
    %v5012 = vadd.f32 %v256, %v5011
    %5013 = vdwg.mxu0
    %5014 = vmatprep.subr.bf16.mxu0 %v4900
    %5015 = vmatpush1.bf16.msra.mxu0 %v4899
    %5016 = vmatprep.subr.bf16.mxu0 %v4904
    %5017 = vmatpush1.bf16.msra.mxu0 %v4903
    %5018 = vmatprep.subr.bf16.mxu0 %v4908
    %5019 = vmatpush1.bf16.msra.mxu0 %v4907
    %5020 = vmatprep.subr.bf16.mxu0 %v4912
    %5021 = vmatpush1.bf16.msra.mxu0 %v4911
    %5022 = vmatprep.subr.bf16.mxu0 %v4916
    %5023 = vmatpush1.bf16.msra.mxu0 %v4915
    %5024 = vmatprep.subr.bf16.mxu0 %v4920
    %5025 = vmatpush1.bf16.msra.mxu0 %v4919
    %5026 = vmatprep.subr.bf16.mxu0 %v4924
    %5027 = vmatpush1.bf16.msra.mxu0 %v4923
    %5028 = vmatprep.subr.bf16.mxu0 %v4928
    %5029 = vmatpush1.bf16.msra.mxu0 %v4927
    %5030 = vmatprep.subr.bf16.mxu0 0
    %5031 = vmatpush1.bf16.msra.mxu0 0
    %5032 = vmatprep.subr.bf16.mxu0 0
    %5033 = vmatpush1.bf16.msra.mxu0 0
    %5034 = vmatprep.subr.bf16.mxu0 0
    %5035 = vmatpush1.bf16.msra.mxu0 0
    %5036 = vmatprep.subr.bf16.mxu0 0
    %5037 = vmatpush1.bf16.msra.mxu0 0
    %5038 = vmatprep.subr.bf16.mxu0 0
    %5039 = vmatpush1.bf16.msra.mxu0 0
    %5040 = vmatprep.subr.bf16.mxu0 0
    %5041 = vmatpush1.bf16.msra.mxu0 0
    %5042 = vmatprep.subr.bf16.mxu0 0
    %5043 = vmatpush1.bf16.msra.mxu0 0
    %5044 = vmatprep.subr.bf16.mxu0 0
    %5045 = vmatpush1.bf16.msra.mxu0 0
    %5046 = vmatprep.mubr.bf16.mxu0 0
    %5047 = vmatmul.mubr.bf16.gmra.mrb[0].mxu0 %v4767
    %v5048 = vpop.f32.mrb[0].mxu0
    %v5049 = vadd.f32 %v260, %v5048
    %v5050 = vpop.f32.mrb[0].mxu0
    %v5051 = vadd.f32 %v264, %v5050
    %v5052 = vpop.f32.mrb[0].mxu0
    %v5053 = vadd.f32 %v260, %v5052
    %v5054 = vpop.f32.mrb[0].mxu0
    %v5055 = vadd.f32 %v264, %v5054
    %5056 = vmatprep.mubr.bf16.mxu0 0
    %5057 = vmatmul.mubr.bf16.gmra.mrb[0].mxu0 %v4768
    %v5058 = vpop.f32.mrb[0].mxu0
    %v5059 = vadd.f32 %v260, %v5058
    %v5060 = vpop.f32.mrb[0].mxu0
    %v5061 = vadd.f32 %v264, %v5060
    %v5062 = vpop.f32.mrb[0].mxu0
    %v5063 = vadd.f32 %v260, %v5062
    %v5064 = vpop.f32.mrb[0].mxu0
    %v5065 = vadd.f32 %v264, %v5064
    %5066 = vdwg.mxu0
    %v5067 = vmul.f32 %v539, %v4651
    %v5068 = vmul.f32 %v543, %v4652
    %v5069 = vmul.f32 %v547, %v4653
    %v5070 = vmul.f32 %v551, %v4654
    %v5071 = vmul.f32 %v539, %v4655
    %v5072 = vmul.f32 %v543, %v4656
    %v5073 = vmul.f32 %v547, %v4657
    %v5074 = vmul.f32 %v551, %v4658
    %v5075 = vmul.f32 %v539, %v4659
    %v5076 = vmul.f32 %v543, %v4660
    %v5077 = vmul.f32 %v547, %v4661
    %v5078 = vmul.f32 %v551, %v4662
    %v5079 = vmul.f32 %v539, %v4663
    %v5080 = vmul.f32 %v543, %v4664
    %v5081 = vmul.f32 %v547, %v4665
    %v5082 = vmul.f32 %v551, %v4666
    %v5083 = vmul.f32 %v576, %v4996
    %v5084 = vmul.f32 %v580, %v4998
    %v5085 = vmul.f32 %v584, %v5049
    %v5086 = vmul.f32 %v588, %v5051
    %v5087 = vmul.f32 %v576, %v5000
    %v5088 = vmul.f32 %v580, %v5002
    %v5089 = vmul.f32 %v584, %v5053
    %v5090 = vmul.f32 %v588, %v5055
    %v5091 = vmul.f32 %v576, %v5006
    %v5092 = vmul.f32 %v580, %v5008
    %v5093 = vmul.f32 %v584, %v5059
    %v5094 = vmul.f32 %v588, %v5061
    %v5095 = vmul.f32 %v576, %v5010
    %v5096 = vmul.f32 %v580, %v5012
    %v5097 = vmul.f32 %v584, %v5063
    %v5098 = vmul.f32 %v588, %v5065
    %v5099 = vadd.f32 %v5067, %v5083
    %v5100 = vadd.f32 %v5068, %v5084
    %v5101 = vadd.f32 %v5069, %v5085
    %v5102 = vadd.f32 %v5070, %v5086
    %v5103 = vadd.f32 %v5071, %v5087
    %v5104 = vadd.f32 %v5072, %v5088
    %v5105 = vadd.f32 %v5073, %v5089
    %v5106 = vadd.f32 %v5074, %v5090
    %v5107 = vadd.f32 %v5075, %v5091
    %v5108 = vadd.f32 %v5076, %v5092
    %v5109 = vadd.f32 %v5077, %v5093
    %v5110 = vadd.f32 %v5078, %v5094
    %v5111 = vadd.f32 %v5079, %v5095
    %v5112 = vadd.f32 %v5080, %v5096
    %v5113 = vadd.f32 %v5081, %v5097
    %v5114 = vadd.f32 %v5082, %v5098
    %v5115 = vadd.f32 %v5099, %v5100
    %v5116 = vadd.f32 %v5103, %v5104
    %v5117 = vadd.f32 %v5107, %v5108
    %v5118 = vadd.f32 %v5111, %v5112
    %v5119 = vadd.f32 %v5115, %v5101
    %v5120 = vadd.f32 %v5116, %v5105
    %v5121 = vadd.f32 %v5117, %v5109
    %v5122 = vadd.f32 %v5118, %v5113
    %v5123 = vadd.f32 %v5119, %v5102
    %v5124 = vadd.f32 %v5120, %v5106
    %v5125 = vadd.f32 %v5121, %v5110
    %v5126 = vadd.f32 %v5122, %v5114
    %v5127 = vld [vmem:[%s4 + $0xa] sm:$0x1]
    %vm5128 = vcmp.gt.f32.partialorder %v5127, 0.0
    %v5129 = vmul.f32 %v4707, %v642
    %v5130 = vmul.f32 %v4708, %v642
    %v5131 = vmul.f32 %v4709, %v642
    %v5132 = vmul.f32 %v4710, %v642
    %v5133 = vmul.f32 %v650, %v5123
    %v5134 = vmul.f32 %v650, %v5124
    %v5135 = vmul.f32 %v650, %v5125
    %v5136 = vmul.f32 %v650, %v5126
    %v5137 = vadd.f32 %v5129, %v5133
    %v5138 = vadd.f32 %v5130, %v5134
    %v5139 = vadd.f32 %v5131, %v5135
    %v5140 = vadd.f32 %v5132, %v5136
    %v5141 = vmul.f32 %v662, %v4719
    %v5142 = vmul.f32 %v662, %v4720
    %v5143 = vmul.f32 %v662, %v4721
    %v5144 = vmul.f32 %v662, %v4722
    %v5145 = vsub.f32 %v5137, %v5141
    %v5146 = vsub.f32 %v5138, %v5142
    %v5147 = vsub.f32 %v5139, %v5143
    %v5148 = vsub.f32 %v5140, %v5144
    %v5149 = vsel %vm5128, 1, 0
    %v5150 = vlaneseq
    %v5151 = vshrl.u32 %v5150, 7
    %v5152 = vsub.s32 0, %v5151
    %v5153 = vrot.slane %v5149, %v5152
    %vm5154 = vcmp.eq.s32.totalorder %v5153, 1
    %v5155 = vsel %vm5154, %v5145, %v4707
    %v5156 = vsel %vm5154, %v5146, %v4708
    %v5157 = vsel %vm5154, %v5147, %v4709
    %v5158 = vsel %vm5154, %v5148, %v4710
    %vm5159 = vcmp.gt.f32.partialorder %v5155, %v662
    %vm5160 = vcmp.gt.f32.partialorder %v5156, %v662
    %vm5161 = vcmp.gt.f32.partialorder %v5157, %v662
    %vm5162 = vcmp.gt.f32.partialorder %v5158, %v662
    %vm5163 = vmand %vm5159, %vm5154
    %vm5164 = vmand %vm5160, %vm5154
    %vm5165 = vmand %vm5161, %vm5154
    %vm5166 = vmand %vm5162, %vm5154
    %v5167 = vsel %vm5163, 1.0, 0.0
    %v5168 = vsel %vm5164, 1.0, 0.0
    %v5169 = vsel %vm5165, 1.0, 0.0
    %v5170 = vsel %vm5166, 1.0, 0.0
    %v5171 = vpack.c.bf16 %v5156, %v5155
    %v5172 = vpack.c.bf16 %v5158, %v5157
    %v5175 = vunpack.c.l.b16 %v5171
    %v5176 = vunpack.c.h.b16 %v5171
    %v5177 = vunpack.c.l.b16 %v5172
    %v5178 = vunpack.c.h.b16 %v5172
    %v5179 = vpack.c.b16 %v5175, %v5175
    %v5180 = vpack.c.b16 %v5176, %v5176
    %v5181 = vpack.c.b16 %v5177, %v5177
    %v5182 = vpack.c.b16 %v5178, %v5178
    %s5187 = scalar_lea.vmem [#allocation14], 160
    %5188 = vst [vmem:[%s5187] sm:$0xf] %v5179
    %5189 = vst [vmem:[%s5187 + $0x4] sm:$0xf] %v5180
    %5190 = vst [vmem:[%s5187 + $0x8] sm:$0xf] %v5181
    %5191 = vst [vmem:[%s5187 + $0xc] sm:$0xf] %v5182
    %v5192 = vpack.c.bf16 %v5168, %v5167
    %v5193 = vpack.c.bf16 %v5170, %v5169
    %v5196 = vunpack.c.l.b16 %v5192
    %v5197 = vunpack.c.h.b16 %v5192
    %v5198 = vunpack.c.l.b16 %v5193
    %v5199 = vunpack.c.h.b16 %v5193
    %v5200 = vpack.c.b16 %v5196, %v5196
    %v5201 = vpack.c.b16 %v5197, %v5197
    %v5202 = vpack.c.b16 %v5198, %v5198
    %v5203 = vpack.c.b16 %v5199, %v5199
    %s5208 = scalar_lea.vmem [#allocation15], 160
    %5209 = vst [vmem:[%s5208] sm:$0xf] %v5200
    %5210 = vst [vmem:[%s5208 + $0x4] sm:$0xf] %v5201
    %5211 = vst [vmem:[%s5208 + $0x8] sm:$0xf] %v5202
    %5212 = vst [vmem:[%s5208 + $0xc] sm:$0xf] %v5203
    %s5213 = scalar_lea.vmem [#allocation2], 88
    %v5214 = vld [vmem:[%s5213] sm:$0xff]
    %v5215 = vunpack.c.l.s8.bf16 %v5214
    %v5216 = vunpack.c.h.s8.bf16 %v5214
    %v5217 = vld [vmem:[#allocation5] sm:$0xff]
    %v5218 = vld [vmem:[#allocation5 + $0x8] sm:$0xff]
    %v5219 = vld [vmem:[#allocation5 + $0x10] sm:$0xff]
    %v5220 = vld [vmem:[#allocation5 + $0x18] sm:$0xff]
    %v5221 = vld [vmem:[#allocation5 + $0x20] sm:$0xff]
    %v5222 = vld [vmem:[#allocation5 + $0x28] sm:$0xff]
    %v5223 = vld [vmem:[#allocation5 + $0x30] sm:$0xff]
    %v5224 = vld [vmem:[#allocation5 + $0x38] sm:$0xff]
    %v5225 = vld [vmem:[#allocation5 + $0x40] sm:$0xff]
    %v5226 = vld [vmem:[#allocation5 + $0x48] sm:$0xff]
    %v5227 = vld [vmem:[#allocation5 + $0x50] sm:$0xff]
    %v5228 = vld [vmem:[#allocation5 + $0x58] sm:$0xff]
    %v5229 = vld [vmem:[#allocation5 + $0x60] sm:$0xff]
    %v5230 = vld [vmem:[#allocation5 + $0x68] sm:$0xff]
    %v5231 = vld [vmem:[#allocation5 + $0x70] sm:$0xff]
    %v5232 = vld [vmem:[#allocation5 + $0x78] sm:$0xff]
    %v5233 = vld [vmem:[#allocation5 + $0x80] sm:$0xff]
    %v5234 = vld [vmem:[#allocation5 + $0x88] sm:$0xff]
    %v5235 = vld [vmem:[#allocation5 + $0x90] sm:$0xff]
    %v5236 = vld [vmem:[#allocation5 + $0x98] sm:$0xff]
    %v5237 = vld [vmem:[#allocation5 + $0xa0] sm:$0xff]
    %v5238 = vld [vmem:[#allocation5 + $0xa8] sm:$0xff]
    %v5239 = vld [vmem:[#allocation5 + $0xb0] sm:$0xff]
    %v5240 = vld [vmem:[#allocation5 + $0xb8] sm:$0xff]
    %v5241 = vld [vmem:[#allocation5 + $0xc0] sm:$0xff]
    %v5242 = vld [vmem:[#allocation5 + $0xc8] sm:$0xff]
    %v5243 = vld [vmem:[#allocation5 + $0xd0] sm:$0xff]
    %v5244 = vld [vmem:[#allocation5 + $0xd8] sm:$0xff]
    %v5245 = vld [vmem:[#allocation5 + $0xe0] sm:$0xff]
    %v5246 = vld [vmem:[#allocation5 + $0xe8] sm:$0xff]
    %v5247 = vld [vmem:[#allocation5 + $0xf0] sm:$0xff]
    %v5248 = vld [vmem:[#allocation5 + $0xf8] sm:$0xff]
    %v5281 = vunpack.c.l.b16 %v5217
    %v5282 = vunpack.c.h.b16 %v5217
    %v5283 = vunpack.c.l.b16 %v5218
    %v5284 = vunpack.c.h.b16 %v5218
    %v5285 = vunpack.c.l.b16 %v5219
    %v5286 = vunpack.c.h.b16 %v5219
    %v5287 = vunpack.c.l.b16 %v5220
    %v5288 = vunpack.c.h.b16 %v5220
    %v5289 = vunpack.c.l.b16 %v5221
    %v5290 = vunpack.c.h.b16 %v5221
    %v5291 = vunpack.c.l.b16 %v5222
    %v5292 = vunpack.c.h.b16 %v5222
    %v5293 = vunpack.c.l.b16 %v5223
    %v5294 = vunpack.c.h.b16 %v5223
    %v5295 = vunpack.c.l.b16 %v5224
    %v5296 = vunpack.c.h.b16 %v5224
    %v5297 = vunpack.c.l.b16 %v5225
    %v5298 = vunpack.c.h.b16 %v5225
    %v5299 = vunpack.c.l.b16 %v5226
    %v5300 = vunpack.c.h.b16 %v5226
    %v5301 = vunpack.c.l.b16 %v5227
    %v5302 = vunpack.c.h.b16 %v5227
    %v5303 = vunpack.c.l.b16 %v5228
    %v5304 = vunpack.c.h.b16 %v5228
    %v5305 = vunpack.c.l.b16 %v5229
    %v5306 = vunpack.c.h.b16 %v5229
    %v5307 = vunpack.c.l.b16 %v5230
    %v5308 = vunpack.c.h.b16 %v5230
    %v5309 = vunpack.c.l.b16 %v5231
    %v5310 = vunpack.c.h.b16 %v5231
    %v5311 = vunpack.c.l.b16 %v5232
    %v5312 = vunpack.c.h.b16 %v5232
    %v5313 = vunpack.c.l.b16 %v5233
    %v5314 = vunpack.c.h.b16 %v5233
    %v5315 = vunpack.c.l.b16 %v5234
    %v5316 = vunpack.c.h.b16 %v5234
    %v5317 = vunpack.c.l.b16 %v5235
    %v5318 = vunpack.c.h.b16 %v5235
    %v5319 = vunpack.c.l.b16 %v5236
    %v5320 = vunpack.c.h.b16 %v5236
    %v5321 = vunpack.c.l.b16 %v5237
    %v5322 = vunpack.c.h.b16 %v5237
    %v5323 = vunpack.c.l.b16 %v5238
    %v5324 = vunpack.c.h.b16 %v5238
    %v5325 = vunpack.c.l.b16 %v5239
    %v5326 = vunpack.c.h.b16 %v5239
    %v5327 = vunpack.c.l.b16 %v5240
    %v5328 = vunpack.c.h.b16 %v5240
    %v5329 = vunpack.c.l.b16 %v5241
    %v5330 = vunpack.c.h.b16 %v5241
    %v5331 = vunpack.c.l.b16 %v5242
    %v5332 = vunpack.c.h.b16 %v5242
    %v5333 = vunpack.c.l.b16 %v5243
    %v5334 = vunpack.c.h.b16 %v5243
    %v5335 = vunpack.c.l.b16 %v5244
    %v5336 = vunpack.c.h.b16 %v5244
    %v5337 = vunpack.c.l.b16 %v5245
    %v5338 = vunpack.c.h.b16 %v5245
    %v5339 = vunpack.c.l.b16 %v5246
    %v5340 = vunpack.c.h.b16 %v5246
    %v5341 = vunpack.c.l.b16 %v5247
    %v5342 = vunpack.c.h.b16 %v5247
    %v5343 = vunpack.c.l.b16 %v5248
    %v5344 = vunpack.c.h.b16 %v5248
    %v5345 = vpack.c.b16 %v5285, %v5281
    %v5346 = vpack.c.b16 %v5286, %v5282
    %v5347 = vpack.c.b16 %v5287, %v5283
    %v5348 = vpack.c.b16 %v5288, %v5284
    %v5349 = vpack.c.b16 %v5293, %v5289
    %v5350 = vpack.c.b16 %v5294, %v5290
    %v5351 = vpack.c.b16 %v5295, %v5291
    %v5352 = vpack.c.b16 %v5296, %v5292
    %v5353 = vpack.c.b16 %v5301, %v5297
    %v5354 = vpack.c.b16 %v5302, %v5298
    %v5355 = vpack.c.b16 %v5303, %v5299
    %v5356 = vpack.c.b16 %v5304, %v5300
    %v5357 = vpack.c.b16 %v5309, %v5305
    %v5358 = vpack.c.b16 %v5310, %v5306
    %v5359 = vpack.c.b16 %v5311, %v5307
    %v5360 = vpack.c.b16 %v5312, %v5308
    %v5361 = vpack.c.b16 %v5317, %v5313
    %v5362 = vpack.c.b16 %v5318, %v5314
    %v5363 = vpack.c.b16 %v5319, %v5315
    %v5364 = vpack.c.b16 %v5320, %v5316
    %v5365 = vpack.c.b16 %v5325, %v5321
    %v5366 = vpack.c.b16 %v5326, %v5322
    %v5367 = vpack.c.b16 %v5327, %v5323
    %v5368 = vpack.c.b16 %v5328, %v5324
    %v5369 = vpack.c.b16 %v5333, %v5329
    %v5370 = vpack.c.b16 %v5334, %v5330
    %v5371 = vpack.c.b16 %v5335, %v5331
    %v5372 = vpack.c.b16 %v5336, %v5332
    %v5373 = vpack.c.b16 %v5341, %v5337
    %v5374 = vpack.c.b16 %v5342, %v5338
    %v5375 = vpack.c.b16 %v5343, %v5339
    %v5376 = vpack.c.b16 %v5344, %v5340
    %5409 = vmatprep.subr.bf16.mxu0 %v5346
    %5410 = vmatpush1.bf16.msra.mxu0 %v5345
    %5411 = vmatprep.subr.bf16.mxu0 %v5350
    %5412 = vmatpush1.bf16.msra.mxu0 %v5349
    %5413 = vmatprep.subr.bf16.mxu0 %v5354
    %5414 = vmatpush1.bf16.msra.mxu0 %v5353
    %5415 = vmatprep.subr.bf16.mxu0 %v5358
    %5416 = vmatpush1.bf16.msra.mxu0 %v5357
    %5417 = vmatprep.subr.bf16.mxu0 %v5362
    %5418 = vmatpush1.bf16.msra.mxu0 %v5361
    %5419 = vmatprep.subr.bf16.mxu0 %v5366
    %5420 = vmatpush1.bf16.msra.mxu0 %v5365
    %5421 = vmatprep.subr.bf16.mxu0 %v5370
    %5422 = vmatpush1.bf16.msra.mxu0 %v5369
    %5423 = vmatprep.subr.bf16.mxu0 %v5374
    %5424 = vmatpush1.bf16.msra.mxu0 %v5373
    %5425 = vmatprep.subr.bf16.mxu0 0
    %5426 = vmatpush1.bf16.msra.mxu0 0
    %5427 = vmatprep.subr.bf16.mxu0 0
    %5428 = vmatpush1.bf16.msra.mxu0 0
    %5429 = vmatprep.subr.bf16.mxu0 0
    %5430 = vmatpush1.bf16.msra.mxu0 0
    %5431 = vmatprep.subr.bf16.mxu0 0
    %5432 = vmatpush1.bf16.msra.mxu0 0
    %5433 = vmatprep.subr.bf16.mxu0 0
    %5434 = vmatpush1.bf16.msra.mxu0 0
    %5435 = vmatprep.subr.bf16.mxu0 0
    %5436 = vmatpush1.bf16.msra.mxu0 0
    %5437 = vmatprep.subr.bf16.mxu0 0
    %5438 = vmatpush1.bf16.msra.mxu0 0
    %5439 = vmatprep.subr.bf16.mxu0 0
    %5440 = vmatpush1.bf16.msra.mxu0 0
    %5441 = vmatprep.mubr.bf16.mxu0 0
    %5442 = vmatmul.mubr.bf16.gmra.mrb[0].mxu0 %v5215
    %v5443 = vpop.f32.mrb[0].mxu0
    %v5444 = vadd.f32 %v252, %v5443
    %v5445 = vpop.f32.mrb[0].mxu0
    %v5446 = vadd.f32 %v256, %v5445
    %v5447 = vpop.f32.mrb[0].mxu0
    %v5448 = vadd.f32 %v252, %v5447
    %v5449 = vpop.f32.mrb[0].mxu0
    %v5450 = vadd.f32 %v256, %v5449
    %5451 = vmatprep.mubr.bf16.mxu0 0
    %5452 = vmatmul.mubr.bf16.gmra.mrb[0].mxu0 %v5216
    %v5453 = vpop.f32.mrb[0].mxu0
    %v5454 = vadd.f32 %v252, %v5453
    %v5455 = vpop.f32.mrb[0].mxu0
    %v5456 = vadd.f32 %v256, %v5455
    %v5457 = vpop.f32.mrb[0].mxu0
    %v5458 = vadd.f32 %v252, %v5457
    %v5459 = vpop.f32.mrb[0].mxu0
    %v5460 = vadd.f32 %v256, %v5459
    %5461 = vdwg.mxu0
    %5462 = vmatprep.subr.bf16.mxu0 %v5348
    %5463 = vmatpush1.bf16.msra.mxu0 %v5347
    %5464 = vmatprep.subr.bf16.mxu0 %v5352
    %5465 = vmatpush1.bf16.msra.mxu0 %v5351
    %5466 = vmatprep.subr.bf16.mxu0 %v5356
    %5467 = vmatpush1.bf16.msra.mxu0 %v5355
    %5468 = vmatprep.subr.bf16.mxu0 %v5360
    %5469 = vmatpush1.bf16.msra.mxu0 %v5359
    %5470 = vmatprep.subr.bf16.mxu0 %v5364
    %5471 = vmatpush1.bf16.msra.mxu0 %v5363
    %5472 = vmatprep.subr.bf16.mxu0 %v5368
    %5473 = vmatpush1.bf16.msra.mxu0 %v5367
    %5474 = vmatprep.subr.bf16.mxu0 %v5372
    %5475 = vmatpush1.bf16.msra.mxu0 %v5371
    %5476 = vmatprep.subr.bf16.mxu0 %v5376
    %5477 = vmatpush1.bf16.msra.mxu0 %v5375
    %5478 = vmatprep.subr.bf16.mxu0 0
    %5479 = vmatpush1.bf16.msra.mxu0 0
    %5480 = vmatprep.subr.bf16.mxu0 0
    %5481 = vmatpush1.bf16.msra.mxu0 0
    %5482 = vmatprep.subr.bf16.mxu0 0
    %5483 = vmatpush1.bf16.msra.mxu0 0
    %5484 = vmatprep.subr.bf16.mxu0 0
    %5485 = vmatpush1.bf16.msra.mxu0 0
    %5486 = vmatprep.subr.bf16.mxu0 0
    %5487 = vmatpush1.bf16.msra.mxu0 0
    %5488 = vmatprep.subr.bf16.mxu0 0
    %5489 = vmatpush1.bf16.msra.mxu0 0
    %5490 = vmatprep.subr.bf16.mxu0 0
    %5491 = vmatpush1.bf16.msra.mxu0 0
    %5492 = vmatprep.subr.bf16.mxu0 0
    %5493 = vmatpush1.bf16.msra.mxu0 0
    %5494 = vmatprep.mubr.bf16.mxu0 0
    %5495 = vmatmul.mubr.bf16.gmra.mrb[0].mxu0 %v5215
    %v5496 = vpop.f32.mrb[0].mxu0
    %v5497 = vadd.f32 %v260, %v5496
    %v5498 = vpop.f32.mrb[0].mxu0
    %v5499 = vadd.f32 %v264, %v5498
    %v5500 = vpop.f32.mrb[0].mxu0
    %v5501 = vadd.f32 %v260, %v5500
    %v5502 = vpop.f32.mrb[0].mxu0
    %v5503 = vadd.f32 %v264, %v5502
    %5504 = vmatprep.mubr.bf16.mxu0 0
    %5505 = vmatmul.mubr.bf16.gmra.mrb[0].mxu0 %v5216
    %v5506 = vpop.f32.mrb[0].mxu0
    %v5507 = vadd.f32 %v260, %v5506
    %v5508 = vpop.f32.mrb[0].mxu0
    %v5509 = vadd.f32 %v264, %v5508
    %v5510 = vpop.f32.mrb[0].mxu0
    %v5511 = vadd.f32 %v260, %v5510
    %v5512 = vpop.f32.mrb[0].mxu0
    %v5513 = vadd.f32 %v264, %v5512
    %5514 = vdwg.mxu0
    %v5515 = vmul.f32 %v539, %v5099
    %v5516 = vmul.f32 %v543, %v5100
    %v5517 = vmul.f32 %v547, %v5101
    %v5518 = vmul.f32 %v551, %v5102
    %v5519 = vmul.f32 %v539, %v5103
    %v5520 = vmul.f32 %v543, %v5104
    %v5521 = vmul.f32 %v547, %v5105
    %v5522 = vmul.f32 %v551, %v5106
    %v5523 = vmul.f32 %v539, %v5107
    %v5524 = vmul.f32 %v543, %v5108
    %v5525 = vmul.f32 %v547, %v5109
    %v5526 = vmul.f32 %v551, %v5110
    %v5527 = vmul.f32 %v539, %v5111
    %v5528 = vmul.f32 %v543, %v5112
    %v5529 = vmul.f32 %v547, %v5113
    %v5530 = vmul.f32 %v551, %v5114
    %v5531 = vmul.f32 %v576, %v5444
    %v5532 = vmul.f32 %v580, %v5446
    %v5533 = vmul.f32 %v584, %v5497
    %v5534 = vmul.f32 %v588, %v5499
    %v5535 = vmul.f32 %v576, %v5448
    %v5536 = vmul.f32 %v580, %v5450
    %v5537 = vmul.f32 %v584, %v5501
    %v5538 = vmul.f32 %v588, %v5503
    %v5539 = vmul.f32 %v576, %v5454
    %v5540 = vmul.f32 %v580, %v5456
    %v5541 = vmul.f32 %v584, %v5507
    %v5542 = vmul.f32 %v588, %v5509
    %v5543 = vmul.f32 %v576, %v5458
    %v5544 = vmul.f32 %v580, %v5460
    %v5545 = vmul.f32 %v584, %v5511
    %v5546 = vmul.f32 %v588, %v5513
    %v5547 = vadd.f32 %v5515, %v5531
    %v5548 = vadd.f32 %v5516, %v5532
    %v5549 = vadd.f32 %v5517, %v5533
    %v5550 = vadd.f32 %v5518, %v5534
    %v5551 = vadd.f32 %v5519, %v5535
    %v5552 = vadd.f32 %v5520, %v5536
    %v5553 = vadd.f32 %v5521, %v5537
    %v5554 = vadd.f32 %v5522, %v5538
    %v5555 = vadd.f32 %v5523, %v5539
    %v5556 = vadd.f32 %v5524, %v5540
    %v5557 = vadd.f32 %v5525, %v5541
    %v5558 = vadd.f32 %v5526, %v5542
    %v5559 = vadd.f32 %v5527, %v5543
    %v5560 = vadd.f32 %v5528, %v5544
    %v5561 = vadd.f32 %v5529, %v5545
    %v5562 = vadd.f32 %v5530, %v5546
    %v5563 = vadd.f32 %v5547, %v5548
    %v5564 = vadd.f32 %v5551, %v5552
    %v5565 = vadd.f32 %v5555, %v5556
    %v5566 = vadd.f32 %v5559, %v5560
    %v5567 = vadd.f32 %v5563, %v5549
    %v5568 = vadd.f32 %v5564, %v5553
    %v5569 = vadd.f32 %v5565, %v5557
    %v5570 = vadd.f32 %v5566, %v5561
    %v5571 = vadd.f32 %v5567, %v5550
    %v5572 = vadd.f32 %v5568, %v5554
    %v5573 = vadd.f32 %v5569, %v5558
    %v5574 = vadd.f32 %v5570, %v5562
    %v5575 = vld [vmem:[%s4 + $0xb] sm:$0x1]
    %vm5576 = vcmp.gt.f32.partialorder %v5575, 0.0
    %v5577 = vmul.f32 %v5155, %v642
    %v5578 = vmul.f32 %v5156, %v642
    %v5579 = vmul.f32 %v5157, %v642
    %v5580 = vmul.f32 %v5158, %v642
    %v5581 = vmul.f32 %v650, %v5571
    %v5582 = vmul.f32 %v650, %v5572
    %v5583 = vmul.f32 %v650, %v5573
    %v5584 = vmul.f32 %v650, %v5574
    %v5585 = vadd.f32 %v5577, %v5581
    %v5586 = vadd.f32 %v5578, %v5582
    %v5587 = vadd.f32 %v5579, %v5583
    %v5588 = vadd.f32 %v5580, %v5584
    %v5589 = vmul.f32 %v662, %v5167
    %v5590 = vmul.f32 %v662, %v5168
    %v5591 = vmul.f32 %v662, %v5169
    %v5592 = vmul.f32 %v662, %v5170
    %v5593 = vsub.f32 %v5585, %v5589
    %v5594 = vsub.f32 %v5586, %v5590
    %v5595 = vsub.f32 %v5587, %v5591
    %v5596 = vsub.f32 %v5588, %v5592
    %v5597 = vsel %vm5576, 1, 0
    %v5598 = vlaneseq
    %v5599 = vshrl.u32 %v5598, 7
    %v5600 = vsub.s32 0, %v5599
    %v5601 = vrot.slane %v5597, %v5600
    %vm5602 = vcmp.eq.s32.totalorder %v5601, 1
    %v5603 = vsel %vm5602, %v5593, %v5155
    %v5604 = vsel %vm5602, %v5594, %v5156
    %v5605 = vsel %vm5602, %v5595, %v5157
    %v5606 = vsel %vm5602, %v5596, %v5158
    %vm5607 = vcmp.gt.f32.partialorder %v5603, %v662
    %vm5608 = vcmp.gt.f32.partialorder %v5604, %v662
    %vm5609 = vcmp.gt.f32.partialorder %v5605, %v662
    %vm5610 = vcmp.gt.f32.partialorder %v5606, %v662
    %vm5611 = vmand %vm5607, %vm5602
    %vm5612 = vmand %vm5608, %vm5602
    %vm5613 = vmand %vm5609, %vm5602
    %vm5614 = vmand %vm5610, %vm5602
    %v5615 = vsel %vm5611, 1.0, 0.0
    %v5616 = vsel %vm5612, 1.0, 0.0
    %v5617 = vsel %vm5613, 1.0, 0.0
    %v5618 = vsel %vm5614, 1.0, 0.0
    %v5619 = vpack.c.bf16 %v5604, %v5603
    %v5620 = vpack.c.bf16 %v5606, %v5605
    %v5623 = vunpack.c.l.b16 %v5619
    %v5624 = vunpack.c.h.b16 %v5619
    %v5625 = vunpack.c.l.b16 %v5620
    %v5626 = vunpack.c.h.b16 %v5620
    %v5627 = vpack.c.b16 %v5623, %v5623
    %v5628 = vpack.c.b16 %v5624, %v5624
    %v5629 = vpack.c.b16 %v5625, %v5625
    %v5630 = vpack.c.b16 %v5626, %v5626
    %s5635 = scalar_lea.vmem [#allocation14], 176
    %5636 = vst [vmem:[%s5635] sm:$0xf] %v5627
    %5637 = vst [vmem:[%s5635 + $0x4] sm:$0xf] %v5628
    %5638 = vst [vmem:[%s5635 + $0x8] sm:$0xf] %v5629
    %5639 = vst [vmem:[%s5635 + $0xc] sm:$0xf] %v5630
    %v5640 = vpack.c.bf16 %v5616, %v5615
    %v5641 = vpack.c.bf16 %v5618, %v5617
    %v5644 = vunpack.c.l.b16 %v5640
    %v5645 = vunpack.c.h.b16 %v5640
    %v5646 = vunpack.c.l.b16 %v5641
    %v5647 = vunpack.c.h.b16 %v5641
    %v5648 = vpack.c.b16 %v5644, %v5644
    %v5649 = vpack.c.b16 %v5645, %v5645
    %v5650 = vpack.c.b16 %v5646, %v5646
    %v5651 = vpack.c.b16 %v5647, %v5647
    %s5656 = scalar_lea.vmem [#allocation15], 176
    %5657 = vst [vmem:[%s5656] sm:$0xf] %v5648
    %5658 = vst [vmem:[%s5656 + $0x4] sm:$0xf] %v5649
    %5659 = vst [vmem:[%s5656 + $0x8] sm:$0xf] %v5650
    %5660 = vst [vmem:[%s5656 + $0xc] sm:$0xf] %v5651
    %s5661 = scalar_lea.vmem [#allocation2], 96
    %v5662 = vld [vmem:[%s5661] sm:$0xff]
    %v5663 = vunpack.c.l.s8.bf16 %v5662
    %v5664 = vunpack.c.h.s8.bf16 %v5662
    %v5665 = vld [vmem:[#allocation5] sm:$0xff]
    %v5666 = vld [vmem:[#allocation5 + $0x8] sm:$0xff]
    %v5667 = vld [vmem:[#allocation5 + $0x10] sm:$0xff]
    %v5668 = vld [vmem:[#allocation5 + $0x18] sm:$0xff]
    %v5669 = vld [vmem:[#allocation5 + $0x20] sm:$0xff]
    %v5670 = vld [vmem:[#allocation5 + $0x28] sm:$0xff]
    %v5671 = vld [vmem:[#allocation5 + $0x30] sm:$0xff]
    %v5672 = vld [vmem:[#allocation5 + $0x38] sm:$0xff]
    %v5673 = vld [vmem:[#allocation5 + $0x40] sm:$0xff]
    %v5674 = vld [vmem:[#allocation5 + $0x48] sm:$0xff]
    %v5675 = vld [vmem:[#allocation5 + $0x50] sm:$0xff]
    %v5676 = vld [vmem:[#allocation5 + $0x58] sm:$0xff]
    %v5677 = vld [vmem:[#allocation5 + $0x60] sm:$0xff]
    %v5678 = vld [vmem:[#allocation5 + $0x68] sm:$0xff]
    %v5679 = vld [vmem:[#allocation5 + $0x70] sm:$0xff]
    %v5680 = vld [vmem:[#allocation5 + $0x78] sm:$0xff]
    %v5681 = vld [vmem:[#allocation5 + $0x80] sm:$0xff]
    %v5682 = vld [vmem:[#allocation5 + $0x88] sm:$0xff]
    %v5683 = vld [vmem:[#allocation5 + $0x90] sm:$0xff]
    %v5684 = vld [vmem:[#allocation5 + $0x98] sm:$0xff]
    %v5685 = vld [vmem:[#allocation5 + $0xa0] sm:$0xff]
    %v5686 = vld [vmem:[#allocation5 + $0xa8] sm:$0xff]
    %v5687 = vld [vmem:[#allocation5 + $0xb0] sm:$0xff]
    %v5688 = vld [vmem:[#allocation5 + $0xb8] sm:$0xff]
    %v5689 = vld [vmem:[#allocation5 + $0xc0] sm:$0xff]
    %v5690 = vld [vmem:[#allocation5 + $0xc8] sm:$0xff]
    %v5691 = vld [vmem:[#allocation5 + $0xd0] sm:$0xff]
    %v5692 = vld [vmem:[#allocation5 + $0xd8] sm:$0xff]
    %v5693 = vld [vmem:[#allocation5 + $0xe0] sm:$0xff]
    %v5694 = vld [vmem:[#allocation5 + $0xe8] sm:$0xff]
    %v5695 = vld [vmem:[#allocation5 + $0xf0] sm:$0xff]
    %v5696 = vld [vmem:[#allocation5 + $0xf8] sm:$0xff]
    %v5729 = vunpack.c.l.b16 %v5665
    %v5730 = vunpack.c.h.b16 %v5665
    %v5731 = vunpack.c.l.b16 %v5666
    %v5732 = vunpack.c.h.b16 %v5666
    %v5733 = vunpack.c.l.b16 %v5667
    %v5734 = vunpack.c.h.b16 %v5667
    %v5735 = vunpack.c.l.b16 %v5668
    %v5736 = vunpack.c.h.b16 %v5668
    %v5737 = vunpack.c.l.b16 %v5669
    %v5738 = vunpack.c.h.b16 %v5669
    %v5739 = vunpack.c.l.b16 %v5670
    %v5740 = vunpack.c.h.b16 %v5670
    %v5741 = vunpack.c.l.b16 %v5671
    %v5742 = vunpack.c.h.b16 %v5671
    %v5743 = vunpack.c.l.b16 %v5672
    %v5744 = vunpack.c.h.b16 %v5672
    %v5745 = vunpack.c.l.b16 %v5673
    %v5746 = vunpack.c.h.b16 %v5673
    %v5747 = vunpack.c.l.b16 %v5674
    %v5748 = vunpack.c.h.b16 %v5674
    %v5749 = vunpack.c.l.b16 %v5675
    %v5750 = vunpack.c.h.b16 %v5675
    %v5751 = vunpack.c.l.b16 %v5676
    %v5752 = vunpack.c.h.b16 %v5676
    %v5753 = vunpack.c.l.b16 %v5677
    %v5754 = vunpack.c.h.b16 %v5677
    %v5755 = vunpack.c.l.b16 %v5678
    %v5756 = vunpack.c.h.b16 %v5678
    %v5757 = vunpack.c.l.b16 %v5679
    %v5758 = vunpack.c.h.b16 %v5679
    %v5759 = vunpack.c.l.b16 %v5680
    %v5760 = vunpack.c.h.b16 %v5680
    %v5761 = vunpack.c.l.b16 %v5681
    %v5762 = vunpack.c.h.b16 %v5681
    %v5763 = vunpack.c.l.b16 %v5682
    %v5764 = vunpack.c.h.b16 %v5682
    %v5765 = vunpack.c.l.b16 %v5683
    %v5766 = vunpack.c.h.b16 %v5683
    %v5767 = vunpack.c.l.b16 %v5684
    %v5768 = vunpack.c.h.b16 %v5684
    %v5769 = vunpack.c.l.b16 %v5685
    %v5770 = vunpack.c.h.b16 %v5685
    %v5771 = vunpack.c.l.b16 %v5686
    %v5772 = vunpack.c.h.b16 %v5686
    %v5773 = vunpack.c.l.b16 %v5687
    %v5774 = vunpack.c.h.b16 %v5687
    %v5775 = vunpack.c.l.b16 %v5688
    %v5776 = vunpack.c.h.b16 %v5688
    %v5777 = vunpack.c.l.b16 %v5689
    %v5778 = vunpack.c.h.b16 %v5689
    %v5779 = vunpack.c.l.b16 %v5690
    %v5780 = vunpack.c.h.b16 %v5690
    %v5781 = vunpack.c.l.b16 %v5691
    %v5782 = vunpack.c.h.b16 %v5691
    %v5783 = vunpack.c.l.b16 %v5692
    %v5784 = vunpack.c.h.b16 %v5692
    %v5785 = vunpack.c.l.b16 %v5693
    %v5786 = vunpack.c.h.b16 %v5693
    %v5787 = vunpack.c.l.b16 %v5694
    %v5788 = vunpack.c.h.b16 %v5694
    %v5789 = vunpack.c.l.b16 %v5695
    %v5790 = vunpack.c.h.b16 %v5695
    %v5791 = vunpack.c.l.b16 %v5696
    %v5792 = vunpack.c.h.b16 %v5696
    %v5793 = vpack.c.b16 %v5733, %v5729
    %v5794 = vpack.c.b16 %v5734, %v5730
    %v5795 = vpack.c.b16 %v5735, %v5731
    %v5796 = vpack.c.b16 %v5736, %v5732
    %v5797 = vpack.c.b16 %v5741, %v5737
    %v5798 = vpack.c.b16 %v5742, %v5738
    %v5799 = vpack.c.b16 %v5743, %v5739
    %v5800 = vpack.c.b16 %v5744, %v5740
    %v5801 = vpack.c.b16 %v5749, %v5745
    %v5802 = vpack.c.b16 %v5750, %v5746
    %v5803 = vpack.c.b16 %v5751, %v5747
    %v5804 = vpack.c.b16 %v5752, %v5748
    %v5805 = vpack.c.b16 %v5757, %v5753
    %v5806 = vpack.c.b16 %v5758, %v5754
    %v5807 = vpack.c.b16 %v5759, %v5755
    %v5808 = vpack.c.b16 %v5760, %v5756
    %v5809 = vpack.c.b16 %v5765, %v5761
    %v5810 = vpack.c.b16 %v5766, %v5762
    %v5811 = vpack.c.b16 %v5767, %v5763
    %v5812 = vpack.c.b16 %v5768, %v5764
    %v5813 = vpack.c.b16 %v5773, %v5769
    %v5814 = vpack.c.b16 %v5774, %v5770
    %v5815 = vpack.c.b16 %v5775, %v5771
    %v5816 = vpack.c.b16 %v5776, %v5772
    %v5817 = vpack.c.b16 %v5781, %v5777
    %v5818 = vpack.c.b16 %v5782, %v5778
    %v5819 = vpack.c.b16 %v5783, %v5779
    %v5820 = vpack.c.b16 %v5784, %v5780
    %v5821 = vpack.c.b16 %v5789, %v5785
    %v5822 = vpack.c.b16 %v5790, %v5786
    %v5823 = vpack.c.b16 %v5791, %v5787
    %v5824 = vpack.c.b16 %v5792, %v5788
    %5857 = vmatprep.subr.bf16.mxu0 %v5794
    %5858 = vmatpush1.bf16.msra.mxu0 %v5793
    %5859 = vmatprep.subr.bf16.mxu0 %v5798
    %5860 = vmatpush1.bf16.msra.mxu0 %v5797
    %5861 = vmatprep.subr.bf16.mxu0 %v5802
    %5862 = vmatpush1.bf16.msra.mxu0 %v5801
    %5863 = vmatprep.subr.bf16.mxu0 %v5806
    %5864 = vmatpush1.bf16.msra.mxu0 %v5805
    %5865 = vmatprep.subr.bf16.mxu0 %v5810
    %5866 = vmatpush1.bf16.msra.mxu0 %v5809
    %5867 = vmatprep.subr.bf16.mxu0 %v5814
    %5868 = vmatpush1.bf16.msra.mxu0 %v5813
    %5869 = vmatprep.subr.bf16.mxu0 %v5818
    %5870 = vmatpush1.bf16.msra.mxu0 %v5817
    %5871 = vmatprep.subr.bf16.mxu0 %v5822
    %5872 = vmatpush1.bf16.msra.mxu0 %v5821
    %5873 = vmatprep.subr.bf16.mxu0 0
    %5874 = vmatpush1.bf16.msra.mxu0 0
    %5875 = vmatprep.subr.bf16.mxu0 0
    %5876 = vmatpush1.bf16.msra.mxu0 0
    %5877 = vmatprep.subr.bf16.mxu0 0
    %5878 = vmatpush1.bf16.msra.mxu0 0
    %5879 = vmatprep.subr.bf16.mxu0 0
    %5880 = vmatpush1.bf16.msra.mxu0 0
    %5881 = vmatprep.subr.bf16.mxu0 0
    %5882 = vmatpush1.bf16.msra.mxu0 0
    %5883 = vmatprep.subr.bf16.mxu0 0
    %5884 = vmatpush1.bf16.msra.mxu0 0
    %5885 = vmatprep.subr.bf16.mxu0 0
    %5886 = vmatpush1.bf16.msra.mxu0 0
    %5887 = vmatprep.subr.bf16.mxu0 0
    %5888 = vmatpush1.bf16.msra.mxu0 0
    %5889 = vmatprep.mubr.bf16.mxu0 0
    %5890 = vmatmul.mubr.bf16.gmra.mrb[0].mxu0 %v5663
    %v5891 = vpop.f32.mrb[0].mxu0
    %v5892 = vadd.f32 %v252, %v5891
    %v5893 = vpop.f32.mrb[0].mxu0
    %v5894 = vadd.f32 %v256, %v5893
    %v5895 = vpop.f32.mrb[0].mxu0
    %v5896 = vadd.f32 %v252, %v5895
    %v5897 = vpop.f32.mrb[0].mxu0
    %v5898 = vadd.f32 %v256, %v5897
    %5899 = vmatprep.mubr.bf16.mxu0 0
    %5900 = vmatmul.mubr.bf16.gmra.mrb[0].mxu0 %v5664
    %v5901 = vpop.f32.mrb[0].mxu0
    %v5902 = vadd.f32 %v252, %v5901
    %v5903 = vpop.f32.mrb[0].mxu0
    %v5904 = vadd.f32 %v256, %v5903
    %v5905 = vpop.f32.mrb[0].mxu0
    %v5906 = vadd.f32 %v252, %v5905
    %v5907 = vpop.f32.mrb[0].mxu0
    %v5908 = vadd.f32 %v256, %v5907
    %5909 = vdwg.mxu0
    %5910 = vmatprep.subr.bf16.mxu0 %v5796
    %5911 = vmatpush1.bf16.msra.mxu0 %v5795
    %5912 = vmatprep.subr.bf16.mxu0 %v5800
    %5913 = vmatpush1.bf16.msra.mxu0 %v5799
    %5914 = vmatprep.subr.bf16.mxu0 %v5804
    %5915 = vmatpush1.bf16.msra.mxu0 %v5803
    %5916 = vmatprep.subr.bf16.mxu0 %v5808
    %5917 = vmatpush1.bf16.msra.mxu0 %v5807
    %5918 = vmatprep.subr.bf16.mxu0 %v5812
    %5919 = vmatpush1.bf16.msra.mxu0 %v5811
    %5920 = vmatprep.subr.bf16.mxu0 %v5816
    %5921 = vmatpush1.bf16.msra.mxu0 %v5815
    %5922 = vmatprep.subr.bf16.mxu0 %v5820
    %5923 = vmatpush1.bf16.msra.mxu0 %v5819
    %5924 = vmatprep.subr.bf16.mxu0 %v5824
    %5925 = vmatpush1.bf16.msra.mxu0 %v5823
    %5926 = vmatprep.subr.bf16.mxu0 0
    %5927 = vmatpush1.bf16.msra.mxu0 0
    %5928 = vmatprep.subr.bf16.mxu0 0
    %5929 = vmatpush1.bf16.msra.mxu0 0
    %5930 = vmatprep.subr.bf16.mxu0 0
    %5931 = vmatpush1.bf16.msra.mxu0 0
    %5932 = vmatprep.subr.bf16.mxu0 0
    %5933 = vmatpush1.bf16.msra.mxu0 0
    %5934 = vmatprep.subr.bf16.mxu0 0
    %5935 = vmatpush1.bf16.msra.mxu0 0
    %5936 = vmatprep.subr.bf16.mxu0 0
    %5937 = vmatpush1.bf16.msra.mxu0 0
    %5938 = vmatprep.subr.bf16.mxu0 0
    %5939 = vmatpush1.bf16.msra.mxu0 0
    %5940 = vmatprep.subr.bf16.mxu0 0
    %5941 = vmatpush1.bf16.msra.mxu0 0
    %5942 = vmatprep.mubr.bf16.mxu0 0
    %5943 = vmatmul.mubr.bf16.gmra.mrb[0].mxu0 %v5663
    %v5944 = vpop.f32.mrb[0].mxu0
    %v5945 = vadd.f32 %v260, %v5944
    %v5946 = vpop.f32.mrb[0].mxu0
    %v5947 = vadd.f32 %v264, %v5946
    %v5948 = vpop.f32.mrb[0].mxu0
    %v5949 = vadd.f32 %v260, %v5948
    %v5950 = vpop.f32.mrb[0].mxu0
    %v5951 = vadd.f32 %v264, %v5950
    %5952 = vmatprep.mubr.bf16.mxu0 0
    %5953 = vmatmul.mubr.bf16.gmra.mrb[0].mxu0 %v5664
    %v5954 = vpop.f32.mrb[0].mxu0
    %v5955 = vadd.f32 %v260, %v5954
    %v5956 = vpop.f32.mrb[0].mxu0
    %v5957 = vadd.f32 %v264, %v5956
    %v5958 = vpop.f32.mrb[0].mxu0
    %v5959 = vadd.f32 %v260, %v5958
    %v5960 = vpop.f32.mrb[0].mxu0
    %v5961 = vadd.f32 %v264, %v5960
    %5962 = vdwg.mxu0
    %v5963 = vmul.f32 %v539, %v5547
    %v5964 = vmul.f32 %v543, %v5548
    %v5965 = vmul.f32 %v547, %v5549
    %v5966 = vmul.f32 %v551, %v5550
    %v5967 = vmul.f32 %v539, %v5551
    %v5968 = vmul.f32 %v543, %v5552
    %v5969 = vmul.f32 %v547, %v5553
    %v5970 = vmul.f32 %v551, %v5554
    %v5971 = vmul.f32 %v539, %v5555
    %v5972 = vmul.f32 %v543, %v5556
    %v5973 = vmul.f32 %v547, %v5557
    %v5974 = vmul.f32 %v551, %v5558
    %v5975 = vmul.f32 %v539, %v5559
    %v5976 = vmul.f32 %v543, %v5560
    %v5977 = vmul.f32 %v547, %v5561
    %v5978 = vmul.f32 %v551, %v5562
    %v5979 = vmul.f32 %v576, %v5892
    %v5980 = vmul.f32 %v580, %v5894
    %v5981 = vmul.f32 %v584, %v5945
    %v5982 = vmul.f32 %v588, %v5947
    %v5983 = vmul.f32 %v576, %v5896
    %v5984 = vmul.f32 %v580, %v5898
    %v5985 = vmul.f32 %v584, %v5949
    %v5986 = vmul.f32 %v588, %v5951
    %v5987 = vmul.f32 %v576, %v5902
    %v5988 = vmul.f32 %v580, %v5904
    %v5989 = vmul.f32 %v584, %v5955
    %v5990 = vmul.f32 %v588, %v5957
    %v5991 = vmul.f32 %v576, %v5906
    %v5992 = vmul.f32 %v580, %v5908
    %v5993 = vmul.f32 %v584, %v5959
    %v5994 = vmul.f32 %v588, %v5961
    %v5995 = vadd.f32 %v5963, %v5979
    %v5996 = vadd.f32 %v5964, %v5980
    %v5997 = vadd.f32 %v5965, %v5981
    %v5998 = vadd.f32 %v5966, %v5982
    %v5999 = vadd.f32 %v5967, %v5983
    %v6000 = vadd.f32 %v5968, %v5984
    %v6001 = vadd.f32 %v5969, %v5985
    %v6002 = vadd.f32 %v5970, %v5986
    %v6003 = vadd.f32 %v5971, %v5987
    %v6004 = vadd.f32 %v5972, %v5988
    %v6005 = vadd.f32 %v5973, %v5989
    %v6006 = vadd.f32 %v5974, %v5990
    %v6007 = vadd.f32 %v5975, %v5991
    %v6008 = vadd.f32 %v5976, %v5992
    %v6009 = vadd.f32 %v5977, %v5993
    %v6010 = vadd.f32 %v5978, %v5994
    %v6011 = vadd.f32 %v5995, %v5996
    %v6012 = vadd.f32 %v5999, %v6000
    %v6013 = vadd.f32 %v6003, %v6004
    %v6014 = vadd.f32 %v6007, %v6008
    %v6015 = vadd.f32 %v6011, %v5997
    %v6016 = vadd.f32 %v6012, %v6001
    %v6017 = vadd.f32 %v6013, %v6005
    %v6018 = vadd.f32 %v6014, %v6009
    %v6019 = vadd.f32 %v6015, %v5998
    %v6020 = vadd.f32 %v6016, %v6002
    %v6021 = vadd.f32 %v6017, %v6006
    %v6022 = vadd.f32 %v6018, %v6010
    %v6023 = vld [vmem:[%s4 + $0xc] sm:$0x1]
    %vm6024 = vcmp.gt.f32.partialorder %v6023, 0.0
    %v6025 = vmul.f32 %v5603, %v642
    %v6026 = vmul.f32 %v5604, %v642
    %v6027 = vmul.f32 %v5605, %v642
    %v6028 = vmul.f32 %v5606, %v642
    %v6029 = vmul.f32 %v650, %v6019
    %v6030 = vmul.f32 %v650, %v6020
    %v6031 = vmul.f32 %v650, %v6021
    %v6032 = vmul.f32 %v650, %v6022
    %v6033 = vadd.f32 %v6025, %v6029
    %v6034 = vadd.f32 %v6026, %v6030
    %v6035 = vadd.f32 %v6027, %v6031
    %v6036 = vadd.f32 %v6028, %v6032
    %v6037 = vmul.f32 %v662, %v5615
    %v6038 = vmul.f32 %v662, %v5616
    %v6039 = vmul.f32 %v662, %v5617
    %v6040 = vmul.f32 %v662, %v5618
    %v6041 = vsub.f32 %v6033, %v6037
    %v6042 = vsub.f32 %v6034, %v6038
    %v6043 = vsub.f32 %v6035, %v6039
    %v6044 = vsub.f32 %v6036, %v6040
    %v6045 = vsel %vm6024, 1, 0
    %v6046 = vlaneseq
    %v6047 = vshrl.u32 %v6046, 7
    %v6048 = vsub.s32 0, %v6047
    %v6049 = vrot.slane %v6045, %v6048
    %vm6050 = vcmp.eq.s32.totalorder %v6049, 1
    %v6051 = vsel %vm6050, %v6041, %v5603
    %v6052 = vsel %vm6050, %v6042, %v5604
    %v6053 = vsel %vm6050, %v6043, %v5605
    %v6054 = vsel %vm6050, %v6044, %v5606
    %vm6055 = vcmp.gt.f32.partialorder %v6051, %v662
    %vm6056 = vcmp.gt.f32.partialorder %v6052, %v662
    %vm6057 = vcmp.gt.f32.partialorder %v6053, %v662
    %vm6058 = vcmp.gt.f32.partialorder %v6054, %v662
    %vm6059 = vmand %vm6055, %vm6050
    %vm6060 = vmand %vm6056, %vm6050
    %vm6061 = vmand %vm6057, %vm6050
    %vm6062 = vmand %vm6058, %vm6050
    %v6063 = vsel %vm6059, 1.0, 0.0
    %v6064 = vsel %vm6060, 1.0, 0.0
    %v6065 = vsel %vm6061, 1.0, 0.0
    %v6066 = vsel %vm6062, 1.0, 0.0
    %v6067 = vpack.c.bf16 %v6052, %v6051
    %v6068 = vpack.c.bf16 %v6054, %v6053
    %v6071 = vunpack.c.l.b16 %v6067
    %v6072 = vunpack.c.h.b16 %v6067
    %v6073 = vunpack.c.l.b16 %v6068
    %v6074 = vunpack.c.h.b16 %v6068
    %v6075 = vpack.c.b16 %v6071, %v6071
    %v6076 = vpack.c.b16 %v6072, %v6072
    %v6077 = vpack.c.b16 %v6073, %v6073
    %v6078 = vpack.c.b16 %v6074, %v6074
    %s6083 = scalar_lea.vmem [#allocation14], 192
    %6084 = vst [vmem:[%s6083] sm:$0xf] %v6075
    %6085 = vst [vmem:[%s6083 + $0x4] sm:$0xf] %v6076
    %6086 = vst [vmem:[%s6083 + $0x8] sm:$0xf] %v6077
    %6087 = vst [vmem:[%s6083 + $0xc] sm:$0xf] %v6078
    %v6088 = vpack.c.bf16 %v6064, %v6063
    %v6089 = vpack.c.bf16 %v6066, %v6065
    %v6092 = vunpack.c.l.b16 %v6088
    %v6093 = vunpack.c.h.b16 %v6088
    %v6094 = vunpack.c.l.b16 %v6089
    %v6095 = vunpack.c.h.b16 %v6089
    %v6096 = vpack.c.b16 %v6092, %v6092
    %v6097 = vpack.c.b16 %v6093, %v6093
    %v6098 = vpack.c.b16 %v6094, %v6094
    %v6099 = vpack.c.b16 %v6095, %v6095
    %s6104 = scalar_lea.vmem [#allocation15], 192
    %6105 = vst [vmem:[%s6104] sm:$0xf] %v6096
    %6106 = vst [vmem:[%s6104 + $0x4] sm:$0xf] %v6097
    %6107 = vst [vmem:[%s6104 + $0x8] sm:$0xf] %v6098
    %6108 = vst [vmem:[%s6104 + $0xc] sm:$0xf] %v6099
    %s6109 = scalar_lea.vmem [#allocation2], 104
    %v6110 = vld [vmem:[%s6109] sm:$0xff]
    %v6111 = vunpack.c.l.s8.bf16 %v6110
    %v6112 = vunpack.c.h.s8.bf16 %v6110
    %v6113 = vld [vmem:[#allocation5] sm:$0xff]
    %v6114 = vld [vmem:[#allocation5 + $0x8] sm:$0xff]
    %v6115 = vld [vmem:[#allocation5 + $0x10] sm:$0xff]
    %v6116 = vld [vmem:[#allocation5 + $0x18] sm:$0xff]
    %v6117 = vld [vmem:[#allocation5 + $0x20] sm:$0xff]
    %v6118 = vld [vmem:[#allocation5 + $0x28] sm:$0xff]
    %v6119 = vld [vmem:[#allocation5 + $0x30] sm:$0xff]
    %v6120 = vld [vmem:[#allocation5 + $0x38] sm:$0xff]
    %v6121 = vld [vmem:[#allocation5 + $0x40] sm:$0xff]
    %v6122 = vld [vmem:[#allocation5 + $0x48] sm:$0xff]
    %v6123 = vld [vmem:[#allocation5 + $0x50] sm:$0xff]
    %v6124 = vld [vmem:[#allocation5 + $0x58] sm:$0xff]
    %v6125 = vld [vmem:[#allocation5 + $0x60] sm:$0xff]
    %v6126 = vld [vmem:[#allocation5 + $0x68] sm:$0xff]
    %v6127 = vld [vmem:[#allocation5 + $0x70] sm:$0xff]
    %v6128 = vld [vmem:[#allocation5 + $0x78] sm:$0xff]
    %v6129 = vld [vmem:[#allocation5 + $0x80] sm:$0xff]
    %v6130 = vld [vmem:[#allocation5 + $0x88] sm:$0xff]
    %v6131 = vld [vmem:[#allocation5 + $0x90] sm:$0xff]
    %v6132 = vld [vmem:[#allocation5 + $0x98] sm:$0xff]
    %v6133 = vld [vmem:[#allocation5 + $0xa0] sm:$0xff]
    %v6134 = vld [vmem:[#allocation5 + $0xa8] sm:$0xff]
    %v6135 = vld [vmem:[#allocation5 + $0xb0] sm:$0xff]
    %v6136 = vld [vmem:[#allocation5 + $0xb8] sm:$0xff]
    %v6137 = vld [vmem:[#allocation5 + $0xc0] sm:$0xff]
    %v6138 = vld [vmem:[#allocation5 + $0xc8] sm:$0xff]
    %v6139 = vld [vmem:[#allocation5 + $0xd0] sm:$0xff]
    %v6140 = vld [vmem:[#allocation5 + $0xd8] sm:$0xff]
    %v6141 = vld [vmem:[#allocation5 + $0xe0] sm:$0xff]
    %v6142 = vld [vmem:[#allocation5 + $0xe8] sm:$0xff]
    %v6143 = vld [vmem:[#allocation5 + $0xf0] sm:$0xff]
    %v6144 = vld [vmem:[#allocation5 + $0xf8] sm:$0xff]
    %v6177 = vunpack.c.l.b16 %v6113
    %v6178 = vunpack.c.h.b16 %v6113
    %v6179 = vunpack.c.l.b16 %v6114
    %v6180 = vunpack.c.h.b16 %v6114
    %v6181 = vunpack.c.l.b16 %v6115
    %v6182 = vunpack.c.h.b16 %v6115
    %v6183 = vunpack.c.l.b16 %v6116
    %v6184 = vunpack.c.h.b16 %v6116
    %v6185 = vunpack.c.l.b16 %v6117
    %v6186 = vunpack.c.h.b16 %v6117
    %v6187 = vunpack.c.l.b16 %v6118
    %v6188 = vunpack.c.h.b16 %v6118
    %v6189 = vunpack.c.l.b16 %v6119
    %v6190 = vunpack.c.h.b16 %v6119
    %v6191 = vunpack.c.l.b16 %v6120
    %v6192 = vunpack.c.h.b16 %v6120
    %v6193 = vunpack.c.l.b16 %v6121
    %v6194 = vunpack.c.h.b16 %v6121
    %v6195 = vunpack.c.l.b16 %v6122
    %v6196 = vunpack.c.h.b16 %v6122
    %v6197 = vunpack.c.l.b16 %v6123
    %v6198 = vunpack.c.h.b16 %v6123
    %v6199 = vunpack.c.l.b16 %v6124
    %v6200 = vunpack.c.h.b16 %v6124
    %v6201 = vunpack.c.l.b16 %v6125
    %v6202 = vunpack.c.h.b16 %v6125
    %v6203 = vunpack.c.l.b16 %v6126
    %v6204 = vunpack.c.h.b16 %v6126
    %v6205 = vunpack.c.l.b16 %v6127
    %v6206 = vunpack.c.h.b16 %v6127
    %v6207 = vunpack.c.l.b16 %v6128
    %v6208 = vunpack.c.h.b16 %v6128
    %v6209 = vunpack.c.l.b16 %v6129
    %v6210 = vunpack.c.h.b16 %v6129
    %v6211 = vunpack.c.l.b16 %v6130
    %v6212 = vunpack.c.h.b16 %v6130
    %v6213 = vunpack.c.l.b16 %v6131
    %v6214 = vunpack.c.h.b16 %v6131
    %v6215 = vunpack.c.l.b16 %v6132
    %v6216 = vunpack.c.h.b16 %v6132
    %v6217 = vunpack.c.l.b16 %v6133
    %v6218 = vunpack.c.h.b16 %v6133
    %v6219 = vunpack.c.l.b16 %v6134
    %v6220 = vunpack.c.h.b16 %v6134
    %v6221 = vunpack.c.l.b16 %v6135
    %v6222 = vunpack.c.h.b16 %v6135
    %v6223 = vunpack.c.l.b16 %v6136
    %v6224 = vunpack.c.h.b16 %v6136
    %v6225 = vunpack.c.l.b16 %v6137
    %v6226 = vunpack.c.h.b16 %v6137
    %v6227 = vunpack.c.l.b16 %v6138
    %v6228 = vunpack.c.h.b16 %v6138
    %v6229 = vunpack.c.l.b16 %v6139
    %v6230 = vunpack.c.h.b16 %v6139
    %v6231 = vunpack.c.l.b16 %v6140
    %v6232 = vunpack.c.h.b16 %v6140
    %v6233 = vunpack.c.l.b16 %v6141
    %v6234 = vunpack.c.h.b16 %v6141
    %v6235 = vunpack.c.l.b16 %v6142
    %v6236 = vunpack.c.h.b16 %v6142
    %v6237 = vunpack.c.l.b16 %v6143
    %v6238 = vunpack.c.h.b16 %v6143
    %v6239 = vunpack.c.l.b16 %v6144
    %v6240 = vunpack.c.h.b16 %v6144
    %v6241 = vpack.c.b16 %v6181, %v6177
    %v6242 = vpack.c.b16 %v6182, %v6178
    %v6243 = vpack.c.b16 %v6183, %v6179
    %v6244 = vpack.c.b16 %v6184, %v6180
    %v6245 = vpack.c.b16 %v6189, %v6185
    %v6246 = vpack.c.b16 %v6190, %v6186
    %v6247 = vpack.c.b16 %v6191, %v6187
    %v6248 = vpack.c.b16 %v6192, %v6188
    %v6249 = vpack.c.b16 %v6197, %v6193
    %v6250 = vpack.c.b16 %v6198, %v6194
    %v6251 = vpack.c.b16 %v6199, %v6195
    %v6252 = vpack.c.b16 %v6200, %v6196
    %v6253 = vpack.c.b16 %v6205, %v6201
    %v6254 = vpack.c.b16 %v6206, %v6202
    %v6255 = vpack.c.b16 %v6207, %v6203
    %v6256 = vpack.c.b16 %v6208, %v6204
    %v6257 = vpack.c.b16 %v6213, %v6209
    %v6258 = vpack.c.b16 %v6214, %v6210
    %v6259 = vpack.c.b16 %v6215, %v6211
    %v6260 = vpack.c.b16 %v6216, %v6212
    %v6261 = vpack.c.b16 %v6221, %v6217
    %v6262 = vpack.c.b16 %v6222, %v6218
    %v6263 = vpack.c.b16 %v6223, %v6219
    %v6264 = vpack.c.b16 %v6224, %v6220
    %v6265 = vpack.c.b16 %v6229, %v6225
    %v6266 = vpack.c.b16 %v6230, %v6226
    %v6267 = vpack.c.b16 %v6231, %v6227
    %v6268 = vpack.c.b16 %v6232, %v6228
    %v6269 = vpack.c.b16 %v6237, %v6233
    %v6270 = vpack.c.b16 %v6238, %v6234
    %v6271 = vpack.c.b16 %v6239, %v6235
    %v6272 = vpack.c.b16 %v6240, %v6236
    %6305 = vmatprep.subr.bf16.mxu0 %v6242
    %6306 = vmatpush1.bf16.msra.mxu0 %v6241
    %6307 = vmatprep.subr.bf16.mxu0 %v6246
    %6308 = vmatpush1.bf16.msra.mxu0 %v6245
    %6309 = vmatprep.subr.bf16.mxu0 %v6250
    %6310 = vmatpush1.bf16.msra.mxu0 %v6249
    %6311 = vmatprep.subr.bf16.mxu0 %v6254
    %6312 = vmatpush1.bf16.msra.mxu0 %v6253
    %6313 = vmatprep.subr.bf16.mxu0 %v6258
    %6314 = vmatpush1.bf16.msra.mxu0 %v6257
    %6315 = vmatprep.subr.bf16.mxu0 %v6262
    %6316 = vmatpush1.bf16.msra.mxu0 %v6261
    %6317 = vmatprep.subr.bf16.mxu0 %v6266
    %6318 = vmatpush1.bf16.msra.mxu0 %v6265
    %6319 = vmatprep.subr.bf16.mxu0 %v6270
    %6320 = vmatpush1.bf16.msra.mxu0 %v6269
    %6321 = vmatprep.subr.bf16.mxu0 0
    %6322 = vmatpush1.bf16.msra.mxu0 0
    %6323 = vmatprep.subr.bf16.mxu0 0
    %6324 = vmatpush1.bf16.msra.mxu0 0
    %6325 = vmatprep.subr.bf16.mxu0 0
    %6326 = vmatpush1.bf16.msra.mxu0 0
    %6327 = vmatprep.subr.bf16.mxu0 0
    %6328 = vmatpush1.bf16.msra.mxu0 0
    %6329 = vmatprep.subr.bf16.mxu0 0
    %6330 = vmatpush1.bf16.msra.mxu0 0
    %6331 = vmatprep.subr.bf16.mxu0 0
    %6332 = vmatpush1.bf16.msra.mxu0 0
    %6333 = vmatprep.subr.bf16.mxu0 0
    %6334 = vmatpush1.bf16.msra.mxu0 0
    %6335 = vmatprep.subr.bf16.mxu0 0
    %6336 = vmatpush1.bf16.msra.mxu0 0
    %6337 = vmatprep.mubr.bf16.mxu0 0
    %6338 = vmatmul.mubr.bf16.gmra.mrb[0].mxu0 %v6111
    %v6339 = vpop.f32.mrb[0].mxu0
    %v6340 = vadd.f32 %v252, %v6339
    %v6341 = vpop.f32.mrb[0].mxu0
    %v6342 = vadd.f32 %v256, %v6341
    %v6343 = vpop.f32.mrb[0].mxu0
    %v6344 = vadd.f32 %v252, %v6343
    %v6345 = vpop.f32.mrb[0].mxu0
    %v6346 = vadd.f32 %v256, %v6345
    %6347 = vmatprep.mubr.bf16.mxu0 0
    %6348 = vmatmul.mubr.bf16.gmra.mrb[0].mxu0 %v6112
    %v6349 = vpop.f32.mrb[0].mxu0
    %v6350 = vadd.f32 %v252, %v6349
    %v6351 = vpop.f32.mrb[0].mxu0
    %v6352 = vadd.f32 %v256, %v6351
    %v6353 = vpop.f32.mrb[0].mxu0
    %v6354 = vadd.f32 %v252, %v6353
    %v6355 = vpop.f32.mrb[0].mxu0
    %v6356 = vadd.f32 %v256, %v6355
    %6357 = vdwg.mxu0
    %6358 = vmatprep.subr.bf16.mxu0 %v6244
    %6359 = vmatpush1.bf16.msra.mxu0 %v6243
    %6360 = vmatprep.subr.bf16.mxu0 %v6248
    %6361 = vmatpush1.bf16.msra.mxu0 %v6247
    %6362 = vmatprep.subr.bf16.mxu0 %v6252
    %6363 = vmatpush1.bf16.msra.mxu0 %v6251
    %6364 = vmatprep.subr.bf16.mxu0 %v6256
    %6365 = vmatpush1.bf16.msra.mxu0 %v6255
    %6366 = vmatprep.subr.bf16.mxu0 %v6260
    %6367 = vmatpush1.bf16.msra.mxu0 %v6259
    %6368 = vmatprep.subr.bf16.mxu0 %v6264
    %6369 = vmatpush1.bf16.msra.mxu0 %v6263
    %6370 = vmatprep.subr.bf16.mxu0 %v6268
    %6371 = vmatpush1.bf16.msra.mxu0 %v6267
    %6372 = vmatprep.subr.bf16.mxu0 %v6272
    %6373 = vmatpush1.bf16.msra.mxu0 %v6271
    %6374 = vmatprep.subr.bf16.mxu0 0
    %6375 = vmatpush1.bf16.msra.mxu0 0
    %6376 = vmatprep.subr.bf16.mxu0 0
    %6377 = vmatpush1.bf16.msra.mxu0 0
    %6378 = vmatprep.subr.bf16.mxu0 0
    %6379 = vmatpush1.bf16.msra.mxu0 0
    %6380 = vmatprep.subr.bf16.mxu0 0
    %6381 = vmatpush1.bf16.msra.mxu0 0
    %6382 = vmatprep.subr.bf16.mxu0 0
    %6383 = vmatpush1.bf16.msra.mxu0 0
    %6384 = vmatprep.subr.bf16.mxu0 0
    %6385 = vmatpush1.bf16.msra.mxu0 0
    %6386 = vmatprep.subr.bf16.mxu0 0
    %6387 = vmatpush1.bf16.msra.mxu0 0
    %6388 = vmatprep.subr.bf16.mxu0 0
    %6389 = vmatpush1.bf16.msra.mxu0 0
    %6390 = vmatprep.mubr.bf16.mxu0 0
    %6391 = vmatmul.mubr.bf16.gmra.mrb[0].mxu0 %v6111
    %v6392 = vpop.f32.mrb[0].mxu0
    %v6393 = vadd.f32 %v260, %v6392
    %v6394 = vpop.f32.mrb[0].mxu0
    %v6395 = vadd.f32 %v264, %v6394
    %v6396 = vpop.f32.mrb[0].mxu0
    %v6397 = vadd.f32 %v260, %v6396
    %v6398 = vpop.f32.mrb[0].mxu0
    %v6399 = vadd.f32 %v264, %v6398
    %6400 = vmatprep.mubr.bf16.mxu0 0
    %6401 = vmatmul.mubr.bf16.gmra.mrb[0].mxu0 %v6112
    %v6402 = vpop.f32.mrb[0].mxu0
    %v6403 = vadd.f32 %v260, %v6402
    %v6404 = vpop.f32.mrb[0].mxu0
    %v6405 = vadd.f32 %v264, %v6404
    %v6406 = vpop.f32.mrb[0].mxu0
    %v6407 = vadd.f32 %v260, %v6406
    %v6408 = vpop.f32.mrb[0].mxu0
    %v6409 = vadd.f32 %v264, %v6408
    %6410 = vdwg.mxu0
    %v6411 = vmul.f32 %v539, %v5995
    %v6412 = vmul.f32 %v543, %v5996
    %v6413 = vmul.f32 %v547, %v5997
    %v6414 = vmul.f32 %v551, %v5998
    %v6415 = vmul.f32 %v539, %v5999
    %v6416 = vmul.f32 %v543, %v6000
    %v6417 = vmul.f32 %v547, %v6001
    %v6418 = vmul.f32 %v551, %v6002
    %v6419 = vmul.f32 %v539, %v6003
    %v6420 = vmul.f32 %v543, %v6004
    %v6421 = vmul.f32 %v547, %v6005
    %v6422 = vmul.f32 %v551, %v6006
    %v6423 = vmul.f32 %v539, %v6007
    %v6424 = vmul.f32 %v543, %v6008
    %v6425 = vmul.f32 %v547, %v6009
    %v6426 = vmul.f32 %v551, %v6010
    %v6427 = vmul.f32 %v576, %v6340
    %v6428 = vmul.f32 %v580, %v6342
    %v6429 = vmul.f32 %v584, %v6393
    %v6430 = vmul.f32 %v588, %v6395
    %v6431 = vmul.f32 %v576, %v6344
    %v6432 = vmul.f32 %v580, %v6346
    %v6433 = vmul.f32 %v584, %v6397
    %v6434 = vmul.f32 %v588, %v6399
    %v6435 = vmul.f32 %v576, %v6350
    %v6436 = vmul.f32 %v580, %v6352
    %v6437 = vmul.f32 %v584, %v6403
    %v6438 = vmul.f32 %v588, %v6405
    %v6439 = vmul.f32 %v576, %v6354
    %v6440 = vmul.f32 %v580, %v6356
    %v6441 = vmul.f32 %v584, %v6407
    %v6442 = vmul.f32 %v588, %v6409
    %v6443 = vadd.f32 %v6411, %v6427
    %v6444 = vadd.f32 %v6412, %v6428
    %v6445 = vadd.f32 %v6413, %v6429
    %v6446 = vadd.f32 %v6414, %v6430
    %v6447 = vadd.f32 %v6415, %v6431
    %v6448 = vadd.f32 %v6416, %v6432
    %v6449 = vadd.f32 %v6417, %v6433
    %v6450 = vadd.f32 %v6418, %v6434
    %v6451 = vadd.f32 %v6419, %v6435
    %v6452 = vadd.f32 %v6420, %v6436
    %v6453 = vadd.f32 %v6421, %v6437
    %v6454 = vadd.f32 %v6422, %v6438
    %v6455 = vadd.f32 %v6423, %v6439
    %v6456 = vadd.f32 %v6424, %v6440
    %v6457 = vadd.f32 %v6425, %v6441
    %v6458 = vadd.f32 %v6426, %v6442
    %v6459 = vadd.f32 %v6443, %v6444
    %v6460 = vadd.f32 %v6447, %v6448
    %v6461 = vadd.f32 %v6451, %v6452
    %v6462 = vadd.f32 %v6455, %v6456
    %v6463 = vadd.f32 %v6459, %v6445
    %v6464 = vadd.f32 %v6460, %v6449
    %v6465 = vadd.f32 %v6461, %v6453
    %v6466 = vadd.f32 %v6462, %v6457
    %v6467 = vadd.f32 %v6463, %v6446
    %v6468 = vadd.f32 %v6464, %v6450
    %v6469 = vadd.f32 %v6465, %v6454
    %v6470 = vadd.f32 %v6466, %v6458
    %v6471 = vld [vmem:[%s4 + $0xd] sm:$0x1]
    %vm6472 = vcmp.gt.f32.partialorder %v6471, 0.0
    %v6473 = vmul.f32 %v6051, %v642
    %v6474 = vmul.f32 %v6052, %v642
    %v6475 = vmul.f32 %v6053, %v642
    %v6476 = vmul.f32 %v6054, %v642
    %v6477 = vmul.f32 %v650, %v6467
    %v6478 = vmul.f32 %v650, %v6468
    %v6479 = vmul.f32 %v650, %v6469
    %v6480 = vmul.f32 %v650, %v6470
    %v6481 = vadd.f32 %v6473, %v6477
    %v6482 = vadd.f32 %v6474, %v6478
    %v6483 = vadd.f32 %v6475, %v6479
    %v6484 = vadd.f32 %v6476, %v6480
    %v6485 = vmul.f32 %v662, %v6063
    %v6486 = vmul.f32 %v662, %v6064
    %v6487 = vmul.f32 %v662, %v6065
    %v6488 = vmul.f32 %v662, %v6066
    %v6489 = vsub.f32 %v6481, %v6485
    %v6490 = vsub.f32 %v6482, %v6486
    %v6491 = vsub.f32 %v6483, %v6487
    %v6492 = vsub.f32 %v6484, %v6488
    %v6493 = vsel %vm6472, 1, 0
    %v6494 = vlaneseq
    %v6495 = vshrl.u32 %v6494, 7
    %v6496 = vsub.s32 0, %v6495
    %v6497 = vrot.slane %v6493, %v6496
    %vm6498 = vcmp.eq.s32.totalorder %v6497, 1
    %v6499 = vsel %vm6498, %v6489, %v6051
    %v6500 = vsel %vm6498, %v6490, %v6052
    %v6501 = vsel %vm6498, %v6491, %v6053
    %v6502 = vsel %vm6498, %v6492, %v6054
    %vm6503 = vcmp.gt.f32.partialorder %v6499, %v662
    %vm6504 = vcmp.gt.f32.partialorder %v6500, %v662
    %vm6505 = vcmp.gt.f32.partialorder %v6501, %v662
    %vm6506 = vcmp.gt.f32.partialorder %v6502, %v662
    %vm6507 = vmand %vm6503, %vm6498
    %vm6508 = vmand %vm6504, %vm6498
    %vm6509 = vmand %vm6505, %vm6498
    %vm6510 = vmand %vm6506, %vm6498
    %v6511 = vsel %vm6507, 1.0, 0.0
    %v6512 = vsel %vm6508, 1.0, 0.0
    %v6513 = vsel %vm6509, 1.0, 0.0
    %v6514 = vsel %vm6510, 1.0, 0.0
    %v6515 = vpack.c.bf16 %v6500, %v6499
    %v6516 = vpack.c.bf16 %v6502, %v6501
    %v6519 = vunpack.c.l.b16 %v6515
    %v6520 = vunpack.c.h.b16 %v6515
    %v6521 = vunpack.c.l.b16 %v6516
    %v6522 = vunpack.c.h.b16 %v6516
    %v6523 = vpack.c.b16 %v6519, %v6519
    %v6524 = vpack.c.b16 %v6520, %v6520
    %v6525 = vpack.c.b16 %v6521, %v6521
    %v6526 = vpack.c.b16 %v6522, %v6522
    %s6531 = scalar_lea.vmem [#allocation14], 208
    %6532 = vst [vmem:[%s6531] sm:$0xf] %v6523
    %6533 = vst [vmem:[%s6531 + $0x4] sm:$0xf] %v6524
    %6534 = vst [vmem:[%s6531 + $0x8] sm:$0xf] %v6525
    %6535 = vst [vmem:[%s6531 + $0xc] sm:$0xf] %v6526
    %v6536 = vpack.c.bf16 %v6512, %v6511
    %v6537 = vpack.c.bf16 %v6514, %v6513
    %v6540 = vunpack.c.l.b16 %v6536
    %v6541 = vunpack.c.h.b16 %v6536
    %v6542 = vunpack.c.l.b16 %v6537
    %v6543 = vunpack.c.h.b16 %v6537
    %v6544 = vpack.c.b16 %v6540, %v6540
    %v6545 = vpack.c.b16 %v6541, %v6541
    %v6546 = vpack.c.b16 %v6542, %v6542
    %v6547 = vpack.c.b16 %v6543, %v6543
    %s6552 = scalar_lea.vmem [#allocation15], 208
    %6553 = vst [vmem:[%s6552] sm:$0xf] %v6544
    %6554 = vst [vmem:[%s6552 + $0x4] sm:$0xf] %v6545
    %6555 = vst [vmem:[%s6552 + $0x8] sm:$0xf] %v6546
    %6556 = vst [vmem:[%s6552 + $0xc] sm:$0xf] %v6547
    %s6557 = scalar_lea.vmem [#allocation2], 112
    %v6558 = vld [vmem:[%s6557] sm:$0xff]
    %v6559 = vunpack.c.l.s8.bf16 %v6558
    %v6560 = vunpack.c.h.s8.bf16 %v6558
    %v6561 = vld [vmem:[#allocation5] sm:$0xff]
    %v6562 = vld [vmem:[#allocation5 + $0x8] sm:$0xff]
    %v6563 = vld [vmem:[#allocation5 + $0x10] sm:$0xff]
    %v6564 = vld [vmem:[#allocation5 + $0x18] sm:$0xff]
    %v6565 = vld [vmem:[#allocation5 + $0x20] sm:$0xff]
    %v6566 = vld [vmem:[#allocation5 + $0x28] sm:$0xff]
    %v6567 = vld [vmem:[#allocation5 + $0x30] sm:$0xff]
    %v6568 = vld [vmem:[#allocation5 + $0x38] sm:$0xff]
    %v6569 = vld [vmem:[#allocation5 + $0x40] sm:$0xff]
    %v6570 = vld [vmem:[#allocation5 + $0x48] sm:$0xff]
    %v6571 = vld [vmem:[#allocation5 + $0x50] sm:$0xff]
    %v6572 = vld [vmem:[#allocation5 + $0x58] sm:$0xff]
    %v6573 = vld [vmem:[#allocation5 + $0x60] sm:$0xff]
    %v6574 = vld [vmem:[#allocation5 + $0x68] sm:$0xff]
    %v6575 = vld [vmem:[#allocation5 + $0x70] sm:$0xff]
    %v6576 = vld [vmem:[#allocation5 + $0x78] sm:$0xff]
    %v6577 = vld [vmem:[#allocation5 + $0x80] sm:$0xff]
    %v6578 = vld [vmem:[#allocation5 + $0x88] sm:$0xff]
    %v6579 = vld [vmem:[#allocation5 + $0x90] sm:$0xff]
    %v6580 = vld [vmem:[#allocation5 + $0x98] sm:$0xff]
    %v6581 = vld [vmem:[#allocation5 + $0xa0] sm:$0xff]
    %v6582 = vld [vmem:[#allocation5 + $0xa8] sm:$0xff]
    %v6583 = vld [vmem:[#allocation5 + $0xb0] sm:$0xff]
    %v6584 = vld [vmem:[#allocation5 + $0xb8] sm:$0xff]
    %v6585 = vld [vmem:[#allocation5 + $0xc0] sm:$0xff]
    %v6586 = vld [vmem:[#allocation5 + $0xc8] sm:$0xff]
    %v6587 = vld [vmem:[#allocation5 + $0xd0] sm:$0xff]
    %v6588 = vld [vmem:[#allocation5 + $0xd8] sm:$0xff]
    %v6589 = vld [vmem:[#allocation5 + $0xe0] sm:$0xff]
    %v6590 = vld [vmem:[#allocation5 + $0xe8] sm:$0xff]
    %v6591 = vld [vmem:[#allocation5 + $0xf0] sm:$0xff]
    %v6592 = vld [vmem:[#allocation5 + $0xf8] sm:$0xff]
    %v6625 = vunpack.c.l.b16 %v6561
    %v6626 = vunpack.c.h.b16 %v6561
    %v6627 = vunpack.c.l.b16 %v6562
    %v6628 = vunpack.c.h.b16 %v6562
    %v6629 = vunpack.c.l.b16 %v6563
    %v6630 = vunpack.c.h.b16 %v6563
    %v6631 = vunpack.c.l.b16 %v6564
    %v6632 = vunpack.c.h.b16 %v6564
    %v6633 = vunpack.c.l.b16 %v6565
    %v6634 = vunpack.c.h.b16 %v6565
    %v6635 = vunpack.c.l.b16 %v6566
    %v6636 = vunpack.c.h.b16 %v6566
    %v6637 = vunpack.c.l.b16 %v6567
    %v6638 = vunpack.c.h.b16 %v6567
    %v6639 = vunpack.c.l.b16 %v6568
    %v6640 = vunpack.c.h.b16 %v6568
    %v6641 = vunpack.c.l.b16 %v6569
    %v6642 = vunpack.c.h.b16 %v6569
    %v6643 = vunpack.c.l.b16 %v6570
    %v6644 = vunpack.c.h.b16 %v6570
    %v6645 = vunpack.c.l.b16 %v6571
    %v6646 = vunpack.c.h.b16 %v6571
    %v6647 = vunpack.c.l.b16 %v6572
    %v6648 = vunpack.c.h.b16 %v6572
    %v6649 = vunpack.c.l.b16 %v6573
    %v6650 = vunpack.c.h.b16 %v6573
    %v6651 = vunpack.c.l.b16 %v6574
    %v6652 = vunpack.c.h.b16 %v6574
    %v6653 = vunpack.c.l.b16 %v6575
    %v6654 = vunpack.c.h.b16 %v6575
    %v6655 = vunpack.c.l.b16 %v6576
    %v6656 = vunpack.c.h.b16 %v6576
    %v6657 = vunpack.c.l.b16 %v6577
    %v6658 = vunpack.c.h.b16 %v6577
    %v6659 = vunpack.c.l.b16 %v6578
    %v6660 = vunpack.c.h.b16 %v6578
    %v6661 = vunpack.c.l.b16 %v6579
    %v6662 = vunpack.c.h.b16 %v6579
    %v6663 = vunpack.c.l.b16 %v6580
    %v6664 = vunpack.c.h.b16 %v6580
    %v6665 = vunpack.c.l.b16 %v6581
    %v6666 = vunpack.c.h.b16 %v6581
    %v6667 = vunpack.c.l.b16 %v6582
    %v6668 = vunpack.c.h.b16 %v6582
    %v6669 = vunpack.c.l.b16 %v6583
    %v6670 = vunpack.c.h.b16 %v6583
    %v6671 = vunpack.c.l.b16 %v6584
    %v6672 = vunpack.c.h.b16 %v6584
    %v6673 = vunpack.c.l.b16 %v6585
    %v6674 = vunpack.c.h.b16 %v6585
    %v6675 = vunpack.c.l.b16 %v6586
    %v6676 = vunpack.c.h.b16 %v6586
    %v6677 = vunpack.c.l.b16 %v6587
    %v6678 = vunpack.c.h.b16 %v6587
    %v6679 = vunpack.c.l.b16 %v6588
    %v6680 = vunpack.c.h.b16 %v6588
    %v6681 = vunpack.c.l.b16 %v6589
    %v6682 = vunpack.c.h.b16 %v6589
    %v6683 = vunpack.c.l.b16 %v6590
    %v6684 = vunpack.c.h.b16 %v6590
    %v6685 = vunpack.c.l.b16 %v6591
    %v6686 = vunpack.c.h.b16 %v6591
    %v6687 = vunpack.c.l.b16 %v6592
    %v6688 = vunpack.c.h.b16 %v6592
    %v6689 = vpack.c.b16 %v6629, %v6625
    %v6690 = vpack.c.b16 %v6630, %v6626
    %v6691 = vpack.c.b16 %v6631, %v6627
    %v6692 = vpack.c.b16 %v6632, %v6628
    %v6693 = vpack.c.b16 %v6637, %v6633
    %v6694 = vpack.c.b16 %v6638, %v6634
    %v6695 = vpack.c.b16 %v6639, %v6635
    %v6696 = vpack.c.b16 %v6640, %v6636
    %v6697 = vpack.c.b16 %v6645, %v6641
    %v6698 = vpack.c.b16 %v6646, %v6642
    %v6699 = vpack.c.b16 %v6647, %v6643
    %v6700 = vpack.c.b16 %v6648, %v6644
    %v6701 = vpack.c.b16 %v6653, %v6649
    %v6702 = vpack.c.b16 %v6654, %v6650
    %v6703 = vpack.c.b16 %v6655, %v6651
    %v6704 = vpack.c.b16 %v6656, %v6652
    %v6705 = vpack.c.b16 %v6661, %v6657
    %v6706 = vpack.c.b16 %v6662, %v6658
    %v6707 = vpack.c.b16 %v6663, %v6659
    %v6708 = vpack.c.b16 %v6664, %v6660
    %v6709 = vpack.c.b16 %v6669, %v6665
    %v6710 = vpack.c.b16 %v6670, %v6666
    %v6711 = vpack.c.b16 %v6671, %v6667
    %v6712 = vpack.c.b16 %v6672, %v6668
    %v6713 = vpack.c.b16 %v6677, %v6673
    %v6714 = vpack.c.b16 %v6678, %v6674
    %v6715 = vpack.c.b16 %v6679, %v6675
    %v6716 = vpack.c.b16 %v6680, %v6676
    %v6717 = vpack.c.b16 %v6685, %v6681
    %v6718 = vpack.c.b16 %v6686, %v6682
    %v6719 = vpack.c.b16 %v6687, %v6683
    %v6720 = vpack.c.b16 %v6688, %v6684
    %6753 = vmatprep.subr.bf16.mxu0 %v6690
    %6754 = vmatpush1.bf16.msra.mxu0 %v6689
    %6755 = vmatprep.subr.bf16.mxu0 %v6694
    %6756 = vmatpush1.bf16.msra.mxu0 %v6693
    %6757 = vmatprep.subr.bf16.mxu0 %v6698
    %6758 = vmatpush1.bf16.msra.mxu0 %v6697
    %6759 = vmatprep.subr.bf16.mxu0 %v6702
    %6760 = vmatpush1.bf16.msra.mxu0 %v6701
    %6761 = vmatprep.subr.bf16.mxu0 %v6706
    %6762 = vmatpush1.bf16.msra.mxu0 %v6705
    %6763 = vmatprep.subr.bf16.mxu0 %v6710
    %6764 = vmatpush1.bf16.msra.mxu0 %v6709
    %6765 = vmatprep.subr.bf16.mxu0 %v6714
    %6766 = vmatpush1.bf16.msra.mxu0 %v6713
    %6767 = vmatprep.subr.bf16.mxu0 %v6718
    %6768 = vmatpush1.bf16.msra.mxu0 %v6717
    %6769 = vmatprep.subr.bf16.mxu0 0
    %6770 = vmatpush1.bf16.msra.mxu0 0
    %6771 = vmatprep.subr.bf16.mxu0 0
    %6772 = vmatpush1.bf16.msra.mxu0 0
    %6773 = vmatprep.subr.bf16.mxu0 0
    %6774 = vmatpush1.bf16.msra.mxu0 0
    %6775 = vmatprep.subr.bf16.mxu0 0
    %6776 = vmatpush1.bf16.msra.mxu0 0
    %6777 = vmatprep.subr.bf16.mxu0 0
    %6778 = vmatpush1.bf16.msra.mxu0 0
    %6779 = vmatprep.subr.bf16.mxu0 0
    %6780 = vmatpush1.bf16.msra.mxu0 0
    %6781 = vmatprep.subr.bf16.mxu0 0
    %6782 = vmatpush1.bf16.msra.mxu0 0
    %6783 = vmatprep.subr.bf16.mxu0 0
    %6784 = vmatpush1.bf16.msra.mxu0 0
    %6785 = vmatprep.mubr.bf16.mxu0 0
    %6786 = vmatmul.mubr.bf16.gmra.mrb[0].mxu0 %v6559
    %v6787 = vpop.f32.mrb[0].mxu0
    %v6788 = vadd.f32 %v252, %v6787
    %v6789 = vpop.f32.mrb[0].mxu0
    %v6790 = vadd.f32 %v256, %v6789
    %v6791 = vpop.f32.mrb[0].mxu0
    %v6792 = vadd.f32 %v252, %v6791
    %v6793 = vpop.f32.mrb[0].mxu0
    %v6794 = vadd.f32 %v256, %v6793
    %6795 = vmatprep.mubr.bf16.mxu0 0
    %6796 = vmatmul.mubr.bf16.gmra.mrb[0].mxu0 %v6560
    %v6797 = vpop.f32.mrb[0].mxu0
    %v6798 = vadd.f32 %v252, %v6797
    %v6799 = vpop.f32.mrb[0].mxu0
    %v6800 = vadd.f32 %v256, %v6799
    %v6801 = vpop.f32.mrb[0].mxu0
    %v6802 = vadd.f32 %v252, %v6801
    %v6803 = vpop.f32.mrb[0].mxu0
    %v6804 = vadd.f32 %v256, %v6803
    %6805 = vdwg.mxu0
    %6806 = vmatprep.subr.bf16.mxu0 %v6692
    %6807 = vmatpush1.bf16.msra.mxu0 %v6691
    %6808 = vmatprep.subr.bf16.mxu0 %v6696
    %6809 = vmatpush1.bf16.msra.mxu0 %v6695
    %6810 = vmatprep.subr.bf16.mxu0 %v6700
    %6811 = vmatpush1.bf16.msra.mxu0 %v6699
    %6812 = vmatprep.subr.bf16.mxu0 %v6704
    %6813 = vmatpush1.bf16.msra.mxu0 %v6703
    %6814 = vmatprep.subr.bf16.mxu0 %v6708
    %6815 = vmatpush1.bf16.msra.mxu0 %v6707
    %6816 = vmatprep.subr.bf16.mxu0 %v6712
    %6817 = vmatpush1.bf16.msra.mxu0 %v6711
    %6818 = vmatprep.subr.bf16.mxu0 %v6716
    %6819 = vmatpush1.bf16.msra.mxu0 %v6715
    %6820 = vmatprep.subr.bf16.mxu0 %v6720
    %6821 = vmatpush1.bf16.msra.mxu0 %v6719
    %6822 = vmatprep.subr.bf16.mxu0 0
    %6823 = vmatpush1.bf16.msra.mxu0 0
    %6824 = vmatprep.subr.bf16.mxu0 0
    %6825 = vmatpush1.bf16.msra.mxu0 0
    %6826 = vmatprep.subr.bf16.mxu0 0
    %6827 = vmatpush1.bf16.msra.mxu0 0
    %6828 = vmatprep.subr.bf16.mxu0 0
    %6829 = vmatpush1.bf16.msra.mxu0 0
    %6830 = vmatprep.subr.bf16.mxu0 0
    %6831 = vmatpush1.bf16.msra.mxu0 0
    %6832 = vmatprep.subr.bf16.mxu0 0
    %6833 = vmatpush1.bf16.msra.mxu0 0
    %6834 = vmatprep.subr.bf16.mxu0 0
    %6835 = vmatpush1.bf16.msra.mxu0 0
    %6836 = vmatprep.subr.bf16.mxu0 0
    %6837 = vmatpush1.bf16.msra.mxu0 0
    %6838 = vmatprep.mubr.bf16.mxu0 0
    %6839 = vmatmul.mubr.bf16.gmra.mrb[0].mxu0 %v6559
    %v6840 = vpop.f32.mrb[0].mxu0
    %v6841 = vadd.f32 %v260, %v6840
    %v6842 = vpop.f32.mrb[0].mxu0
    %v6843 = vadd.f32 %v264, %v6842
    %v6844 = vpop.f32.mrb[0].mxu0
    %v6845 = vadd.f32 %v260, %v6844
    %v6846 = vpop.f32.mrb[0].mxu0
    %v6847 = vadd.f32 %v264, %v6846
    %6848 = vmatprep.mubr.bf16.mxu0 0
    %6849 = vmatmul.mubr.bf16.gmra.mrb[0].mxu0 %v6560
    %v6850 = vpop.f32.mrb[0].mxu0
    %v6851 = vadd.f32 %v260, %v6850
    %v6852 = vpop.f32.mrb[0].mxu0
    %v6853 = vadd.f32 %v264, %v6852
    %v6854 = vpop.f32.mrb[0].mxu0
    %v6855 = vadd.f32 %v260, %v6854
    %v6856 = vpop.f32.mrb[0].mxu0
    %v6857 = vadd.f32 %v264, %v6856
    %6858 = vdwg.mxu0
    %v6859 = vmul.f32 %v539, %v6443
    %v6860 = vmul.f32 %v543, %v6444
    %v6861 = vmul.f32 %v547, %v6445
    %v6862 = vmul.f32 %v551, %v6446
    %v6863 = vmul.f32 %v539, %v6447
    %v6864 = vmul.f32 %v543, %v6448
    %v6865 = vmul.f32 %v547, %v6449
    %v6866 = vmul.f32 %v551, %v6450
    %v6867 = vmul.f32 %v539, %v6451
    %v6868 = vmul.f32 %v543, %v6452
    %v6869 = vmul.f32 %v547, %v6453
    %v6870 = vmul.f32 %v551, %v6454
    %v6871 = vmul.f32 %v539, %v6455
    %v6872 = vmul.f32 %v543, %v6456
    %v6873 = vmul.f32 %v547, %v6457
    %v6874 = vmul.f32 %v551, %v6458
    %v6875 = vmul.f32 %v576, %v6788
    %v6876 = vmul.f32 %v580, %v6790
    %v6877 = vmul.f32 %v584, %v6841
    %v6878 = vmul.f32 %v588, %v6843
    %v6879 = vmul.f32 %v576, %v6792
    %v6880 = vmul.f32 %v580, %v6794
    %v6881 = vmul.f32 %v584, %v6845
    %v6882 = vmul.f32 %v588, %v6847
    %v6883 = vmul.f32 %v576, %v6798
    %v6884 = vmul.f32 %v580, %v6800
    %v6885 = vmul.f32 %v584, %v6851
    %v6886 = vmul.f32 %v588, %v6853
    %v6887 = vmul.f32 %v576, %v6802
    %v6888 = vmul.f32 %v580, %v6804
    %v6889 = vmul.f32 %v584, %v6855
    %v6890 = vmul.f32 %v588, %v6857
    %v6891 = vadd.f32 %v6859, %v6875
    %v6892 = vadd.f32 %v6860, %v6876
    %v6893 = vadd.f32 %v6861, %v6877
    %v6894 = vadd.f32 %v6862, %v6878
    %v6895 = vadd.f32 %v6863, %v6879
    %v6896 = vadd.f32 %v6864, %v6880
    %v6897 = vadd.f32 %v6865, %v6881
    %v6898 = vadd.f32 %v6866, %v6882
    %v6899 = vadd.f32 %v6867, %v6883
    %v6900 = vadd.f32 %v6868, %v6884
    %v6901 = vadd.f32 %v6869, %v6885
    %v6902 = vadd.f32 %v6870, %v6886
    %v6903 = vadd.f32 %v6871, %v6887
    %v6904 = vadd.f32 %v6872, %v6888
    %v6905 = vadd.f32 %v6873, %v6889
    %v6906 = vadd.f32 %v6874, %v6890
    %v6907 = vadd.f32 %v6891, %v6892
    %v6908 = vadd.f32 %v6895, %v6896
    %v6909 = vadd.f32 %v6899, %v6900
    %v6910 = vadd.f32 %v6903, %v6904
    %v6911 = vadd.f32 %v6907, %v6893
    %v6912 = vadd.f32 %v6908, %v6897
    %v6913 = vadd.f32 %v6909, %v6901
    %v6914 = vadd.f32 %v6910, %v6905
    %v6915 = vadd.f32 %v6911, %v6894
    %v6916 = vadd.f32 %v6912, %v6898
    %v6917 = vadd.f32 %v6913, %v6902
    %v6918 = vadd.f32 %v6914, %v6906
    %v6919 = vld [vmem:[%s4 + $0xe] sm:$0x1]
    %vm6920 = vcmp.gt.f32.partialorder %v6919, 0.0
    %v6921 = vmul.f32 %v6499, %v642
    %v6922 = vmul.f32 %v6500, %v642
    %v6923 = vmul.f32 %v6501, %v642
    %v6924 = vmul.f32 %v6502, %v642
    %v6925 = vmul.f32 %v650, %v6915
    %v6926 = vmul.f32 %v650, %v6916
    %v6927 = vmul.f32 %v650, %v6917
    %v6928 = vmul.f32 %v650, %v6918
    %v6929 = vadd.f32 %v6921, %v6925
    %v6930 = vadd.f32 %v6922, %v6926
    %v6931 = vadd.f32 %v6923, %v6927
    %v6932 = vadd.f32 %v6924, %v6928
    %v6933 = vmul.f32 %v662, %v6511
    %v6934 = vmul.f32 %v662, %v6512
    %v6935 = vmul.f32 %v662, %v6513
    %v6936 = vmul.f32 %v662, %v6514
    %v6937 = vsub.f32 %v6929, %v6933
    %v6938 = vsub.f32 %v6930, %v6934
    %v6939 = vsub.f32 %v6931, %v6935
    %v6940 = vsub.f32 %v6932, %v6936
    %v6941 = vsel %vm6920, 1, 0
    %v6942 = vlaneseq
    %v6943 = vshrl.u32 %v6942, 7
    %v6944 = vsub.s32 0, %v6943
    %v6945 = vrot.slane %v6941, %v6944
    %vm6946 = vcmp.eq.s32.totalorder %v6945, 1
    %v6947 = vsel %vm6946, %v6937, %v6499
    %v6948 = vsel %vm6946, %v6938, %v6500
    %v6949 = vsel %vm6946, %v6939, %v6501
    %v6950 = vsel %vm6946, %v6940, %v6502
    %vm6951 = vcmp.gt.f32.partialorder %v6947, %v662
    %vm6952 = vcmp.gt.f32.partialorder %v6948, %v662
    %vm6953 = vcmp.gt.f32.partialorder %v6949, %v662
    %vm6954 = vcmp.gt.f32.partialorder %v6950, %v662
    %vm6955 = vmand %vm6951, %vm6946
    %vm6956 = vmand %vm6952, %vm6946
    %vm6957 = vmand %vm6953, %vm6946
    %vm6958 = vmand %vm6954, %vm6946
    %v6959 = vsel %vm6955, 1.0, 0.0
    %v6960 = vsel %vm6956, 1.0, 0.0
    %v6961 = vsel %vm6957, 1.0, 0.0
    %v6962 = vsel %vm6958, 1.0, 0.0
    %v6963 = vpack.c.bf16 %v6948, %v6947
    %v6964 = vpack.c.bf16 %v6950, %v6949
    %v6967 = vunpack.c.l.b16 %v6963
    %v6968 = vunpack.c.h.b16 %v6963
    %v6969 = vunpack.c.l.b16 %v6964
    %v6970 = vunpack.c.h.b16 %v6964
    %v6971 = vpack.c.b16 %v6967, %v6967
    %v6972 = vpack.c.b16 %v6968, %v6968
    %v6973 = vpack.c.b16 %v6969, %v6969
    %v6974 = vpack.c.b16 %v6970, %v6970
    %s6979 = scalar_lea.vmem [#allocation14], 224
    %6980 = vst [vmem:[%s6979] sm:$0xf] %v6971
    %6981 = vst [vmem:[%s6979 + $0x4] sm:$0xf] %v6972
    %6982 = vst [vmem:[%s6979 + $0x8] sm:$0xf] %v6973
    %6983 = vst [vmem:[%s6979 + $0xc] sm:$0xf] %v6974
    %v6984 = vpack.c.bf16 %v6960, %v6959
    %v6985 = vpack.c.bf16 %v6962, %v6961
    %v6988 = vunpack.c.l.b16 %v6984
    %v6989 = vunpack.c.h.b16 %v6984
    %v6990 = vunpack.c.l.b16 %v6985
    %v6991 = vunpack.c.h.b16 %v6985
    %v6992 = vpack.c.b16 %v6988, %v6988
    %v6993 = vpack.c.b16 %v6989, %v6989
    %v6994 = vpack.c.b16 %v6990, %v6990
    %v6995 = vpack.c.b16 %v6991, %v6991
    %s7000 = scalar_lea.vmem [#allocation15], 224
    %7001 = vst [vmem:[%s7000] sm:$0xf] %v6992
    %7002 = vst [vmem:[%s7000 + $0x4] sm:$0xf] %v6993
    %7003 = vst [vmem:[%s7000 + $0x8] sm:$0xf] %v6994
    %7004 = vst [vmem:[%s7000 + $0xc] sm:$0xf] %v6995
    %s7005 = scalar_lea.vmem [#allocation2], 120
    %v7006 = vld [vmem:[%s7005] sm:$0xff]
    %v7007 = vunpack.c.l.s8.bf16 %v7006
    %v7008 = vunpack.c.h.s8.bf16 %v7006
    %v7009 = vld [vmem:[#allocation5] sm:$0xff]
    %v7010 = vld [vmem:[#allocation5 + $0x8] sm:$0xff]
    %v7011 = vld [vmem:[#allocation5 + $0x10] sm:$0xff]
    %v7012 = vld [vmem:[#allocation5 + $0x18] sm:$0xff]
    %v7013 = vld [vmem:[#allocation5 + $0x20] sm:$0xff]
    %v7014 = vld [vmem:[#allocation5 + $0x28] sm:$0xff]
    %v7015 = vld [vmem:[#allocation5 + $0x30] sm:$0xff]
    %v7016 = vld [vmem:[#allocation5 + $0x38] sm:$0xff]
    %v7017 = vld [vmem:[#allocation5 + $0x40] sm:$0xff]
    %v7018 = vld [vmem:[#allocation5 + $0x48] sm:$0xff]
    %v7019 = vld [vmem:[#allocation5 + $0x50] sm:$0xff]
    %v7020 = vld [vmem:[#allocation5 + $0x58] sm:$0xff]
    %v7021 = vld [vmem:[#allocation5 + $0x60] sm:$0xff]
    %v7022 = vld [vmem:[#allocation5 + $0x68] sm:$0xff]
    %v7023 = vld [vmem:[#allocation5 + $0x70] sm:$0xff]
    %v7024 = vld [vmem:[#allocation5 + $0x78] sm:$0xff]
    %v7025 = vld [vmem:[#allocation5 + $0x80] sm:$0xff]
    %v7026 = vld [vmem:[#allocation5 + $0x88] sm:$0xff]
    %v7027 = vld [vmem:[#allocation5 + $0x90] sm:$0xff]
    %v7028 = vld [vmem:[#allocation5 + $0x98] sm:$0xff]
    %v7029 = vld [vmem:[#allocation5 + $0xa0] sm:$0xff]
    %v7030 = vld [vmem:[#allocation5 + $0xa8] sm:$0xff]
    %v7031 = vld [vmem:[#allocation5 + $0xb0] sm:$0xff]
    %v7032 = vld [vmem:[#allocation5 + $0xb8] sm:$0xff]
    %v7033 = vld [vmem:[#allocation5 + $0xc0] sm:$0xff]
    %v7034 = vld [vmem:[#allocation5 + $0xc8] sm:$0xff]
    %v7035 = vld [vmem:[#allocation5 + $0xd0] sm:$0xff]
    %v7036 = vld [vmem:[#allocation5 + $0xd8] sm:$0xff]
    %v7037 = vld [vmem:[#allocation5 + $0xe0] sm:$0xff]
    %v7038 = vld [vmem:[#allocation5 + $0xe8] sm:$0xff]
    %v7039 = vld [vmem:[#allocation5 + $0xf0] sm:$0xff]
    %v7040 = vld [vmem:[#allocation5 + $0xf8] sm:$0xff]
    %v7073 = vunpack.c.l.b16 %v7009
    %v7074 = vunpack.c.h.b16 %v7009
    %v7075 = vunpack.c.l.b16 %v7010
    %v7076 = vunpack.c.h.b16 %v7010
    %v7077 = vunpack.c.l.b16 %v7011
    %v7078 = vunpack.c.h.b16 %v7011
    %v7079 = vunpack.c.l.b16 %v7012
    %v7080 = vunpack.c.h.b16 %v7012
    %v7081 = vunpack.c.l.b16 %v7013
    %v7082 = vunpack.c.h.b16 %v7013
    %v7083 = vunpack.c.l.b16 %v7014
    %v7084 = vunpack.c.h.b16 %v7014
    %v7085 = vunpack.c.l.b16 %v7015
    %v7086 = vunpack.c.h.b16 %v7015
    %v7087 = vunpack.c.l.b16 %v7016
    %v7088 = vunpack.c.h.b16 %v7016
    %v7089 = vunpack.c.l.b16 %v7017
    %v7090 = vunpack.c.h.b16 %v7017
    %v7091 = vunpack.c.l.b16 %v7018
    %v7092 = vunpack.c.h.b16 %v7018
    %v7093 = vunpack.c.l.b16 %v7019
    %v7094 = vunpack.c.h.b16 %v7019
    %v7095 = vunpack.c.l.b16 %v7020
    %v7096 = vunpack.c.h.b16 %v7020
    %v7097 = vunpack.c.l.b16 %v7021
    %v7098 = vunpack.c.h.b16 %v7021
    %v7099 = vunpack.c.l.b16 %v7022
    %v7100 = vunpack.c.h.b16 %v7022
    %v7101 = vunpack.c.l.b16 %v7023
    %v7102 = vunpack.c.h.b16 %v7023
    %v7103 = vunpack.c.l.b16 %v7024
    %v7104 = vunpack.c.h.b16 %v7024
    %v7105 = vunpack.c.l.b16 %v7025
    %v7106 = vunpack.c.h.b16 %v7025
    %v7107 = vunpack.c.l.b16 %v7026
    %v7108 = vunpack.c.h.b16 %v7026
    %v7109 = vunpack.c.l.b16 %v7027
    %v7110 = vunpack.c.h.b16 %v7027
    %v7111 = vunpack.c.l.b16 %v7028
    %v7112 = vunpack.c.h.b16 %v7028
    %v7113 = vunpack.c.l.b16 %v7029
    %v7114 = vunpack.c.h.b16 %v7029
    %v7115 = vunpack.c.l.b16 %v7030
    %v7116 = vunpack.c.h.b16 %v7030
    %v7117 = vunpack.c.l.b16 %v7031
    %v7118 = vunpack.c.h.b16 %v7031
    %v7119 = vunpack.c.l.b16 %v7032
    %v7120 = vunpack.c.h.b16 %v7032
    %v7121 = vunpack.c.l.b16 %v7033
    %v7122 = vunpack.c.h.b16 %v7033
    %v7123 = vunpack.c.l.b16 %v7034
    %v7124 = vunpack.c.h.b16 %v7034
    %v7125 = vunpack.c.l.b16 %v7035
    %v7126 = vunpack.c.h.b16 %v7035
    %v7127 = vunpack.c.l.b16 %v7036
    %v7128 = vunpack.c.h.b16 %v7036
    %v7129 = vunpack.c.l.b16 %v7037
    %v7130 = vunpack.c.h.b16 %v7037
    %v7131 = vunpack.c.l.b16 %v7038
    %v7132 = vunpack.c.h.b16 %v7038
    %v7133 = vunpack.c.l.b16 %v7039
    %v7134 = vunpack.c.h.b16 %v7039
    %v7135 = vunpack.c.l.b16 %v7040
    %v7136 = vunpack.c.h.b16 %v7040
    %v7137 = vpack.c.b16 %v7077, %v7073
    %v7138 = vpack.c.b16 %v7078, %v7074
    %v7139 = vpack.c.b16 %v7079, %v7075
    %v7140 = vpack.c.b16 %v7080, %v7076
    %v7141 = vpack.c.b16 %v7085, %v7081
    %v7142 = vpack.c.b16 %v7086, %v7082
    %v7143 = vpack.c.b16 %v7087, %v7083
    %v7144 = vpack.c.b16 %v7088, %v7084
    %v7145 = vpack.c.b16 %v7093, %v7089
    %v7146 = vpack.c.b16 %v7094, %v7090
    %v7147 = vpack.c.b16 %v7095, %v7091
    %v7148 = vpack.c.b16 %v7096, %v7092
    %v7149 = vpack.c.b16 %v7101, %v7097
    %v7150 = vpack.c.b16 %v7102, %v7098
    %v7151 = vpack.c.b16 %v7103, %v7099
    %v7152 = vpack.c.b16 %v7104, %v7100
    %v7153 = vpack.c.b16 %v7109, %v7105
    %v7154 = vpack.c.b16 %v7110, %v7106
    %v7155 = vpack.c.b16 %v7111, %v7107
    %v7156 = vpack.c.b16 %v7112, %v7108
    %v7157 = vpack.c.b16 %v7117, %v7113
    %v7158 = vpack.c.b16 %v7118, %v7114
    %v7159 = vpack.c.b16 %v7119, %v7115
    %v7160 = vpack.c.b16 %v7120, %v7116
    %v7161 = vpack.c.b16 %v7125, %v7121
    %v7162 = vpack.c.b16 %v7126, %v7122
    %v7163 = vpack.c.b16 %v7127, %v7123
    %v7164 = vpack.c.b16 %v7128, %v7124
    %v7165 = vpack.c.b16 %v7133, %v7129
    %v7166 = vpack.c.b16 %v7134, %v7130
    %v7167 = vpack.c.b16 %v7135, %v7131
    %v7168 = vpack.c.b16 %v7136, %v7132
    %7201 = vmatprep.subr.bf16.mxu0 %v7138
    %7202 = vmatpush1.bf16.msra.mxu0 %v7137
    %7203 = vmatprep.subr.bf16.mxu0 %v7142
    %7204 = vmatpush1.bf16.msra.mxu0 %v7141
    %7205 = vmatprep.subr.bf16.mxu0 %v7146
    %7206 = vmatpush1.bf16.msra.mxu0 %v7145
    %7207 = vmatprep.subr.bf16.mxu0 %v7150
    %7208 = vmatpush1.bf16.msra.mxu0 %v7149
    %7209 = vmatprep.subr.bf16.mxu0 %v7154
    %7210 = vmatpush1.bf16.msra.mxu0 %v7153
    %7211 = vmatprep.subr.bf16.mxu0 %v7158
    %7212 = vmatpush1.bf16.msra.mxu0 %v7157
    %7213 = vmatprep.subr.bf16.mxu0 %v7162
    %7214 = vmatpush1.bf16.msra.mxu0 %v7161
    %7215 = vmatprep.subr.bf16.mxu0 %v7166
    %7216 = vmatpush1.bf16.msra.mxu0 %v7165
    %7217 = vmatprep.subr.bf16.mxu0 0
    %7218 = vmatpush1.bf16.msra.mxu0 0
    %7219 = vmatprep.subr.bf16.mxu0 0
    %7220 = vmatpush1.bf16.msra.mxu0 0
    %7221 = vmatprep.subr.bf16.mxu0 0
    %7222 = vmatpush1.bf16.msra.mxu0 0
    %7223 = vmatprep.subr.bf16.mxu0 0
    %7224 = vmatpush1.bf16.msra.mxu0 0
    %7225 = vmatprep.subr.bf16.mxu0 0
    %7226 = vmatpush1.bf16.msra.mxu0 0
    %7227 = vmatprep.subr.bf16.mxu0 0
    %7228 = vmatpush1.bf16.msra.mxu0 0
    %7229 = vmatprep.subr.bf16.mxu0 0
    %7230 = vmatpush1.bf16.msra.mxu0 0
    %7231 = vmatprep.subr.bf16.mxu0 0
    %7232 = vmatpush1.bf16.msra.mxu0 0
    %7233 = vmatprep.mubr.bf16.mxu0 0
    %7234 = vmatmul.mubr.bf16.gmra.mrb[0].mxu0 %v7007
    %v7235 = vpop.f32.mrb[0].mxu0
    %v7236 = vadd.f32 %v252, %v7235
    %v7237 = vpop.f32.mrb[0].mxu0
    %v7238 = vadd.f32 %v256, %v7237
    %v7239 = vpop.f32.mrb[0].mxu0
    %v7240 = vadd.f32 %v252, %v7239
    %v7241 = vpop.f32.mrb[0].mxu0
    %v7242 = vadd.f32 %v256, %v7241
    %7243 = vmatprep.mubr.bf16.mxu0 0
    %7244 = vmatmul.mubr.bf16.gmra.mrb[0].mxu0 %v7008
    %v7245 = vpop.f32.mrb[0].mxu0
    %v7246 = vadd.f32 %v252, %v7245
    %v7247 = vpop.f32.mrb[0].mxu0
    %v7248 = vadd.f32 %v256, %v7247
    %v7249 = vpop.f32.mrb[0].mxu0
    %v7250 = vadd.f32 %v252, %v7249
    %v7251 = vpop.f32.mrb[0].mxu0
    %v7252 = vadd.f32 %v256, %v7251
    %7253 = vdwg.mxu0
    %7254 = vmatprep.subr.bf16.mxu0 %v7140
    %7255 = vmatpush1.bf16.msra.mxu0 %v7139
    %7256 = vmatprep.subr.bf16.mxu0 %v7144
    %7257 = vmatpush1.bf16.msra.mxu0 %v7143
    %7258 = vmatprep.subr.bf16.mxu0 %v7148
    %7259 = vmatpush1.bf16.msra.mxu0 %v7147
    %7260 = vmatprep.subr.bf16.mxu0 %v7152
    %7261 = vmatpush1.bf16.msra.mxu0 %v7151
    %7262 = vmatprep.subr.bf16.mxu0 %v7156
    %7263 = vmatpush1.bf16.msra.mxu0 %v7155
    %7264 = vmatprep.subr.bf16.mxu0 %v7160
    %7265 = vmatpush1.bf16.msra.mxu0 %v7159
    %7266 = vmatprep.subr.bf16.mxu0 %v7164
    %7267 = vmatpush1.bf16.msra.mxu0 %v7163
    %7268 = vmatprep.subr.bf16.mxu0 %v7168
    %7269 = vmatpush1.bf16.msra.mxu0 %v7167
    %7270 = vmatprep.subr.bf16.mxu0 0
    %7271 = vmatpush1.bf16.msra.mxu0 0
    %7272 = vmatprep.subr.bf16.mxu0 0
    %7273 = vmatpush1.bf16.msra.mxu0 0
    %7274 = vmatprep.subr.bf16.mxu0 0
    %7275 = vmatpush1.bf16.msra.mxu0 0
    %7276 = vmatprep.subr.bf16.mxu0 0
    %7277 = vmatpush1.bf16.msra.mxu0 0
    %7278 = vmatprep.subr.bf16.mxu0 0
    %7279 = vmatpush1.bf16.msra.mxu0 0
    %7280 = vmatprep.subr.bf16.mxu0 0
    %7281 = vmatpush1.bf16.msra.mxu0 0
    %7282 = vmatprep.subr.bf16.mxu0 0
    %7283 = vmatpush1.bf16.msra.mxu0 0
    %7284 = vmatprep.subr.bf16.mxu0 0
    %7285 = vmatpush1.bf16.msra.mxu0 0
    %7286 = vmatprep.mubr.bf16.mxu0 0
    %7287 = vmatmul.mubr.bf16.gmra.mrb[0].mxu0 %v7007
    %v7288 = vpop.f32.mrb[0].mxu0
    %v7289 = vadd.f32 %v260, %v7288
    %v7290 = vpop.f32.mrb[0].mxu0
    %v7291 = vadd.f32 %v264, %v7290
    %v7292 = vpop.f32.mrb[0].mxu0
    %v7293 = vadd.f32 %v260, %v7292
    %v7294 = vpop.f32.mrb[0].mxu0
    %v7295 = vadd.f32 %v264, %v7294
    %7296 = vmatprep.mubr.bf16.mxu0 0
    %7297 = vmatmul.mubr.bf16.gmra.mrb[0].mxu0 %v7008
    %v7298 = vpop.f32.mrb[0].mxu0
    %v7299 = vadd.f32 %v260, %v7298
    %v7300 = vpop.f32.mrb[0].mxu0
    %v7301 = vadd.f32 %v264, %v7300
    %v7302 = vpop.f32.mrb[0].mxu0
    %v7303 = vadd.f32 %v260, %v7302
    %v7304 = vpop.f32.mrb[0].mxu0
    %v7305 = vadd.f32 %v264, %v7304
    %7306 = vdwg.mxu0
    %v7307 = vmul.f32 %v539, %v6891
    %v7308 = vmul.f32 %v543, %v6892
    %v7309 = vmul.f32 %v547, %v6893
    %v7310 = vmul.f32 %v551, %v6894
    %v7311 = vmul.f32 %v539, %v6895
    %v7312 = vmul.f32 %v543, %v6896
    %v7313 = vmul.f32 %v547, %v6897
    %v7314 = vmul.f32 %v551, %v6898
    %v7315 = vmul.f32 %v539, %v6899
    %v7316 = vmul.f32 %v543, %v6900
    %v7317 = vmul.f32 %v547, %v6901
    %v7318 = vmul.f32 %v551, %v6902
    %v7319 = vmul.f32 %v539, %v6903
    %v7320 = vmul.f32 %v543, %v6904
    %v7321 = vmul.f32 %v547, %v6905
    %v7322 = vmul.f32 %v551, %v6906
    %v7323 = vmul.f32 %v576, %v7236
    %v7324 = vmul.f32 %v580, %v7238
    %v7325 = vmul.f32 %v584, %v7289
    %v7326 = vmul.f32 %v588, %v7291
    %v7327 = vmul.f32 %v576, %v7240
    %v7328 = vmul.f32 %v580, %v7242
    %v7329 = vmul.f32 %v584, %v7293
    %v7330 = vmul.f32 %v588, %v7295
    %v7331 = vmul.f32 %v576, %v7246
    %v7332 = vmul.f32 %v580, %v7248
    %v7333 = vmul.f32 %v584, %v7299
    %v7334 = vmul.f32 %v588, %v7301
    %v7335 = vmul.f32 %v576, %v7250
    %v7336 = vmul.f32 %v580, %v7252
    %v7337 = vmul.f32 %v584, %v7303
    %v7338 = vmul.f32 %v588, %v7305
    %v7339 = vadd.f32 %v7307, %v7323
    %v7340 = vadd.f32 %v7308, %v7324
    %v7341 = vadd.f32 %v7309, %v7325
    %v7342 = vadd.f32 %v7310, %v7326
    %v7343 = vadd.f32 %v7311, %v7327
    %v7344 = vadd.f32 %v7312, %v7328
    %v7345 = vadd.f32 %v7313, %v7329
    %v7346 = vadd.f32 %v7314, %v7330
    %v7347 = vadd.f32 %v7315, %v7331
    %v7348 = vadd.f32 %v7316, %v7332
    %v7349 = vadd.f32 %v7317, %v7333
    %v7350 = vadd.f32 %v7318, %v7334
    %v7351 = vadd.f32 %v7319, %v7335
    %v7352 = vadd.f32 %v7320, %v7336
    %v7353 = vadd.f32 %v7321, %v7337
    %v7354 = vadd.f32 %v7322, %v7338
    %v7355 = vadd.f32 %v7339, %v7340
    %v7356 = vadd.f32 %v7343, %v7344
    %v7357 = vadd.f32 %v7347, %v7348
    %v7358 = vadd.f32 %v7351, %v7352
    %v7359 = vadd.f32 %v7355, %v7341
    %v7360 = vadd.f32 %v7356, %v7345
    %v7361 = vadd.f32 %v7357, %v7349
    %v7362 = vadd.f32 %v7358, %v7353
    %v7363 = vadd.f32 %v7359, %v7342
    %v7364 = vadd.f32 %v7360, %v7346
    %v7365 = vadd.f32 %v7361, %v7350
    %v7366 = vadd.f32 %v7362, %v7354
    %v7367 = vld [vmem:[%s4 + $0xf] sm:$0x1]
    %vm7368 = vcmp.gt.f32.partialorder %v7367, 0.0
    %v7369 = vmul.f32 %v6947, %v642
    %v7370 = vmul.f32 %v6948, %v642
    %v7371 = vmul.f32 %v6949, %v642
    %v7372 = vmul.f32 %v6950, %v642
    %v7373 = vmul.f32 %v650, %v7363
    %v7374 = vmul.f32 %v650, %v7364
    %v7375 = vmul.f32 %v650, %v7365
    %v7376 = vmul.f32 %v650, %v7366
    %v7377 = vadd.f32 %v7369, %v7373
    %v7378 = vadd.f32 %v7370, %v7374
    %v7379 = vadd.f32 %v7371, %v7375
    %v7380 = vadd.f32 %v7372, %v7376
    %v7381 = vmul.f32 %v662, %v6959
    %v7382 = vmul.f32 %v662, %v6960
    %v7383 = vmul.f32 %v662, %v6961
    %v7384 = vmul.f32 %v662, %v6962
    %v7385 = vsub.f32 %v7377, %v7381
    %v7386 = vsub.f32 %v7378, %v7382
    %v7387 = vsub.f32 %v7379, %v7383
    %v7388 = vsub.f32 %v7380, %v7384
    %v7389 = vsel %vm7368, 1, 0
    %v7390 = vlaneseq
    %v7391 = vshrl.u32 %v7390, 7
    %v7392 = vsub.s32 0, %v7391
    %v7393 = vrot.slane %v7389, %v7392
    %vm7394 = vcmp.eq.s32.totalorder %v7393, 1
    %v7395 = vsel %vm7394, %v7385, %v6947
    %v7396 = vsel %vm7394, %v7386, %v6948
    %v7397 = vsel %vm7394, %v7387, %v6949
    %v7398 = vsel %vm7394, %v7388, %v6950
    %vm7399 = vcmp.gt.f32.partialorder %v7395, %v662
    %vm7400 = vcmp.gt.f32.partialorder %v7396, %v662
    %vm7401 = vcmp.gt.f32.partialorder %v7397, %v662
    %vm7402 = vcmp.gt.f32.partialorder %v7398, %v662
    %vm7403 = vmand %vm7399, %vm7394
    %vm7404 = vmand %vm7400, %vm7394
    %vm7405 = vmand %vm7401, %vm7394
    %vm7406 = vmand %vm7402, %vm7394
    %v7407 = vsel %vm7403, 1.0, 0.0
    %v7408 = vsel %vm7404, 1.0, 0.0
    %v7409 = vsel %vm7405, 1.0, 0.0
    %v7410 = vsel %vm7406, 1.0, 0.0
    %v7411 = vpack.c.bf16 %v7396, %v7395
    %v7412 = vpack.c.bf16 %v7398, %v7397
    %v7415 = vunpack.c.l.b16 %v7411
    %v7416 = vunpack.c.h.b16 %v7411
    %v7417 = vunpack.c.l.b16 %v7412
    %v7418 = vunpack.c.h.b16 %v7412
    %v7419 = vpack.c.b16 %v7415, %v7415
    %v7420 = vpack.c.b16 %v7416, %v7416
    %v7421 = vpack.c.b16 %v7417, %v7417
    %v7422 = vpack.c.b16 %v7418, %v7418
    %s7427 = scalar_lea.vmem [#allocation14], 240
    %7428 = vst [vmem:[%s7427] sm:$0xf] %v7419
    %7429 = vst [vmem:[%s7427 + $0x4] sm:$0xf] %v7420
    %7430 = vst [vmem:[%s7427 + $0x8] sm:$0xf] %v7421
    %7431 = vst [vmem:[%s7427 + $0xc] sm:$0xf] %v7422
    %v7432 = vpack.c.bf16 %v7408, %v7407
    %v7433 = vpack.c.bf16 %v7410, %v7409
    %v7436 = vunpack.c.l.b16 %v7432
    %v7437 = vunpack.c.h.b16 %v7432
    %v7438 = vunpack.c.l.b16 %v7433
    %v7439 = vunpack.c.h.b16 %v7433
    %v7440 = vpack.c.b16 %v7436, %v7436
    %v7441 = vpack.c.b16 %v7437, %v7437
    %v7442 = vpack.c.b16 %v7438, %v7438
    %v7443 = vpack.c.b16 %v7439, %v7439
    %s7448 = scalar_lea.vmem [#allocation15], 240
    %7449 = vst [vmem:[%s7448] sm:$0xf] %v7440
    %7450 = vst [vmem:[%s7448 + $0x4] sm:$0xf] %v7441
    %7451 = vst [vmem:[%s7448 + $0x8] sm:$0xf] %v7442
    %7452 = vst [vmem:[%s7448 + $0xc] sm:$0xf] %v7443
    %7453 = vst [vmem:[#allocation17] sm:$0xff] %v7339
    %7454 = vst [vmem:[#allocation17 + $0x8] sm:$0xff] %v7340
    %7455 = vst [vmem:[#allocation17 + $0x10] sm:$0xff] %v7341
    %7456 = vst [vmem:[#allocation17 + $0x18] sm:$0xff] %v7342
    %7457 = vst [vmem:[#allocation17 + $0x20] sm:$0xff] %v7343
    %7458 = vst [vmem:[#allocation17 + $0x28] sm:$0xff] %v7344
    %7459 = vst [vmem:[#allocation17 + $0x30] sm:$0xff] %v7345
    %7460 = vst [vmem:[#allocation17 + $0x38] sm:$0xff] %v7346
    %7461 = vst [vmem:[#allocation17 + $0x40] sm:$0xff] %v7347
    %7462 = vst [vmem:[#allocation17 + $0x48] sm:$0xff] %v7348
    %7463 = vst [vmem:[#allocation17 + $0x50] sm:$0xff] %v7349
    %7464 = vst [vmem:[#allocation17 + $0x58] sm:$0xff] %v7350
    %7465 = vst [vmem:[#allocation17 + $0x60] sm:$0xff] %v7351
    %7466 = vst [vmem:[#allocation17 + $0x68] sm:$0xff] %v7352
    %7467 = vst [vmem:[#allocation17 + $0x70] sm:$0xff] %v7353
    %7468 = vst [vmem:[#allocation17 + $0x78] sm:$0xff] %v7354
    %7469 = vst [vmem:[#allocation18] sm:$0xff] %v7395
    %7470 = vst [vmem:[#allocation18 + $0x8] sm:$0xff] %v7396
    %7471 = vst [vmem:[#allocation18 + $0x10] sm:$0xff] %v7397
    %7472 = vst [vmem:[#allocation18 + $0x18] sm:$0xff] %v7398
    %7473 = vst [vmem:[#allocation20] sm:$0xff] %v7407
    %7474 = vst [vmem:[#allocation20 + $0x8] sm:$0xff] %v7408
    %7475 = vst [vmem:[#allocation20 + $0x10] sm:$0xff] %v7409
    %7476 = vst [vmem:[#allocation20 + $0x18] sm:$0xff] %v7410
    // Predicated region
    $region66: #{run.1} parent=1 // pred_check
      _
    $region67: #{run.1} parent=1 // pred_check_branch
      %7478 = sbr.rel (0) target = $region69
    $region68: #{run.1} parent=1 // pred_region
      %s7480 = ssub.s32 4096, 4096
      %7481 = vsyncadd [#allocation4], %s7480
      %s7482 = sshll.u32 [#allocation14], 4
      %s7483 = int_to_ptr.vmem [resolvable:$true] %s7482
      %7488 = dma.vmem_to_hbm [thread:$0]  %s7483, 4096, %s8, [#allocation4], 64, 64, 4
    $region69: #{run.1} parent=1 // pred_fallthru
      _
    // Predicated region
    $region70: #{run.1} parent=1 // pred_check
      _
    $region71: #{run.1} parent=1 // pred_check_branch
      %7490 = sbr.rel (0) target = $region73
    $region72: #{run.1} parent=1 // pred_region
      %s7492 = ssub.s32 4096, 4096
      %7493 = vsyncadd [#allocation16], %s7492
      %s7494 = sshll.u32 [#allocation15], 4
      %s7495 = int_to_ptr.vmem [resolvable:$true] %s7494
      %7500 = dma.vmem_to_hbm [thread:$0]  %s7495, 4096, %s9, [#allocation16], 64, 64, 4
    $region73: #{run.1} parent=1 // pred_fallthru
      _
    // Predicated region
    $region74: #{run.1} parent=1 // pred_check
      _
    $region75: #{run.1} parent=1 // pred_check_branch
      %7502 = sbr.rel (0) target = $region77
    $region76: #{run.1} parent=1 // pred_region
      %s7504 = ssub.s32 2048, 2048
      %7505 = vsyncadd [#allocation16], %s7504
      %s7506 = sshll.u32 [#allocation17], 4
      %s7507 = int_to_ptr.vmem [resolvable:$true] %s7506
      %7512 = dma.vmem_to_hbm [thread:$0]  %s7507, 2048, %s10, [#allocation16], 512, 512, 32
    $region77: #{run.1} parent=1 // pred_fallthru
      _
    // Predicated region
    $region78: #{run.1} parent=1 // pred_check
      _
    $region79: #{run.1} parent=1 // pred_check_branch
      %7514 = sbr.rel (0) target = $region81
    $region80: #{run.1} parent=1 // pred_region
      %s7516 = ssub.s32 512, 512
      %7517 = vsyncadd [#allocation19], %s7516
      %s7518 = sshll.u32 [#allocation18], 4
      %s7519 = int_to_ptr.vmem [resolvable:$true] %s7518
      %7524 = dma.vmem_to_hbm [thread:$0]  %s7519, 512, %s11, [#allocation19], 128, 128, 8
    $region81: #{run.1} parent=1 // pred_fallthru
      _
    // Predicated region
    $region82: #{run.1} parent=1 // pred_check
      _
    $region83: #{run.1} parent=1 // pred_check_branch
      %7526 = sbr.rel (0) target = $region85
    $region84: #{run.1} parent=1 // pred_region
      %s7528 = ssub.s32 512, 512
      %7529 = vsyncadd [#allocation19], %s7528
      %s7530 = sshll.u32 [#allocation20], 4
      %s7531 = int_to_ptr.vmem [resolvable:$true] %s7530
      %7536 = dma.vmem_to_hbm [thread:$0]  %s7531, 512, %s12, [#allocation19], 128, 128, 8
    $region85: #{run.1} parent=1 // pred_fallthru
      _
    // Predicated region
    $region86: #{run.1} parent=1 // pred_check
      _
    $region87: #{run.1} parent=1 // pred_check_branch
      %7538 = sbr.rel (0) target = $region89
    $region88: #{run.1} parent=1 // pred_region
      %7539 = dma.done [#allocation4], 4096
    $region89: #{run.1} parent=1 // pred_fallthru
      _
    // Predicated region
    $region90: #{run.1} parent=1 // pred_check
      _
    $region91: #{run.1} parent=1 // pred_check_branch
      %7541 = sbr.rel (0) target = $region93
    $region92: #{run.1} parent=1 // pred_region
      %7542 = dma.done [#allocation16], 4096
    $region93: #{run.1} parent=1 // pred_fallthru
      _
    // Predicated region
    $region94: #{run.1} parent=1 // pred_check
      _
    $region95: #{run.1} parent=1 // pred_check_branch
      %7544 = sbr.rel (0) target = $region97
    $region96: #{run.1} parent=1 // pred_region
      %7545 = dma.done [#allocation16], 2048
    $region97: #{run.1} parent=1 // pred_fallthru
      _
    // Predicated region
    $region98: #{run.1} parent=1 // pred_check
      _
    $region99: #{run.1} parent=1 // pred_check_branch
      %7547 = sbr.rel (0) target = $region101
    $region100: #{run.1} parent=1 // pred_region
      %7548 = dma.done [#allocation19], 512
    $region101: #{run.1} parent=1 // pred_fallthru
      _
    // Predicated region
    $region102: #{run.1} parent=1 // pred_check
      _
    $region103: #{run.1} parent=1 // pred_check_branch
      %7550 = sbr.rel (0) target = $region105
    $region104: #{run.1} parent=1 // pred_region
      %7551 = dma.done [#allocation19], 512
    $region105: #{run.1} parent=1 // pred_fallthru
      _
    %7552 = vsyncpa [#allocation3], 1
    %7553 = vsyncpa [#allocation6], 1
    %7554 = vsyncpa [#allocation9], 1
    %7555 = vsyncpa [#allocation12], 1
    %7556 = vsyncpa [#allocation4], 1
    %7557 = vsyncpa [#allocation16], 1
    %7558 = vsyncpa [#allocation19], 1

</llo_original>
